<compile_context>
chip_gen: v7x
topology: tpu7x:2x2x1
jax: 0.10.0
libtpu: 0.0.40
codegen_flags: <defaults>
</compile_context>

<pallas_src>
import jax
import jax.numpy as jnp
import numpy as np
from jax.experimental import pallas as pl
from jax.experimental.pallas import tpu as pltpu


# ----------------------------- fused LSTM + head kernel -----------------------------
def _make_fused_kernel(num_layers, T, B, H, O_pad):
    """Builds a kernel with signature (x, [wih, whh, b] * L, wd, bd, out)."""

    def kernel(*refs):
        x_ref = refs[0]
        wd_ref = refs[1 + 3 * num_layers]     # (H, O_pad)
        bd_ref = refs[2 + 3 * num_layers]     # (1, O_pad)
        out_ref = refs[3 + 3 * num_layers]    # (B, T, O_pad)

        # (B, T, D) -> time-major (T*B, D), once, entirely in VMEM.
        x = x_ref[...].astype(jnp.float32)
        inp = jnp.transpose(x, (1, 0, 2)).reshape(T * B, x.shape[-1])

        for layer in range(num_layers):
            wih = refs[1 + 3 * layer][...]    # (4, D_in, H)  gate order [i, f, g, o]
            whh = refs[2 + 3 * layer][...]    # (4, H, H)
            b = refs[3 + 3 * layer][...]      # (4, 1, H)

            # Hoisted input projection: one (T*B, D_in) x (D_in, H) matmul per gate,
            # outside the sequential recurrence.
            xp = [
                (jnp.dot(inp, wih[g], preferred_element_type=jnp.float32)
                 + b[g]).reshape(T, B, H)
                for g in range(4)
            ]

            h = jnp.zeros((B, H), jnp.float32)
            c = jnp.zeros((B, H), jnp.float32)
            hs = []
            # T is small & static -> fully unrolled recurrence, static indexing only.
            # TODO(synk): for long sequences switch to lax.fori_loop + VMEM scratch.
            for t in range(T):
                i_t = jax.nn.sigmoid(
                    xp[0][t] + jnp.dot(h, whh[0], preferred_element_type=jnp.float32))
                f_t = jax.nn.sigmoid(
                    xp[1][t] + jnp.dot(h, whh[1], preferred_element_type=jnp.float32))
                g_t = jnp.tanh(
                    xp[2][t] + jnp.dot(h, whh[2], preferred_element_type=jnp.float32))
                o_t = jax.nn.sigmoid(
                    xp[3][t] + jnp.dot(h, whh[3], preferred_element_type=jnp.float32))
                c = f_t * c + i_t * g_t
                h = o_t * jnp.tanh(c)
                hs.append(h)

            # Hidden sequence of this layer, time-major (T*B, H); stays in VMEM and
            # directly feeds the next layer / the dense head (no HBM round trip).
            inp = jnp.concatenate(hs, axis=0)
            # TODO(synk): nn.LSTM inter-layer dropout is train-mode only; inference omits it.

        # Dense head fused as the kernel epilogue, lane-dense (O padded to 128).
        out = jnp.dot(inp, wd_ref[...], preferred_element_type=jnp.float32) + bd_ref[...]
        out_ref[...] = jnp.transpose(out.reshape(T, B, O_pad), (1, 0, 2)).astype(out_ref.dtype)

    return kernel


# --------------------------------- forward wrapper ----------------------------------
def ee_lstm_forward(params, x_btd):
    """x_btd: (B, T, D) batch_first input -> (B, T, output_dim)."""
    B, T, _ = x_btd.shape
    num_layers = len(params["lstm"])
    H = params["lstm"][0][1].shape[1]                 # w_hh is (4H, H)
    O = params["dense_w"].shape[0]
    O_pad = ((O + 127) // 128) * 128                  # lane-dense output width

    inputs = [x_btd.astype(jnp.float32)]
    for (w_ih, w_hh, b_ih, b_hh) in params["lstm"]:
        d_in = w_ih.shape[1]
        # Split per gate (PyTorch order [i, f, g, o]) and pre-transpose for x @ W.
        inputs.append(jnp.transpose(w_ih.astype(jnp.float32).reshape(4, H, d_in), (0, 2, 1)))
        inputs.append(jnp.transpose(w_hh.astype(jnp.float32).reshape(4, H, H), (0, 2, 1)))
        inputs.append((b_ih + b_hh).astype(jnp.float32).reshape(4, 1, H))

    wd = jnp.zeros((H, O_pad), jnp.float32).at[:, :O].set(params["dense_w"].T.astype(jnp.float32))
    bd = jnp.zeros((1, O_pad), jnp.float32).at[:, :O].set(
        params["dense_b"].astype(jnp.float32).reshape(1, O))
    inputs += [wd, bd]

    kernel = _make_fused_kernel(num_layers, T, B, H, O_pad)
    out_pad = pl.pallas_call(
        kernel,
        out_shape=jax.ShapeDtypeStruct((B, T, O_pad), jnp.float32),
        in_specs=[pl.BlockSpec(memory_space=pltpu.MemorySpace.VMEM)] * len(inputs),
        out_specs=pl.BlockSpec(memory_space=pltpu.MemorySpace.VMEM),
    )(*inputs)
    return out_pad[..., :O]


# ---------------------------------- parameters ---------------------------------------
def init_params(key, input_dim, hidden_dim, num_layers, output_dim):
    k = 1.0 / np.sqrt(hidden_dim)
    keys = jax.random.split(key, num_layers * 4 + 2)
    idx = 0
    lstm = []
    for layer in range(num_layers):
        d_in = input_dim if layer == 0 else hidden_dim
        w_ih = jax.random.uniform(keys[idx], (4 * hidden_dim, d_in), minval=-k, maxval=k); idx += 1
        w_hh = jax.random.uniform(keys[idx], (4 * hidden_dim, hidden_dim), minval=-k, maxval=k); idx += 1
        b_ih = jax.random.uniform(keys[idx], (4 * hidden_dim,), minval=-k, maxval=k); idx += 1
        b_hh = jax.random.uniform(keys[idx], (4 * hidden_dim,), minval=-k, maxval=k); idx += 1
        lstm.append((w_ih, w_hh, b_ih, b_hh))
    dense_w = jax.random.uniform(keys[idx], (output_dim, hidden_dim), minval=-k, maxval=k); idx += 1
    dense_b = jax.random.uniform(keys[idx], (output_dim,), minval=-k, maxval=k)
    return {"lstm": lstm, "dense_w": dense_w, "dense_b": dense_b}


# ------------------------------- pure-JAX reference ----------------------------------
def _ref_forward(params, x_btd):
    def one_layer(x_tbd, w_ih, w_hh, b_ih, b_hh):
        H = w_hh.shape[1]
        b = b_ih + b_hh

        def step(carry, x_t):
            h, c = carry
            g = x_t @ w_ih.T + h @ w_hh.T + b
            i = jax.nn.sigmoid(g[:, :H])
            f = jax.nn.sigmoid(g[:, H:2 * H])
            gg = jnp.tanh(g[:, 2 * H:3 * H])
            o = jax.nn.sigmoid(g[:, 3 * H:])
            c = f * c + i * gg
            h = o * jnp.tanh(c)
            return (h, c), h

        Bsz = x_tbd.shape[1]
        init = (jnp.zeros((Bsz, H)), jnp.zeros((Bsz, H)))
        _, hs = jax.lax.scan(step, init, x_tbd)
        return hs

    h = jnp.transpose(x_btd, (1, 0, 2)).astype(jnp.float32)
    for (w_ih, w_hh, b_ih, b_hh) in params["lstm"]:
        h = one_layer(h, w_ih, w_hh, b_ih, b_hh)
    out = h @ params["dense_w"].T + params["dense_b"]
    return jnp.transpose(out, (1, 0, 2))


# ------------------------------------- main -------------------------------------------
if __name__ == "__main__":
    INPUT_DIM, HIDDEN_DIM, NUM_LAYERS, OUTPUT_DIM = 4, 32, 2, 1
    B, T = 2, 8

    key = jax.random.PRNGKey(0)
    pkey, xkey = jax.random.split(key)
    params = init_params(pkey, INPUT_DIM, HIDDEN_DIM, NUM_LAYERS, OUTPUT_DIM)
    x = jax.random.normal(xkey, (B, T, INPUT_DIM), dtype=jnp.float32)

    out = jax.block_until_ready(ee_lstm_forward(params, x))
    assert out.shape == (B, T, OUTPUT_DIM), out.shape

    ref = jax.block_until_ready(_ref_forward(params, x))
    np.testing.assert_allclose(np.asarray(out), np.asarray(ref), rtol=1e-5, atol=1e-5)
    print("KERNEL_OK")
</pallas_src>

<mosaic_0001>
module attributes {stable_mosaic.version = 11 : i64} {
  func.func @kernel(%arg0: memref<2x8x4xf32, #tpu.memory_space<vmem>>, %arg1: memref<4x4x32xf32, #tpu.memory_space<vmem>>, %arg2: memref<4x32x32xf32, #tpu.memory_space<vmem>>, %arg3: memref<4x1x32xf32, #tpu.memory_space<vmem>>, %arg4: memref<4x32x32xf32, #tpu.memory_space<vmem>>, %arg5: memref<4x32x32xf32, #tpu.memory_space<vmem>>, %arg6: memref<4x1x32xf32, #tpu.memory_space<vmem>>, %arg7: memref<32x128xf32, #tpu.memory_space<vmem>>, %arg8: memref<1x128xf32, #tpu.memory_space<vmem>>, %arg9: memref<2x8x128xf32, #tpu.memory_space<vmem>>) attributes {dimension_semantics = [], scalar_prefetch = 0 : i64, scratch_operands = 0 : i64, tpu.core_type = #tpu.core_type<tc>} {
    %c0 = arith.constant 0 : index
    %c0_0 = arith.constant 0 : index
    %c0_1 = arith.constant 0 : index
    %0 = vector.load %arg0[%c0, %c0_0, %c0_1] : memref<2x8x4xf32, #tpu.memory_space<vmem>>, vector<2x8x4xf32>
    %1 = tpu.transpose %0, [1, 0, 2] : vector<2x8x4xf32> -> vector<8x2x4xf32>
    %2 = vector.shape_cast %1 : vector<8x2x4xf32> to vector<16x4xf32>
    %c0_2 = arith.constant 0 : index
    %c0_3 = arith.constant 0 : index
    %c0_4 = arith.constant 0 : index
    %3 = vector.load %arg1[%c0_2, %c0_3, %c0_4] : memref<4x4x32xf32, #tpu.memory_space<vmem>>, vector<4x4x32xf32>
    %c0_5 = arith.constant 0 : index
    %c0_6 = arith.constant 0 : index
    %c0_7 = arith.constant 0 : index
    %4 = vector.load %arg2[%c0_5, %c0_6, %c0_7] : memref<4x32x32xf32, #tpu.memory_space<vmem>>, vector<4x32x32xf32>
    %c0_8 = arith.constant 0 : index
    %c0_9 = arith.constant 0 : index
    %c0_10 = arith.constant 0 : index
    %5 = vector.load %arg3[%c0_8, %c0_9, %c0_10] : memref<4x1x32xf32, #tpu.memory_space<vmem>>, vector<4x1x32xf32>
    %6 = vector.extract_strided_slice %3 {offsets = [0, 0, 0], sizes = [1, 4, 32], strides = [1, 1, 1]} : vector<4x4x32xf32> to vector<1x4x32xf32>
    %7 = vector.shape_cast %6 : vector<1x4x32xf32> to vector<4x32xf32>
    %cst = arith.constant dense<0.000000e+00> : vector<16x32xf32>
    %8 = tpu.matmul %2, %7, %cst {dimension_numbers = #tpu.dot_dimension_numbers<[1], [0], [0], [1], [0, 0, 1, 1], [], []>} : vector<16x4xf32>, vector<4x32xf32>, vector<16x32xf32> -> vector<16x32xf32>
    %9 = vector.extract_strided_slice %5 {offsets = [0, 0, 0], sizes = [1, 1, 32], strides = [1, 1, 1]} : vector<4x1x32xf32> to vector<1x1x32xf32>
    %10 = vector.shape_cast %9 : vector<1x1x32xf32> to vector<1x32xf32>
    %11 = vector.broadcast %10 : vector<1x32xf32> to vector<16x32xf32>
    %12 = arith.addf %8, %11 : vector<16x32xf32>
    %13 = vector.shape_cast %12 : vector<16x32xf32> to vector<8x2x32xf32>
    %14 = vector.extract_strided_slice %3 {offsets = [1, 0, 0], sizes = [1, 4, 32], strides = [1, 1, 1]} : vector<4x4x32xf32> to vector<1x4x32xf32>
    %15 = vector.shape_cast %14 : vector<1x4x32xf32> to vector<4x32xf32>
    %cst_11 = arith.constant dense<0.000000e+00> : vector<16x32xf32>
    %16 = tpu.matmul %2, %15, %cst_11 {dimension_numbers = #tpu.dot_dimension_numbers<[1], [0], [0], [1], [0, 0, 1, 1], [], []>} : vector<16x4xf32>, vector<4x32xf32>, vector<16x32xf32> -> vector<16x32xf32>
    %17 = vector.extract_strided_slice %5 {offsets = [1, 0, 0], sizes = [1, 1, 32], strides = [1, 1, 1]} : vector<4x1x32xf32> to vector<1x1x32xf32>
    %18 = vector.shape_cast %17 : vector<1x1x32xf32> to vector<1x32xf32>
    %19 = vector.broadcast %18 : vector<1x32xf32> to vector<16x32xf32>
    %20 = arith.addf %16, %19 : vector<16x32xf32>
    %21 = vector.shape_cast %20 : vector<16x32xf32> to vector<8x2x32xf32>
    %22 = vector.extract_strided_slice %3 {offsets = [2, 0, 0], sizes = [1, 4, 32], strides = [1, 1, 1]} : vector<4x4x32xf32> to vector<1x4x32xf32>
    %23 = vector.shape_cast %22 : vector<1x4x32xf32> to vector<4x32xf32>
    %cst_12 = arith.constant dense<0.000000e+00> : vector<16x32xf32>
    %24 = tpu.matmul %2, %23, %cst_12 {dimension_numbers = #tpu.dot_dimension_numbers<[1], [0], [0], [1], [0, 0, 1, 1], [], []>} : vector<16x4xf32>, vector<4x32xf32>, vector<16x32xf32> -> vector<16x32xf32>
    %25 = vector.extract_strided_slice %5 {offsets = [2, 0, 0], sizes = [1, 1, 32], strides = [1, 1, 1]} : vector<4x1x32xf32> to vector<1x1x32xf32>
    %26 = vector.shape_cast %25 : vector<1x1x32xf32> to vector<1x32xf32>
    %27 = vector.broadcast %26 : vector<1x32xf32> to vector<16x32xf32>
    %28 = arith.addf %24, %27 : vector<16x32xf32>
    %29 = vector.shape_cast %28 : vector<16x32xf32> to vector<8x2x32xf32>
    %30 = vector.extract_strided_slice %3 {offsets = [3, 0, 0], sizes = [1, 4, 32], strides = [1, 1, 1]} : vector<4x4x32xf32> to vector<1x4x32xf32>
    %31 = vector.shape_cast %30 : vector<1x4x32xf32> to vector<4x32xf32>
    %cst_13 = arith.constant dense<0.000000e+00> : vector<16x32xf32>
    %32 = tpu.matmul %2, %31, %cst_13 {dimension_numbers = #tpu.dot_dimension_numbers<[1], [0], [0], [1], [0, 0, 1, 1], [], []>} : vector<16x4xf32>, vector<4x32xf32>, vector<16x32xf32> -> vector<16x32xf32>
    %33 = vector.extract_strided_slice %5 {offsets = [3, 0, 0], sizes = [1, 1, 32], strides = [1, 1, 1]} : vector<4x1x32xf32> to vector<1x1x32xf32>
    %34 = vector.shape_cast %33 : vector<1x1x32xf32> to vector<1x32xf32>
    %35 = vector.broadcast %34 : vector<1x32xf32> to vector<16x32xf32>
    %36 = arith.addf %32, %35 : vector<16x32xf32>
    %37 = vector.shape_cast %36 : vector<16x32xf32> to vector<8x2x32xf32>
    %cst_14 = arith.constant 0.000000e+00 : f32
    %38 = vector.broadcast %cst_14 : f32 to vector<2x32xf32>
    %cst_15 = arith.constant 0.000000e+00 : f32
    %39 = vector.broadcast %cst_15 : f32 to vector<2x32xf32>
    %40 = vector.extract_strided_slice %13 {offsets = [0, 0, 0], sizes = [1, 2, 32], strides = [1, 1, 1]} : vector<8x2x32xf32> to vector<1x2x32xf32>
    %41 = vector.shape_cast %40 : vector<1x2x32xf32> to vector<2x32xf32>
    %42 = vector.extract_strided_slice %4 {offsets = [0, 0, 0], sizes = [1, 32, 32], strides = [1, 1, 1]} : vector<4x32x32xf32> to vector<1x32x32xf32>
    %43 = vector.shape_cast %42 : vector<1x32x32xf32> to vector<32x32xf32>
    %cst_16 = arith.constant dense<0.000000e+00> : vector<2x32xf32>
    %44 = tpu.matmul %38, %43, %cst_16 {dimension_numbers = #tpu.dot_dimension_numbers<[1], [0], [0], [1], [0, 0, 1, 1], [], []>} : vector<2x32xf32>, vector<32x32xf32>, vector<2x32xf32> -> vector<2x32xf32>
    %45 = arith.addf %41, %44 : vector<2x32xf32>
    %46 = arith.negf %45 : vector<2x32xf32>
    %47 = math.exp %46 : vector<2x32xf32>
    %cst_17 = arith.constant 1.000000e+00 : f32
    %48 = vector.broadcast %cst_17 : f32 to vector<2x32xf32>
    %49 = arith.addf %48, %47 : vector<2x32xf32>
    %50 = arith.divf %48, %49 : vector<2x32xf32>
    %51 = vector.extract_strided_slice %21 {offsets = [0, 0, 0], sizes = [1, 2, 32], strides = [1, 1, 1]} : vector<8x2x32xf32> to vector<1x2x32xf32>
    %52 = vector.shape_cast %51 : vector<1x2x32xf32> to vector<2x32xf32>
    %53 = vector.extract_strided_slice %4 {offsets = [1, 0, 0], sizes = [1, 32, 32], strides = [1, 1, 1]} : vector<4x32x32xf32> to vector<1x32x32xf32>
    %54 = vector.shape_cast %53 : vector<1x32x32xf32> to vector<32x32xf32>
    %cst_18 = arith.constant dense<0.000000e+00> : vector<2x32xf32>
    %55 = tpu.matmul %38, %54, %cst_18 {dimension_numbers = #tpu.dot_dimension_numbers<[1], [0], [0], [1], [0, 0, 1, 1], [], []>} : vector<2x32xf32>, vector<32x32xf32>, vector<2x32xf32> -> vector<2x32xf32>
    %56 = arith.addf %52, %55 : vector<2x32xf32>
    %57 = arith.negf %56 : vector<2x32xf32>
    %58 = math.exp %57 : vector<2x32xf32>
    %cst_19 = arith.constant 1.000000e+00 : f32
    %59 = vector.broadcast %cst_19 : f32 to vector<2x32xf32>
    %60 = arith.addf %59, %58 : vector<2x32xf32>
    %61 = arith.divf %59, %60 : vector<2x32xf32>
    %62 = vector.extract_strided_slice %29 {offsets = [0, 0, 0], sizes = [1, 2, 32], strides = [1, 1, 1]} : vector<8x2x32xf32> to vector<1x2x32xf32>
    %63 = vector.shape_cast %62 : vector<1x2x32xf32> to vector<2x32xf32>
    %64 = vector.extract_strided_slice %4 {offsets = [2, 0, 0], sizes = [1, 32, 32], strides = [1, 1, 1]} : vector<4x32x32xf32> to vector<1x32x32xf32>
    %65 = vector.shape_cast %64 : vector<1x32x32xf32> to vector<32x32xf32>
    %cst_20 = arith.constant dense<0.000000e+00> : vector<2x32xf32>
    %66 = tpu.matmul %38, %65, %cst_20 {dimension_numbers = #tpu.dot_dimension_numbers<[1], [0], [0], [1], [0, 0, 1, 1], [], []>} : vector<2x32xf32>, vector<32x32xf32>, vector<2x32xf32> -> vector<2x32xf32>
    %67 = arith.addf %63, %66 : vector<2x32xf32>
    %68 = math.tanh %67 : vector<2x32xf32>
    %69 = vector.extract_strided_slice %37 {offsets = [0, 0, 0], sizes = [1, 2, 32], strides = [1, 1, 1]} : vector<8x2x32xf32> to vector<1x2x32xf32>
    %70 = vector.shape_cast %69 : vector<1x2x32xf32> to vector<2x32xf32>
    %71 = vector.extract_strided_slice %4 {offsets = [3, 0, 0], sizes = [1, 32, 32], strides = [1, 1, 1]} : vector<4x32x32xf32> to vector<1x32x32xf32>
    %72 = vector.shape_cast %71 : vector<1x32x32xf32> to vector<32x32xf32>
    %cst_21 = arith.constant dense<0.000000e+00> : vector<2x32xf32>
    %73 = tpu.matmul %38, %72, %cst_21 {dimension_numbers = #tpu.dot_dimension_numbers<[1], [0], [0], [1], [0, 0, 1, 1], [], []>} : vector<2x32xf32>, vector<32x32xf32>, vector<2x32xf32> -> vector<2x32xf32>
    %74 = arith.addf %70, %73 : vector<2x32xf32>
    %75 = arith.negf %74 : vector<2x32xf32>
    %76 = math.exp %75 : vector<2x32xf32>
    %cst_22 = arith.constant 1.000000e+00 : f32
    %77 = vector.broadcast %cst_22 : f32 to vector<2x32xf32>
    %78 = arith.addf %77, %76 : vector<2x32xf32>
    %79 = arith.divf %77, %78 : vector<2x32xf32>
    %80 = arith.mulf %61, %39 : vector<2x32xf32>
    %81 = arith.mulf %50, %68 : vector<2x32xf32>
    %82 = arith.addf %80, %81 : vector<2x32xf32>
    %83 = math.tanh %82 : vector<2x32xf32>
    %84 = arith.mulf %79, %83 : vector<2x32xf32>
    %85 = vector.extract_strided_slice %13 {offsets = [1, 0, 0], sizes = [1, 2, 32], strides = [1, 1, 1]} : vector<8x2x32xf32> to vector<1x2x32xf32>
    %86 = vector.shape_cast %85 : vector<1x2x32xf32> to vector<2x32xf32>
    %87 = vector.extract_strided_slice %4 {offsets = [0, 0, 0], sizes = [1, 32, 32], strides = [1, 1, 1]} : vector<4x32x32xf32> to vector<1x32x32xf32>
    %88 = vector.shape_cast %87 : vector<1x32x32xf32> to vector<32x32xf32>
    %cst_23 = arith.constant dense<0.000000e+00> : vector<2x32xf32>
    %89 = tpu.matmul %84, %88, %cst_23 {dimension_numbers = #tpu.dot_dimension_numbers<[1], [0], [0], [1], [0, 0, 1, 1], [], []>} : vector<2x32xf32>, vector<32x32xf32>, vector<2x32xf32> -> vector<2x32xf32>
    %90 = arith.addf %86, %89 : vector<2x32xf32>
    %91 = arith.negf %90 : vector<2x32xf32>
    %92 = math.exp %91 : vector<2x32xf32>
    %cst_24 = arith.constant 1.000000e+00 : f32
    %93 = vector.broadcast %cst_24 : f32 to vector<2x32xf32>
    %94 = arith.addf %93, %92 : vector<2x32xf32>
    %95 = arith.divf %93, %94 : vector<2x32xf32>
    %96 = vector.extract_strided_slice %21 {offsets = [1, 0, 0], sizes = [1, 2, 32], strides = [1, 1, 1]} : vector<8x2x32xf32> to vector<1x2x32xf32>
    %97 = vector.shape_cast %96 : vector<1x2x32xf32> to vector<2x32xf32>
    %98 = vector.extract_strided_slice %4 {offsets = [1, 0, 0], sizes = [1, 32, 32], strides = [1, 1, 1]} : vector<4x32x32xf32> to vector<1x32x32xf32>
    %99 = vector.shape_cast %98 : vector<1x32x32xf32> to vector<32x32xf32>
    %cst_25 = arith.constant dense<0.000000e+00> : vector<2x32xf32>
    %100 = tpu.matmul %84, %99, %cst_25 {dimension_numbers = #tpu.dot_dimension_numbers<[1], [0], [0], [1], [0, 0, 1, 1], [], []>} : vector<2x32xf32>, vector<32x32xf32>, vector<2x32xf32> -> vector<2x32xf32>
    %101 = arith.addf %97, %100 : vector<2x32xf32>
    %102 = arith.negf %101 : vector<2x32xf32>
    %103 = math.exp %102 : vector<2x32xf32>
    %cst_26 = arith.constant 1.000000e+00 : f32
    %104 = vector.broadcast %cst_26 : f32 to vector<2x32xf32>
    %105 = arith.addf %104, %103 : vector<2x32xf32>
    %106 = arith.divf %104, %105 : vector<2x32xf32>
    %107 = vector.extract_strided_slice %29 {offsets = [1, 0, 0], sizes = [1, 2, 32], strides = [1, 1, 1]} : vector<8x2x32xf32> to vector<1x2x32xf32>
    %108 = vector.shape_cast %107 : vector<1x2x32xf32> to vector<2x32xf32>
    %109 = vector.extract_strided_slice %4 {offsets = [2, 0, 0], sizes = [1, 32, 32], strides = [1, 1, 1]} : vector<4x32x32xf32> to vector<1x32x32xf32>
    %110 = vector.shape_cast %109 : vector<1x32x32xf32> to vector<32x32xf32>
    %cst_27 = arith.constant dense<0.000000e+00> : vector<2x32xf32>
    %111 = tpu.matmul %84, %110, %cst_27 {dimension_numbers = #tpu.dot_dimension_numbers<[1], [0], [0], [1], [0, 0, 1, 1], [], []>} : vector<2x32xf32>, vector<32x32xf32>, vector<2x32xf32> -> vector<2x32xf32>
    %112 = arith.addf %108, %111 : vector<2x32xf32>
    %113 = math.tanh %112 : vector<2x32xf32>
    %114 = vector.extract_strided_slice %37 {offsets = [1, 0, 0], sizes = [1, 2, 32], strides = [1, 1, 1]} : vector<8x2x32xf32> to vector<1x2x32xf32>
    %115 = vector.shape_cast %114 : vector<1x2x32xf32> to vector<2x32xf32>
    %116 = vector.extract_strided_slice %4 {offsets = [3, 0, 0], sizes = [1, 32, 32], strides = [1, 1, 1]} : vector<4x32x32xf32> to vector<1x32x32xf32>
    %117 = vector.shape_cast %116 : vector<1x32x32xf32> to vector<32x32xf32>
    %cst_28 = arith.constant dense<0.000000e+00> : vector<2x32xf32>
    %118 = tpu.matmul %84, %117, %cst_28 {dimension_numbers = #tpu.dot_dimension_numbers<[1], [0], [0], [1], [0, 0, 1, 1], [], []>} : vector<2x32xf32>, vector<32x32xf32>, vector<2x32xf32> -> vector<2x32xf32>
    %119 = arith.addf %115, %118 : vector<2x32xf32>
    %120 = arith.negf %119 : vector<2x32xf32>
    %121 = math.exp %120 : vector<2x32xf32>
    %cst_29 = arith.constant 1.000000e+00 : f32
    %122 = vector.broadcast %cst_29 : f32 to vector<2x32xf32>
    %123 = arith.addf %122, %121 : vector<2x32xf32>
    %124 = arith.divf %122, %123 : vector<2x32xf32>
    %125 = arith.mulf %106, %82 : vector<2x32xf32>
    %126 = arith.mulf %95, %113 : vector<2x32xf32>
    %127 = arith.addf %125, %126 : vector<2x32xf32>
    %128 = math.tanh %127 : vector<2x32xf32>
    %129 = arith.mulf %124, %128 : vector<2x32xf32>
    %130 = vector.extract_strided_slice %13 {offsets = [2, 0, 0], sizes = [1, 2, 32], strides = [1, 1, 1]} : vector<8x2x32xf32> to vector<1x2x32xf32>
    %131 = vector.shape_cast %130 : vector<1x2x32xf32> to vector<2x32xf32>
    %132 = vector.extract_strided_slice %4 {offsets = [0, 0, 0], sizes = [1, 32, 32], strides = [1, 1, 1]} : vector<4x32x32xf32> to vector<1x32x32xf32>
    %133 = vector.shape_cast %132 : vector<1x32x32xf32> to vector<32x32xf32>
    %cst_30 = arith.constant dense<0.000000e+00> : vector<2x32xf32>
    %134 = tpu.matmul %129, %133, %cst_30 {dimension_numbers = #tpu.dot_dimension_numbers<[1], [0], [0], [1], [0, 0, 1, 1], [], []>} : vector<2x32xf32>, vector<32x32xf32>, vector<2x32xf32> -> vector<2x32xf32>
    %135 = arith.addf %131, %134 : vector<2x32xf32>
    %136 = arith.negf %135 : vector<2x32xf32>
    %137 = math.exp %136 : vector<2x32xf32>
    %cst_31 = arith.constant 1.000000e+00 : f32
    %138 = vector.broadcast %cst_31 : f32 to vector<2x32xf32>
    %139 = arith.addf %138, %137 : vector<2x32xf32>
    %140 = arith.divf %138, %139 : vector<2x32xf32>
    %141 = vector.extract_strided_slice %21 {offsets = [2, 0, 0], sizes = [1, 2, 32], strides = [1, 1, 1]} : vector<8x2x32xf32> to vector<1x2x32xf32>
    %142 = vector.shape_cast %141 : vector<1x2x32xf32> to vector<2x32xf32>
    %143 = vector.extract_strided_slice %4 {offsets = [1, 0, 0], sizes = [1, 32, 32], strides = [1, 1, 1]} : vector<4x32x32xf32> to vector<1x32x32xf32>
    %144 = vector.shape_cast %143 : vector<1x32x32xf32> to vector<32x32xf32>
    %cst_32 = arith.constant dense<0.000000e+00> : vector<2x32xf32>
    %145 = tpu.matmul %129, %144, %cst_32 {dimension_numbers = #tpu.dot_dimension_numbers<[1], [0], [0], [1], [0, 0, 1, 1], [], []>} : vector<2x32xf32>, vector<32x32xf32>, vector<2x32xf32> -> vector<2x32xf32>
    %146 = arith.addf %142, %145 : vector<2x32xf32>
    %147 = arith.negf %146 : vector<2x32xf32>
    %148 = math.exp %147 : vector<2x32xf32>
    %cst_33 = arith.constant 1.000000e+00 : f32
    %149 = vector.broadcast %cst_33 : f32 to vector<2x32xf32>
    %150 = arith.addf %149, %148 : vector<2x32xf32>
    %151 = arith.divf %149, %150 : vector<2x32xf32>
    %152 = vector.extract_strided_slice %29 {offsets = [2, 0, 0], sizes = [1, 2, 32], strides = [1, 1, 1]} : vector<8x2x32xf32> to vector<1x2x32xf32>
    %153 = vector.shape_cast %152 : vector<1x2x32xf32> to vector<2x32xf32>
    %154 = vector.extract_strided_slice %4 {offsets = [2, 0, 0], sizes = [1, 32, 32], strides = [1, 1, 1]} : vector<4x32x32xf32> to vector<1x32x32xf32>
    %155 = vector.shape_cast %154 : vector<1x32x32xf32> to vector<32x32xf32>
    %cst_34 = arith.constant dense<0.000000e+00> : vector<2x32xf32>
    %156 = tpu.matmul %129, %155, %cst_34 {dimension_numbers = #tpu.dot_dimension_numbers<[1], [0], [0], [1], [0, 0, 1, 1], [], []>} : vector<2x32xf32>, vector<32x32xf32>, vector<2x32xf32> -> vector<2x32xf32>
    %157 = arith.addf %153, %156 : vector<2x32xf32>
    %158 = math.tanh %157 : vector<2x32xf32>
    %159 = vector.extract_strided_slice %37 {offsets = [2, 0, 0], sizes = [1, 2, 32], strides = [1, 1, 1]} : vector<8x2x32xf32> to vector<1x2x32xf32>
    %160 = vector.shape_cast %159 : vector<1x2x32xf32> to vector<2x32xf32>
    %161 = vector.extract_strided_slice %4 {offsets = [3, 0, 0], sizes = [1, 32, 32], strides = [1, 1, 1]} : vector<4x32x32xf32> to vector<1x32x32xf32>
    %162 = vector.shape_cast %161 : vector<1x32x32xf32> to vector<32x32xf32>
    %cst_35 = arith.constant dense<0.000000e+00> : vector<2x32xf32>
    %163 = tpu.matmul %129, %162, %cst_35 {dimension_numbers = #tpu.dot_dimension_numbers<[1], [0], [0], [1], [0, 0, 1, 1], [], []>} : vector<2x32xf32>, vector<32x32xf32>, vector<2x32xf32> -> vector<2x32xf32>
    %164 = arith.addf %160, %163 : vector<2x32xf32>
    %165 = arith.negf %164 : vector<2x32xf32>
    %166 = math.exp %165 : vector<2x32xf32>
    %cst_36 = arith.constant 1.000000e+00 : f32
    %167 = vector.broadcast %cst_36 : f32 to vector<2x32xf32>
    %168 = arith.addf %167, %166 : vector<2x32xf32>
    %169 = arith.divf %167, %168 : vector<2x32xf32>
    %170 = arith.mulf %151, %127 : vector<2x32xf32>
    %171 = arith.mulf %140, %158 : vector<2x32xf32>
    %172 = arith.addf %170, %171 : vector<2x32xf32>
    %173 = math.tanh %172 : vector<2x32xf32>
    %174 = arith.mulf %169, %173 : vector<2x32xf32>
    %175 = vector.extract_strided_slice %13 {offsets = [3, 0, 0], sizes = [1, 2, 32], strides = [1, 1, 1]} : vector<8x2x32xf32> to vector<1x2x32xf32>
    %176 = vector.shape_cast %175 : vector<1x2x32xf32> to vector<2x32xf32>
    %177 = vector.extract_strided_slice %4 {offsets = [0, 0, 0], sizes = [1, 32, 32], strides = [1, 1, 1]} : vector<4x32x32xf32> to vector<1x32x32xf32>
    %178 = vector.shape_cast %177 : vector<1x32x32xf32> to vector<32x32xf32>
    %cst_37 = arith.constant dense<0.000000e+00> : vector<2x32xf32>
    %179 = tpu.matmul %174, %178, %cst_37 {dimension_numbers = #tpu.dot_dimension_numbers<[1], [0], [0], [1], [0, 0, 1, 1], [], []>} : vector<2x32xf32>, vector<32x32xf32>, vector<2x32xf32> -> vector<2x32xf32>
    %180 = arith.addf %176, %179 : vector<2x32xf32>
    %181 = arith.negf %180 : vector<2x32xf32>
    %182 = math.exp %181 : vector<2x32xf32>
    %cst_38 = arith.constant 1.000000e+00 : f32
    %183 = vector.broadcast %cst_38 : f32 to vector<2x32xf32>
    %184 = arith.addf %183, %182 : vector<2x32xf32>
    %185 = arith.divf %183, %184 : vector<2x32xf32>
    %186 = vector.extract_strided_slice %21 {offsets = [3, 0, 0], sizes = [1, 2, 32], strides = [1, 1, 1]} : vector<8x2x32xf32> to vector<1x2x32xf32>
    %187 = vector.shape_cast %186 : vector<1x2x32xf32> to vector<2x32xf32>
    %188 = vector.extract_strided_slice %4 {offsets = [1, 0, 0], sizes = [1, 32, 32], strides = [1, 1, 1]} : vector<4x32x32xf32> to vector<1x32x32xf32>
    %189 = vector.shape_cast %188 : vector<1x32x32xf32> to vector<32x32xf32>
    %cst_39 = arith.constant dense<0.000000e+00> : vector<2x32xf32>
    %190 = tpu.matmul %174, %189, %cst_39 {dimension_numbers = #tpu.dot_dimension_numbers<[1], [0], [0], [1], [0, 0, 1, 1], [], []>} : vector<2x32xf32>, vector<32x32xf32>, vector<2x32xf32> -> vector<2x32xf32>
    %191 = arith.addf %187, %190 : vector<2x32xf32>
    %192 = arith.negf %191 : vector<2x32xf32>
    %193 = math.exp %192 : vector<2x32xf32>
    %cst_40 = arith.constant 1.000000e+00 : f32
    %194 = vector.broadcast %cst_40 : f32 to vector<2x32xf32>
    %195 = arith.addf %194, %193 : vector<2x32xf32>
    %196 = arith.divf %194, %195 : vector<2x32xf32>
    %197 = vector.extract_strided_slice %29 {offsets = [3, 0, 0], sizes = [1, 2, 32], strides = [1, 1, 1]} : vector<8x2x32xf32> to vector<1x2x32xf32>
    %198 = vector.shape_cast %197 : vector<1x2x32xf32> to vector<2x32xf32>
    %199 = vector.extract_strided_slice %4 {offsets = [2, 0, 0], sizes = [1, 32, 32], strides = [1, 1, 1]} : vector<4x32x32xf32> to vector<1x32x32xf32>
    %200 = vector.shape_cast %199 : vector<1x32x32xf32> to vector<32x32xf32>
    %cst_41 = arith.constant dense<0.000000e+00> : vector<2x32xf32>
    %201 = tpu.matmul %174, %200, %cst_41 {dimension_numbers = #tpu.dot_dimension_numbers<[1], [0], [0], [1], [0, 0, 1, 1], [], []>} : vector<2x32xf32>, vector<32x32xf32>, vector<2x32xf32> -> vector<2x32xf32>
    %202 = arith.addf %198, %201 : vector<2x32xf32>
    %203 = math.tanh %202 : vector<2x32xf32>
    %204 = vector.extract_strided_slice %37 {offsets = [3, 0, 0], sizes = [1, 2, 32], strides = [1, 1, 1]} : vector<8x2x32xf32> to vector<1x2x32xf32>
    %205 = vector.shape_cast %204 : vector<1x2x32xf32> to vector<2x32xf32>
    %206 = vector.extract_strided_slice %4 {offsets = [3, 0, 0], sizes = [1, 32, 32], strides = [1, 1, 1]} : vector<4x32x32xf32> to vector<1x32x32xf32>
    %207 = vector.shape_cast %206 : vector<1x32x32xf32> to vector<32x32xf32>
    %cst_42 = arith.constant dense<0.000000e+00> : vector<2x32xf32>
    %208 = tpu.matmul %174, %207, %cst_42 {dimension_numbers = #tpu.dot_dimension_numbers<[1], [0], [0], [1], [0, 0, 1, 1], [], []>} : vector<2x32xf32>, vector<32x32xf32>, vector<2x32xf32> -> vector<2x32xf32>
    %209 = arith.addf %205, %208 : vector<2x32xf32>
    %210 = arith.negf %209 : vector<2x32xf32>
    %211 = math.exp %210 : vector<2x32xf32>
    %cst_43 = arith.constant 1.000000e+00 : f32
    %212 = vector.broadcast %cst_43 : f32 to vector<2x32xf32>
    %213 = arith.addf %212, %211 : vector<2x32xf32>
    %214 = arith.divf %212, %213 : vector<2x32xf32>
    %215 = arith.mulf %196, %172 : vector<2x32xf32>
    %216 = arith.mulf %185, %203 : vector<2x32xf32>
    %217 = arith.addf %215, %216 : vector<2x32xf32>
    %218 = math.tanh %217 : vector<2x32xf32>
    %219 = arith.mulf %214, %218 : vector<2x32xf32>
    %220 = vector.extract_strided_slice %13 {offsets = [4, 0, 0], sizes = [1, 2, 32], strides = [1, 1, 1]} : vector<8x2x32xf32> to vector<1x2x32xf32>
    %221 = vector.shape_cast %220 : vector<1x2x32xf32> to vector<2x32xf32>
    %222 = vector.extract_strided_slice %4 {offsets = [0, 0, 0], sizes = [1, 32, 32], strides = [1, 1, 1]} : vector<4x32x32xf32> to vector<1x32x32xf32>
    %223 = vector.shape_cast %222 : vector<1x32x32xf32> to vector<32x32xf32>
    %cst_44 = arith.constant dense<0.000000e+00> : vector<2x32xf32>
    %224 = tpu.matmul %219, %223, %cst_44 {dimension_numbers = #tpu.dot_dimension_numbers<[1], [0], [0], [1], [0, 0, 1, 1], [], []>} : vector<2x32xf32>, vector<32x32xf32>, vector<2x32xf32> -> vector<2x32xf32>
    %225 = arith.addf %221, %224 : vector<2x32xf32>
    %226 = arith.negf %225 : vector<2x32xf32>
    %227 = math.exp %226 : vector<2x32xf32>
    %cst_45 = arith.constant 1.000000e+00 : f32
    %228 = vector.broadcast %cst_45 : f32 to vector<2x32xf32>
    %229 = arith.addf %228, %227 : vector<2x32xf32>
    %230 = arith.divf %228, %229 : vector<2x32xf32>
    %231 = vector.extract_strided_slice %21 {offsets = [4, 0, 0], sizes = [1, 2, 32], strides = [1, 1, 1]} : vector<8x2x32xf32> to vector<1x2x32xf32>
    %232 = vector.shape_cast %231 : vector<1x2x32xf32> to vector<2x32xf32>
    %233 = vector.extract_strided_slice %4 {offsets = [1, 0, 0], sizes = [1, 32, 32], strides = [1, 1, 1]} : vector<4x32x32xf32> to vector<1x32x32xf32>
    %234 = vector.shape_cast %233 : vector<1x32x32xf32> to vector<32x32xf32>
    %cst_46 = arith.constant dense<0.000000e+00> : vector<2x32xf32>
    %235 = tpu.matmul %219, %234, %cst_46 {dimension_numbers = #tpu.dot_dimension_numbers<[1], [0], [0], [1], [0, 0, 1, 1], [], []>} : vector<2x32xf32>, vector<32x32xf32>, vector<2x32xf32> -> vector<2x32xf32>
    %236 = arith.addf %232, %235 : vector<2x32xf32>
    %237 = arith.negf %236 : vector<2x32xf32>
    %238 = math.exp %237 : vector<2x32xf32>
    %cst_47 = arith.constant 1.000000e+00 : f32
    %239 = vector.broadcast %cst_47 : f32 to vector<2x32xf32>
    %240 = arith.addf %239, %238 : vector<2x32xf32>
    %241 = arith.divf %239, %240 : vector<2x32xf32>
    %242 = vector.extract_strided_slice %29 {offsets = [4, 0, 0], sizes = [1, 2, 32], strides = [1, 1, 1]} : vector<8x2x32xf32> to vector<1x2x32xf32>
    %243 = vector.shape_cast %242 : vector<1x2x32xf32> to vector<2x32xf32>
    %244 = vector.extract_strided_slice %4 {offsets = [2, 0, 0], sizes = [1, 32, 32], strides = [1, 1, 1]} : vector<4x32x32xf32> to vector<1x32x32xf32>
    %245 = vector.shape_cast %244 : vector<1x32x32xf32> to vector<32x32xf32>
    %cst_48 = arith.constant dense<0.000000e+00> : vector<2x32xf32>
    %246 = tpu.matmul %219, %245, %cst_48 {dimension_numbers = #tpu.dot_dimension_numbers<[1], [0], [0], [1], [0, 0, 1, 1], [], []>} : vector<2x32xf32>, vector<32x32xf32>, vector<2x32xf32> -> vector<2x32xf32>
    %247 = arith.addf %243, %246 : vector<2x32xf32>
    %248 = math.tanh %247 : vector<2x32xf32>
    %249 = vector.extract_strided_slice %37 {offsets = [4, 0, 0], sizes = [1, 2, 32], strides = [1, 1, 1]} : vector<8x2x32xf32> to vector<1x2x32xf32>
    %250 = vector.shape_cast %249 : vector<1x2x32xf32> to vector<2x32xf32>
    %251 = vector.extract_strided_slice %4 {offsets = [3, 0, 0], sizes = [1, 32, 32], strides = [1, 1, 1]} : vector<4x32x32xf32> to vector<1x32x32xf32>
    %252 = vector.shape_cast %251 : vector<1x32x32xf32> to vector<32x32xf32>
    %cst_49 = arith.constant dense<0.000000e+00> : vector<2x32xf32>
    %253 = tpu.matmul %219, %252, %cst_49 {dimension_numbers = #tpu.dot_dimension_numbers<[1], [0], [0], [1], [0, 0, 1, 1], [], []>} : vector<2x32xf32>, vector<32x32xf32>, vector<2x32xf32> -> vector<2x32xf32>
    %254 = arith.addf %250, %253 : vector<2x32xf32>
    %255 = arith.negf %254 : vector<2x32xf32>
    %256 = math.exp %255 : vector<2x32xf32>
    %cst_50 = arith.constant 1.000000e+00 : f32
    %257 = vector.broadcast %cst_50 : f32 to vector<2x32xf32>
    %258 = arith.addf %257, %256 : vector<2x32xf32>
    %259 = arith.divf %257, %258 : vector<2x32xf32>
    %260 = arith.mulf %241, %217 : vector<2x32xf32>
    %261 = arith.mulf %230, %248 : vector<2x32xf32>
    %262 = arith.addf %260, %261 : vector<2x32xf32>
    %263 = math.tanh %262 : vector<2x32xf32>
    %264 = arith.mulf %259, %263 : vector<2x32xf32>
    %265 = vector.extract_strided_slice %13 {offsets = [5, 0, 0], sizes = [1, 2, 32], strides = [1, 1, 1]} : vector<8x2x32xf32> to vector<1x2x32xf32>
    %266 = vector.shape_cast %265 : vector<1x2x32xf32> to vector<2x32xf32>
    %267 = vector.extract_strided_slice %4 {offsets = [0, 0, 0], sizes = [1, 32, 32], strides = [1, 1, 1]} : vector<4x32x32xf32> to vector<1x32x32xf32>
    %268 = vector.shape_cast %267 : vector<1x32x32xf32> to vector<32x32xf32>
    %cst_51 = arith.constant dense<0.000000e+00> : vector<2x32xf32>
    %269 = tpu.matmul %264, %268, %cst_51 {dimension_numbers = #tpu.dot_dimension_numbers<[1], [0], [0], [1], [0, 0, 1, 1], [], []>} : vector<2x32xf32>, vector<32x32xf32>, vector<2x32xf32> -> vector<2x32xf32>
    %270 = arith.addf %266, %269 : vector<2x32xf32>
    %271 = arith.negf %270 : vector<2x32xf32>
    %272 = math.exp %271 : vector<2x32xf32>
    %cst_52 = arith.constant 1.000000e+00 : f32
    %273 = vector.broadcast %cst_52 : f32 to vector<2x32xf32>
    %274 = arith.addf %273, %272 : vector<2x32xf32>
    %275 = arith.divf %273, %274 : vector<2x32xf32>
    %276 = vector.extract_strided_slice %21 {offsets = [5, 0, 0], sizes = [1, 2, 32], strides = [1, 1, 1]} : vector<8x2x32xf32> to vector<1x2x32xf32>
    %277 = vector.shape_cast %276 : vector<1x2x32xf32> to vector<2x32xf32>
    %278 = vector.extract_strided_slice %4 {offsets = [1, 0, 0], sizes = [1, 32, 32], strides = [1, 1, 1]} : vector<4x32x32xf32> to vector<1x32x32xf32>
    %279 = vector.shape_cast %278 : vector<1x32x32xf32> to vector<32x32xf32>
    %cst_53 = arith.constant dense<0.000000e+00> : vector<2x32xf32>
    %280 = tpu.matmul %264, %279, %cst_53 {dimension_numbers = #tpu.dot_dimension_numbers<[1], [0], [0], [1], [0, 0, 1, 1], [], []>} : vector<2x32xf32>, vector<32x32xf32>, vector<2x32xf32> -> vector<2x32xf32>
    %281 = arith.addf %277, %280 : vector<2x32xf32>
    %282 = arith.negf %281 : vector<2x32xf32>
    %283 = math.exp %282 : vector<2x32xf32>
    %cst_54 = arith.constant 1.000000e+00 : f32
    %284 = vector.broadcast %cst_54 : f32 to vector<2x32xf32>
    %285 = arith.addf %284, %283 : vector<2x32xf32>
    %286 = arith.divf %284, %285 : vector<2x32xf32>
    %287 = vector.extract_strided_slice %29 {offsets = [5, 0, 0], sizes = [1, 2, 32], strides = [1, 1, 1]} : vector<8x2x32xf32> to vector<1x2x32xf32>
    %288 = vector.shape_cast %287 : vector<1x2x32xf32> to vector<2x32xf32>
    %289 = vector.extract_strided_slice %4 {offsets = [2, 0, 0], sizes = [1, 32, 32], strides = [1, 1, 1]} : vector<4x32x32xf32> to vector<1x32x32xf32>
    %290 = vector.shape_cast %289 : vector<1x32x32xf32> to vector<32x32xf32>
    %cst_55 = arith.constant dense<0.000000e+00> : vector<2x32xf32>
    %291 = tpu.matmul %264, %290, %cst_55 {dimension_numbers = #tpu.dot_dimension_numbers<[1], [0], [0], [1], [0, 0, 1, 1], [], []>} : vector<2x32xf32>, vector<32x32xf32>, vector<2x32xf32> -> vector<2x32xf32>
    %292 = arith.addf %288, %291 : vector<2x32xf32>
    %293 = math.tanh %292 : vector<2x32xf32>
    %294 = vector.extract_strided_slice %37 {offsets = [5, 0, 0], sizes = [1, 2, 32], strides = [1, 1, 1]} : vector<8x2x32xf32> to vector<1x2x32xf32>
    %295 = vector.shape_cast %294 : vector<1x2x32xf32> to vector<2x32xf32>
    %296 = vector.extract_strided_slice %4 {offsets = [3, 0, 0], sizes = [1, 32, 32], strides = [1, 1, 1]} : vector<4x32x32xf32> to vector<1x32x32xf32>
    %297 = vector.shape_cast %296 : vector<1x32x32xf32> to vector<32x32xf32>
    %cst_56 = arith.constant dense<0.000000e+00> : vector<2x32xf32>
    %298 = tpu.matmul %264, %297, %cst_56 {dimension_numbers = #tpu.dot_dimension_numbers<[1], [0], [0], [1], [0, 0, 1, 1], [], []>} : vector<2x32xf32>, vector<32x32xf32>, vector<2x32xf32> -> vector<2x32xf32>
    %299 = arith.addf %295, %298 : vector<2x32xf32>
    %300 = arith.negf %299 : vector<2x32xf32>
    %301 = math.exp %300 : vector<2x32xf32>
    %cst_57 = arith.constant 1.000000e+00 : f32
    %302 = vector.broadcast %cst_57 : f32 to vector<2x32xf32>
    %303 = arith.addf %302, %301 : vector<2x32xf32>
    %304 = arith.divf %302, %303 : vector<2x32xf32>
    %305 = arith.mulf %286, %262 : vector<2x32xf32>
    %306 = arith.mulf %275, %293 : vector<2x32xf32>
    %307 = arith.addf %305, %306 : vector<2x32xf32>
    %308 = math.tanh %307 : vector<2x32xf32>
    %309 = arith.mulf %304, %308 : vector<2x32xf32>
    %310 = vector.extract_strided_slice %13 {offsets = [6, 0, 0], sizes = [1, 2, 32], strides = [1, 1, 1]} : vector<8x2x32xf32> to vector<1x2x32xf32>
    %311 = vector.shape_cast %310 : vector<1x2x32xf32> to vector<2x32xf32>
    %312 = vector.extract_strided_slice %4 {offsets = [0, 0, 0], sizes = [1, 32, 32], strides = [1, 1, 1]} : vector<4x32x32xf32> to vector<1x32x32xf32>
    %313 = vector.shape_cast %312 : vector<1x32x32xf32> to vector<32x32xf32>
    %cst_58 = arith.constant dense<0.000000e+00> : vector<2x32xf32>
    %314 = tpu.matmul %309, %313, %cst_58 {dimension_numbers = #tpu.dot_dimension_numbers<[1], [0], [0], [1], [0, 0, 1, 1], [], []>} : vector<2x32xf32>, vector<32x32xf32>, vector<2x32xf32> -> vector<2x32xf32>
    %315 = arith.addf %311, %314 : vector<2x32xf32>
    %316 = arith.negf %315 : vector<2x32xf32>
    %317 = math.exp %316 : vector<2x32xf32>
    %cst_59 = arith.constant 1.000000e+00 : f32
    %318 = vector.broadcast %cst_59 : f32 to vector<2x32xf32>
    %319 = arith.addf %318, %317 : vector<2x32xf32>
    %320 = arith.divf %318, %319 : vector<2x32xf32>
    %321 = vector.extract_strided_slice %21 {offsets = [6, 0, 0], sizes = [1, 2, 32], strides = [1, 1, 1]} : vector<8x2x32xf32> to vector<1x2x32xf32>
    %322 = vector.shape_cast %321 : vector<1x2x32xf32> to vector<2x32xf32>
    %323 = vector.extract_strided_slice %4 {offsets = [1, 0, 0], sizes = [1, 32, 32], strides = [1, 1, 1]} : vector<4x32x32xf32> to vector<1x32x32xf32>
    %324 = vector.shape_cast %323 : vector<1x32x32xf32> to vector<32x32xf32>
    %cst_60 = arith.constant dense<0.000000e+00> : vector<2x32xf32>
    %325 = tpu.matmul %309, %324, %cst_60 {dimension_numbers = #tpu.dot_dimension_numbers<[1], [0], [0], [1], [0, 0, 1, 1], [], []>} : vector<2x32xf32>, vector<32x32xf32>, vector<2x32xf32> -> vector<2x32xf32>
    %326 = arith.addf %322, %325 : vector<2x32xf32>
    %327 = arith.negf %326 : vector<2x32xf32>
    %328 = math.exp %327 : vector<2x32xf32>
    %cst_61 = arith.constant 1.000000e+00 : f32
    %329 = vector.broadcast %cst_61 : f32 to vector<2x32xf32>
    %330 = arith.addf %329, %328 : vector<2x32xf32>
    %331 = arith.divf %329, %330 : vector<2x32xf32>
    %332 = vector.extract_strided_slice %29 {offsets = [6, 0, 0], sizes = [1, 2, 32], strides = [1, 1, 1]} : vector<8x2x32xf32> to vector<1x2x32xf32>
    %333 = vector.shape_cast %332 : vector<1x2x32xf32> to vector<2x32xf32>
    %334 = vector.extract_strided_slice %4 {offsets = [2, 0, 0], sizes = [1, 32, 32], strides = [1, 1, 1]} : vector<4x32x32xf32> to vector<1x32x32xf32>
    %335 = vector.shape_cast %334 : vector<1x32x32xf32> to vector<32x32xf32>
    %cst_62 = arith.constant dense<0.000000e+00> : vector<2x32xf32>
    %336 = tpu.matmul %309, %335, %cst_62 {dimension_numbers = #tpu.dot_dimension_numbers<[1], [0], [0], [1], [0, 0, 1, 1], [], []>} : vector<2x32xf32>, vector<32x32xf32>, vector<2x32xf32> -> vector<2x32xf32>
    %337 = arith.addf %333, %336 : vector<2x32xf32>
    %338 = math.tanh %337 : vector<2x32xf32>
    %339 = vector.extract_strided_slice %37 {offsets = [6, 0, 0], sizes = [1, 2, 32], strides = [1, 1, 1]} : vector<8x2x32xf32> to vector<1x2x32xf32>
    %340 = vector.shape_cast %339 : vector<1x2x32xf32> to vector<2x32xf32>
    %341 = vector.extract_strided_slice %4 {offsets = [3, 0, 0], sizes = [1, 32, 32], strides = [1, 1, 1]} : vector<4x32x32xf32> to vector<1x32x32xf32>
    %342 = vector.shape_cast %341 : vector<1x32x32xf32> to vector<32x32xf32>
    %cst_63 = arith.constant dense<0.000000e+00> : vector<2x32xf32>
    %343 = tpu.matmul %309, %342, %cst_63 {dimension_numbers = #tpu.dot_dimension_numbers<[1], [0], [0], [1], [0, 0, 1, 1], [], []>} : vector<2x32xf32>, vector<32x32xf32>, vector<2x32xf32> -> vector<2x32xf32>
    %344 = arith.addf %340, %343 : vector<2x32xf32>
    %345 = arith.negf %344 : vector<2x32xf32>
    %346 = math.exp %345 : vector<2x32xf32>
    %cst_64 = arith.constant 1.000000e+00 : f32
    %347 = vector.broadcast %cst_64 : f32 to vector<2x32xf32>
    %348 = arith.addf %347, %346 : vector<2x32xf32>
    %349 = arith.divf %347, %348 : vector<2x32xf32>
    %350 = arith.mulf %331, %307 : vector<2x32xf32>
    %351 = arith.mulf %320, %338 : vector<2x32xf32>
    %352 = arith.addf %350, %351 : vector<2x32xf32>
    %353 = math.tanh %352 : vector<2x32xf32>
    %354 = arith.mulf %349, %353 : vector<2x32xf32>
    %355 = vector.extract_strided_slice %13 {offsets = [7, 0, 0], sizes = [1, 2, 32], strides = [1, 1, 1]} : vector<8x2x32xf32> to vector<1x2x32xf32>
    %356 = vector.shape_cast %355 : vector<1x2x32xf32> to vector<2x32xf32>
    %357 = vector.extract_strided_slice %4 {offsets = [0, 0, 0], sizes = [1, 32, 32], strides = [1, 1, 1]} : vector<4x32x32xf32> to vector<1x32x32xf32>
    %358 = vector.shape_cast %357 : vector<1x32x32xf32> to vector<32x32xf32>
    %cst_65 = arith.constant dense<0.000000e+00> : vector<2x32xf32>
    %359 = tpu.matmul %354, %358, %cst_65 {dimension_numbers = #tpu.dot_dimension_numbers<[1], [0], [0], [1], [0, 0, 1, 1], [], []>} : vector<2x32xf32>, vector<32x32xf32>, vector<2x32xf32> -> vector<2x32xf32>
    %360 = arith.addf %356, %359 : vector<2x32xf32>
    %361 = arith.negf %360 : vector<2x32xf32>
    %362 = math.exp %361 : vector<2x32xf32>
    %cst_66 = arith.constant 1.000000e+00 : f32
    %363 = vector.broadcast %cst_66 : f32 to vector<2x32xf32>
    %364 = arith.addf %363, %362 : vector<2x32xf32>
    %365 = arith.divf %363, %364 : vector<2x32xf32>
    %366 = vector.extract_strided_slice %21 {offsets = [7, 0, 0], sizes = [1, 2, 32], strides = [1, 1, 1]} : vector<8x2x32xf32> to vector<1x2x32xf32>
    %367 = vector.shape_cast %366 : vector<1x2x32xf32> to vector<2x32xf32>
    %368 = vector.extract_strided_slice %4 {offsets = [1, 0, 0], sizes = [1, 32, 32], strides = [1, 1, 1]} : vector<4x32x32xf32> to vector<1x32x32xf32>
    %369 = vector.shape_cast %368 : vector<1x32x32xf32> to vector<32x32xf32>
    %cst_67 = arith.constant dense<0.000000e+00> : vector<2x32xf32>
    %370 = tpu.matmul %354, %369, %cst_67 {dimension_numbers = #tpu.dot_dimension_numbers<[1], [0], [0], [1], [0, 0, 1, 1], [], []>} : vector<2x32xf32>, vector<32x32xf32>, vector<2x32xf32> -> vector<2x32xf32>
    %371 = arith.addf %367, %370 : vector<2x32xf32>
    %372 = arith.negf %371 : vector<2x32xf32>
    %373 = math.exp %372 : vector<2x32xf32>
    %cst_68 = arith.constant 1.000000e+00 : f32
    %374 = vector.broadcast %cst_68 : f32 to vector<2x32xf32>
    %375 = arith.addf %374, %373 : vector<2x32xf32>
    %376 = arith.divf %374, %375 : vector<2x32xf32>
    %377 = vector.extract_strided_slice %29 {offsets = [7, 0, 0], sizes = [1, 2, 32], strides = [1, 1, 1]} : vector<8x2x32xf32> to vector<1x2x32xf32>
    %378 = vector.shape_cast %377 : vector<1x2x32xf32> to vector<2x32xf32>
    %379 = vector.extract_strided_slice %4 {offsets = [2, 0, 0], sizes = [1, 32, 32], strides = [1, 1, 1]} : vector<4x32x32xf32> to vector<1x32x32xf32>
    %380 = vector.shape_cast %379 : vector<1x32x32xf32> to vector<32x32xf32>
    %cst_69 = arith.constant dense<0.000000e+00> : vector<2x32xf32>
    %381 = tpu.matmul %354, %380, %cst_69 {dimension_numbers = #tpu.dot_dimension_numbers<[1], [0], [0], [1], [0, 0, 1, 1], [], []>} : vector<2x32xf32>, vector<32x32xf32>, vector<2x32xf32> -> vector<2x32xf32>
    %382 = arith.addf %378, %381 : vector<2x32xf32>
    %383 = math.tanh %382 : vector<2x32xf32>
    %384 = vector.extract_strided_slice %37 {offsets = [7, 0, 0], sizes = [1, 2, 32], strides = [1, 1, 1]} : vector<8x2x32xf32> to vector<1x2x32xf32>
    %385 = vector.shape_cast %384 : vector<1x2x32xf32> to vector<2x32xf32>
    %386 = vector.extract_strided_slice %4 {offsets = [3, 0, 0], sizes = [1, 32, 32], strides = [1, 1, 1]} : vector<4x32x32xf32> to vector<1x32x32xf32>
    %387 = vector.shape_cast %386 : vector<1x32x32xf32> to vector<32x32xf32>
    %cst_70 = arith.constant dense<0.000000e+00> : vector<2x32xf32>
    %388 = tpu.matmul %354, %387, %cst_70 {dimension_numbers = #tpu.dot_dimension_numbers<[1], [0], [0], [1], [0, 0, 1, 1], [], []>} : vector<2x32xf32>, vector<32x32xf32>, vector<2x32xf32> -> vector<2x32xf32>
    %389 = arith.addf %385, %388 : vector<2x32xf32>
    %390 = arith.negf %389 : vector<2x32xf32>
    %391 = math.exp %390 : vector<2x32xf32>
    %cst_71 = arith.constant 1.000000e+00 : f32
    %392 = vector.broadcast %cst_71 : f32 to vector<2x32xf32>
    %393 = arith.addf %392, %391 : vector<2x32xf32>
    %394 = arith.divf %392, %393 : vector<2x32xf32>
    %395 = arith.mulf %376, %352 : vector<2x32xf32>
    %396 = arith.mulf %365, %383 : vector<2x32xf32>
    %397 = arith.addf %395, %396 : vector<2x32xf32>
    %398 = math.tanh %397 : vector<2x32xf32>
    %399 = arith.mulf %394, %398 : vector<2x32xf32>
    %400 = tpu.concatenate %84, %129, %174, %219, %264, %309, %354, %399 in 0 : vector<2x32xf32>, vector<2x32xf32>, vector<2x32xf32>, vector<2x32xf32>, vector<2x32xf32>, vector<2x32xf32>, vector<2x32xf32>, vector<2x32xf32> -> vector<16x32xf32>
    %c0_72 = arith.constant 0 : index
    %c0_73 = arith.constant 0 : index
    %c0_74 = arith.constant 0 : index
    %401 = vector.load %arg4[%c0_72, %c0_73, %c0_74] : memref<4x32x32xf32, #tpu.memory_space<vmem>>, vector<4x32x32xf32>
    %c0_75 = arith.constant 0 : index
    %c0_76 = arith.constant 0 : index
    %c0_77 = arith.constant 0 : index
    %402 = vector.load %arg5[%c0_75, %c0_76, %c0_77] : memref<4x32x32xf32, #tpu.memory_space<vmem>>, vector<4x32x32xf32>
    %c0_78 = arith.constant 0 : index
    %c0_79 = arith.constant 0 : index
    %c0_80 = arith.constant 0 : index
    %403 = vector.load %arg6[%c0_78, %c0_79, %c0_80] : memref<4x1x32xf32, #tpu.memory_space<vmem>>, vector<4x1x32xf32>
    %404 = vector.extract_strided_slice %401 {offsets = [0, 0, 0], sizes = [1, 32, 32], strides = [1, 1, 1]} : vector<4x32x32xf32> to vector<1x32x32xf32>
    %405 = vector.shape_cast %404 : vector<1x32x32xf32> to vector<32x32xf32>
    %cst_81 = arith.constant dense<0.000000e+00> : vector<16x32xf32>
    %406 = tpu.matmul %400, %405, %cst_81 {dimension_numbers = #tpu.dot_dimension_numbers<[1], [0], [0], [1], [0, 0, 1, 1], [], []>} : vector<16x32xf32>, vector<32x32xf32>, vector<16x32xf32> -> vector<16x32xf32>
    %407 = vector.extract_strided_slice %403 {offsets = [0, 0, 0], sizes = [1, 1, 32], strides = [1, 1, 1]} : vector<4x1x32xf32> to vector<1x1x32xf32>
    %408 = vector.shape_cast %407 : vector<1x1x32xf32> to vector<1x32xf32>
    %409 = vector.broadcast %408 : vector<1x32xf32> to vector<16x32xf32>
    %410 = arith.addf %406, %409 : vector<16x32xf32>
    %411 = vector.shape_cast %410 : vector<16x32xf32> to vector<8x2x32xf32>
    %412 = vector.extract_strided_slice %401 {offsets = [1, 0, 0], sizes = [1, 32, 32], strides = [1, 1, 1]} : vector<4x32x32xf32> to vector<1x32x32xf32>
    %413 = vector.shape_cast %412 : vector<1x32x32xf32> to vector<32x32xf32>
    %cst_82 = arith.constant dense<0.000000e+00> : vector<16x32xf32>
    %414 = tpu.matmul %400, %413, %cst_82 {dimension_numbers = #tpu.dot_dimension_numbers<[1], [0], [0], [1], [0, 0, 1, 1], [], []>} : vector<16x32xf32>, vector<32x32xf32>, vector<16x32xf32> -> vector<16x32xf32>
    %415 = vector.extract_strided_slice %403 {offsets = [1, 0, 0], sizes = [1, 1, 32], strides = [1, 1, 1]} : vector<4x1x32xf32> to vector<1x1x32xf32>
    %416 = vector.shape_cast %415 : vector<1x1x32xf32> to vector<1x32xf32>
    %417 = vector.broadcast %416 : vector<1x32xf32> to vector<16x32xf32>
    %418 = arith.addf %414, %417 : vector<16x32xf32>
    %419 = vector.shape_cast %418 : vector<16x32xf32> to vector<8x2x32xf32>
    %420 = vector.extract_strided_slice %401 {offsets = [2, 0, 0], sizes = [1, 32, 32], strides = [1, 1, 1]} : vector<4x32x32xf32> to vector<1x32x32xf32>
    %421 = vector.shape_cast %420 : vector<1x32x32xf32> to vector<32x32xf32>
    %cst_83 = arith.constant dense<0.000000e+00> : vector<16x32xf32>
    %422 = tpu.matmul %400, %421, %cst_83 {dimension_numbers = #tpu.dot_dimension_numbers<[1], [0], [0], [1], [0, 0, 1, 1], [], []>} : vector<16x32xf32>, vector<32x32xf32>, vector<16x32xf32> -> vector<16x32xf32>
    %423 = vector.extract_strided_slice %403 {offsets = [2, 0, 0], sizes = [1, 1, 32], strides = [1, 1, 1]} : vector<4x1x32xf32> to vector<1x1x32xf32>
    %424 = vector.shape_cast %423 : vector<1x1x32xf32> to vector<1x32xf32>
    %425 = vector.broadcast %424 : vector<1x32xf32> to vector<16x32xf32>
    %426 = arith.addf %422, %425 : vector<16x32xf32>
    %427 = vector.shape_cast %426 : vector<16x32xf32> to vector<8x2x32xf32>
    %428 = vector.extract_strided_slice %401 {offsets = [3, 0, 0], sizes = [1, 32, 32], strides = [1, 1, 1]} : vector<4x32x32xf32> to vector<1x32x32xf32>
    %429 = vector.shape_cast %428 : vector<1x32x32xf32> to vector<32x32xf32>
    %cst_84 = arith.constant dense<0.000000e+00> : vector<16x32xf32>
    %430 = tpu.matmul %400, %429, %cst_84 {dimension_numbers = #tpu.dot_dimension_numbers<[1], [0], [0], [1], [0, 0, 1, 1], [], []>} : vector<16x32xf32>, vector<32x32xf32>, vector<16x32xf32> -> vector<16x32xf32>
    %431 = vector.extract_strided_slice %403 {offsets = [3, 0, 0], sizes = [1, 1, 32], strides = [1, 1, 1]} : vector<4x1x32xf32> to vector<1x1x32xf32>
    %432 = vector.shape_cast %431 : vector<1x1x32xf32> to vector<1x32xf32>
    %433 = vector.broadcast %432 : vector<1x32xf32> to vector<16x32xf32>
    %434 = arith.addf %430, %433 : vector<16x32xf32>
    %435 = vector.shape_cast %434 : vector<16x32xf32> to vector<8x2x32xf32>
    %cst_85 = arith.constant 0.000000e+00 : f32
    %436 = vector.broadcast %cst_85 : f32 to vector<2x32xf32>
    %cst_86 = arith.constant 0.000000e+00 : f32
    %437 = vector.broadcast %cst_86 : f32 to vector<2x32xf32>
    %438 = vector.extract_strided_slice %411 {offsets = [0, 0, 0], sizes = [1, 2, 32], strides = [1, 1, 1]} : vector<8x2x32xf32> to vector<1x2x32xf32>
    %439 = vector.shape_cast %438 : vector<1x2x32xf32> to vector<2x32xf32>
    %440 = vector.extract_strided_slice %402 {offsets = [0, 0, 0], sizes = [1, 32, 32], strides = [1, 1, 1]} : vector<4x32x32xf32> to vector<1x32x32xf32>
    %441 = vector.shape_cast %440 : vector<1x32x32xf32> to vector<32x32xf32>
    %cst_87 = arith.constant dense<0.000000e+00> : vector<2x32xf32>
    %442 = tpu.matmul %436, %441, %cst_87 {dimension_numbers = #tpu.dot_dimension_numbers<[1], [0], [0], [1], [0, 0, 1, 1], [], []>} : vector<2x32xf32>, vector<32x32xf32>, vector<2x32xf32> -> vector<2x32xf32>
    %443 = arith.addf %439, %442 : vector<2x32xf32>
    %444 = arith.negf %443 : vector<2x32xf32>
    %445 = math.exp %444 : vector<2x32xf32>
    %cst_88 = arith.constant 1.000000e+00 : f32
    %446 = vector.broadcast %cst_88 : f32 to vector<2x32xf32>
    %447 = arith.addf %446, %445 : vector<2x32xf32>
    %448 = arith.divf %446, %447 : vector<2x32xf32>
    %449 = vector.extract_strided_slice %419 {offsets = [0, 0, 0], sizes = [1, 2, 32], strides = [1, 1, 1]} : vector<8x2x32xf32> to vector<1x2x32xf32>
    %450 = vector.shape_cast %449 : vector<1x2x32xf32> to vector<2x32xf32>
    %451 = vector.extract_strided_slice %402 {offsets = [1, 0, 0], sizes = [1, 32, 32], strides = [1, 1, 1]} : vector<4x32x32xf32> to vector<1x32x32xf32>
    %452 = vector.shape_cast %451 : vector<1x32x32xf32> to vector<32x32xf32>
    %cst_89 = arith.constant dense<0.000000e+00> : vector<2x32xf32>
    %453 = tpu.matmul %436, %452, %cst_89 {dimension_numbers = #tpu.dot_dimension_numbers<[1], [0], [0], [1], [0, 0, 1, 1], [], []>} : vector<2x32xf32>, vector<32x32xf32>, vector<2x32xf32> -> vector<2x32xf32>
    %454 = arith.addf %450, %453 : vector<2x32xf32>
    %455 = arith.negf %454 : vector<2x32xf32>
    %456 = math.exp %455 : vector<2x32xf32>
    %cst_90 = arith.constant 1.000000e+00 : f32
    %457 = vector.broadcast %cst_90 : f32 to vector<2x32xf32>
    %458 = arith.addf %457, %456 : vector<2x32xf32>
    %459 = arith.divf %457, %458 : vector<2x32xf32>
    %460 = vector.extract_strided_slice %427 {offsets = [0, 0, 0], sizes = [1, 2, 32], strides = [1, 1, 1]} : vector<8x2x32xf32> to vector<1x2x32xf32>
    %461 = vector.shape_cast %460 : vector<1x2x32xf32> to vector<2x32xf32>
    %462 = vector.extract_strided_slice %402 {offsets = [2, 0, 0], sizes = [1, 32, 32], strides = [1, 1, 1]} : vector<4x32x32xf32> to vector<1x32x32xf32>
    %463 = vector.shape_cast %462 : vector<1x32x32xf32> to vector<32x32xf32>
    %cst_91 = arith.constant dense<0.000000e+00> : vector<2x32xf32>
    %464 = tpu.matmul %436, %463, %cst_91 {dimension_numbers = #tpu.dot_dimension_numbers<[1], [0], [0], [1], [0, 0, 1, 1], [], []>} : vector<2x32xf32>, vector<32x32xf32>, vector<2x32xf32> -> vector<2x32xf32>
    %465 = arith.addf %461, %464 : vector<2x32xf32>
    %466 = math.tanh %465 : vector<2x32xf32>
    %467 = vector.extract_strided_slice %435 {offsets = [0, 0, 0], sizes = [1, 2, 32], strides = [1, 1, 1]} : vector<8x2x32xf32> to vector<1x2x32xf32>
    %468 = vector.shape_cast %467 : vector<1x2x32xf32> to vector<2x32xf32>
    %469 = vector.extract_strided_slice %402 {offsets = [3, 0, 0], sizes = [1, 32, 32], strides = [1, 1, 1]} : vector<4x32x32xf32> to vector<1x32x32xf32>
    %470 = vector.shape_cast %469 : vector<1x32x32xf32> to vector<32x32xf32>
    %cst_92 = arith.constant dense<0.000000e+00> : vector<2x32xf32>
    %471 = tpu.matmul %436, %470, %cst_92 {dimension_numbers = #tpu.dot_dimension_numbers<[1], [0], [0], [1], [0, 0, 1, 1], [], []>} : vector<2x32xf32>, vector<32x32xf32>, vector<2x32xf32> -> vector<2x32xf32>
    %472 = arith.addf %468, %471 : vector<2x32xf32>
    %473 = arith.negf %472 : vector<2x32xf32>
    %474 = math.exp %473 : vector<2x32xf32>
    %cst_93 = arith.constant 1.000000e+00 : f32
    %475 = vector.broadcast %cst_93 : f32 to vector<2x32xf32>
    %476 = arith.addf %475, %474 : vector<2x32xf32>
    %477 = arith.divf %475, %476 : vector<2x32xf32>
    %478 = arith.mulf %459, %437 : vector<2x32xf32>
    %479 = arith.mulf %448, %466 : vector<2x32xf32>
    %480 = arith.addf %478, %479 : vector<2x32xf32>
    %481 = math.tanh %480 : vector<2x32xf32>
    %482 = arith.mulf %477, %481 : vector<2x32xf32>
    %483 = vector.extract_strided_slice %411 {offsets = [1, 0, 0], sizes = [1, 2, 32], strides = [1, 1, 1]} : vector<8x2x32xf32> to vector<1x2x32xf32>
    %484 = vector.shape_cast %483 : vector<1x2x32xf32> to vector<2x32xf32>
    %485 = vector.extract_strided_slice %402 {offsets = [0, 0, 0], sizes = [1, 32, 32], strides = [1, 1, 1]} : vector<4x32x32xf32> to vector<1x32x32xf32>
    %486 = vector.shape_cast %485 : vector<1x32x32xf32> to vector<32x32xf32>
    %cst_94 = arith.constant dense<0.000000e+00> : vector<2x32xf32>
    %487 = tpu.matmul %482, %486, %cst_94 {dimension_numbers = #tpu.dot_dimension_numbers<[1], [0], [0], [1], [0, 0, 1, 1], [], []>} : vector<2x32xf32>, vector<32x32xf32>, vector<2x32xf32> -> vector<2x32xf32>
    %488 = arith.addf %484, %487 : vector<2x32xf32>
    %489 = arith.negf %488 : vector<2x32xf32>
    %490 = math.exp %489 : vector<2x32xf32>
    %cst_95 = arith.constant 1.000000e+00 : f32
    %491 = vector.broadcast %cst_95 : f32 to vector<2x32xf32>
    %492 = arith.addf %491, %490 : vector<2x32xf32>
    %493 = arith.divf %491, %492 : vector<2x32xf32>
    %494 = vector.extract_strided_slice %419 {offsets = [1, 0, 0], sizes = [1, 2, 32], strides = [1, 1, 1]} : vector<8x2x32xf32> to vector<1x2x32xf32>
    %495 = vector.shape_cast %494 : vector<1x2x32xf32> to vector<2x32xf32>
    %496 = vector.extract_strided_slice %402 {offsets = [1, 0, 0], sizes = [1, 32, 32], strides = [1, 1, 1]} : vector<4x32x32xf32> to vector<1x32x32xf32>
    %497 = vector.shape_cast %496 : vector<1x32x32xf32> to vector<32x32xf32>
    %cst_96 = arith.constant dense<0.000000e+00> : vector<2x32xf32>
    %498 = tpu.matmul %482, %497, %cst_96 {dimension_numbers = #tpu.dot_dimension_numbers<[1], [0], [0], [1], [0, 0, 1, 1], [], []>} : vector<2x32xf32>, vector<32x32xf32>, vector<2x32xf32> -> vector<2x32xf32>
    %499 = arith.addf %495, %498 : vector<2x32xf32>
    %500 = arith.negf %499 : vector<2x32xf32>
    %501 = math.exp %500 : vector<2x32xf32>
    %cst_97 = arith.constant 1.000000e+00 : f32
    %502 = vector.broadcast %cst_97 : f32 to vector<2x32xf32>
    %503 = arith.addf %502, %501 : vector<2x32xf32>
    %504 = arith.divf %502, %503 : vector<2x32xf32>
    %505 = vector.extract_strided_slice %427 {offsets = [1, 0, 0], sizes = [1, 2, 32], strides = [1, 1, 1]} : vector<8x2x32xf32> to vector<1x2x32xf32>
    %506 = vector.shape_cast %505 : vector<1x2x32xf32> to vector<2x32xf32>
    %507 = vector.extract_strided_slice %402 {offsets = [2, 0, 0], sizes = [1, 32, 32], strides = [1, 1, 1]} : vector<4x32x32xf32> to vector<1x32x32xf32>
    %508 = vector.shape_cast %507 : vector<1x32x32xf32> to vector<32x32xf32>
    %cst_98 = arith.constant dense<0.000000e+00> : vector<2x32xf32>
    %509 = tpu.matmul %482, %508, %cst_98 {dimension_numbers = #tpu.dot_dimension_numbers<[1], [0], [0], [1], [0, 0, 1, 1], [], []>} : vector<2x32xf32>, vector<32x32xf32>, vector<2x32xf32> -> vector<2x32xf32>
    %510 = arith.addf %506, %509 : vector<2x32xf32>
    %511 = math.tanh %510 : vector<2x32xf32>
    %512 = vector.extract_strided_slice %435 {offsets = [1, 0, 0], sizes = [1, 2, 32], strides = [1, 1, 1]} : vector<8x2x32xf32> to vector<1x2x32xf32>
    %513 = vector.shape_cast %512 : vector<1x2x32xf32> to vector<2x32xf32>
    %514 = vector.extract_strided_slice %402 {offsets = [3, 0, 0], sizes = [1, 32, 32], strides = [1, 1, 1]} : vector<4x32x32xf32> to vector<1x32x32xf32>
    %515 = vector.shape_cast %514 : vector<1x32x32xf32> to vector<32x32xf32>
    %cst_99 = arith.constant dense<0.000000e+00> : vector<2x32xf32>
    %516 = tpu.matmul %482, %515, %cst_99 {dimension_numbers = #tpu.dot_dimension_numbers<[1], [0], [0], [1], [0, 0, 1, 1], [], []>} : vector<2x32xf32>, vector<32x32xf32>, vector<2x32xf32> -> vector<2x32xf32>
    %517 = arith.addf %513, %516 : vector<2x32xf32>
    %518 = arith.negf %517 : vector<2x32xf32>
    %519 = math.exp %518 : vector<2x32xf32>
    %cst_100 = arith.constant 1.000000e+00 : f32
    %520 = vector.broadcast %cst_100 : f32 to vector<2x32xf32>
    %521 = arith.addf %520, %519 : vector<2x32xf32>
    %522 = arith.divf %520, %521 : vector<2x32xf32>
    %523 = arith.mulf %504, %480 : vector<2x32xf32>
    %524 = arith.mulf %493, %511 : vector<2x32xf32>
    %525 = arith.addf %523, %524 : vector<2x32xf32>
    %526 = math.tanh %525 : vector<2x32xf32>
    %527 = arith.mulf %522, %526 : vector<2x32xf32>
    %528 = vector.extract_strided_slice %411 {offsets = [2, 0, 0], sizes = [1, 2, 32], strides = [1, 1, 1]} : vector<8x2x32xf32> to vector<1x2x32xf32>
    %529 = vector.shape_cast %528 : vector<1x2x32xf32> to vector<2x32xf32>
    %530 = vector.extract_strided_slice %402 {offsets = [0, 0, 0], sizes = [1, 32, 32], strides = [1, 1, 1]} : vector<4x32x32xf32> to vector<1x32x32xf32>
    %531 = vector.shape_cast %530 : vector<1x32x32xf32> to vector<32x32xf32>
    %cst_101 = arith.constant dense<0.000000e+00> : vector<2x32xf32>
    %532 = tpu.matmul %527, %531, %cst_101 {dimension_numbers = #tpu.dot_dimension_numbers<[1], [0], [0], [1], [0, 0, 1, 1], [], []>} : vector<2x32xf32>, vector<32x32xf32>, vector<2x32xf32> -> vector<2x32xf32>
    %533 = arith.addf %529, %532 : vector<2x32xf32>
    %534 = arith.negf %533 : vector<2x32xf32>
    %535 = math.exp %534 : vector<2x32xf32>
    %cst_102 = arith.constant 1.000000e+00 : f32
    %536 = vector.broadcast %cst_102 : f32 to vector<2x32xf32>
    %537 = arith.addf %536, %535 : vector<2x32xf32>
    %538 = arith.divf %536, %537 : vector<2x32xf32>
    %539 = vector.extract_strided_slice %419 {offsets = [2, 0, 0], sizes = [1, 2, 32], strides = [1, 1, 1]} : vector<8x2x32xf32> to vector<1x2x32xf32>
    %540 = vector.shape_cast %539 : vector<1x2x32xf32> to vector<2x32xf32>
    %541 = vector.extract_strided_slice %402 {offsets = [1, 0, 0], sizes = [1, 32, 32], strides = [1, 1, 1]} : vector<4x32x32xf32> to vector<1x32x32xf32>
    %542 = vector.shape_cast %541 : vector<1x32x32xf32> to vector<32x32xf32>
    %cst_103 = arith.constant dense<0.000000e+00> : vector<2x32xf32>
    %543 = tpu.matmul %527, %542, %cst_103 {dimension_numbers = #tpu.dot_dimension_numbers<[1], [0], [0], [1], [0, 0, 1, 1], [], []>} : vector<2x32xf32>, vector<32x32xf32>, vector<2x32xf32> -> vector<2x32xf32>
    %544 = arith.addf %540, %543 : vector<2x32xf32>
    %545 = arith.negf %544 : vector<2x32xf32>
    %546 = math.exp %545 : vector<2x32xf32>
    %cst_104 = arith.constant 1.000000e+00 : f32
    %547 = vector.broadcast %cst_104 : f32 to vector<2x32xf32>
    %548 = arith.addf %547, %546 : vector<2x32xf32>
    %549 = arith.divf %547, %548 : vector<2x32xf32>
    %550 = vector.extract_strided_slice %427 {offsets = [2, 0, 0], sizes = [1, 2, 32], strides = [1, 1, 1]} : vector<8x2x32xf32> to vector<1x2x32xf32>
    %551 = vector.shape_cast %550 : vector<1x2x32xf32> to vector<2x32xf32>
    %552 = vector.extract_strided_slice %402 {offsets = [2, 0, 0], sizes = [1, 32, 32], strides = [1, 1, 1]} : vector<4x32x32xf32> to vector<1x32x32xf32>
    %553 = vector.shape_cast %552 : vector<1x32x32xf32> to vector<32x32xf32>
    %cst_105 = arith.constant dense<0.000000e+00> : vector<2x32xf32>
    %554 = tpu.matmul %527, %553, %cst_105 {dimension_numbers = #tpu.dot_dimension_numbers<[1], [0], [0], [1], [0, 0, 1, 1], [], []>} : vector<2x32xf32>, vector<32x32xf32>, vector<2x32xf32> -> vector<2x32xf32>
    %555 = arith.addf %551, %554 : vector<2x32xf32>
    %556 = math.tanh %555 : vector<2x32xf32>
    %557 = vector.extract_strided_slice %435 {offsets = [2, 0, 0], sizes = [1, 2, 32], strides = [1, 1, 1]} : vector<8x2x32xf32> to vector<1x2x32xf32>
    %558 = vector.shape_cast %557 : vector<1x2x32xf32> to vector<2x32xf32>
    %559 = vector.extract_strided_slice %402 {offsets = [3, 0, 0], sizes = [1, 32, 32], strides = [1, 1, 1]} : vector<4x32x32xf32> to vector<1x32x32xf32>
    %560 = vector.shape_cast %559 : vector<1x32x32xf32> to vector<32x32xf32>
    %cst_106 = arith.constant dense<0.000000e+00> : vector<2x32xf32>
    %561 = tpu.matmul %527, %560, %cst_106 {dimension_numbers = #tpu.dot_dimension_numbers<[1], [0], [0], [1], [0, 0, 1, 1], [], []>} : vector<2x32xf32>, vector<32x32xf32>, vector<2x32xf32> -> vector<2x32xf32>
    %562 = arith.addf %558, %561 : vector<2x32xf32>
    %563 = arith.negf %562 : vector<2x32xf32>
    %564 = math.exp %563 : vector<2x32xf32>
    %cst_107 = arith.constant 1.000000e+00 : f32
    %565 = vector.broadcast %cst_107 : f32 to vector<2x32xf32>
    %566 = arith.addf %565, %564 : vector<2x32xf32>
    %567 = arith.divf %565, %566 : vector<2x32xf32>
    %568 = arith.mulf %549, %525 : vector<2x32xf32>
    %569 = arith.mulf %538, %556 : vector<2x32xf32>
    %570 = arith.addf %568, %569 : vector<2x32xf32>
    %571 = math.tanh %570 : vector<2x32xf32>
    %572 = arith.mulf %567, %571 : vector<2x32xf32>
    %573 = vector.extract_strided_slice %411 {offsets = [3, 0, 0], sizes = [1, 2, 32], strides = [1, 1, 1]} : vector<8x2x32xf32> to vector<1x2x32xf32>
    %574 = vector.shape_cast %573 : vector<1x2x32xf32> to vector<2x32xf32>
    %575 = vector.extract_strided_slice %402 {offsets = [0, 0, 0], sizes = [1, 32, 32], strides = [1, 1, 1]} : vector<4x32x32xf32> to vector<1x32x32xf32>
    %576 = vector.shape_cast %575 : vector<1x32x32xf32> to vector<32x32xf32>
    %cst_108 = arith.constant dense<0.000000e+00> : vector<2x32xf32>
    %577 = tpu.matmul %572, %576, %cst_108 {dimension_numbers = #tpu.dot_dimension_numbers<[1], [0], [0], [1], [0, 0, 1, 1], [], []>} : vector<2x32xf32>, vector<32x32xf32>, vector<2x32xf32> -> vector<2x32xf32>
    %578 = arith.addf %574, %577 : vector<2x32xf32>
    %579 = arith.negf %578 : vector<2x32xf32>
    %580 = math.exp %579 : vector<2x32xf32>
    %cst_109 = arith.constant 1.000000e+00 : f32
    %581 = vector.broadcast %cst_109 : f32 to vector<2x32xf32>
    %582 = arith.addf %581, %580 : vector<2x32xf32>
    %583 = arith.divf %581, %582 : vector<2x32xf32>
    %584 = vector.extract_strided_slice %419 {offsets = [3, 0, 0], sizes = [1, 2, 32], strides = [1, 1, 1]} : vector<8x2x32xf32> to vector<1x2x32xf32>
    %585 = vector.shape_cast %584 : vector<1x2x32xf32> to vector<2x32xf32>
    %586 = vector.extract_strided_slice %402 {offsets = [1, 0, 0], sizes = [1, 32, 32], strides = [1, 1, 1]} : vector<4x32x32xf32> to vector<1x32x32xf32>
    %587 = vector.shape_cast %586 : vector<1x32x32xf32> to vector<32x32xf32>
    %cst_110 = arith.constant dense<0.000000e+00> : vector<2x32xf32>
    %588 = tpu.matmul %572, %587, %cst_110 {dimension_numbers = #tpu.dot_dimension_numbers<[1], [0], [0], [1], [0, 0, 1, 1], [], []>} : vector<2x32xf32>, vector<32x32xf32>, vector<2x32xf32> -> vector<2x32xf32>
    %589 = arith.addf %585, %588 : vector<2x32xf32>
    %590 = arith.negf %589 : vector<2x32xf32>
    %591 = math.exp %590 : vector<2x32xf32>
    %cst_111 = arith.constant 1.000000e+00 : f32
    %592 = vector.broadcast %cst_111 : f32 to vector<2x32xf32>
    %593 = arith.addf %592, %591 : vector<2x32xf32>
    %594 = arith.divf %592, %593 : vector<2x32xf32>
    %595 = vector.extract_strided_slice %427 {offsets = [3, 0, 0], sizes = [1, 2, 32], strides = [1, 1, 1]} : vector<8x2x32xf32> to vector<1x2x32xf32>
    %596 = vector.shape_cast %595 : vector<1x2x32xf32> to vector<2x32xf32>
    %597 = vector.extract_strided_slice %402 {offsets = [2, 0, 0], sizes = [1, 32, 32], strides = [1, 1, 1]} : vector<4x32x32xf32> to vector<1x32x32xf32>
    %598 = vector.shape_cast %597 : vector<1x32x32xf32> to vector<32x32xf32>
    %cst_112 = arith.constant dense<0.000000e+00> : vector<2x32xf32>
    %599 = tpu.matmul %572, %598, %cst_112 {dimension_numbers = #tpu.dot_dimension_numbers<[1], [0], [0], [1], [0, 0, 1, 1], [], []>} : vector<2x32xf32>, vector<32x32xf32>, vector<2x32xf32> -> vector<2x32xf32>
    %600 = arith.addf %596, %599 : vector<2x32xf32>
    %601 = math.tanh %600 : vector<2x32xf32>
    %602 = vector.extract_strided_slice %435 {offsets = [3, 0, 0], sizes = [1, 2, 32], strides = [1, 1, 1]} : vector<8x2x32xf32> to vector<1x2x32xf32>
    %603 = vector.shape_cast %602 : vector<1x2x32xf32> to vector<2x32xf32>
    %604 = vector.extract_strided_slice %402 {offsets = [3, 0, 0], sizes = [1, 32, 32], strides = [1, 1, 1]} : vector<4x32x32xf32> to vector<1x32x32xf32>
    %605 = vector.shape_cast %604 : vector<1x32x32xf32> to vector<32x32xf32>
    %cst_113 = arith.constant dense<0.000000e+00> : vector<2x32xf32>
    %606 = tpu.matmul %572, %605, %cst_113 {dimension_numbers = #tpu.dot_dimension_numbers<[1], [0], [0], [1], [0, 0, 1, 1], [], []>} : vector<2x32xf32>, vector<32x32xf32>, vector<2x32xf32> -> vector<2x32xf32>
    %607 = arith.addf %603, %606 : vector<2x32xf32>
    %608 = arith.negf %607 : vector<2x32xf32>
    %609 = math.exp %608 : vector<2x32xf32>
    %cst_114 = arith.constant 1.000000e+00 : f32
    %610 = vector.broadcast %cst_114 : f32 to vector<2x32xf32>
    %611 = arith.addf %610, %609 : vector<2x32xf32>
    %612 = arith.divf %610, %611 : vector<2x32xf32>
    %613 = arith.mulf %594, %570 : vector<2x32xf32>
    %614 = arith.mulf %583, %601 : vector<2x32xf32>
    %615 = arith.addf %613, %614 : vector<2x32xf32>
    %616 = math.tanh %615 : vector<2x32xf32>
    %617 = arith.mulf %612, %616 : vector<2x32xf32>
    %618 = vector.extract_strided_slice %411 {offsets = [4, 0, 0], sizes = [1, 2, 32], strides = [1, 1, 1]} : vector<8x2x32xf32> to vector<1x2x32xf32>
    %619 = vector.shape_cast %618 : vector<1x2x32xf32> to vector<2x32xf32>
    %620 = vector.extract_strided_slice %402 {offsets = [0, 0, 0], sizes = [1, 32, 32], strides = [1, 1, 1]} : vector<4x32x32xf32> to vector<1x32x32xf32>
    %621 = vector.shape_cast %620 : vector<1x32x32xf32> to vector<32x32xf32>
    %cst_115 = arith.constant dense<0.000000e+00> : vector<2x32xf32>
    %622 = tpu.matmul %617, %621, %cst_115 {dimension_numbers = #tpu.dot_dimension_numbers<[1], [0], [0], [1], [0, 0, 1, 1], [], []>} : vector<2x32xf32>, vector<32x32xf32>, vector<2x32xf32> -> vector<2x32xf32>
    %623 = arith.addf %619, %622 : vector<2x32xf32>
    %624 = arith.negf %623 : vector<2x32xf32>
    %625 = math.exp %624 : vector<2x32xf32>
    %cst_116 = arith.constant 1.000000e+00 : f32
    %626 = vector.broadcast %cst_116 : f32 to vector<2x32xf32>
    %627 = arith.addf %626, %625 : vector<2x32xf32>
    %628 = arith.divf %626, %627 : vector<2x32xf32>
    %629 = vector.extract_strided_slice %419 {offsets = [4, 0, 0], sizes = [1, 2, 32], strides = [1, 1, 1]} : vector<8x2x32xf32> to vector<1x2x32xf32>
    %630 = vector.shape_cast %629 : vector<1x2x32xf32> to vector<2x32xf32>
    %631 = vector.extract_strided_slice %402 {offsets = [1, 0, 0], sizes = [1, 32, 32], strides = [1, 1, 1]} : vector<4x32x32xf32> to vector<1x32x32xf32>
    %632 = vector.shape_cast %631 : vector<1x32x32xf32> to vector<32x32xf32>
    %cst_117 = arith.constant dense<0.000000e+00> : vector<2x32xf32>
    %633 = tpu.matmul %617, %632, %cst_117 {dimension_numbers = #tpu.dot_dimension_numbers<[1], [0], [0], [1], [0, 0, 1, 1], [], []>} : vector<2x32xf32>, vector<32x32xf32>, vector<2x32xf32> -> vector<2x32xf32>
    %634 = arith.addf %630, %633 : vector<2x32xf32>
    %635 = arith.negf %634 : vector<2x32xf32>
    %636 = math.exp %635 : vector<2x32xf32>
    %cst_118 = arith.constant 1.000000e+00 : f32
    %637 = vector.broadcast %cst_118 : f32 to vector<2x32xf32>
    %638 = arith.addf %637, %636 : vector<2x32xf32>
    %639 = arith.divf %637, %638 : vector<2x32xf32>
    %640 = vector.extract_strided_slice %427 {offsets = [4, 0, 0], sizes = [1, 2, 32], strides = [1, 1, 1]} : vector<8x2x32xf32> to vector<1x2x32xf32>
    %641 = vector.shape_cast %640 : vector<1x2x32xf32> to vector<2x32xf32>
    %642 = vector.extract_strided_slice %402 {offsets = [2, 0, 0], sizes = [1, 32, 32], strides = [1, 1, 1]} : vector<4x32x32xf32> to vector<1x32x32xf32>
    %643 = vector.shape_cast %642 : vector<1x32x32xf32> to vector<32x32xf32>
    %cst_119 = arith.constant dense<0.000000e+00> : vector<2x32xf32>
    %644 = tpu.matmul %617, %643, %cst_119 {dimension_numbers = #tpu.dot_dimension_numbers<[1], [0], [0], [1], [0, 0, 1, 1], [], []>} : vector<2x32xf32>, vector<32x32xf32>, vector<2x32xf32> -> vector<2x32xf32>
    %645 = arith.addf %641, %644 : vector<2x32xf32>
    %646 = math.tanh %645 : vector<2x32xf32>
    %647 = vector.extract_strided_slice %435 {offsets = [4, 0, 0], sizes = [1, 2, 32], strides = [1, 1, 1]} : vector<8x2x32xf32> to vector<1x2x32xf32>
    %648 = vector.shape_cast %647 : vector<1x2x32xf32> to vector<2x32xf32>
    %649 = vector.extract_strided_slice %402 {offsets = [3, 0, 0], sizes = [1, 32, 32], strides = [1, 1, 1]} : vector<4x32x32xf32> to vector<1x32x32xf32>
    %650 = vector.shape_cast %649 : vector<1x32x32xf32> to vector<32x32xf32>
    %cst_120 = arith.constant dense<0.000000e+00> : vector<2x32xf32>
    %651 = tpu.matmul %617, %650, %cst_120 {dimension_numbers = #tpu.dot_dimension_numbers<[1], [0], [0], [1], [0, 0, 1, 1], [], []>} : vector<2x32xf32>, vector<32x32xf32>, vector<2x32xf32> -> vector<2x32xf32>
    %652 = arith.addf %648, %651 : vector<2x32xf32>
    %653 = arith.negf %652 : vector<2x32xf32>
    %654 = math.exp %653 : vector<2x32xf32>
    %cst_121 = arith.constant 1.000000e+00 : f32
    %655 = vector.broadcast %cst_121 : f32 to vector<2x32xf32>
    %656 = arith.addf %655, %654 : vector<2x32xf32>
    %657 = arith.divf %655, %656 : vector<2x32xf32>
    %658 = arith.mulf %639, %615 : vector<2x32xf32>
    %659 = arith.mulf %628, %646 : vector<2x32xf32>
    %660 = arith.addf %658, %659 : vector<2x32xf32>
    %661 = math.tanh %660 : vector<2x32xf32>
    %662 = arith.mulf %657, %661 : vector<2x32xf32>
    %663 = vector.extract_strided_slice %411 {offsets = [5, 0, 0], sizes = [1, 2, 32], strides = [1, 1, 1]} : vector<8x2x32xf32> to vector<1x2x32xf32>
    %664 = vector.shape_cast %663 : vector<1x2x32xf32> to vector<2x32xf32>
    %665 = vector.extract_strided_slice %402 {offsets = [0, 0, 0], sizes = [1, 32, 32], strides = [1, 1, 1]} : vector<4x32x32xf32> to vector<1x32x32xf32>
    %666 = vector.shape_cast %665 : vector<1x32x32xf32> to vector<32x32xf32>
    %cst_122 = arith.constant dense<0.000000e+00> : vector<2x32xf32>
    %667 = tpu.matmul %662, %666, %cst_122 {dimension_numbers = #tpu.dot_dimension_numbers<[1], [0], [0], [1], [0, 0, 1, 1], [], []>} : vector<2x32xf32>, vector<32x32xf32>, vector<2x32xf32> -> vector<2x32xf32>
    %668 = arith.addf %664, %667 : vector<2x32xf32>
    %669 = arith.negf %668 : vector<2x32xf32>
    %670 = math.exp %669 : vector<2x32xf32>
    %cst_123 = arith.constant 1.000000e+00 : f32
    %671 = vector.broadcast %cst_123 : f32 to vector<2x32xf32>
    %672 = arith.addf %671, %670 : vector<2x32xf32>
    %673 = arith.divf %671, %672 : vector<2x32xf32>
    %674 = vector.extract_strided_slice %419 {offsets = [5, 0, 0], sizes = [1, 2, 32], strides = [1, 1, 1]} : vector<8x2x32xf32> to vector<1x2x32xf32>
    %675 = vector.shape_cast %674 : vector<1x2x32xf32> to vector<2x32xf32>
    %676 = vector.extract_strided_slice %402 {offsets = [1, 0, 0], sizes = [1, 32, 32], strides = [1, 1, 1]} : vector<4x32x32xf32> to vector<1x32x32xf32>
    %677 = vector.shape_cast %676 : vector<1x32x32xf32> to vector<32x32xf32>
    %cst_124 = arith.constant dense<0.000000e+00> : vector<2x32xf32>
    %678 = tpu.matmul %662, %677, %cst_124 {dimension_numbers = #tpu.dot_dimension_numbers<[1], [0], [0], [1], [0, 0, 1, 1], [], []>} : vector<2x32xf32>, vector<32x32xf32>, vector<2x32xf32> -> vector<2x32xf32>
    %679 = arith.addf %675, %678 : vector<2x32xf32>
    %680 = arith.negf %679 : vector<2x32xf32>
    %681 = math.exp %680 : vector<2x32xf32>
    %cst_125 = arith.constant 1.000000e+00 : f32
    %682 = vector.broadcast %cst_125 : f32 to vector<2x32xf32>
    %683 = arith.addf %682, %681 : vector<2x32xf32>
    %684 = arith.divf %682, %683 : vector<2x32xf32>
    %685 = vector.extract_strided_slice %427 {offsets = [5, 0, 0], sizes = [1, 2, 32], strides = [1, 1, 1]} : vector<8x2x32xf32> to vector<1x2x32xf32>
    %686 = vector.shape_cast %685 : vector<1x2x32xf32> to vector<2x32xf32>
    %687 = vector.extract_strided_slice %402 {offsets = [2, 0, 0], sizes = [1, 32, 32], strides = [1, 1, 1]} : vector<4x32x32xf32> to vector<1x32x32xf32>
    %688 = vector.shape_cast %687 : vector<1x32x32xf32> to vector<32x32xf32>
    %cst_126 = arith.constant dense<0.000000e+00> : vector<2x32xf32>
    %689 = tpu.matmul %662, %688, %cst_126 {dimension_numbers = #tpu.dot_dimension_numbers<[1], [0], [0], [1], [0, 0, 1, 1], [], []>} : vector<2x32xf32>, vector<32x32xf32>, vector<2x32xf32> -> vector<2x32xf32>
    %690 = arith.addf %686, %689 : vector<2x32xf32>
    %691 = math.tanh %690 : vector<2x32xf32>
    %692 = vector.extract_strided_slice %435 {offsets = [5, 0, 0], sizes = [1, 2, 32], strides = [1, 1, 1]} : vector<8x2x32xf32> to vector<1x2x32xf32>
    %693 = vector.shape_cast %692 : vector<1x2x32xf32> to vector<2x32xf32>
    %694 = vector.extract_strided_slice %402 {offsets = [3, 0, 0], sizes = [1, 32, 32], strides = [1, 1, 1]} : vector<4x32x32xf32> to vector<1x32x32xf32>
    %695 = vector.shape_cast %694 : vector<1x32x32xf32> to vector<32x32xf32>
    %cst_127 = arith.constant dense<0.000000e+00> : vector<2x32xf32>
    %696 = tpu.matmul %662, %695, %cst_127 {dimension_numbers = #tpu.dot_dimension_numbers<[1], [0], [0], [1], [0, 0, 1, 1], [], []>} : vector<2x32xf32>, vector<32x32xf32>, vector<2x32xf32> -> vector<2x32xf32>
    %697 = arith.addf %693, %696 : vector<2x32xf32>
    %698 = arith.negf %697 : vector<2x32xf32>
    %699 = math.exp %698 : vector<2x32xf32>
    %cst_128 = arith.constant 1.000000e+00 : f32
    %700 = vector.broadcast %cst_128 : f32 to vector<2x32xf32>
    %701 = arith.addf %700, %699 : vector<2x32xf32>
    %702 = arith.divf %700, %701 : vector<2x32xf32>
    %703 = arith.mulf %684, %660 : vector<2x32xf32>
    %704 = arith.mulf %673, %691 : vector<2x32xf32>
    %705 = arith.addf %703, %704 : vector<2x32xf32>
    %706 = math.tanh %705 : vector<2x32xf32>
    %707 = arith.mulf %702, %706 : vector<2x32xf32>
    %708 = vector.extract_strided_slice %411 {offsets = [6, 0, 0], sizes = [1, 2, 32], strides = [1, 1, 1]} : vector<8x2x32xf32> to vector<1x2x32xf32>
    %709 = vector.shape_cast %708 : vector<1x2x32xf32> to vector<2x32xf32>
    %710 = vector.extract_strided_slice %402 {offsets = [0, 0, 0], sizes = [1, 32, 32], strides = [1, 1, 1]} : vector<4x32x32xf32> to vector<1x32x32xf32>
    %711 = vector.shape_cast %710 : vector<1x32x32xf32> to vector<32x32xf32>
    %cst_129 = arith.constant dense<0.000000e+00> : vector<2x32xf32>
    %712 = tpu.matmul %707, %711, %cst_129 {dimension_numbers = #tpu.dot_dimension_numbers<[1], [0], [0], [1], [0, 0, 1, 1], [], []>} : vector<2x32xf32>, vector<32x32xf32>, vector<2x32xf32> -> vector<2x32xf32>
    %713 = arith.addf %709, %712 : vector<2x32xf32>
    %714 = arith.negf %713 : vector<2x32xf32>
    %715 = math.exp %714 : vector<2x32xf32>
    %cst_130 = arith.constant 1.000000e+00 : f32
    %716 = vector.broadcast %cst_130 : f32 to vector<2x32xf32>
    %717 = arith.addf %716, %715 : vector<2x32xf32>
    %718 = arith.divf %716, %717 : vector<2x32xf32>
    %719 = vector.extract_strided_slice %419 {offsets = [6, 0, 0], sizes = [1, 2, 32], strides = [1, 1, 1]} : vector<8x2x32xf32> to vector<1x2x32xf32>
    %720 = vector.shape_cast %719 : vector<1x2x32xf32> to vector<2x32xf32>
    %721 = vector.extract_strided_slice %402 {offsets = [1, 0, 0], sizes = [1, 32, 32], strides = [1, 1, 1]} : vector<4x32x32xf32> to vector<1x32x32xf32>
    %722 = vector.shape_cast %721 : vector<1x32x32xf32> to vector<32x32xf32>
    %cst_131 = arith.constant dense<0.000000e+00> : vector<2x32xf32>
    %723 = tpu.matmul %707, %722, %cst_131 {dimension_numbers = #tpu.dot_dimension_numbers<[1], [0], [0], [1], [0, 0, 1, 1], [], []>} : vector<2x32xf32>, vector<32x32xf32>, vector<2x32xf32> -> vector<2x32xf32>
    %724 = arith.addf %720, %723 : vector<2x32xf32>
    %725 = arith.negf %724 : vector<2x32xf32>
    %726 = math.exp %725 : vector<2x32xf32>
    %cst_132 = arith.constant 1.000000e+00 : f32
    %727 = vector.broadcast %cst_132 : f32 to vector<2x32xf32>
    %728 = arith.addf %727, %726 : vector<2x32xf32>
    %729 = arith.divf %727, %728 : vector<2x32xf32>
    %730 = vector.extract_strided_slice %427 {offsets = [6, 0, 0], sizes = [1, 2, 32], strides = [1, 1, 1]} : vector<8x2x32xf32> to vector<1x2x32xf32>
    %731 = vector.shape_cast %730 : vector<1x2x32xf32> to vector<2x32xf32>
    %732 = vector.extract_strided_slice %402 {offsets = [2, 0, 0], sizes = [1, 32, 32], strides = [1, 1, 1]} : vector<4x32x32xf32> to vector<1x32x32xf32>
    %733 = vector.shape_cast %732 : vector<1x32x32xf32> to vector<32x32xf32>
    %cst_133 = arith.constant dense<0.000000e+00> : vector<2x32xf32>
    %734 = tpu.matmul %707, %733, %cst_133 {dimension_numbers = #tpu.dot_dimension_numbers<[1], [0], [0], [1], [0, 0, 1, 1], [], []>} : vector<2x32xf32>, vector<32x32xf32>, vector<2x32xf32> -> vector<2x32xf32>
    %735 = arith.addf %731, %734 : vector<2x32xf32>
    %736 = math.tanh %735 : vector<2x32xf32>
    %737 = vector.extract_strided_slice %435 {offsets = [6, 0, 0], sizes = [1, 2, 32], strides = [1, 1, 1]} : vector<8x2x32xf32> to vector<1x2x32xf32>
    %738 = vector.shape_cast %737 : vector<1x2x32xf32> to vector<2x32xf32>
    %739 = vector.extract_strided_slice %402 {offsets = [3, 0, 0], sizes = [1, 32, 32], strides = [1, 1, 1]} : vector<4x32x32xf32> to vector<1x32x32xf32>
    %740 = vector.shape_cast %739 : vector<1x32x32xf32> to vector<32x32xf32>
    %cst_134 = arith.constant dense<0.000000e+00> : vector<2x32xf32>
    %741 = tpu.matmul %707, %740, %cst_134 {dimension_numbers = #tpu.dot_dimension_numbers<[1], [0], [0], [1], [0, 0, 1, 1], [], []>} : vector<2x32xf32>, vector<32x32xf32>, vector<2x32xf32> -> vector<2x32xf32>
    %742 = arith.addf %738, %741 : vector<2x32xf32>
    %743 = arith.negf %742 : vector<2x32xf32>
    %744 = math.exp %743 : vector<2x32xf32>
    %cst_135 = arith.constant 1.000000e+00 : f32
    %745 = vector.broadcast %cst_135 : f32 to vector<2x32xf32>
    %746 = arith.addf %745, %744 : vector<2x32xf32>
    %747 = arith.divf %745, %746 : vector<2x32xf32>
    %748 = arith.mulf %729, %705 : vector<2x32xf32>
    %749 = arith.mulf %718, %736 : vector<2x32xf32>
    %750 = arith.addf %748, %749 : vector<2x32xf32>
    %751 = math.tanh %750 : vector<2x32xf32>
    %752 = arith.mulf %747, %751 : vector<2x32xf32>
    %753 = vector.extract_strided_slice %411 {offsets = [7, 0, 0], sizes = [1, 2, 32], strides = [1, 1, 1]} : vector<8x2x32xf32> to vector<1x2x32xf32>
    %754 = vector.shape_cast %753 : vector<1x2x32xf32> to vector<2x32xf32>
    %755 = vector.extract_strided_slice %402 {offsets = [0, 0, 0], sizes = [1, 32, 32], strides = [1, 1, 1]} : vector<4x32x32xf32> to vector<1x32x32xf32>
    %756 = vector.shape_cast %755 : vector<1x32x32xf32> to vector<32x32xf32>
    %cst_136 = arith.constant dense<0.000000e+00> : vector<2x32xf32>
    %757 = tpu.matmul %752, %756, %cst_136 {dimension_numbers = #tpu.dot_dimension_numbers<[1], [0], [0], [1], [0, 0, 1, 1], [], []>} : vector<2x32xf32>, vector<32x32xf32>, vector<2x32xf32> -> vector<2x32xf32>
    %758 = arith.addf %754, %757 : vector<2x32xf32>
    %759 = arith.negf %758 : vector<2x32xf32>
    %760 = math.exp %759 : vector<2x32xf32>
    %cst_137 = arith.constant 1.000000e+00 : f32
    %761 = vector.broadcast %cst_137 : f32 to vector<2x32xf32>
    %762 = arith.addf %761, %760 : vector<2x32xf32>
    %763 = arith.divf %761, %762 : vector<2x32xf32>
    %764 = vector.extract_strided_slice %419 {offsets = [7, 0, 0], sizes = [1, 2, 32], strides = [1, 1, 1]} : vector<8x2x32xf32> to vector<1x2x32xf32>
    %765 = vector.shape_cast %764 : vector<1x2x32xf32> to vector<2x32xf32>
    %766 = vector.extract_strided_slice %402 {offsets = [1, 0, 0], sizes = [1, 32, 32], strides = [1, 1, 1]} : vector<4x32x32xf32> to vector<1x32x32xf32>
    %767 = vector.shape_cast %766 : vector<1x32x32xf32> to vector<32x32xf32>
    %cst_138 = arith.constant dense<0.000000e+00> : vector<2x32xf32>
    %768 = tpu.matmul %752, %767, %cst_138 {dimension_numbers = #tpu.dot_dimension_numbers<[1], [0], [0], [1], [0, 0, 1, 1], [], []>} : vector<2x32xf32>, vector<32x32xf32>, vector<2x32xf32> -> vector<2x32xf32>
    %769 = arith.addf %765, %768 : vector<2x32xf32>
    %770 = arith.negf %769 : vector<2x32xf32>
    %771 = math.exp %770 : vector<2x32xf32>
    %cst_139 = arith.constant 1.000000e+00 : f32
    %772 = vector.broadcast %cst_139 : f32 to vector<2x32xf32>
    %773 = arith.addf %772, %771 : vector<2x32xf32>
    %774 = arith.divf %772, %773 : vector<2x32xf32>
    %775 = vector.extract_strided_slice %427 {offsets = [7, 0, 0], sizes = [1, 2, 32], strides = [1, 1, 1]} : vector<8x2x32xf32> to vector<1x2x32xf32>
    %776 = vector.shape_cast %775 : vector<1x2x32xf32> to vector<2x32xf32>
    %777 = vector.extract_strided_slice %402 {offsets = [2, 0, 0], sizes = [1, 32, 32], strides = [1, 1, 1]} : vector<4x32x32xf32> to vector<1x32x32xf32>
    %778 = vector.shape_cast %777 : vector<1x32x32xf32> to vector<32x32xf32>
    %cst_140 = arith.constant dense<0.000000e+00> : vector<2x32xf32>
    %779 = tpu.matmul %752, %778, %cst_140 {dimension_numbers = #tpu.dot_dimension_numbers<[1], [0], [0], [1], [0, 0, 1, 1], [], []>} : vector<2x32xf32>, vector<32x32xf32>, vector<2x32xf32> -> vector<2x32xf32>
    %780 = arith.addf %776, %779 : vector<2x32xf32>
    %781 = math.tanh %780 : vector<2x32xf32>
    %782 = vector.extract_strided_slice %435 {offsets = [7, 0, 0], sizes = [1, 2, 32], strides = [1, 1, 1]} : vector<8x2x32xf32> to vector<1x2x32xf32>
    %783 = vector.shape_cast %782 : vector<1x2x32xf32> to vector<2x32xf32>
    %784 = vector.extract_strided_slice %402 {offsets = [3, 0, 0], sizes = [1, 32, 32], strides = [1, 1, 1]} : vector<4x32x32xf32> to vector<1x32x32xf32>
    %785 = vector.shape_cast %784 : vector<1x32x32xf32> to vector<32x32xf32>
    %cst_141 = arith.constant dense<0.000000e+00> : vector<2x32xf32>
    %786 = tpu.matmul %752, %785, %cst_141 {dimension_numbers = #tpu.dot_dimension_numbers<[1], [0], [0], [1], [0, 0, 1, 1], [], []>} : vector<2x32xf32>, vector<32x32xf32>, vector<2x32xf32> -> vector<2x32xf32>
    %787 = arith.addf %783, %786 : vector<2x32xf32>
    %788 = arith.negf %787 : vector<2x32xf32>
    %789 = math.exp %788 : vector<2x32xf32>
    %cst_142 = arith.constant 1.000000e+00 : f32
    %790 = vector.broadcast %cst_142 : f32 to vector<2x32xf32>
    %791 = arith.addf %790, %789 : vector<2x32xf32>
    %792 = arith.divf %790, %791 : vector<2x32xf32>
    %793 = arith.mulf %774, %750 : vector<2x32xf32>
    %794 = arith.mulf %763, %781 : vector<2x32xf32>
    %795 = arith.addf %793, %794 : vector<2x32xf32>
    %796 = math.tanh %795 : vector<2x32xf32>
    %797 = arith.mulf %792, %796 : vector<2x32xf32>
    %798 = tpu.concatenate %482, %527, %572, %617, %662, %707, %752, %797 in 0 : vector<2x32xf32>, vector<2x32xf32>, vector<2x32xf32>, vector<2x32xf32>, vector<2x32xf32>, vector<2x32xf32>, vector<2x32xf32>, vector<2x32xf32> -> vector<16x32xf32>
    %c0_143 = arith.constant 0 : index
    %c0_144 = arith.constant 0 : index
    %799 = vector.load %arg7[%c0_143, %c0_144] : memref<32x128xf32, #tpu.memory_space<vmem>>, vector<32x128xf32>
    %cst_145 = arith.constant dense<0.000000e+00> : vector<16x128xf32>
    %800 = tpu.matmul %798, %799, %cst_145 {dimension_numbers = #tpu.dot_dimension_numbers<[1], [0], [0], [1], [0, 0, 1, 1], [], []>} : vector<16x32xf32>, vector<32x128xf32>, vector<16x128xf32> -> vector<16x128xf32>
    %c0_146 = arith.constant 0 : index
    %c0_147 = arith.constant 0 : index
    %801 = vector.load %arg8[%c0_146, %c0_147] : memref<1x128xf32, #tpu.memory_space<vmem>>, vector<1x128xf32>
    %802 = vector.broadcast %801 : vector<1x128xf32> to vector<16x128xf32>
    %803 = arith.addf %800, %802 : vector<16x128xf32>
    %804 = vector.shape_cast %803 : vector<16x128xf32> to vector<8x2x128xf32>
    %805 = tpu.transpose %804, [1, 0, 2] : vector<8x2x128xf32> -> vector<2x8x128xf32>
    %c0_148 = arith.constant 0 : index
    %c0_149 = arith.constant 0 : index
    %c0_150 = arith.constant 0 : index
    %806 = vector.load %arg9[%c0_148, %c0_149, %c0_150] : memref<2x8x128xf32, #tpu.memory_space<vmem>>, vector<2x8x128xf32>
    tpu.vector_store %arg9[%c0_148, %c0_149, %c0_150], %805 {strides = array<i32>} : memref<2x8x128xf32, #tpu.memory_space<vmem>>, vector<2x8x128xf32>,
    return
  }
}

</mosaic_0001>

<llo_original>
// kernel: tpu_custom_call.1
$region0: #{tpu_custom_call.1}
  #allocation0 [shape = 'u32[]', space=smem, size = 0x4, offset = 0x4, fixed_abs, tag = 'smem constant byte address 0x4 - core index']
  #allocation1 [shape = 'u32[144,128]{1,0:T(1,128)}', space=vmem, size = 0x12000, scoped, tag = 'internal scratch']
  %s0 = inlined_call_operand.vmem [shape: f32[2,8,4], index: 0, kind: input, shape index: {}]
  %s1 = inlined_call_operand.vmem [shape: f32[4,4,32], index: 1, kind: input, shape index: {}]
  %s2 = inlined_call_operand.hbm [shape: f32[4,32,32], index: 2, kind: input, shape index: {}]
  %s3 = inlined_call_operand.hbm [shape: f32[4,1,32], index: 3, kind: input, shape index: {}]
  %s4 = inlined_call_operand.hbm [shape: f32[4,32,32], index: 4, kind: input, shape index: {}]
  %s5 = inlined_call_operand.hbm [shape: f32[4,32,32], index: 5, kind: input, shape index: {}]
  %s6 = inlined_call_operand.hbm [shape: f32[4,1,32], index: 6, kind: input, shape index: {}]
  %s7 = inlined_call_operand.vmem [shape: f32[32,128], index: 7, kind: input, shape index: {}]
  %s8 = inlined_call_operand.vmem [shape: f32[1,128], index: 8, kind: input, shape index: {}]
  %s9 = inlined_call_operand.hbm [shape: f32[2,8,128], index: 9, kind: output, shape index: {}]
  %s10 = sld [smem:[#allocation0]]
  $region66: #{tpu_custom_call.1} parent=0
    _
  %s12 = ssub.s32 1, %s10
  %s13 = scalar_select 0, %s12, %s10
  $region1: #{tpu_custom_call.1} parent=0
    #allocation2 [shape = 'u8[65536]{0}', space=vmem, size = 0x10000, scoped, tag = 'input window, operand 2, single buffered']
    #allocation3 [shape = 's32[1]{0}', space=sflag, size = 0x4, scoped, tag = 'scoped memory for tpu_custom_call.1']
    #allocation4 [shape = 's32[1]{0}', space=sflag, size = 0x4, scoped, tag = 'scoped memory for tpu_custom_call.1']
    #allocation5 [shape = 'u8[2048]{0}', space=vmem, size = 0x800, scoped, tag = 'input window, operand 3, single buffered']
    #allocation6 [shape = 's32[1]{0}', space=sflag, size = 0x4, scoped, tag = 'scoped memory for tpu_custom_call.1']
    #allocation7 [shape = 'u8[65536]{0}', space=vmem, size = 0x10000, scoped, tag = 'input window, operand 4, single buffered']
    #allocation8 [shape = 'u8[65536]{0}', space=vmem, size = 0x10000, scoped, tag = 'input window, operand 5, single buffered']
    #allocation9 [shape = 's32[1]{0}', space=sflag, size = 0x4, scoped, tag = 'scoped memory for tpu_custom_call.1']
    #allocation10 [shape = 'u8[2048]{0}', space=vmem, size = 0x800, scoped, tag = 'input window, operand 6, single buffered']
    #allocation11 [shape = 'u8[8192]{0}', space=vmem, size = 0x2000, scoped, tag = 'output window, operand 0, single buffered']
    %14 = vsyncpa [#allocation3], 0
    %15 = vsyncpa [#allocation6], 0
    %16 = vsyncpa [#allocation9], 0
    %17 = vsyncpa [#allocation4], 0
    // Predicated region
    $region2: #{tpu_custom_call.1} parent=1 // pred_check
      _
    $region3: #{tpu_custom_call.1} parent=1 // pred_check_branch
      %19 = sbr.rel (0) target = $region5
    $region4: #{tpu_custom_call.1} parent=1 // pred_region
      _
    $region5: #{tpu_custom_call.1} parent=1 // pred_fallthru
      _
    // Predicated region
    $region6: #{tpu_custom_call.1} parent=1 // pred_check
      _
    $region7: #{tpu_custom_call.1} parent=1 // pred_check_branch
      %21 = sbr.rel (0) target = $region9
    $region8: #{tpu_custom_call.1} parent=1 // pred_region
      _
    $region9: #{tpu_custom_call.1} parent=1 // pred_fallthru
      _
    // Predicated region
    $region10: #{tpu_custom_call.1} parent=1 // pred_check
      _
    $region11: #{tpu_custom_call.1} parent=1 // pred_check_branch
      %23 = sbr.rel (0) target = $region13
    $region12: #{tpu_custom_call.1} parent=1 // pred_region
      %s25 = ssub.s32 2048, 2048
      %26 = vsyncadd [#allocation3], %s25
      %s27 = sshll.u32 [#allocation2], 4
      %s28 = int_to_ptr.vmem [resolvable:$true] %s27
      %33 = dma.hbm_to_vmem [thread:$0]  %s2, 2048, %s28, [#allocation3], 128, 128, 8
    $region13: #{tpu_custom_call.1} parent=1 // pred_fallthru
      _
    // Predicated region
    $region14: #{tpu_custom_call.1} parent=1 // pred_check
      _
    $region15: #{tpu_custom_call.1} parent=1 // pred_check_branch
      %35 = sbr.rel (0) target = $region17
    $region16: #{tpu_custom_call.1} parent=1 // pred_region
      %s37 = ssub.s32 64, 64
      %38 = vsyncadd [#allocation6], %s37
      %s39 = sshll.u32 [#allocation5], 4
      %s40 = int_to_ptr.vmem [resolvable:$true] %s39
      %45 = dma.hbm_to_vmem [thread:$0]  %s3, 64, %s40, [#allocation6], 16, 16, 1
    $region17: #{tpu_custom_call.1} parent=1 // pred_fallthru
      _
    // Predicated region
    $region18: #{tpu_custom_call.1} parent=1 // pred_check
      _
    $region19: #{tpu_custom_call.1} parent=1 // pred_check_branch
      %47 = sbr.rel (0) target = $region21
    $region20: #{tpu_custom_call.1} parent=1 // pred_region
      %s49 = ssub.s32 2048, 2048
      %50 = vsyncadd [#allocation6], %s49
      %s51 = sshll.u32 [#allocation7], 4
      %s52 = int_to_ptr.vmem [resolvable:$true] %s51
      %57 = dma.hbm_to_vmem [thread:$0]  %s4, 2048, %s52, [#allocation6], 128, 128, 8
    $region21: #{tpu_custom_call.1} parent=1 // pred_fallthru
      _
    // Predicated region
    $region22: #{tpu_custom_call.1} parent=1 // pred_check
      _
    $region23: #{tpu_custom_call.1} parent=1 // pred_check_branch
      %59 = sbr.rel (0) target = $region25
    $region24: #{tpu_custom_call.1} parent=1 // pred_region
      %s61 = ssub.s32 2048, 2048
      %62 = vsyncadd [#allocation9], %s61
      %s63 = sshll.u32 [#allocation8], 4
      %s64 = int_to_ptr.vmem [resolvable:$true] %s63
      %69 = dma.hbm_to_vmem [thread:$0]  %s5, 2048, %s64, [#allocation9], 128, 128, 8
    $region25: #{tpu_custom_call.1} parent=1 // pred_fallthru
      _
    // Predicated region
    $region26: #{tpu_custom_call.1} parent=1 // pred_check
      _
    $region27: #{tpu_custom_call.1} parent=1 // pred_check_branch
      %71 = sbr.rel (0) target = $region29
    $region28: #{tpu_custom_call.1} parent=1 // pred_region
      %s73 = ssub.s32 64, 64
      %74 = vsyncadd [#allocation9], %s73
      %s75 = sshll.u32 [#allocation10], 4
      %s76 = int_to_ptr.vmem [resolvable:$true] %s75
      %81 = dma.hbm_to_vmem [thread:$0]  %s6, 64, %s76, [#allocation9], 16, 16, 1
    $region29: #{tpu_custom_call.1} parent=1 // pred_fallthru
      _
    // Predicated region
    $region30: #{tpu_custom_call.1} parent=1 // pred_check
      _
    $region31: #{tpu_custom_call.1} parent=1 // pred_check_branch
      %83 = sbr.rel (0) target = $region33
    $region32: #{tpu_custom_call.1} parent=1 // pred_region
      _
    $region33: #{tpu_custom_call.1} parent=1 // pred_fallthru
      _
    // Predicated region
    $region34: #{tpu_custom_call.1} parent=1 // pred_check
      _
    $region35: #{tpu_custom_call.1} parent=1 // pred_check_branch
      %85 = sbr.rel (0) target = $region37
    $region36: #{tpu_custom_call.1} parent=1 // pred_region
      _
    $region37: #{tpu_custom_call.1} parent=1 // pred_fallthru
      _
    // Predicated region
    $region38: #{tpu_custom_call.1} parent=1 // pred_check
      _
    $region39: #{tpu_custom_call.1} parent=1 // pred_check_branch
      %87 = sbr.rel (0) target = $region41
    $region40: #{tpu_custom_call.1} parent=1 // pred_region
      %88 = dma.done [#allocation3], 2048
    $region41: #{tpu_custom_call.1} parent=1 // pred_fallthru
      _
    // Predicated region
    $region42: #{tpu_custom_call.1} parent=1 // pred_check
      _
    $region43: #{tpu_custom_call.1} parent=1 // pred_check_branch
      %90 = sbr.rel (0) target = $region45
    $region44: #{tpu_custom_call.1} parent=1 // pred_region
      %91 = dma.done [#allocation6], 64
    $region45: #{tpu_custom_call.1} parent=1 // pred_fallthru
      _
    // Predicated region
    $region46: #{tpu_custom_call.1} parent=1 // pred_check
      _
    $region47: #{tpu_custom_call.1} parent=1 // pred_check_branch
      %93 = sbr.rel (0) target = $region49
    $region48: #{tpu_custom_call.1} parent=1 // pred_region
      %94 = dma.done [#allocation6], 2048
    $region49: #{tpu_custom_call.1} parent=1 // pred_fallthru
      _
    // Predicated region
    $region50: #{tpu_custom_call.1} parent=1 // pred_check
      _
    $region51: #{tpu_custom_call.1} parent=1 // pred_check_branch
      %96 = sbr.rel (0) target = $region53
    $region52: #{tpu_custom_call.1} parent=1 // pred_region
      %97 = dma.done [#allocation9], 2048
    $region53: #{tpu_custom_call.1} parent=1 // pred_fallthru
      _
    // Predicated region
    $region54: #{tpu_custom_call.1} parent=1 // pred_check
      _
    $region55: #{tpu_custom_call.1} parent=1 // pred_check_branch
      %99 = sbr.rel (0) target = $region57
    $region56: #{tpu_custom_call.1} parent=1 // pred_region
      %100 = dma.done [#allocation9], 64
    $region57: #{tpu_custom_call.1} parent=1 // pred_fallthru
      _
    %v101 = vld [vmem:[%s0] sm:$0xff]
    %v102 = vld [vmem:[%s0 + $0x8] sm:$0xff]
    %v103 = vcombine.high %v101, 0.0
    %v105 = vunpack.c.l.s4 1983009808
    %v106 = vunpack.c.0.s8 %v105
    %v107 = vlaneseq
    %v108 = vshrl.u32 %v107, 7
    %v109 = vsub.s32 %v106, %v108
    %v110 = vrot.slane %v101, %v109
    %v112 = vunpack.c.l.s4 1983009808
    %v113 = vunpack.c.0.s8 %v112
    %v114 = vlaneseq
    %v115 = vshrl.u32 %v114, 7
    %v116 = vsub.s32 %v113, %v115
    %v117 = vrot.slane %v103, %v116
    %v118 = vcombine.high %v102, 0.0
    %v120 = vunpack.c.l.s4 1983009808
    %v121 = vunpack.c.0.s8 %v120
    %v122 = vlaneseq
    %v123 = vshrl.u32 %v122, 7
    %v124 = vsub.s32 %v121, %v123
    %v125 = vrot.slane %v102, %v124
    %v127 = vunpack.c.l.s4 1983009808
    %v128 = vunpack.c.0.s8 %v127
    %v129 = vlaneseq
    %v130 = vshrl.u32 %v129, 7
    %v131 = vsub.s32 %v128, %v130
    %v132 = vrot.slane %v118, %v131
    %v133 = vcombine.low %v110, %v125
    %v134 = vcombine.high %v110, %v125
    %v136 = vunpack.c.l.s4 1934713408
    %v137 = vunpack.c.0.s8 %v136
    %v138 = vlaneseq
    %v139 = vshrl.u32 %v138, 7
    %v140 = vsub.s32 %v137, %v139
    %v141 = vrot.slane %v133, %v140
    %v143 = vunpack.c.l.s4 1934713408
    %v144 = vunpack.c.0.s8 %v143
    %v145 = vlaneseq
    %v146 = vshrl.u32 %v145, 7
    %v147 = vsub.s32 %v144, %v146
    %v148 = vrot.slane %v134, %v147
    %v149 = vcombine.low %v117, %v132
    %v150 = vcombine.high %v117, %v132
    %v152 = vunpack.c.l.s4 1934713408
    %v153 = vunpack.c.0.s8 %v152
    %v154 = vlaneseq
    %v155 = vshrl.u32 %v154, 7
    %v156 = vsub.s32 %v153, %v155
    %v157 = vrot.slane %v149, %v156
    %v159 = vunpack.c.l.s4 1934713408
    %v160 = vunpack.c.0.s8 %v159
    %v161 = vlaneseq
    %v162 = vshrl.u32 %v161, 7
    %v163 = vsub.s32 %v160, %v162
    %v164 = vrot.slane %v150, %v163
    %v165 = vcombine.high %v141, 0.0
    %v166 = vcombine.high %v148, 0.0
    %v167 = vcombine.high %v157, 0.0
    %v168 = vcombine.high %v164, 0.0
    %v169 = vld [vmem:[%s1] sm:$0xf]
    %v170 = vld [vmem:[%s1 + $0x4] sm:$0xf]
    %v171 = vld [vmem:[%s1 + $0x8] sm:$0xf]
    %v172 = vld [vmem:[%s1 + $0xc] sm:$0xf]
    %v173 = vld [vmem:[#allocation2] sm:$0xff]
    %v174 = vld [vmem:[#allocation2 + $0x8] sm:$0xff]
    %v175 = vld [vmem:[#allocation2 + $0x10] sm:$0xff]
    %v176 = vld [vmem:[#allocation2 + $0x18] sm:$0xff]
    %v177 = vld [vmem:[#allocation2 + $0x20] sm:$0xff]
    %v178 = vld [vmem:[#allocation2 + $0x28] sm:$0xff]
    %v179 = vld [vmem:[#allocation2 + $0x30] sm:$0xff]
    %v180 = vld [vmem:[#allocation2 + $0x38] sm:$0xff]
    %v181 = vld [vmem:[#allocation2 + $0x40] sm:$0xff]
    %v182 = vld [vmem:[#allocation2 + $0x48] sm:$0xff]
    %v183 = vld [vmem:[#allocation2 + $0x50] sm:$0xff]
    %v184 = vld [vmem:[#allocation2 + $0x58] sm:$0xff]
    %v185 = vld [vmem:[#allocation2 + $0x60] sm:$0xff]
    %v186 = vld [vmem:[#allocation2 + $0x68] sm:$0xff]
    %v187 = vld [vmem:[#allocation2 + $0x70] sm:$0xff]
    %v188 = vld [vmem:[#allocation2 + $0x78] sm:$0xff]
    %v189 = vld [vmem:[#allocation5] sm:$0x1]
    %v190 = vld [vmem:[#allocation5 + $0x1] sm:$0x1]
    %v191 = vld [vmem:[#allocation5 + $0x2] sm:$0x1]
    %v192 = vld [vmem:[#allocation5 + $0x3] sm:$0x1]
    %v194 = vlaneseq
    %v195 = vshrl.u32 %v194, 7
    %v196 = vsub.s32 0, %v195
    %v197 = vrot.slane %v189, %v196
    %v207 = vcombine.low %v141, %v165
    %v208 = vcombine.low %v148, %v166
    %v210 = vunpack.c.l.s4 1983009808
    %v211 = vunpack.c.0.s8 %v210
    %v212 = vlaneseq
    %v213 = vshrl.u32 %v212, 7
    %v214 = vsub.s32 %v211, %v213
    %v215 = vrot.slane %v207, %v214
    %v217 = vunpack.c.l.s4 1983009808
    %v218 = vunpack.c.0.s8 %v217
    %v219 = vlaneseq
    %v220 = vshrl.u32 %v219, 7
    %v221 = vsub.s32 %v218, %v220
    %v222 = vrot.slane %v208, %v221
    %v223 = vcombine.low %v215, %v222
    %v224 = vcombine.low %v157, %v167
    %v225 = vcombine.low %v164, %v168
    %v227 = vunpack.c.l.s4 1983009808
    %v228 = vunpack.c.0.s8 %v227
    %v229 = vlaneseq
    %v230 = vshrl.u32 %v229, 7
    %v231 = vsub.s32 %v228, %v230
    %v232 = vrot.slane %v224, %v231
    %v234 = vunpack.c.l.s4 1983009808
    %v235 = vunpack.c.0.s8 %v234
    %v236 = vlaneseq
    %v237 = vshrl.u32 %v236, 7
    %v238 = vsub.s32 %v235, %v237
    %v239 = vrot.slane %v225, %v238
    %v240 = vcombine.low %v232, %v239
    %vm241 = vcmask 31744
    %v242 = vsel %vm241, %v223, 0
    %v244 = vsel %vm241, %v240, 0
    %vm246 = vcmask 1043456
    %v248 = vsel %vm246, %v169, 0
    %250 = vmatprep.subr.mxu0 0.0
    %251 = vmatpush1.msra.mxu0 %v248
    %252 = vmatprep.subr.mxu0 0.0
    %253 = vmatpush1.msra.mxu0 0.0
    %254 = vmatprep.subr.mxu0 0.0
    %255 = vmatpush1.msra.mxu0 0.0
    %256 = vmatprep.subr.mxu0 0.0
    %257 = vmatpush1.msra.mxu0 0.0
    %258 = vmatprep.subr.mxu0 0.0
    %259 = vmatpush1.msra.mxu0 0.0
    %260 = vmatprep.subr.mxu0 0.0
    %261 = vmatpush1.msra.mxu0 0.0
    %262 = vmatprep.subr.mxu0 0.0
    %263 = vmatpush1.msra.mxu0 0.0
    %264 = vmatprep.subr.mxu0 0.0
    %265 = vmatpush1.msra.mxu0 0.0
    %266 = vmatprep.subr.mxu0 0.0
    %267 = vmatpush1.msra.mxu0 0.0
    %268 = vmatprep.subr.mxu0 0.0
    %269 = vmatpush1.msra.mxu0 0.0
    %270 = vmatprep.subr.mxu0 0.0
    %271 = vmatpush1.msra.mxu0 0.0
    %272 = vmatprep.subr.mxu0 0.0
    %273 = vmatpush1.msra.mxu0 0.0
    %274 = vmatprep.subr.mxu0 0.0
    %275 = vmatpush1.msra.mxu0 0.0
    %276 = vmatprep.subr.mxu0 0.0
    %277 = vmatpush1.msra.mxu0 0.0
    %278 = vmatprep.subr.mxu0 0.0
    %279 = vmatpush1.msra.mxu0 0.0
    %280 = vmatprep.subr.mxu0 0.0
    %281 = vmatpush1.msra.mxu0 0.0
    %282 = vmatprep.subr.mxu0 0.0
    %283 = vmatpush1.msra.mxu0 0.0
    %284 = vmatprep.subr.mxu0 0.0
    %285 = vmatpush1.msra.mxu0 0.0
    %286 = vmatprep.subr.mxu0 0.0
    %287 = vmatpush1.msra.mxu0 0.0
    %288 = vmatprep.subr.mxu0 0.0
    %289 = vmatpush1.msra.mxu0 0.0
    %290 = vmatprep.subr.mxu0 0.0
    %291 = vmatpush1.msra.mxu0 0.0
    %292 = vmatprep.subr.mxu0 0.0
    %293 = vmatpush1.msra.mxu0 0.0
    %294 = vmatprep.subr.mxu0 0.0
    %295 = vmatpush1.msra.mxu0 0.0
    %296 = vmatprep.subr.mxu0 0.0
    %297 = vmatpush1.msra.mxu0 0.0
    %298 = vmatprep.subr.mxu0 0.0
    %299 = vmatpush1.msra.mxu0 0.0
    %300 = vmatprep.subr.mxu0 0.0
    %301 = vmatpush1.msra.mxu0 0.0
    %302 = vmatprep.subr.mxu0 0.0
    %303 = vmatpush1.msra.mxu0 0.0
    %304 = vmatprep.subr.mxu0 0.0
    %305 = vmatpush1.msra.mxu0 0.0
    %306 = vmatprep.subr.mxu0 0.0
    %307 = vmatpush1.msra.mxu0 0.0
    %308 = vmatprep.subr.mxu0 0.0
    %309 = vmatpush1.msra.mxu0 0.0
    %310 = vmatprep.subr.mxu0 0.0
    %311 = vmatpush1.msra.mxu0 0.0
    %312 = vmatprep.subr.mxu0 0.0
    %313 = vmatpush1.msra.mxu0 0.0
    %314 = vmatprep.mubr.f32.mxu0 0.0
    %315 = vmatmul.mubr.f32.gmra.mrb[0].mxu0 %v242
    %v316 = vpop.f32.mrb[0].mxu0
    %v317 = vadd.f32 %v197, %v316
    %v318 = vpop.f32.mrb[0].mxu0
    %319 = vmatprep.mubr.f32.mxu0 0.0
    %320 = vmatmul.mubr.f32.gmra.mrb[0].mxu0 %v244
    %v321 = vpop.f32.mrb[0].mxu0
    %v322 = vadd.f32 %v197, %v321
    %v323 = vpop.f32.mrb[0].mxu0
    %324 = vdwg.mxu0
    %v327 = vcombine.high %v317, %v317
    %v329 = vunpack.c.l.s4 1983009808
    %v330 = vunpack.c.0.s8 %v329
    %v331 = vlaneseq
    %v332 = vshrl.u32 %v331, 7
    %v333 = vsub.s32 %v330, %v332
    %v334 = vrot.slane %v317, %v333
    %v336 = vunpack.c.l.s4 1983009808
    %v337 = vunpack.c.0.s8 %v336
    %v338 = vlaneseq
    %v339 = vshrl.u32 %v338, 7
    %v340 = vsub.s32 %v337, %v339
    %v341 = vrot.slane %v327, %v340
    %v342 = vcombine.high %v334, %v334
    %v343 = vcombine.high %v341, %v341
    %v344 = vcombine.high %v322, %v322
    %v346 = vunpack.c.l.s4 1983009808
    %v347 = vunpack.c.0.s8 %v346
    %v348 = vlaneseq
    %v349 = vshrl.u32 %v348, 7
    %v350 = vsub.s32 %v347, %v349
    %v351 = vrot.slane %v322, %v350
    %v353 = vunpack.c.l.s4 1983009808
    %v354 = vunpack.c.0.s8 %v353
    %v355 = vlaneseq
    %v356 = vshrl.u32 %v355, 7
    %v357 = vsub.s32 %v354, %v356
    %v358 = vrot.slane %v344, %v357
    %v359 = vcombine.high %v351, %v351
    %v360 = vcombine.high %v358, %v358
    %v370 = vlaneseq
    %v371 = vshrl.u32 %v370, 7
    %v372 = vsub.s32 0, %v371
    %v373 = vrot.slane %v190, %v372
    %v376 = vsel %vm246, %v170, 0
    %378 = vmatprep.subr.mxu0 0.0
    %379 = vmatpush1.msra.mxu0 %v376
    %380 = vmatprep.subr.mxu0 0.0
    %381 = vmatpush1.msra.mxu0 0.0
    %382 = vmatprep.subr.mxu0 0.0
    %383 = vmatpush1.msra.mxu0 0.0
    %384 = vmatprep.subr.mxu0 0.0
    %385 = vmatpush1.msra.mxu0 0.0
    %386 = vmatprep.subr.mxu0 0.0
    %387 = vmatpush1.msra.mxu0 0.0
    %388 = vmatprep.subr.mxu0 0.0
    %389 = vmatpush1.msra.mxu0 0.0
    %390 = vmatprep.subr.mxu0 0.0
    %391 = vmatpush1.msra.mxu0 0.0
    %392 = vmatprep.subr.mxu0 0.0
    %393 = vmatpush1.msra.mxu0 0.0
    %394 = vmatprep.subr.mxu0 0.0
    %395 = vmatpush1.msra.mxu0 0.0
    %396 = vmatprep.subr.mxu0 0.0
    %397 = vmatpush1.msra.mxu0 0.0
    %398 = vmatprep.subr.mxu0 0.0
    %399 = vmatpush1.msra.mxu0 0.0
    %400 = vmatprep.subr.mxu0 0.0
    %401 = vmatpush1.msra.mxu0 0.0
    %402 = vmatprep.subr.mxu0 0.0
    %403 = vmatpush1.msra.mxu0 0.0
    %404 = vmatprep.subr.mxu0 0.0
    %405 = vmatpush1.msra.mxu0 0.0
    %406 = vmatprep.subr.mxu0 0.0
    %407 = vmatpush1.msra.mxu0 0.0
    %408 = vmatprep.subr.mxu0 0.0
    %409 = vmatpush1.msra.mxu0 0.0
    %410 = vmatprep.subr.mxu0 0.0
    %411 = vmatpush1.msra.mxu0 0.0
    %412 = vmatprep.subr.mxu0 0.0
    %413 = vmatpush1.msra.mxu0 0.0
    %414 = vmatprep.subr.mxu0 0.0
    %415 = vmatpush1.msra.mxu0 0.0
    %416 = vmatprep.subr.mxu0 0.0
    %417 = vmatpush1.msra.mxu0 0.0
    %418 = vmatprep.subr.mxu0 0.0
    %419 = vmatpush1.msra.mxu0 0.0
    %420 = vmatprep.subr.mxu0 0.0
    %421 = vmatpush1.msra.mxu0 0.0
    %422 = vmatprep.subr.mxu0 0.0
    %423 = vmatpush1.msra.mxu0 0.0
    %424 = vmatprep.subr.mxu0 0.0
    %425 = vmatpush1.msra.mxu0 0.0
    %426 = vmatprep.subr.mxu0 0.0
    %427 = vmatpush1.msra.mxu0 0.0
    %428 = vmatprep.subr.mxu0 0.0
    %429 = vmatpush1.msra.mxu0 0.0
    %430 = vmatprep.subr.mxu0 0.0
    %431 = vmatpush1.msra.mxu0 0.0
    %432 = vmatprep.subr.mxu0 0.0
    %433 = vmatpush1.msra.mxu0 0.0
    %434 = vmatprep.subr.mxu0 0.0
    %435 = vmatpush1.msra.mxu0 0.0
    %436 = vmatprep.subr.mxu0 0.0
    %437 = vmatpush1.msra.mxu0 0.0
    %438 = vmatprep.subr.mxu0 0.0
    %439 = vmatpush1.msra.mxu0 0.0
    %440 = vmatprep.subr.mxu0 0.0
    %441 = vmatpush1.msra.mxu0 0.0
    %442 = vmatprep.mubr.f32.mxu0 0.0
    %443 = vmatmul.mubr.f32.gmra.mrb[0].mxu0 %v242
    %v444 = vpop.f32.mrb[0].mxu0
    %v445 = vadd.f32 %v373, %v444
    %v446 = vpop.f32.mrb[0].mxu0
    %447 = vmatprep.mubr.f32.mxu0 0.0
    %448 = vmatmul.mubr.f32.gmra.mrb[0].mxu0 %v244
    %v449 = vpop.f32.mrb[0].mxu0
    %v450 = vadd.f32 %v373, %v449
    %v451 = vpop.f32.mrb[0].mxu0
    %452 = vdwg.mxu0
    %v455 = vcombine.high %v445, %v445
    %v457 = vunpack.c.l.s4 1983009808
    %v458 = vunpack.c.0.s8 %v457
    %v459 = vlaneseq
    %v460 = vshrl.u32 %v459, 7
    %v461 = vsub.s32 %v458, %v460
    %v462 = vrot.slane %v445, %v461
    %v464 = vunpack.c.l.s4 1983009808
    %v465 = vunpack.c.0.s8 %v464
    %v466 = vlaneseq
    %v467 = vshrl.u32 %v466, 7
    %v468 = vsub.s32 %v465, %v467
    %v469 = vrot.slane %v455, %v468
    %v470 = vcombine.high %v462, %v462
    %v471 = vcombine.high %v469, %v469
    %v472 = vcombine.high %v450, %v450
    %v474 = vunpack.c.l.s4 1983009808
    %v475 = vunpack.c.0.s8 %v474
    %v476 = vlaneseq
    %v477 = vshrl.u32 %v476, 7
    %v478 = vsub.s32 %v475, %v477
    %v479 = vrot.slane %v450, %v478
    %v481 = vunpack.c.l.s4 1983009808
    %v482 = vunpack.c.0.s8 %v481
    %v483 = vlaneseq
    %v484 = vshrl.u32 %v483, 7
    %v485 = vsub.s32 %v482, %v484
    %v486 = vrot.slane %v472, %v485
    %v487 = vcombine.high %v479, %v479
    %v488 = vcombine.high %v486, %v486
    %v498 = vlaneseq
    %v499 = vshrl.u32 %v498, 7
    %v500 = vsub.s32 0, %v499
    %v501 = vrot.slane %v191, %v500
    %v504 = vsel %vm246, %v171, 0
    %506 = vmatprep.subr.mxu0 0.0
    %507 = vmatpush1.msra.mxu0 %v504
    %508 = vmatprep.subr.mxu0 0.0
    %509 = vmatpush1.msra.mxu0 0.0
    %510 = vmatprep.subr.mxu0 0.0
    %511 = vmatpush1.msra.mxu0 0.0
    %512 = vmatprep.subr.mxu0 0.0
    %513 = vmatpush1.msra.mxu0 0.0
    %514 = vmatprep.subr.mxu0 0.0
    %515 = vmatpush1.msra.mxu0 0.0
    %516 = vmatprep.subr.mxu0 0.0
    %517 = vmatpush1.msra.mxu0 0.0
    %518 = vmatprep.subr.mxu0 0.0
    %519 = vmatpush1.msra.mxu0 0.0
    %520 = vmatprep.subr.mxu0 0.0
    %521 = vmatpush1.msra.mxu0 0.0
    %522 = vmatprep.subr.mxu0 0.0
    %523 = vmatpush1.msra.mxu0 0.0
    %524 = vmatprep.subr.mxu0 0.0
    %525 = vmatpush1.msra.mxu0 0.0
    %526 = vmatprep.subr.mxu0 0.0
    %527 = vmatpush1.msra.mxu0 0.0
    %528 = vmatprep.subr.mxu0 0.0
    %529 = vmatpush1.msra.mxu0 0.0
    %530 = vmatprep.subr.mxu0 0.0
    %531 = vmatpush1.msra.mxu0 0.0
    %532 = vmatprep.subr.mxu0 0.0
    %533 = vmatpush1.msra.mxu0 0.0
    %534 = vmatprep.subr.mxu0 0.0
    %535 = vmatpush1.msra.mxu0 0.0
    %536 = vmatprep.subr.mxu0 0.0
    %537 = vmatpush1.msra.mxu0 0.0
    %538 = vmatprep.subr.mxu0 0.0
    %539 = vmatpush1.msra.mxu0 0.0
    %540 = vmatprep.subr.mxu0 0.0
    %541 = vmatpush1.msra.mxu0 0.0
    %542 = vmatprep.subr.mxu0 0.0
    %543 = vmatpush1.msra.mxu0 0.0
    %544 = vmatprep.subr.mxu0 0.0
    %545 = vmatpush1.msra.mxu0 0.0
    %546 = vmatprep.subr.mxu0 0.0
    %547 = vmatpush1.msra.mxu0 0.0
    %548 = vmatprep.subr.mxu0 0.0
    %549 = vmatpush1.msra.mxu0 0.0
    %550 = vmatprep.subr.mxu0 0.0
    %551 = vmatpush1.msra.mxu0 0.0
    %552 = vmatprep.subr.mxu0 0.0
    %553 = vmatpush1.msra.mxu0 0.0
    %554 = vmatprep.subr.mxu0 0.0
    %555 = vmatpush1.msra.mxu0 0.0
    %556 = vmatprep.subr.mxu0 0.0
    %557 = vmatpush1.msra.mxu0 0.0
    %558 = vmatprep.subr.mxu0 0.0
    %559 = vmatpush1.msra.mxu0 0.0
    %560 = vmatprep.subr.mxu0 0.0
    %561 = vmatpush1.msra.mxu0 0.0
    %562 = vmatprep.subr.mxu0 0.0
    %563 = vmatpush1.msra.mxu0 0.0
    %564 = vmatprep.subr.mxu0 0.0
    %565 = vmatpush1.msra.mxu0 0.0
    %566 = vmatprep.subr.mxu0 0.0
    %567 = vmatpush1.msra.mxu0 0.0
    %568 = vmatprep.subr.mxu0 0.0
    %569 = vmatpush1.msra.mxu0 0.0
    %570 = vmatprep.mubr.f32.mxu0 0.0
    %571 = vmatmul.mubr.f32.gmra.mrb[0].mxu0 %v242
    %v572 = vpop.f32.mrb[0].mxu0
    %v573 = vadd.f32 %v501, %v572
    %v574 = vpop.f32.mrb[0].mxu0
    %575 = vmatprep.mubr.f32.mxu0 0.0
    %576 = vmatmul.mubr.f32.gmra.mrb[0].mxu0 %v244
    %v577 = vpop.f32.mrb[0].mxu0
    %v578 = vadd.f32 %v501, %v577
    %v579 = vpop.f32.mrb[0].mxu0
    %580 = vdwg.mxu0
    %v583 = vcombine.high %v573, %v573
    %v585 = vunpack.c.l.s4 1983009808
    %v586 = vunpack.c.0.s8 %v585
    %v587 = vlaneseq
    %v588 = vshrl.u32 %v587, 7
    %v589 = vsub.s32 %v586, %v588
    %v590 = vrot.slane %v573, %v589
    %v592 = vunpack.c.l.s4 1983009808
    %v593 = vunpack.c.0.s8 %v592
    %v594 = vlaneseq
    %v595 = vshrl.u32 %v594, 7
    %v596 = vsub.s32 %v593, %v595
    %v597 = vrot.slane %v583, %v596
    %v598 = vcombine.high %v590, %v590
    %v599 = vcombine.high %v597, %v597
    %v600 = vcombine.high %v578, %v578
    %v602 = vunpack.c.l.s4 1983009808
    %v603 = vunpack.c.0.s8 %v602
    %v604 = vlaneseq
    %v605 = vshrl.u32 %v604, 7
    %v606 = vsub.s32 %v603, %v605
    %v607 = vrot.slane %v578, %v606
    %v609 = vunpack.c.l.s4 1983009808
    %v610 = vunpack.c.0.s8 %v609
    %v611 = vlaneseq
    %v612 = vshrl.u32 %v611, 7
    %v613 = vsub.s32 %v610, %v612
    %v614 = vrot.slane %v600, %v613
    %v615 = vcombine.high %v607, %v607
    %v616 = vcombine.high %v614, %v614
    %v626 = vlaneseq
    %v627 = vshrl.u32 %v626, 7
    %v628 = vsub.s32 0, %v627
    %v629 = vrot.slane %v192, %v628
    %v632 = vsel %vm246, %v172, 0
    %634 = vmatprep.subr.mxu0 0.0
    %635 = vmatpush1.msra.mxu0 %v632
    %636 = vmatprep.subr.mxu0 0.0
    %637 = vmatpush1.msra.mxu0 0.0
    %638 = vmatprep.subr.mxu0 0.0
    %639 = vmatpush1.msra.mxu0 0.0
    %640 = vmatprep.subr.mxu0 0.0
    %641 = vmatpush1.msra.mxu0 0.0
    %642 = vmatprep.subr.mxu0 0.0
    %643 = vmatpush1.msra.mxu0 0.0
    %644 = vmatprep.subr.mxu0 0.0
    %645 = vmatpush1.msra.mxu0 0.0
    %646 = vmatprep.subr.mxu0 0.0
    %647 = vmatpush1.msra.mxu0 0.0
    %648 = vmatprep.subr.mxu0 0.0
    %649 = vmatpush1.msra.mxu0 0.0
    %650 = vmatprep.subr.mxu0 0.0
    %651 = vmatpush1.msra.mxu0 0.0
    %652 = vmatprep.subr.mxu0 0.0
    %653 = vmatpush1.msra.mxu0 0.0
    %654 = vmatprep.subr.mxu0 0.0
    %655 = vmatpush1.msra.mxu0 0.0
    %656 = vmatprep.subr.mxu0 0.0
    %657 = vmatpush1.msra.mxu0 0.0
    %658 = vmatprep.subr.mxu0 0.0
    %659 = vmatpush1.msra.mxu0 0.0
    %660 = vmatprep.subr.mxu0 0.0
    %661 = vmatpush1.msra.mxu0 0.0
    %662 = vmatprep.subr.mxu0 0.0
    %663 = vmatpush1.msra.mxu0 0.0
    %664 = vmatprep.subr.mxu0 0.0
    %665 = vmatpush1.msra.mxu0 0.0
    %666 = vmatprep.subr.mxu0 0.0
    %667 = vmatpush1.msra.mxu0 0.0
    %668 = vmatprep.subr.mxu0 0.0
    %669 = vmatpush1.msra.mxu0 0.0
    %670 = vmatprep.subr.mxu0 0.0
    %671 = vmatpush1.msra.mxu0 0.0
    %672 = vmatprep.subr.mxu0 0.0
    %673 = vmatpush1.msra.mxu0 0.0
    %674 = vmatprep.subr.mxu0 0.0
    %675 = vmatpush1.msra.mxu0 0.0
    %676 = vmatprep.subr.mxu0 0.0
    %677 = vmatpush1.msra.mxu0 0.0
    %678 = vmatprep.subr.mxu0 0.0
    %679 = vmatpush1.msra.mxu0 0.0
    %680 = vmatprep.subr.mxu0 0.0
    %681 = vmatpush1.msra.mxu0 0.0
    %682 = vmatprep.subr.mxu0 0.0
    %683 = vmatpush1.msra.mxu0 0.0
    %684 = vmatprep.subr.mxu0 0.0
    %685 = vmatpush1.msra.mxu0 0.0
    %686 = vmatprep.subr.mxu0 0.0
    %687 = vmatpush1.msra.mxu0 0.0
    %688 = vmatprep.subr.mxu0 0.0
    %689 = vmatpush1.msra.mxu0 0.0
    %690 = vmatprep.subr.mxu0 0.0
    %691 = vmatpush1.msra.mxu0 0.0
    %692 = vmatprep.subr.mxu0 0.0
    %693 = vmatpush1.msra.mxu0 0.0
    %694 = vmatprep.subr.mxu0 0.0
    %695 = vmatpush1.msra.mxu0 0.0
    %696 = vmatprep.subr.mxu0 0.0
    %697 = vmatpush1.msra.mxu0 0.0
    %698 = vmatprep.mubr.f32.mxu0 0.0
    %699 = vmatmul.mubr.f32.gmra.mrb[0].mxu0 %v242
    %v700 = vpop.f32.mrb[0].mxu0
    %v701 = vadd.f32 %v629, %v700
    %v702 = vpop.f32.mrb[0].mxu0
    %703 = vmatprep.mubr.f32.mxu0 0.0
    %704 = vmatmul.mubr.f32.gmra.mrb[0].mxu0 %v244
    %v705 = vpop.f32.mrb[0].mxu0
    %v706 = vadd.f32 %v629, %v705
    %v707 = vpop.f32.mrb[0].mxu0
    %708 = vdwg.mxu0
    %v711 = vcombine.high %v701, %v701
    %v713 = vunpack.c.l.s4 1983009808
    %v714 = vunpack.c.0.s8 %v713
    %v715 = vlaneseq
    %v716 = vshrl.u32 %v715, 7
    %v717 = vsub.s32 %v714, %v716
    %v718 = vrot.slane %v701, %v717
    %v720 = vunpack.c.l.s4 1983009808
    %v721 = vunpack.c.0.s8 %v720
    %v722 = vlaneseq
    %v723 = vshrl.u32 %v722, 7
    %v724 = vsub.s32 %v721, %v723
    %v725 = vrot.slane %v711, %v724
    %v726 = vcombine.high %v718, %v718
    %v727 = vcombine.high %v725, %v725
    %v728 = vcombine.high %v706, %v706
    %v730 = vunpack.c.l.s4 1983009808
    %v731 = vunpack.c.0.s8 %v730
    %v732 = vlaneseq
    %v733 = vshrl.u32 %v732, 7
    %v734 = vsub.s32 %v731, %v733
    %v735 = vrot.slane %v706, %v734
    %v737 = vunpack.c.l.s4 1983009808
    %v738 = vunpack.c.0.s8 %v737
    %v739 = vlaneseq
    %v740 = vshrl.u32 %v739, 7
    %v741 = vsub.s32 %v738, %v740
    %v742 = vrot.slane %v728, %v741
    %v743 = vcombine.high %v735, %v735
    %v744 = vcombine.high %v742, %v742
    %vm753 = vcmask 261120
    %v755 = vsel %vm753, 0.0, 0
    %757 = vmatprep.subr.mxu0 0.0
    %758 = vmatpush1.msra.mxu0 %v173
    %759 = vmatprep.subr.mxu0 0.0
    %760 = vmatpush1.msra.mxu0 %v174
    %761 = vmatprep.subr.mxu0 0.0
    %762 = vmatpush1.msra.mxu0 %v175
    %763 = vmatprep.subr.mxu0 0.0
    %764 = vmatpush1.msra.mxu0 %v176
    %765 = vmatprep.subr.mxu0 0.0
    %766 = vmatpush1.msra.mxu0 0.0
    %767 = vmatprep.subr.mxu0 0.0
    %768 = vmatpush1.msra.mxu0 0.0
    %769 = vmatprep.subr.mxu0 0.0
    %770 = vmatpush1.msra.mxu0 0.0
    %771 = vmatprep.subr.mxu0 0.0
    %772 = vmatpush1.msra.mxu0 0.0
    %773 = vmatprep.subr.mxu0 0.0
    %774 = vmatpush1.msra.mxu0 0.0
    %775 = vmatprep.subr.mxu0 0.0
    %776 = vmatpush1.msra.mxu0 0.0
    %777 = vmatprep.subr.mxu0 0.0
    %778 = vmatpush1.msra.mxu0 0.0
    %779 = vmatprep.subr.mxu0 0.0
    %780 = vmatpush1.msra.mxu0 0.0
    %781 = vmatprep.subr.mxu0 0.0
    %782 = vmatpush1.msra.mxu0 0.0
    %783 = vmatprep.subr.mxu0 0.0
    %784 = vmatpush1.msra.mxu0 0.0
    %785 = vmatprep.subr.mxu0 0.0
    %786 = vmatpush1.msra.mxu0 0.0
    %787 = vmatprep.subr.mxu0 0.0
    %788 = vmatpush1.msra.mxu0 0.0
    %789 = vmatprep.subr.mxu0 0.0
    %790 = vmatpush1.msra.mxu0 0.0
    %791 = vmatprep.subr.mxu0 0.0
    %792 = vmatpush1.msra.mxu0 0.0
    %793 = vmatprep.subr.mxu0 0.0
    %794 = vmatpush1.msra.mxu0 0.0
    %795 = vmatprep.subr.mxu0 0.0
    %796 = vmatpush1.msra.mxu0 0.0
    %797 = vmatprep.subr.mxu0 0.0
    %798 = vmatpush1.msra.mxu0 0.0
    %799 = vmatprep.subr.mxu0 0.0
    %800 = vmatpush1.msra.mxu0 0.0
    %801 = vmatprep.subr.mxu0 0.0
    %802 = vmatpush1.msra.mxu0 0.0
    %803 = vmatprep.subr.mxu0 0.0
    %804 = vmatpush1.msra.mxu0 0.0
    %805 = vmatprep.subr.mxu0 0.0
    %806 = vmatpush1.msra.mxu0 0.0
    %807 = vmatprep.subr.mxu0 0.0
    %808 = vmatpush1.msra.mxu0 0.0
    %809 = vmatprep.subr.mxu0 0.0
    %810 = vmatpush1.msra.mxu0 0.0
    %811 = vmatprep.subr.mxu0 0.0
    %812 = vmatpush1.msra.mxu0 0.0
    %813 = vmatprep.subr.mxu0 0.0
    %814 = vmatpush1.msra.mxu0 0.0
    %815 = vmatprep.subr.mxu0 0.0
    %816 = vmatpush1.msra.mxu0 0.0
    %817 = vmatprep.subr.mxu0 0.0
    %818 = vmatpush1.msra.mxu0 0.0
    %819 = vmatprep.subr.mxu0 0.0
    %820 = vmatpush1.msra.mxu0 0.0
    %821 = vmatprep.mubr.f32.mxu0 0.0
    %822 = vmatmul.mubr.f32.gmra.mrb[0].mxu0 %v755
    %v823 = vpop.f32.mrb[0].mxu0
    %v824 = vadd.f32 0.0, %v823
    %v825 = vpop.f32.mrb[0].mxu0
    %826 = vdwg.mxu0
    %v827 = vadd.f32 %v334, %v824
    %v828 = vxor.u32 %v827, 2147483648
    %v829 = vmul.f32 %v828, 1.442695
    %v830 = vpow.pop %v829
    %v831 = vadd.f32 %v830, 1.0
    %v832 = vrcp.pop %v831
    %v833 = vmul.f32 1.0, %v832
    %834 = vmatprep.subr.mxu0 0.0
    %835 = vmatpush1.msra.mxu0 %v177
    %836 = vmatprep.subr.mxu0 0.0
    %837 = vmatpush1.msra.mxu0 %v178
    %838 = vmatprep.subr.mxu0 0.0
    %839 = vmatpush1.msra.mxu0 %v179
    %840 = vmatprep.subr.mxu0 0.0
    %841 = vmatpush1.msra.mxu0 %v180
    %842 = vmatprep.subr.mxu0 0.0
    %843 = vmatpush1.msra.mxu0 0.0
    %844 = vmatprep.subr.mxu0 0.0
    %845 = vmatpush1.msra.mxu0 0.0
    %846 = vmatprep.subr.mxu0 0.0
    %847 = vmatpush1.msra.mxu0 0.0
    %848 = vmatprep.subr.mxu0 0.0
    %849 = vmatpush1.msra.mxu0 0.0
    %850 = vmatprep.subr.mxu0 0.0
    %851 = vmatpush1.msra.mxu0 0.0
    %852 = vmatprep.subr.mxu0 0.0
    %853 = vmatpush1.msra.mxu0 0.0
    %854 = vmatprep.subr.mxu0 0.0
    %855 = vmatpush1.msra.mxu0 0.0
    %856 = vmatprep.subr.mxu0 0.0
    %857 = vmatpush1.msra.mxu0 0.0
    %858 = vmatprep.subr.mxu0 0.0
    %859 = vmatpush1.msra.mxu0 0.0
    %860 = vmatprep.subr.mxu0 0.0
    %861 = vmatpush1.msra.mxu0 0.0
    %862 = vmatprep.subr.mxu0 0.0
    %863 = vmatpush1.msra.mxu0 0.0
    %864 = vmatprep.subr.mxu0 0.0
    %865 = vmatpush1.msra.mxu0 0.0
    %866 = vmatprep.subr.mxu0 0.0
    %867 = vmatpush1.msra.mxu0 0.0
    %868 = vmatprep.subr.mxu0 0.0
    %869 = vmatpush1.msra.mxu0 0.0
    %870 = vmatprep.subr.mxu0 0.0
    %871 = vmatpush1.msra.mxu0 0.0
    %872 = vmatprep.subr.mxu0 0.0
    %873 = vmatpush1.msra.mxu0 0.0
    %874 = vmatprep.subr.mxu0 0.0
    %875 = vmatpush1.msra.mxu0 0.0
    %876 = vmatprep.subr.mxu0 0.0
    %877 = vmatpush1.msra.mxu0 0.0
    %878 = vmatprep.subr.mxu0 0.0
    %879 = vmatpush1.msra.mxu0 0.0
    %880 = vmatprep.subr.mxu0 0.0
    %881 = vmatpush1.msra.mxu0 0.0
    %882 = vmatprep.subr.mxu0 0.0
    %883 = vmatpush1.msra.mxu0 0.0
    %884 = vmatprep.subr.mxu0 0.0
    %885 = vmatpush1.msra.mxu0 0.0
    %886 = vmatprep.subr.mxu0 0.0
    %887 = vmatpush1.msra.mxu0 0.0
    %888 = vmatprep.subr.mxu0 0.0
    %889 = vmatpush1.msra.mxu0 0.0
    %890 = vmatprep.subr.mxu0 0.0
    %891 = vmatpush1.msra.mxu0 0.0
    %892 = vmatprep.subr.mxu0 0.0
    %893 = vmatpush1.msra.mxu0 0.0
    %894 = vmatprep.subr.mxu0 0.0
    %895 = vmatpush1.msra.mxu0 0.0
    %896 = vmatprep.subr.mxu0 0.0
    %897 = vmatpush1.msra.mxu0 0.0
    %898 = vmatprep.mubr.f32.mxu0 0.0
    %899 = vmatmul.mubr.f32.gmra.mrb[0].mxu0 %v755
    %v900 = vpop.f32.mrb[0].mxu0
    %v901 = vadd.f32 0.0, %v900
    %v902 = vpop.f32.mrb[0].mxu0
    %903 = vdwg.mxu0
    %v904 = vadd.f32 %v462, %v901
    %v905 = vxor.u32 %v904, 2147483648
    %v906 = vmul.f32 %v905, 1.442695
    %v907 = vpow.pop %v906
    %v908 = vadd.f32 %v907, 1.0
    %v909 = vrcp.pop %v908
    %v910 = vmul.f32 1.0, %v909
    %911 = vmatprep.subr.mxu0 0.0
    %912 = vmatpush1.msra.mxu0 %v181
    %913 = vmatprep.subr.mxu0 0.0
    %914 = vmatpush1.msra.mxu0 %v182
    %915 = vmatprep.subr.mxu0 0.0
    %916 = vmatpush1.msra.mxu0 %v183
    %917 = vmatprep.subr.mxu0 0.0
    %918 = vmatpush1.msra.mxu0 %v184
    %919 = vmatprep.subr.mxu0 0.0
    %920 = vmatpush1.msra.mxu0 0.0
    %921 = vmatprep.subr.mxu0 0.0
    %922 = vmatpush1.msra.mxu0 0.0
    %923 = vmatprep.subr.mxu0 0.0
    %924 = vmatpush1.msra.mxu0 0.0
    %925 = vmatprep.subr.mxu0 0.0
    %926 = vmatpush1.msra.mxu0 0.0
    %927 = vmatprep.subr.mxu0 0.0
    %928 = vmatpush1.msra.mxu0 0.0
    %929 = vmatprep.subr.mxu0 0.0
    %930 = vmatpush1.msra.mxu0 0.0
    %931 = vmatprep.subr.mxu0 0.0
    %932 = vmatpush1.msra.mxu0 0.0
    %933 = vmatprep.subr.mxu0 0.0
    %934 = vmatpush1.msra.mxu0 0.0
    %935 = vmatprep.subr.mxu0 0.0
    %936 = vmatpush1.msra.mxu0 0.0
    %937 = vmatprep.subr.mxu0 0.0
    %938 = vmatpush1.msra.mxu0 0.0
    %939 = vmatprep.subr.mxu0 0.0
    %940 = vmatpush1.msra.mxu0 0.0
    %941 = vmatprep.subr.mxu0 0.0
    %942 = vmatpush1.msra.mxu0 0.0
    %943 = vmatprep.subr.mxu0 0.0
    %944 = vmatpush1.msra.mxu0 0.0
    %945 = vmatprep.subr.mxu0 0.0
    %946 = vmatpush1.msra.mxu0 0.0
    %947 = vmatprep.subr.mxu0 0.0
    %948 = vmatpush1.msra.mxu0 0.0
    %949 = vmatprep.subr.mxu0 0.0
    %950 = vmatpush1.msra.mxu0 0.0
    %951 = vmatprep.subr.mxu0 0.0
    %952 = vmatpush1.msra.mxu0 0.0
    %953 = vmatprep.subr.mxu0 0.0
    %954 = vmatpush1.msra.mxu0 0.0
    %955 = vmatprep.subr.mxu0 0.0
    %956 = vmatpush1.msra.mxu0 0.0
    %957 = vmatprep.subr.mxu0 0.0
    %958 = vmatpush1.msra.mxu0 0.0
    %959 = vmatprep.subr.mxu0 0.0
    %960 = vmatpush1.msra.mxu0 0.0
    %961 = vmatprep.subr.mxu0 0.0
    %962 = vmatpush1.msra.mxu0 0.0
    %963 = vmatprep.subr.mxu0 0.0
    %964 = vmatpush1.msra.mxu0 0.0
    %965 = vmatprep.subr.mxu0 0.0
    %966 = vmatpush1.msra.mxu0 0.0
    %967 = vmatprep.subr.mxu0 0.0
    %968 = vmatpush1.msra.mxu0 0.0
    %969 = vmatprep.subr.mxu0 0.0
    %970 = vmatpush1.msra.mxu0 0.0
    %971 = vmatprep.subr.mxu0 0.0
    %972 = vmatpush1.msra.mxu0 0.0
    %973 = vmatprep.subr.mxu0 0.0
    %974 = vmatpush1.msra.mxu0 0.0
    %975 = vmatprep.mubr.f32.mxu0 0.0
    %976 = vmatmul.mubr.f32.gmra.mrb[0].mxu0 %v755
    %v977 = vpop.f32.mrb[0].mxu0
    %v978 = vadd.f32 0.0, %v977
    %v979 = vpop.f32.mrb[0].mxu0
    %980 = vdwg.mxu0
    %v981 = vadd.f32 %v590, %v978
    %v982 = vtanh.pop %v981
    %983 = vmatprep.subr.mxu0 0.0
    %984 = vmatpush1.msra.mxu0 %v185
    %985 = vmatprep.subr.mxu0 0.0
    %986 = vmatpush1.msra.mxu0 %v186
    %987 = vmatprep.subr.mxu0 0.0
    %988 = vmatpush1.msra.mxu0 %v187
    %989 = vmatprep.subr.mxu0 0.0
    %990 = vmatpush1.msra.mxu0 %v188
    %991 = vmatprep.subr.mxu0 0.0
    %992 = vmatpush1.msra.mxu0 0.0
    %993 = vmatprep.subr.mxu0 0.0
    %994 = vmatpush1.msra.mxu0 0.0
    %995 = vmatprep.subr.mxu0 0.0
    %996 = vmatpush1.msra.mxu0 0.0
    %997 = vmatprep.subr.mxu0 0.0
    %998 = vmatpush1.msra.mxu0 0.0
    %999 = vmatprep.subr.mxu0 0.0
    %1000 = vmatpush1.msra.mxu0 0.0
    %1001 = vmatprep.subr.mxu0 0.0
    %1002 = vmatpush1.msra.mxu0 0.0
    %1003 = vmatprep.subr.mxu0 0.0
    %1004 = vmatpush1.msra.mxu0 0.0
    %1005 = vmatprep.subr.mxu0 0.0
    %1006 = vmatpush1.msra.mxu0 0.0
    %1007 = vmatprep.subr.mxu0 0.0
    %1008 = vmatpush1.msra.mxu0 0.0
    %1009 = vmatprep.subr.mxu0 0.0
    %1010 = vmatpush1.msra.mxu0 0.0
    %1011 = vmatprep.subr.mxu0 0.0
    %1012 = vmatpush1.msra.mxu0 0.0
    %1013 = vmatprep.subr.mxu0 0.0
    %1014 = vmatpush1.msra.mxu0 0.0
    %1015 = vmatprep.subr.mxu0 0.0
    %1016 = vmatpush1.msra.mxu0 0.0
    %1017 = vmatprep.subr.mxu0 0.0
    %1018 = vmatpush1.msra.mxu0 0.0
    %1019 = vmatprep.subr.mxu0 0.0
    %1020 = vmatpush1.msra.mxu0 0.0
    %1021 = vmatprep.subr.mxu0 0.0
    %1022 = vmatpush1.msra.mxu0 0.0
    %1023 = vmatprep.subr.mxu0 0.0
    %1024 = vmatpush1.msra.mxu0 0.0
    %1025 = vmatprep.subr.mxu0 0.0
    %1026 = vmatpush1.msra.mxu0 0.0
    %1027 = vmatprep.subr.mxu0 0.0
    %1028 = vmatpush1.msra.mxu0 0.0
    %1029 = vmatprep.subr.mxu0 0.0
    %1030 = vmatpush1.msra.mxu0 0.0
    %1031 = vmatprep.subr.mxu0 0.0
    %1032 = vmatpush1.msra.mxu0 0.0
    %1033 = vmatprep.subr.mxu0 0.0
    %1034 = vmatpush1.msra.mxu0 0.0
    %1035 = vmatprep.subr.mxu0 0.0
    %1036 = vmatpush1.msra.mxu0 0.0
    %1037 = vmatprep.subr.mxu0 0.0
    %1038 = vmatpush1.msra.mxu0 0.0
    %1039 = vmatprep.subr.mxu0 0.0
    %1040 = vmatpush1.msra.mxu0 0.0
    %1041 = vmatprep.subr.mxu0 0.0
    %1042 = vmatpush1.msra.mxu0 0.0
    %1043 = vmatprep.subr.mxu0 0.0
    %1044 = vmatpush1.msra.mxu0 0.0
    %1045 = vmatprep.subr.mxu0 0.0
    %1046 = vmatpush1.msra.mxu0 0.0
    %1047 = vmatprep.mubr.f32.mxu0 0.0
    %1048 = vmatmul.mubr.f32.gmra.mrb[0].mxu0 %v755
    %v1049 = vpop.f32.mrb[0].mxu0
    %v1050 = vadd.f32 0.0, %v1049
    %v1051 = vpop.f32.mrb[0].mxu0
    %1052 = vdwg.mxu0
    %v1053 = vadd.f32 %v718, %v1050
    %v1054 = vxor.u32 %v1053, 2147483648
    %v1055 = vmul.f32 %v1054, 1.442695
    %v1056 = vpow.pop %v1055
    %v1057 = vadd.f32 %v1056, 1.0
    %v1058 = vrcp.pop %v1057
    %v1059 = vmul.f32 1.0, %v1058
    %v1060 = vmul.f32 %v910, 0.0
    %v1061 = vmul.f32 %v833, %v982
    %v1062 = vadd.f32 %v1060, %v1061
    %v1063 = vtanh.pop %v1062
    %v1064 = vmul.f32 %v1059, %v1063
    %v1066 = vsel %vm753, %v1064, 0
    %1068 = vmatprep.subr.mxu0 0.0
    %1069 = vmatpush1.msra.mxu0 %v173
    %1070 = vmatprep.subr.mxu0 0.0
    %1071 = vmatpush1.msra.mxu0 %v174
    %1072 = vmatprep.subr.mxu0 0.0
    %1073 = vmatpush1.msra.mxu0 %v175
    %1074 = vmatprep.subr.mxu0 0.0
    %1075 = vmatpush1.msra.mxu0 %v176
    %1076 = vmatprep.subr.mxu0 0.0
    %1077 = vmatpush1.msra.mxu0 0.0
    %1078 = vmatprep.subr.mxu0 0.0
    %1079 = vmatpush1.msra.mxu0 0.0
    %1080 = vmatprep.subr.mxu0 0.0
    %1081 = vmatpush1.msra.mxu0 0.0
    %1082 = vmatprep.subr.mxu0 0.0
    %1083 = vmatpush1.msra.mxu0 0.0
    %1084 = vmatprep.subr.mxu0 0.0
    %1085 = vmatpush1.msra.mxu0 0.0
    %1086 = vmatprep.subr.mxu0 0.0
    %1087 = vmatpush1.msra.mxu0 0.0
    %1088 = vmatprep.subr.mxu0 0.0
    %1089 = vmatpush1.msra.mxu0 0.0
    %1090 = vmatprep.subr.mxu0 0.0
    %1091 = vmatpush1.msra.mxu0 0.0
    %1092 = vmatprep.subr.mxu0 0.0
    %1093 = vmatpush1.msra.mxu0 0.0
    %1094 = vmatprep.subr.mxu0 0.0
    %1095 = vmatpush1.msra.mxu0 0.0
    %1096 = vmatprep.subr.mxu0 0.0
    %1097 = vmatpush1.msra.mxu0 0.0
    %1098 = vmatprep.subr.mxu0 0.0
    %1099 = vmatpush1.msra.mxu0 0.0
    %1100 = vmatprep.subr.mxu0 0.0
    %1101 = vmatpush1.msra.mxu0 0.0
    %1102 = vmatprep.subr.mxu0 0.0
    %1103 = vmatpush1.msra.mxu0 0.0
    %1104 = vmatprep.subr.mxu0 0.0
    %1105 = vmatpush1.msra.mxu0 0.0
    %1106 = vmatprep.subr.mxu0 0.0
    %1107 = vmatpush1.msra.mxu0 0.0
    %1108 = vmatprep.subr.mxu0 0.0
    %1109 = vmatpush1.msra.mxu0 0.0
    %1110 = vmatprep.subr.mxu0 0.0
    %1111 = vmatpush1.msra.mxu0 0.0
    %1112 = vmatprep.subr.mxu0 0.0
    %1113 = vmatpush1.msra.mxu0 0.0
    %1114 = vmatprep.subr.mxu0 0.0
    %1115 = vmatpush1.msra.mxu0 0.0
    %1116 = vmatprep.subr.mxu0 0.0
    %1117 = vmatpush1.msra.mxu0 0.0
    %1118 = vmatprep.subr.mxu0 0.0
    %1119 = vmatpush1.msra.mxu0 0.0
    %1120 = vmatprep.subr.mxu0 0.0
    %1121 = vmatpush1.msra.mxu0 0.0
    %1122 = vmatprep.subr.mxu0 0.0
    %1123 = vmatpush1.msra.mxu0 0.0
    %1124 = vmatprep.subr.mxu0 0.0
    %1125 = vmatpush1.msra.mxu0 0.0
    %1126 = vmatprep.subr.mxu0 0.0
    %1127 = vmatpush1.msra.mxu0 0.0
    %1128 = vmatprep.subr.mxu0 0.0
    %1129 = vmatpush1.msra.mxu0 0.0
    %1130 = vmatprep.subr.mxu0 0.0
    %1131 = vmatpush1.msra.mxu0 0.0
    %1132 = vmatprep.mubr.f32.mxu0 0.0
    %1133 = vmatmul.mubr.f32.gmra.mrb[0].mxu0 %v1066
    %v1134 = vpop.f32.mrb[0].mxu0
    %v1135 = vadd.f32 0.0, %v1134
    %v1136 = vpop.f32.mrb[0].mxu0
    %1137 = vdwg.mxu0
    %v1138 = vadd.f32 %v342, %v1135
    %v1139 = vxor.u32 %v1138, 2147483648
    %v1140 = vmul.f32 %v1139, 1.442695
    %v1141 = vpow.pop %v1140
    %v1142 = vadd.f32 %v1141, 1.0
    %v1143 = vrcp.pop %v1142
    %v1144 = vmul.f32 1.0, %v1143
    %1145 = vmatprep.subr.mxu0 0.0
    %1146 = vmatpush1.msra.mxu0 %v177
    %1147 = vmatprep.subr.mxu0 0.0
    %1148 = vmatpush1.msra.mxu0 %v178
    %1149 = vmatprep.subr.mxu0 0.0
    %1150 = vmatpush1.msra.mxu0 %v179
    %1151 = vmatprep.subr.mxu0 0.0
    %1152 = vmatpush1.msra.mxu0 %v180
    %1153 = vmatprep.subr.mxu0 0.0
    %1154 = vmatpush1.msra.mxu0 0.0
    %1155 = vmatprep.subr.mxu0 0.0
    %1156 = vmatpush1.msra.mxu0 0.0
    %1157 = vmatprep.subr.mxu0 0.0
    %1158 = vmatpush1.msra.mxu0 0.0
    %1159 = vmatprep.subr.mxu0 0.0
    %1160 = vmatpush1.msra.mxu0 0.0
    %1161 = vmatprep.subr.mxu0 0.0
    %1162 = vmatpush1.msra.mxu0 0.0
    %1163 = vmatprep.subr.mxu0 0.0
    %1164 = vmatpush1.msra.mxu0 0.0
    %1165 = vmatprep.subr.mxu0 0.0
    %1166 = vmatpush1.msra.mxu0 0.0
    %1167 = vmatprep.subr.mxu0 0.0
    %1168 = vmatpush1.msra.mxu0 0.0
    %1169 = vmatprep.subr.mxu0 0.0
    %1170 = vmatpush1.msra.mxu0 0.0
    %1171 = vmatprep.subr.mxu0 0.0
    %1172 = vmatpush1.msra.mxu0 0.0
    %1173 = vmatprep.subr.mxu0 0.0
    %1174 = vmatpush1.msra.mxu0 0.0
    %1175 = vmatprep.subr.mxu0 0.0
    %1176 = vmatpush1.msra.mxu0 0.0
    %1177 = vmatprep.subr.mxu0 0.0
    %1178 = vmatpush1.msra.mxu0 0.0
    %1179 = vmatprep.subr.mxu0 0.0
    %1180 = vmatpush1.msra.mxu0 0.0
    %1181 = vmatprep.subr.mxu0 0.0
    %1182 = vmatpush1.msra.mxu0 0.0
    %1183 = vmatprep.subr.mxu0 0.0
    %1184 = vmatpush1.msra.mxu0 0.0
    %1185 = vmatprep.subr.mxu0 0.0
    %1186 = vmatpush1.msra.mxu0 0.0
    %1187 = vmatprep.subr.mxu0 0.0
    %1188 = vmatpush1.msra.mxu0 0.0
    %1189 = vmatprep.subr.mxu0 0.0
    %1190 = vmatpush1.msra.mxu0 0.0
    %1191 = vmatprep.subr.mxu0 0.0
    %1192 = vmatpush1.msra.mxu0 0.0
    %1193 = vmatprep.subr.mxu0 0.0
    %1194 = vmatpush1.msra.mxu0 0.0
    %1195 = vmatprep.subr.mxu0 0.0
    %1196 = vmatpush1.msra.mxu0 0.0
    %1197 = vmatprep.subr.mxu0 0.0
    %1198 = vmatpush1.msra.mxu0 0.0
    %1199 = vmatprep.subr.mxu0 0.0
    %1200 = vmatpush1.msra.mxu0 0.0
    %1201 = vmatprep.subr.mxu0 0.0
    %1202 = vmatpush1.msra.mxu0 0.0
    %1203 = vmatprep.subr.mxu0 0.0
    %1204 = vmatpush1.msra.mxu0 0.0
    %1205 = vmatprep.subr.mxu0 0.0
    %1206 = vmatpush1.msra.mxu0 0.0
    %1207 = vmatprep.subr.mxu0 0.0
    %1208 = vmatpush1.msra.mxu0 0.0
    %1209 = vmatprep.mubr.f32.mxu0 0.0
    %1210 = vmatmul.mubr.f32.gmra.mrb[0].mxu0 %v1066
    %v1211 = vpop.f32.mrb[0].mxu0
    %v1212 = vadd.f32 0.0, %v1211
    %v1213 = vpop.f32.mrb[0].mxu0
    %1214 = vdwg.mxu0
    %v1215 = vadd.f32 %v470, %v1212
    %v1216 = vxor.u32 %v1215, 2147483648
    %v1217 = vmul.f32 %v1216, 1.442695
    %v1218 = vpow.pop %v1217
    %v1219 = vadd.f32 %v1218, 1.0
    %v1220 = vrcp.pop %v1219
    %v1221 = vmul.f32 1.0, %v1220
    %1222 = vmatprep.subr.mxu0 0.0
    %1223 = vmatpush1.msra.mxu0 %v181
    %1224 = vmatprep.subr.mxu0 0.0
    %1225 = vmatpush1.msra.mxu0 %v182
    %1226 = vmatprep.subr.mxu0 0.0
    %1227 = vmatpush1.msra.mxu0 %v183
    %1228 = vmatprep.subr.mxu0 0.0
    %1229 = vmatpush1.msra.mxu0 %v184
    %1230 = vmatprep.subr.mxu0 0.0
    %1231 = vmatpush1.msra.mxu0 0.0
    %1232 = vmatprep.subr.mxu0 0.0
    %1233 = vmatpush1.msra.mxu0 0.0
    %1234 = vmatprep.subr.mxu0 0.0
    %1235 = vmatpush1.msra.mxu0 0.0
    %1236 = vmatprep.subr.mxu0 0.0
    %1237 = vmatpush1.msra.mxu0 0.0
    %1238 = vmatprep.subr.mxu0 0.0
    %1239 = vmatpush1.msra.mxu0 0.0
    %1240 = vmatprep.subr.mxu0 0.0
    %1241 = vmatpush1.msra.mxu0 0.0
    %1242 = vmatprep.subr.mxu0 0.0
    %1243 = vmatpush1.msra.mxu0 0.0
    %1244 = vmatprep.subr.mxu0 0.0
    %1245 = vmatpush1.msra.mxu0 0.0
    %1246 = vmatprep.subr.mxu0 0.0
    %1247 = vmatpush1.msra.mxu0 0.0
    %1248 = vmatprep.subr.mxu0 0.0
    %1249 = vmatpush1.msra.mxu0 0.0
    %1250 = vmatprep.subr.mxu0 0.0
    %1251 = vmatpush1.msra.mxu0 0.0
    %1252 = vmatprep.subr.mxu0 0.0
    %1253 = vmatpush1.msra.mxu0 0.0
    %1254 = vmatprep.subr.mxu0 0.0
    %1255 = vmatpush1.msra.mxu0 0.0
    %1256 = vmatprep.subr.mxu0 0.0
    %1257 = vmatpush1.msra.mxu0 0.0
    %1258 = vmatprep.subr.mxu0 0.0
    %1259 = vmatpush1.msra.mxu0 0.0
    %1260 = vmatprep.subr.mxu0 0.0
    %1261 = vmatpush1.msra.mxu0 0.0
    %1262 = vmatprep.subr.mxu0 0.0
    %1263 = vmatpush1.msra.mxu0 0.0
    %1264 = vmatprep.subr.mxu0 0.0
    %1265 = vmatpush1.msra.mxu0 0.0
    %1266 = vmatprep.subr.mxu0 0.0
    %1267 = vmatpush1.msra.mxu0 0.0
    %1268 = vmatprep.subr.mxu0 0.0
    %1269 = vmatpush1.msra.mxu0 0.0
    %1270 = vmatprep.subr.mxu0 0.0
    %1271 = vmatpush1.msra.mxu0 0.0
    %1272 = vmatprep.subr.mxu0 0.0
    %1273 = vmatpush1.msra.mxu0 0.0
    %1274 = vmatprep.subr.mxu0 0.0
    %1275 = vmatpush1.msra.mxu0 0.0
    %1276 = vmatprep.subr.mxu0 0.0
    %1277 = vmatpush1.msra.mxu0 0.0
    %1278 = vmatprep.subr.mxu0 0.0
    %1279 = vmatpush1.msra.mxu0 0.0
    %1280 = vmatprep.subr.mxu0 0.0
    %1281 = vmatpush1.msra.mxu0 0.0
    %1282 = vmatprep.subr.mxu0 0.0
    %1283 = vmatpush1.msra.mxu0 0.0
    %1284 = vmatprep.subr.mxu0 0.0
    %1285 = vmatpush1.msra.mxu0 0.0
    %1286 = vmatprep.mubr.f32.mxu0 0.0
    %1287 = vmatmul.mubr.f32.gmra.mrb[0].mxu0 %v1066
    %v1288 = vpop.f32.mrb[0].mxu0
    %v1289 = vadd.f32 0.0, %v1288
    %v1290 = vpop.f32.mrb[0].mxu0
    %1291 = vdwg.mxu0
    %v1292 = vadd.f32 %v598, %v1289
    %v1293 = vtanh.pop %v1292
    %1294 = vmatprep.subr.mxu0 0.0
    %1295 = vmatpush1.msra.mxu0 %v185
    %1296 = vmatprep.subr.mxu0 0.0
    %1297 = vmatpush1.msra.mxu0 %v186
    %1298 = vmatprep.subr.mxu0 0.0
    %1299 = vmatpush1.msra.mxu0 %v187
    %1300 = vmatprep.subr.mxu0 0.0
    %1301 = vmatpush1.msra.mxu0 %v188
    %1302 = vmatprep.subr.mxu0 0.0
    %1303 = vmatpush1.msra.mxu0 0.0
    %1304 = vmatprep.subr.mxu0 0.0
    %1305 = vmatpush1.msra.mxu0 0.0
    %1306 = vmatprep.subr.mxu0 0.0
    %1307 = vmatpush1.msra.mxu0 0.0
    %1308 = vmatprep.subr.mxu0 0.0
    %1309 = vmatpush1.msra.mxu0 0.0
    %1310 = vmatprep.subr.mxu0 0.0
    %1311 = vmatpush1.msra.mxu0 0.0
    %1312 = vmatprep.subr.mxu0 0.0
    %1313 = vmatpush1.msra.mxu0 0.0
    %1314 = vmatprep.subr.mxu0 0.0
    %1315 = vmatpush1.msra.mxu0 0.0
    %1316 = vmatprep.subr.mxu0 0.0
    %1317 = vmatpush1.msra.mxu0 0.0
    %1318 = vmatprep.subr.mxu0 0.0
    %1319 = vmatpush1.msra.mxu0 0.0
    %1320 = vmatprep.subr.mxu0 0.0
    %1321 = vmatpush1.msra.mxu0 0.0
    %1322 = vmatprep.subr.mxu0 0.0
    %1323 = vmatpush1.msra.mxu0 0.0
    %1324 = vmatprep.subr.mxu0 0.0
    %1325 = vmatpush1.msra.mxu0 0.0
    %1326 = vmatprep.subr.mxu0 0.0
    %1327 = vmatpush1.msra.mxu0 0.0
    %1328 = vmatprep.subr.mxu0 0.0
    %1329 = vmatpush1.msra.mxu0 0.0
    %1330 = vmatprep.subr.mxu0 0.0
    %1331 = vmatpush1.msra.mxu0 0.0
    %1332 = vmatprep.subr.mxu0 0.0
    %1333 = vmatpush1.msra.mxu0 0.0
    %1334 = vmatprep.subr.mxu0 0.0
    %1335 = vmatpush1.msra.mxu0 0.0
    %1336 = vmatprep.subr.mxu0 0.0
    %1337 = vmatpush1.msra.mxu0 0.0
    %1338 = vmatprep.subr.mxu0 0.0
    %1339 = vmatpush1.msra.mxu0 0.0
    %1340 = vmatprep.subr.mxu0 0.0
    %1341 = vmatpush1.msra.mxu0 0.0
    %1342 = vmatprep.subr.mxu0 0.0
    %1343 = vmatpush1.msra.mxu0 0.0
    %1344 = vmatprep.subr.mxu0 0.0
    %1345 = vmatpush1.msra.mxu0 0.0
    %1346 = vmatprep.subr.mxu0 0.0
    %1347 = vmatpush1.msra.mxu0 0.0
    %1348 = vmatprep.subr.mxu0 0.0
    %1349 = vmatpush1.msra.mxu0 0.0
    %1350 = vmatprep.subr.mxu0 0.0
    %1351 = vmatpush1.msra.mxu0 0.0
    %1352 = vmatprep.subr.mxu0 0.0
    %1353 = vmatpush1.msra.mxu0 0.0
    %1354 = vmatprep.subr.mxu0 0.0
    %1355 = vmatpush1.msra.mxu0 0.0
    %1356 = vmatprep.subr.mxu0 0.0
    %1357 = vmatpush1.msra.mxu0 0.0
    %1358 = vmatprep.mubr.f32.mxu0 0.0
    %1359 = vmatmul.mubr.f32.gmra.mrb[0].mxu0 %v1066
    %v1360 = vpop.f32.mrb[0].mxu0
    %v1361 = vadd.f32 0.0, %v1360
    %v1362 = vpop.f32.mrb[0].mxu0
    %1363 = vdwg.mxu0
    %v1364 = vadd.f32 %v726, %v1361
    %v1365 = vxor.u32 %v1364, 2147483648
    %v1366 = vmul.f32 %v1365, 1.442695
    %v1367 = vpow.pop %v1366
    %v1368 = vadd.f32 %v1367, 1.0
    %v1369 = vrcp.pop %v1368
    %v1370 = vmul.f32 1.0, %v1369
    %v1371 = vmul.f32 %v1221, %v1062
    %v1372 = vmul.f32 %v1144, %v1293
    %v1373 = vadd.f32 %v1371, %v1372
    %v1374 = vtanh.pop %v1373
    %v1375 = vmul.f32 %v1370, %v1374
    %v1377 = vsel %vm753, %v1375, 0
    %1379 = vmatprep.subr.mxu0 0.0
    %1380 = vmatpush1.msra.mxu0 %v173
    %1381 = vmatprep.subr.mxu0 0.0
    %1382 = vmatpush1.msra.mxu0 %v174
    %1383 = vmatprep.subr.mxu0 0.0
    %1384 = vmatpush1.msra.mxu0 %v175
    %1385 = vmatprep.subr.mxu0 0.0
    %1386 = vmatpush1.msra.mxu0 %v176
    %1387 = vmatprep.subr.mxu0 0.0
    %1388 = vmatpush1.msra.mxu0 0.0
    %1389 = vmatprep.subr.mxu0 0.0
    %1390 = vmatpush1.msra.mxu0 0.0
    %1391 = vmatprep.subr.mxu0 0.0
    %1392 = vmatpush1.msra.mxu0 0.0
    %1393 = vmatprep.subr.mxu0 0.0
    %1394 = vmatpush1.msra.mxu0 0.0
    %1395 = vmatprep.subr.mxu0 0.0
    %1396 = vmatpush1.msra.mxu0 0.0
    %1397 = vmatprep.subr.mxu0 0.0
    %1398 = vmatpush1.msra.mxu0 0.0
    %1399 = vmatprep.subr.mxu0 0.0
    %1400 = vmatpush1.msra.mxu0 0.0
    %1401 = vmatprep.subr.mxu0 0.0
    %1402 = vmatpush1.msra.mxu0 0.0
    %1403 = vmatprep.subr.mxu0 0.0
    %1404 = vmatpush1.msra.mxu0 0.0
    %1405 = vmatprep.subr.mxu0 0.0
    %1406 = vmatpush1.msra.mxu0 0.0
    %1407 = vmatprep.subr.mxu0 0.0
    %1408 = vmatpush1.msra.mxu0 0.0
    %1409 = vmatprep.subr.mxu0 0.0
    %1410 = vmatpush1.msra.mxu0 0.0
    %1411 = vmatprep.subr.mxu0 0.0
    %1412 = vmatpush1.msra.mxu0 0.0
    %1413 = vmatprep.subr.mxu0 0.0
    %1414 = vmatpush1.msra.mxu0 0.0
    %1415 = vmatprep.subr.mxu0 0.0
    %1416 = vmatpush1.msra.mxu0 0.0
    %1417 = vmatprep.subr.mxu0 0.0
    %1418 = vmatpush1.msra.mxu0 0.0
    %1419 = vmatprep.subr.mxu0 0.0
    %1420 = vmatpush1.msra.mxu0 0.0
    %1421 = vmatprep.subr.mxu0 0.0
    %1422 = vmatpush1.msra.mxu0 0.0
    %1423 = vmatprep.subr.mxu0 0.0
    %1424 = vmatpush1.msra.mxu0 0.0
    %1425 = vmatprep.subr.mxu0 0.0
    %1426 = vmatpush1.msra.mxu0 0.0
    %1427 = vmatprep.subr.mxu0 0.0
    %1428 = vmatpush1.msra.mxu0 0.0
    %1429 = vmatprep.subr.mxu0 0.0
    %1430 = vmatpush1.msra.mxu0 0.0
    %1431 = vmatprep.subr.mxu0 0.0
    %1432 = vmatpush1.msra.mxu0 0.0
    %1433 = vmatprep.subr.mxu0 0.0
    %1434 = vmatpush1.msra.mxu0 0.0
    %1435 = vmatprep.subr.mxu0 0.0
    %1436 = vmatpush1.msra.mxu0 0.0
    %1437 = vmatprep.subr.mxu0 0.0
    %1438 = vmatpush1.msra.mxu0 0.0
    %1439 = vmatprep.subr.mxu0 0.0
    %1440 = vmatpush1.msra.mxu0 0.0
    %1441 = vmatprep.subr.mxu0 0.0
    %1442 = vmatpush1.msra.mxu0 0.0
    %1443 = vmatprep.mubr.f32.mxu0 0.0
    %1444 = vmatmul.mubr.f32.gmra.mrb[0].mxu0 %v1377
    %v1445 = vpop.f32.mrb[0].mxu0
    %v1446 = vadd.f32 0.0, %v1445
    %v1447 = vpop.f32.mrb[0].mxu0
    %1448 = vdwg.mxu0
    %v1449 = vadd.f32 %v341, %v1446
    %v1450 = vxor.u32 %v1449, 2147483648
    %v1451 = vmul.f32 %v1450, 1.442695
    %v1452 = vpow.pop %v1451
    %v1453 = vadd.f32 %v1452, 1.0
    %v1454 = vrcp.pop %v1453
    %v1455 = vmul.f32 1.0, %v1454
    %1456 = vmatprep.subr.mxu0 0.0
    %1457 = vmatpush1.msra.mxu0 %v177
    %1458 = vmatprep.subr.mxu0 0.0
    %1459 = vmatpush1.msra.mxu0 %v178
    %1460 = vmatprep.subr.mxu0 0.0
    %1461 = vmatpush1.msra.mxu0 %v179
    %1462 = vmatprep.subr.mxu0 0.0
    %1463 = vmatpush1.msra.mxu0 %v180
    %1464 = vmatprep.subr.mxu0 0.0
    %1465 = vmatpush1.msra.mxu0 0.0
    %1466 = vmatprep.subr.mxu0 0.0
    %1467 = vmatpush1.msra.mxu0 0.0
    %1468 = vmatprep.subr.mxu0 0.0
    %1469 = vmatpush1.msra.mxu0 0.0
    %1470 = vmatprep.subr.mxu0 0.0
    %1471 = vmatpush1.msra.mxu0 0.0
    %1472 = vmatprep.subr.mxu0 0.0
    %1473 = vmatpush1.msra.mxu0 0.0
    %1474 = vmatprep.subr.mxu0 0.0
    %1475 = vmatpush1.msra.mxu0 0.0
    %1476 = vmatprep.subr.mxu0 0.0
    %1477 = vmatpush1.msra.mxu0 0.0
    %1478 = vmatprep.subr.mxu0 0.0
    %1479 = vmatpush1.msra.mxu0 0.0
    %1480 = vmatprep.subr.mxu0 0.0
    %1481 = vmatpush1.msra.mxu0 0.0
    %1482 = vmatprep.subr.mxu0 0.0
    %1483 = vmatpush1.msra.mxu0 0.0
    %1484 = vmatprep.subr.mxu0 0.0
    %1485 = vmatpush1.msra.mxu0 0.0
    %1486 = vmatprep.subr.mxu0 0.0
    %1487 = vmatpush1.msra.mxu0 0.0
    %1488 = vmatprep.subr.mxu0 0.0
    %1489 = vmatpush1.msra.mxu0 0.0
    %1490 = vmatprep.subr.mxu0 0.0
    %1491 = vmatpush1.msra.mxu0 0.0
    %1492 = vmatprep.subr.mxu0 0.0
    %1493 = vmatpush1.msra.mxu0 0.0
    %1494 = vmatprep.subr.mxu0 0.0
    %1495 = vmatpush1.msra.mxu0 0.0
    %1496 = vmatprep.subr.mxu0 0.0
    %1497 = vmatpush1.msra.mxu0 0.0
    %1498 = vmatprep.subr.mxu0 0.0
    %1499 = vmatpush1.msra.mxu0 0.0
    %1500 = vmatprep.subr.mxu0 0.0
    %1501 = vmatpush1.msra.mxu0 0.0
    %1502 = vmatprep.subr.mxu0 0.0
    %1503 = vmatpush1.msra.mxu0 0.0
    %1504 = vmatprep.subr.mxu0 0.0
    %1505 = vmatpush1.msra.mxu0 0.0
    %1506 = vmatprep.subr.mxu0 0.0
    %1507 = vmatpush1.msra.mxu0 0.0
    %1508 = vmatprep.subr.mxu0 0.0
    %1509 = vmatpush1.msra.mxu0 0.0
    %1510 = vmatprep.subr.mxu0 0.0
    %1511 = vmatpush1.msra.mxu0 0.0
    %1512 = vmatprep.subr.mxu0 0.0
    %1513 = vmatpush1.msra.mxu0 0.0
    %1514 = vmatprep.subr.mxu0 0.0
    %1515 = vmatpush1.msra.mxu0 0.0
    %1516 = vmatprep.subr.mxu0 0.0
    %1517 = vmatpush1.msra.mxu0 0.0
    %1518 = vmatprep.subr.mxu0 0.0
    %1519 = vmatpush1.msra.mxu0 0.0
    %1520 = vmatprep.mubr.f32.mxu0 0.0
    %1521 = vmatmul.mubr.f32.gmra.mrb[0].mxu0 %v1377
    %v1522 = vpop.f32.mrb[0].mxu0
    %v1523 = vadd.f32 0.0, %v1522
    %v1524 = vpop.f32.mrb[0].mxu0
    %1525 = vdwg.mxu0
    %v1526 = vadd.f32 %v469, %v1523
    %v1527 = vxor.u32 %v1526, 2147483648
    %v1528 = vmul.f32 %v1527, 1.442695
    %v1529 = vpow.pop %v1528
    %v1530 = vadd.f32 %v1529, 1.0
    %v1531 = vrcp.pop %v1530
    %v1532 = vmul.f32 1.0, %v1531
    %1533 = vmatprep.subr.mxu0 0.0
    %1534 = vmatpush1.msra.mxu0 %v181
    %1535 = vmatprep.subr.mxu0 0.0
    %1536 = vmatpush1.msra.mxu0 %v182
    %1537 = vmatprep.subr.mxu0 0.0
    %1538 = vmatpush1.msra.mxu0 %v183
    %1539 = vmatprep.subr.mxu0 0.0
    %1540 = vmatpush1.msra.mxu0 %v184
    %1541 = vmatprep.subr.mxu0 0.0
    %1542 = vmatpush1.msra.mxu0 0.0
    %1543 = vmatprep.subr.mxu0 0.0
    %1544 = vmatpush1.msra.mxu0 0.0
    %1545 = vmatprep.subr.mxu0 0.0
    %1546 = vmatpush1.msra.mxu0 0.0
    %1547 = vmatprep.subr.mxu0 0.0
    %1548 = vmatpush1.msra.mxu0 0.0
    %1549 = vmatprep.subr.mxu0 0.0
    %1550 = vmatpush1.msra.mxu0 0.0
    %1551 = vmatprep.subr.mxu0 0.0
    %1552 = vmatpush1.msra.mxu0 0.0
    %1553 = vmatprep.subr.mxu0 0.0
    %1554 = vmatpush1.msra.mxu0 0.0
    %1555 = vmatprep.subr.mxu0 0.0
    %1556 = vmatpush1.msra.mxu0 0.0
    %1557 = vmatprep.subr.mxu0 0.0
    %1558 = vmatpush1.msra.mxu0 0.0
    %1559 = vmatprep.subr.mxu0 0.0
    %1560 = vmatpush1.msra.mxu0 0.0
    %1561 = vmatprep.subr.mxu0 0.0
    %1562 = vmatpush1.msra.mxu0 0.0
    %1563 = vmatprep.subr.mxu0 0.0
    %1564 = vmatpush1.msra.mxu0 0.0
    %1565 = vmatprep.subr.mxu0 0.0
    %1566 = vmatpush1.msra.mxu0 0.0
    %1567 = vmatprep.subr.mxu0 0.0
    %1568 = vmatpush1.msra.mxu0 0.0
    %1569 = vmatprep.subr.mxu0 0.0
    %1570 = vmatpush1.msra.mxu0 0.0
    %1571 = vmatprep.subr.mxu0 0.0
    %1572 = vmatpush1.msra.mxu0 0.0
    %1573 = vmatprep.subr.mxu0 0.0
    %1574 = vmatpush1.msra.mxu0 0.0
    %1575 = vmatprep.subr.mxu0 0.0
    %1576 = vmatpush1.msra.mxu0 0.0
    %1577 = vmatprep.subr.mxu0 0.0
    %1578 = vmatpush1.msra.mxu0 0.0
    %1579 = vmatprep.subr.mxu0 0.0
    %1580 = vmatpush1.msra.mxu0 0.0
    %1581 = vmatprep.subr.mxu0 0.0
    %1582 = vmatpush1.msra.mxu0 0.0
    %1583 = vmatprep.subr.mxu0 0.0
    %1584 = vmatpush1.msra.mxu0 0.0
    %1585 = vmatprep.subr.mxu0 0.0
    %1586 = vmatpush1.msra.mxu0 0.0
    %1587 = vmatprep.subr.mxu0 0.0
    %1588 = vmatpush1.msra.mxu0 0.0
    %1589 = vmatprep.subr.mxu0 0.0
    %1590 = vmatpush1.msra.mxu0 0.0
    %1591 = vmatprep.subr.mxu0 0.0
    %1592 = vmatpush1.msra.mxu0 0.0
    %1593 = vmatprep.subr.mxu0 0.0
    %1594 = vmatpush1.msra.mxu0 0.0
    %1595 = vmatprep.subr.mxu0 0.0
    %1596 = vmatpush1.msra.mxu0 0.0
    %1597 = vmatprep.mubr.f32.mxu0 0.0
    %1598 = vmatmul.mubr.f32.gmra.mrb[0].mxu0 %v1377
    %v1599 = vpop.f32.mrb[0].mxu0
    %v1600 = vadd.f32 0.0, %v1599
    %v1601 = vpop.f32.mrb[0].mxu0
    %1602 = vdwg.mxu0
    %v1603 = vadd.f32 %v597, %v1600
    %v1604 = vtanh.pop %v1603
    %1605 = vmatprep.subr.mxu0 0.0
    %1606 = vmatpush1.msra.mxu0 %v185
    %1607 = vmatprep.subr.mxu0 0.0
    %1608 = vmatpush1.msra.mxu0 %v186
    %1609 = vmatprep.subr.mxu0 0.0
    %1610 = vmatpush1.msra.mxu0 %v187
    %1611 = vmatprep.subr.mxu0 0.0
    %1612 = vmatpush1.msra.mxu0 %v188
    %1613 = vmatprep.subr.mxu0 0.0
    %1614 = vmatpush1.msra.mxu0 0.0
    %1615 = vmatprep.subr.mxu0 0.0
    %1616 = vmatpush1.msra.mxu0 0.0
    %1617 = vmatprep.subr.mxu0 0.0
    %1618 = vmatpush1.msra.mxu0 0.0
    %1619 = vmatprep.subr.mxu0 0.0
    %1620 = vmatpush1.msra.mxu0 0.0
    %1621 = vmatprep.subr.mxu0 0.0
    %1622 = vmatpush1.msra.mxu0 0.0
    %1623 = vmatprep.subr.mxu0 0.0
    %1624 = vmatpush1.msra.mxu0 0.0
    %1625 = vmatprep.subr.mxu0 0.0
    %1626 = vmatpush1.msra.mxu0 0.0
    %1627 = vmatprep.subr.mxu0 0.0
    %1628 = vmatpush1.msra.mxu0 0.0
    %1629 = vmatprep.subr.mxu0 0.0
    %1630 = vmatpush1.msra.mxu0 0.0
    %1631 = vmatprep.subr.mxu0 0.0
    %1632 = vmatpush1.msra.mxu0 0.0
    %1633 = vmatprep.subr.mxu0 0.0
    %1634 = vmatpush1.msra.mxu0 0.0
    %1635 = vmatprep.subr.mxu0 0.0
    %1636 = vmatpush1.msra.mxu0 0.0
    %1637 = vmatprep.subr.mxu0 0.0
    %1638 = vmatpush1.msra.mxu0 0.0
    %1639 = vmatprep.subr.mxu0 0.0
    %1640 = vmatpush1.msra.mxu0 0.0
    %1641 = vmatprep.subr.mxu0 0.0
    %1642 = vmatpush1.msra.mxu0 0.0
    %1643 = vmatprep.subr.mxu0 0.0
    %1644 = vmatpush1.msra.mxu0 0.0
    %1645 = vmatprep.subr.mxu0 0.0
    %1646 = vmatpush1.msra.mxu0 0.0
    %1647 = vmatprep.subr.mxu0 0.0
    %1648 = vmatpush1.msra.mxu0 0.0
    %1649 = vmatprep.subr.mxu0 0.0
    %1650 = vmatpush1.msra.mxu0 0.0
    %1651 = vmatprep.subr.mxu0 0.0
    %1652 = vmatpush1.msra.mxu0 0.0
    %1653 = vmatprep.subr.mxu0 0.0
    %1654 = vmatpush1.msra.mxu0 0.0
    %1655 = vmatprep.subr.mxu0 0.0
    %1656 = vmatpush1.msra.mxu0 0.0
    %1657 = vmatprep.subr.mxu0 0.0
    %1658 = vmatpush1.msra.mxu0 0.0
    %1659 = vmatprep.subr.mxu0 0.0
    %1660 = vmatpush1.msra.mxu0 0.0
    %1661 = vmatprep.subr.mxu0 0.0
    %1662 = vmatpush1.msra.mxu0 0.0
    %1663 = vmatprep.subr.mxu0 0.0
    %1664 = vmatpush1.msra.mxu0 0.0
    %1665 = vmatprep.subr.mxu0 0.0
    %1666 = vmatpush1.msra.mxu0 0.0
    %1667 = vmatprep.subr.mxu0 0.0
    %1668 = vmatpush1.msra.mxu0 0.0
    %1669 = vmatprep.mubr.f32.mxu0 0.0
    %1670 = vmatmul.mubr.f32.gmra.mrb[0].mxu0 %v1377
    %v1671 = vpop.f32.mrb[0].mxu0
    %v1672 = vadd.f32 0.0, %v1671
    %v1673 = vpop.f32.mrb[0].mxu0
    %1674 = vdwg.mxu0
    %v1675 = vadd.f32 %v725, %v1672
    %v1676 = vxor.u32 %v1675, 2147483648
    %v1677 = vmul.f32 %v1676, 1.442695
    %v1678 = vpow.pop %v1677
    %v1679 = vadd.f32 %v1678, 1.0
    %v1680 = vrcp.pop %v1679
    %v1681 = vmul.f32 1.0, %v1680
    %v1682 = vmul.f32 %v1532, %v1373
    %v1683 = vmul.f32 %v1455, %v1604
    %v1684 = vadd.f32 %v1682, %v1683
    %v1685 = vtanh.pop %v1684
    %v1686 = vmul.f32 %v1681, %v1685
    %v1688 = vsel %vm753, %v1686, 0
    %1690 = vmatprep.subr.mxu0 0.0
    %1691 = vmatpush1.msra.mxu0 %v173
    %1692 = vmatprep.subr.mxu0 0.0
    %1693 = vmatpush1.msra.mxu0 %v174
    %1694 = vmatprep.subr.mxu0 0.0
    %1695 = vmatpush1.msra.mxu0 %v175
    %1696 = vmatprep.subr.mxu0 0.0
    %1697 = vmatpush1.msra.mxu0 %v176
    %1698 = vmatprep.subr.mxu0 0.0
    %1699 = vmatpush1.msra.mxu0 0.0
    %1700 = vmatprep.subr.mxu0 0.0
    %1701 = vmatpush1.msra.mxu0 0.0
    %1702 = vmatprep.subr.mxu0 0.0
    %1703 = vmatpush1.msra.mxu0 0.0
    %1704 = vmatprep.subr.mxu0 0.0
    %1705 = vmatpush1.msra.mxu0 0.0
    %1706 = vmatprep.subr.mxu0 0.0
    %1707 = vmatpush1.msra.mxu0 0.0
    %1708 = vmatprep.subr.mxu0 0.0
    %1709 = vmatpush1.msra.mxu0 0.0
    %1710 = vmatprep.subr.mxu0 0.0
    %1711 = vmatpush1.msra.mxu0 0.0
    %1712 = vmatprep.subr.mxu0 0.0
    %1713 = vmatpush1.msra.mxu0 0.0
    %1714 = vmatprep.subr.mxu0 0.0
    %1715 = vmatpush1.msra.mxu0 0.0
    %1716 = vmatprep.subr.mxu0 0.0
    %1717 = vmatpush1.msra.mxu0 0.0
    %1718 = vmatprep.subr.mxu0 0.0
    %1719 = vmatpush1.msra.mxu0 0.0
    %1720 = vmatprep.subr.mxu0 0.0
    %1721 = vmatpush1.msra.mxu0 0.0
    %1722 = vmatprep.subr.mxu0 0.0
    %1723 = vmatpush1.msra.mxu0 0.0
    %1724 = vmatprep.subr.mxu0 0.0
    %1725 = vmatpush1.msra.mxu0 0.0
    %1726 = vmatprep.subr.mxu0 0.0
    %1727 = vmatpush1.msra.mxu0 0.0
    %1728 = vmatprep.subr.mxu0 0.0
    %1729 = vmatpush1.msra.mxu0 0.0
    %1730 = vmatprep.subr.mxu0 0.0
    %1731 = vmatpush1.msra.mxu0 0.0
    %1732 = vmatprep.subr.mxu0 0.0
    %1733 = vmatpush1.msra.mxu0 0.0
    %1734 = vmatprep.subr.mxu0 0.0
    %1735 = vmatpush1.msra.mxu0 0.0
    %1736 = vmatprep.subr.mxu0 0.0
    %1737 = vmatpush1.msra.mxu0 0.0
    %1738 = vmatprep.subr.mxu0 0.0
    %1739 = vmatpush1.msra.mxu0 0.0
    %1740 = vmatprep.subr.mxu0 0.0
    %1741 = vmatpush1.msra.mxu0 0.0
    %1742 = vmatprep.subr.mxu0 0.0
    %1743 = vmatpush1.msra.mxu0 0.0
    %1744 = vmatprep.subr.mxu0 0.0
    %1745 = vmatpush1.msra.mxu0 0.0
    %1746 = vmatprep.subr.mxu0 0.0
    %1747 = vmatpush1.msra.mxu0 0.0
    %1748 = vmatprep.subr.mxu0 0.0
    %1749 = vmatpush1.msra.mxu0 0.0
    %1750 = vmatprep.subr.mxu0 0.0
    %1751 = vmatpush1.msra.mxu0 0.0
    %1752 = vmatprep.subr.mxu0 0.0
    %1753 = vmatpush1.msra.mxu0 0.0
    %1754 = vmatprep.mubr.f32.mxu0 0.0
    %1755 = vmatmul.mubr.f32.gmra.mrb[0].mxu0 %v1688
    %v1756 = vpop.f32.mrb[0].mxu0
    %v1757 = vadd.f32 0.0, %v1756
    %v1758 = vpop.f32.mrb[0].mxu0
    %1759 = vdwg.mxu0
    %v1760 = vadd.f32 %v343, %v1757
    %v1761 = vxor.u32 %v1760, 2147483648
    %v1762 = vmul.f32 %v1761, 1.442695
    %v1763 = vpow.pop %v1762
    %v1764 = vadd.f32 %v1763, 1.0
    %v1765 = vrcp.pop %v1764
    %v1766 = vmul.f32 1.0, %v1765
    %1767 = vmatprep.subr.mxu0 0.0
    %1768 = vmatpush1.msra.mxu0 %v177
    %1769 = vmatprep.subr.mxu0 0.0
    %1770 = vmatpush1.msra.mxu0 %v178
    %1771 = vmatprep.subr.mxu0 0.0
    %1772 = vmatpush1.msra.mxu0 %v179
    %1773 = vmatprep.subr.mxu0 0.0
    %1774 = vmatpush1.msra.mxu0 %v180
    %1775 = vmatprep.subr.mxu0 0.0
    %1776 = vmatpush1.msra.mxu0 0.0
    %1777 = vmatprep.subr.mxu0 0.0
    %1778 = vmatpush1.msra.mxu0 0.0
    %1779 = vmatprep.subr.mxu0 0.0
    %1780 = vmatpush1.msra.mxu0 0.0
    %1781 = vmatprep.subr.mxu0 0.0
    %1782 = vmatpush1.msra.mxu0 0.0
    %1783 = vmatprep.subr.mxu0 0.0
    %1784 = vmatpush1.msra.mxu0 0.0
    %1785 = vmatprep.subr.mxu0 0.0
    %1786 = vmatpush1.msra.mxu0 0.0
    %1787 = vmatprep.subr.mxu0 0.0
    %1788 = vmatpush1.msra.mxu0 0.0
    %1789 = vmatprep.subr.mxu0 0.0
    %1790 = vmatpush1.msra.mxu0 0.0
    %1791 = vmatprep.subr.mxu0 0.0
    %1792 = vmatpush1.msra.mxu0 0.0
    %1793 = vmatprep.subr.mxu0 0.0
    %1794 = vmatpush1.msra.mxu0 0.0
    %1795 = vmatprep.subr.mxu0 0.0
    %1796 = vmatpush1.msra.mxu0 0.0
    %1797 = vmatprep.subr.mxu0 0.0
    %1798 = vmatpush1.msra.mxu0 0.0
    %1799 = vmatprep.subr.mxu0 0.0
    %1800 = vmatpush1.msra.mxu0 0.0
    %1801 = vmatprep.subr.mxu0 0.0
    %1802 = vmatpush1.msra.mxu0 0.0
    %1803 = vmatprep.subr.mxu0 0.0
    %1804 = vmatpush1.msra.mxu0 0.0
    %1805 = vmatprep.subr.mxu0 0.0
    %1806 = vmatpush1.msra.mxu0 0.0
    %1807 = vmatprep.subr.mxu0 0.0
    %1808 = vmatpush1.msra.mxu0 0.0
    %1809 = vmatprep.subr.mxu0 0.0
    %1810 = vmatpush1.msra.mxu0 0.0
    %1811 = vmatprep.subr.mxu0 0.0
    %1812 = vmatpush1.msra.mxu0 0.0
    %1813 = vmatprep.subr.mxu0 0.0
    %1814 = vmatpush1.msra.mxu0 0.0
    %1815 = vmatprep.subr.mxu0 0.0
    %1816 = vmatpush1.msra.mxu0 0.0
    %1817 = vmatprep.subr.mxu0 0.0
    %1818 = vmatpush1.msra.mxu0 0.0
    %1819 = vmatprep.subr.mxu0 0.0
    %1820 = vmatpush1.msra.mxu0 0.0
    %1821 = vmatprep.subr.mxu0 0.0
    %1822 = vmatpush1.msra.mxu0 0.0
    %1823 = vmatprep.subr.mxu0 0.0
    %1824 = vmatpush1.msra.mxu0 0.0
    %1825 = vmatprep.subr.mxu0 0.0
    %1826 = vmatpush1.msra.mxu0 0.0
    %1827 = vmatprep.subr.mxu0 0.0
    %1828 = vmatpush1.msra.mxu0 0.0
    %1829 = vmatprep.subr.mxu0 0.0
    %1830 = vmatpush1.msra.mxu0 0.0
    %1831 = vmatprep.mubr.f32.mxu0 0.0
    %1832 = vmatmul.mubr.f32.gmra.mrb[0].mxu0 %v1688
    %v1833 = vpop.f32.mrb[0].mxu0
    %v1834 = vadd.f32 0.0, %v1833
    %v1835 = vpop.f32.mrb[0].mxu0
    %1836 = vdwg.mxu0
    %v1837 = vadd.f32 %v471, %v1834
    %v1838 = vxor.u32 %v1837, 2147483648
    %v1839 = vmul.f32 %v1838, 1.442695
    %v1840 = vpow.pop %v1839
    %v1841 = vadd.f32 %v1840, 1.0
    %v1842 = vrcp.pop %v1841
    %v1843 = vmul.f32 1.0, %v1842
    %1844 = vmatprep.subr.mxu0 0.0
    %1845 = vmatpush1.msra.mxu0 %v181
    %1846 = vmatprep.subr.mxu0 0.0
    %1847 = vmatpush1.msra.mxu0 %v182
    %1848 = vmatprep.subr.mxu0 0.0
    %1849 = vmatpush1.msra.mxu0 %v183
    %1850 = vmatprep.subr.mxu0 0.0
    %1851 = vmatpush1.msra.mxu0 %v184
    %1852 = vmatprep.subr.mxu0 0.0
    %1853 = vmatpush1.msra.mxu0 0.0
    %1854 = vmatprep.subr.mxu0 0.0
    %1855 = vmatpush1.msra.mxu0 0.0
    %1856 = vmatprep.subr.mxu0 0.0
    %1857 = vmatpush1.msra.mxu0 0.0
    %1858 = vmatprep.subr.mxu0 0.0
    %1859 = vmatpush1.msra.mxu0 0.0
    %1860 = vmatprep.subr.mxu0 0.0
    %1861 = vmatpush1.msra.mxu0 0.0
    %1862 = vmatprep.subr.mxu0 0.0
    %1863 = vmatpush1.msra.mxu0 0.0
    %1864 = vmatprep.subr.mxu0 0.0
    %1865 = vmatpush1.msra.mxu0 0.0
    %1866 = vmatprep.subr.mxu0 0.0
    %1867 = vmatpush1.msra.mxu0 0.0
    %1868 = vmatprep.subr.mxu0 0.0
    %1869 = vmatpush1.msra.mxu0 0.0
    %1870 = vmatprep.subr.mxu0 0.0
    %1871 = vmatpush1.msra.mxu0 0.0
    %1872 = vmatprep.subr.mxu0 0.0
    %1873 = vmatpush1.msra.mxu0 0.0
    %1874 = vmatprep.subr.mxu0 0.0
    %1875 = vmatpush1.msra.mxu0 0.0
    %1876 = vmatprep.subr.mxu0 0.0
    %1877 = vmatpush1.msra.mxu0 0.0
    %1878 = vmatprep.subr.mxu0 0.0
    %1879 = vmatpush1.msra.mxu0 0.0
    %1880 = vmatprep.subr.mxu0 0.0
    %1881 = vmatpush1.msra.mxu0 0.0
    %1882 = vmatprep.subr.mxu0 0.0
    %1883 = vmatpush1.msra.mxu0 0.0
    %1884 = vmatprep.subr.mxu0 0.0
    %1885 = vmatpush1.msra.mxu0 0.0
    %1886 = vmatprep.subr.mxu0 0.0
    %1887 = vmatpush1.msra.mxu0 0.0
    %1888 = vmatprep.subr.mxu0 0.0
    %1889 = vmatpush1.msra.mxu0 0.0
    %1890 = vmatprep.subr.mxu0 0.0
    %1891 = vmatpush1.msra.mxu0 0.0
    %1892 = vmatprep.subr.mxu0 0.0
    %1893 = vmatpush1.msra.mxu0 0.0
    %1894 = vmatprep.subr.mxu0 0.0
    %1895 = vmatpush1.msra.mxu0 0.0
    %1896 = vmatprep.subr.mxu0 0.0
    %1897 = vmatpush1.msra.mxu0 0.0
    %1898 = vmatprep.subr.mxu0 0.0
    %1899 = vmatpush1.msra.mxu0 0.0
    %1900 = vmatprep.subr.mxu0 0.0
    %1901 = vmatpush1.msra.mxu0 0.0
    %1902 = vmatprep.subr.mxu0 0.0
    %1903 = vmatpush1.msra.mxu0 0.0
    %1904 = vmatprep.subr.mxu0 0.0
    %1905 = vmatpush1.msra.mxu0 0.0
    %1906 = vmatprep.subr.mxu0 0.0
    %1907 = vmatpush1.msra.mxu0 0.0
    %1908 = vmatprep.mubr.f32.mxu0 0.0
    %1909 = vmatmul.mubr.f32.gmra.mrb[0].mxu0 %v1688
    %v1910 = vpop.f32.mrb[0].mxu0
    %v1911 = vadd.f32 0.0, %v1910
    %v1912 = vpop.f32.mrb[0].mxu0
    %1913 = vdwg.mxu0
    %v1914 = vadd.f32 %v599, %v1911
    %v1915 = vtanh.pop %v1914
    %1916 = vmatprep.subr.mxu0 0.0
    %1917 = vmatpush1.msra.mxu0 %v185
    %1918 = vmatprep.subr.mxu0 0.0
    %1919 = vmatpush1.msra.mxu0 %v186
    %1920 = vmatprep.subr.mxu0 0.0
    %1921 = vmatpush1.msra.mxu0 %v187
    %1922 = vmatprep.subr.mxu0 0.0
    %1923 = vmatpush1.msra.mxu0 %v188
    %1924 = vmatprep.subr.mxu0 0.0
    %1925 = vmatpush1.msra.mxu0 0.0
    %1926 = vmatprep.subr.mxu0 0.0
    %1927 = vmatpush1.msra.mxu0 0.0
    %1928 = vmatprep.subr.mxu0 0.0
    %1929 = vmatpush1.msra.mxu0 0.0
    %1930 = vmatprep.subr.mxu0 0.0
    %1931 = vmatpush1.msra.mxu0 0.0
    %1932 = vmatprep.subr.mxu0 0.0
    %1933 = vmatpush1.msra.mxu0 0.0
    %1934 = vmatprep.subr.mxu0 0.0
    %1935 = vmatpush1.msra.mxu0 0.0
    %1936 = vmatprep.subr.mxu0 0.0
    %1937 = vmatpush1.msra.mxu0 0.0
    %1938 = vmatprep.subr.mxu0 0.0
    %1939 = vmatpush1.msra.mxu0 0.0
    %1940 = vmatprep.subr.mxu0 0.0
    %1941 = vmatpush1.msra.mxu0 0.0
    %1942 = vmatprep.subr.mxu0 0.0
    %1943 = vmatpush1.msra.mxu0 0.0
    %1944 = vmatprep.subr.mxu0 0.0
    %1945 = vmatpush1.msra.mxu0 0.0
    %1946 = vmatprep.subr.mxu0 0.0
    %1947 = vmatpush1.msra.mxu0 0.0
    %1948 = vmatprep.subr.mxu0 0.0
    %1949 = vmatpush1.msra.mxu0 0.0
    %1950 = vmatprep.subr.mxu0 0.0
    %1951 = vmatpush1.msra.mxu0 0.0
    %1952 = vmatprep.subr.mxu0 0.0
    %1953 = vmatpush1.msra.mxu0 0.0
    %1954 = vmatprep.subr.mxu0 0.0
    %1955 = vmatpush1.msra.mxu0 0.0
    %1956 = vmatprep.subr.mxu0 0.0
    %1957 = vmatpush1.msra.mxu0 0.0
    %1958 = vmatprep.subr.mxu0 0.0
    %1959 = vmatpush1.msra.mxu0 0.0
    %1960 = vmatprep.subr.mxu0 0.0
    %1961 = vmatpush1.msra.mxu0 0.0
    %1962 = vmatprep.subr.mxu0 0.0
    %1963 = vmatpush1.msra.mxu0 0.0
    %1964 = vmatprep.subr.mxu0 0.0
    %1965 = vmatpush1.msra.mxu0 0.0
    %1966 = vmatprep.subr.mxu0 0.0
    %1967 = vmatpush1.msra.mxu0 0.0
    %1968 = vmatprep.subr.mxu0 0.0
    %1969 = vmatpush1.msra.mxu0 0.0
    %1970 = vmatprep.subr.mxu0 0.0
    %1971 = vmatpush1.msra.mxu0 0.0
    %1972 = vmatprep.subr.mxu0 0.0
    %1973 = vmatpush1.msra.mxu0 0.0
    %1974 = vmatprep.subr.mxu0 0.0
    %1975 = vmatpush1.msra.mxu0 0.0
    %1976 = vmatprep.subr.mxu0 0.0
    %1977 = vmatpush1.msra.mxu0 0.0
    %1978 = vmatprep.subr.mxu0 0.0
    %1979 = vmatpush1.msra.mxu0 0.0
    %1980 = vmatprep.mubr.f32.mxu0 0.0
    %1981 = vmatmul.mubr.f32.gmra.mrb[0].mxu0 %v1688
    %v1982 = vpop.f32.mrb[0].mxu0
    %v1983 = vadd.f32 0.0, %v1982
    %v1984 = vpop.f32.mrb[0].mxu0
    %1985 = vdwg.mxu0
    %v1986 = vadd.f32 %v727, %v1983
    %v1987 = vxor.u32 %v1986, 2147483648
    %v1988 = vmul.f32 %v1987, 1.442695
    %v1989 = vpow.pop %v1988
    %v1990 = vadd.f32 %v1989, 1.0
    %v1991 = vrcp.pop %v1990
    %v1992 = vmul.f32 1.0, %v1991
    %v1993 = vmul.f32 %v1843, %v1684
    %v1994 = vmul.f32 %v1766, %v1915
    %v1995 = vadd.f32 %v1993, %v1994
    %v1996 = vtanh.pop %v1995
    %v1997 = vmul.f32 %v1992, %v1996
    %v1999 = vsel %vm753, %v1997, 0
    %2001 = vmatprep.subr.mxu0 0.0
    %2002 = vmatpush1.msra.mxu0 %v173
    %2003 = vmatprep.subr.mxu0 0.0
    %2004 = vmatpush1.msra.mxu0 %v174
    %2005 = vmatprep.subr.mxu0 0.0
    %2006 = vmatpush1.msra.mxu0 %v175
    %2007 = vmatprep.subr.mxu0 0.0
    %2008 = vmatpush1.msra.mxu0 %v176
    %2009 = vmatprep.subr.mxu0 0.0
    %2010 = vmatpush1.msra.mxu0 0.0
    %2011 = vmatprep.subr.mxu0 0.0
    %2012 = vmatpush1.msra.mxu0 0.0
    %2013 = vmatprep.subr.mxu0 0.0
    %2014 = vmatpush1.msra.mxu0 0.0
    %2015 = vmatprep.subr.mxu0 0.0
    %2016 = vmatpush1.msra.mxu0 0.0
    %2017 = vmatprep.subr.mxu0 0.0
    %2018 = vmatpush1.msra.mxu0 0.0
    %2019 = vmatprep.subr.mxu0 0.0
    %2020 = vmatpush1.msra.mxu0 0.0
    %2021 = vmatprep.subr.mxu0 0.0
    %2022 = vmatpush1.msra.mxu0 0.0
    %2023 = vmatprep.subr.mxu0 0.0
    %2024 = vmatpush1.msra.mxu0 0.0
    %2025 = vmatprep.subr.mxu0 0.0
    %2026 = vmatpush1.msra.mxu0 0.0
    %2027 = vmatprep.subr.mxu0 0.0
    %2028 = vmatpush1.msra.mxu0 0.0
    %2029 = vmatprep.subr.mxu0 0.0
    %2030 = vmatpush1.msra.mxu0 0.0
    %2031 = vmatprep.subr.mxu0 0.0
    %2032 = vmatpush1.msra.mxu0 0.0
    %2033 = vmatprep.subr.mxu0 0.0
    %2034 = vmatpush1.msra.mxu0 0.0
    %2035 = vmatprep.subr.mxu0 0.0
    %2036 = vmatpush1.msra.mxu0 0.0
    %2037 = vmatprep.subr.mxu0 0.0
    %2038 = vmatpush1.msra.mxu0 0.0
    %2039 = vmatprep.subr.mxu0 0.0
    %2040 = vmatpush1.msra.mxu0 0.0
    %2041 = vmatprep.subr.mxu0 0.0
    %2042 = vmatpush1.msra.mxu0 0.0
    %2043 = vmatprep.subr.mxu0 0.0
    %2044 = vmatpush1.msra.mxu0 0.0
    %2045 = vmatprep.subr.mxu0 0.0
    %2046 = vmatpush1.msra.mxu0 0.0
    %2047 = vmatprep.subr.mxu0 0.0
    %2048 = vmatpush1.msra.mxu0 0.0
    %2049 = vmatprep.subr.mxu0 0.0
    %2050 = vmatpush1.msra.mxu0 0.0
    %2051 = vmatprep.subr.mxu0 0.0
    %2052 = vmatpush1.msra.mxu0 0.0
    %2053 = vmatprep.subr.mxu0 0.0
    %2054 = vmatpush1.msra.mxu0 0.0
    %2055 = vmatprep.subr.mxu0 0.0
    %2056 = vmatpush1.msra.mxu0 0.0
    %2057 = vmatprep.subr.mxu0 0.0
    %2058 = vmatpush1.msra.mxu0 0.0
    %2059 = vmatprep.subr.mxu0 0.0
    %2060 = vmatpush1.msra.mxu0 0.0
    %2061 = vmatprep.subr.mxu0 0.0
    %2062 = vmatpush1.msra.mxu0 0.0
    %2063 = vmatprep.subr.mxu0 0.0
    %2064 = vmatpush1.msra.mxu0 0.0
    %2065 = vmatprep.mubr.f32.mxu0 0.0
    %2066 = vmatmul.mubr.f32.gmra.mrb[0].mxu0 %v1999
    %v2067 = vpop.f32.mrb[0].mxu0
    %v2068 = vadd.f32 0.0, %v2067
    %v2069 = vpop.f32.mrb[0].mxu0
    %2070 = vdwg.mxu0
    %v2071 = vadd.f32 %v351, %v2068
    %v2072 = vxor.u32 %v2071, 2147483648
    %v2073 = vmul.f32 %v2072, 1.442695
    %v2074 = vpow.pop %v2073
    %v2075 = vadd.f32 %v2074, 1.0
    %v2076 = vrcp.pop %v2075
    %v2077 = vmul.f32 1.0, %v2076
    %2078 = vmatprep.subr.mxu0 0.0
    %2079 = vmatpush1.msra.mxu0 %v177
    %2080 = vmatprep.subr.mxu0 0.0
    %2081 = vmatpush1.msra.mxu0 %v178
    %2082 = vmatprep.subr.mxu0 0.0
    %2083 = vmatpush1.msra.mxu0 %v179
    %2084 = vmatprep.subr.mxu0 0.0
    %2085 = vmatpush1.msra.mxu0 %v180
    %2086 = vmatprep.subr.mxu0 0.0
    %2087 = vmatpush1.msra.mxu0 0.0
    %2088 = vmatprep.subr.mxu0 0.0
    %2089 = vmatpush1.msra.mxu0 0.0
    %2090 = vmatprep.subr.mxu0 0.0
    %2091 = vmatpush1.msra.mxu0 0.0
    %2092 = vmatprep.subr.mxu0 0.0
    %2093 = vmatpush1.msra.mxu0 0.0
    %2094 = vmatprep.subr.mxu0 0.0
    %2095 = vmatpush1.msra.mxu0 0.0
    %2096 = vmatprep.subr.mxu0 0.0
    %2097 = vmatpush1.msra.mxu0 0.0
    %2098 = vmatprep.subr.mxu0 0.0
    %2099 = vmatpush1.msra.mxu0 0.0
    %2100 = vmatprep.subr.mxu0 0.0
    %2101 = vmatpush1.msra.mxu0 0.0
    %2102 = vmatprep.subr.mxu0 0.0
    %2103 = vmatpush1.msra.mxu0 0.0
    %2104 = vmatprep.subr.mxu0 0.0
    %2105 = vmatpush1.msra.mxu0 0.0
    %2106 = vmatprep.subr.mxu0 0.0
    %2107 = vmatpush1.msra.mxu0 0.0
    %2108 = vmatprep.subr.mxu0 0.0
    %2109 = vmatpush1.msra.mxu0 0.0
    %2110 = vmatprep.subr.mxu0 0.0
    %2111 = vmatpush1.msra.mxu0 0.0
    %2112 = vmatprep.subr.mxu0 0.0
    %2113 = vmatpush1.msra.mxu0 0.0
    %2114 = vmatprep.subr.mxu0 0.0
    %2115 = vmatpush1.msra.mxu0 0.0
    %2116 = vmatprep.subr.mxu0 0.0
    %2117 = vmatpush1.msra.mxu0 0.0
    %2118 = vmatprep.subr.mxu0 0.0
    %2119 = vmatpush1.msra.mxu0 0.0
    %2120 = vmatprep.subr.mxu0 0.0
    %2121 = vmatpush1.msra.mxu0 0.0
    %2122 = vmatprep.subr.mxu0 0.0
    %2123 = vmatpush1.msra.mxu0 0.0
    %2124 = vmatprep.subr.mxu0 0.0
    %2125 = vmatpush1.msra.mxu0 0.0
    %2126 = vmatprep.subr.mxu0 0.0
    %2127 = vmatpush1.msra.mxu0 0.0
    %2128 = vmatprep.subr.mxu0 0.0
    %2129 = vmatpush1.msra.mxu0 0.0
    %2130 = vmatprep.subr.mxu0 0.0
    %2131 = vmatpush1.msra.mxu0 0.0
    %2132 = vmatprep.subr.mxu0 0.0
    %2133 = vmatpush1.msra.mxu0 0.0
    %2134 = vmatprep.subr.mxu0 0.0
    %2135 = vmatpush1.msra.mxu0 0.0
    %2136 = vmatprep.subr.mxu0 0.0
    %2137 = vmatpush1.msra.mxu0 0.0
    %2138 = vmatprep.subr.mxu0 0.0
    %2139 = vmatpush1.msra.mxu0 0.0
    %2140 = vmatprep.subr.mxu0 0.0
    %2141 = vmatpush1.msra.mxu0 0.0
    %2142 = vmatprep.mubr.f32.mxu0 0.0
    %2143 = vmatmul.mubr.f32.gmra.mrb[0].mxu0 %v1999
    %v2144 = vpop.f32.mrb[0].mxu0
    %v2145 = vadd.f32 0.0, %v2144
    %v2146 = vpop.f32.mrb[0].mxu0
    %2147 = vdwg.mxu0
    %v2148 = vadd.f32 %v479, %v2145
    %v2149 = vxor.u32 %v2148, 2147483648
    %v2150 = vmul.f32 %v2149, 1.442695
    %v2151 = vpow.pop %v2150
    %v2152 = vadd.f32 %v2151, 1.0
    %v2153 = vrcp.pop %v2152
    %v2154 = vmul.f32 1.0, %v2153
    %2155 = vmatprep.subr.mxu0 0.0
    %2156 = vmatpush1.msra.mxu0 %v181
    %2157 = vmatprep.subr.mxu0 0.0
    %2158 = vmatpush1.msra.mxu0 %v182
    %2159 = vmatprep.subr.mxu0 0.0
    %2160 = vmatpush1.msra.mxu0 %v183
    %2161 = vmatprep.subr.mxu0 0.0
    %2162 = vmatpush1.msra.mxu0 %v184
    %2163 = vmatprep.subr.mxu0 0.0
    %2164 = vmatpush1.msra.mxu0 0.0
    %2165 = vmatprep.subr.mxu0 0.0
    %2166 = vmatpush1.msra.mxu0 0.0
    %2167 = vmatprep.subr.mxu0 0.0
    %2168 = vmatpush1.msra.mxu0 0.0
    %2169 = vmatprep.subr.mxu0 0.0
    %2170 = vmatpush1.msra.mxu0 0.0
    %2171 = vmatprep.subr.mxu0 0.0
    %2172 = vmatpush1.msra.mxu0 0.0
    %2173 = vmatprep.subr.mxu0 0.0
    %2174 = vmatpush1.msra.mxu0 0.0
    %2175 = vmatprep.subr.mxu0 0.0
    %2176 = vmatpush1.msra.mxu0 0.0
    %2177 = vmatprep.subr.mxu0 0.0
    %2178 = vmatpush1.msra.mxu0 0.0
    %2179 = vmatprep.subr.mxu0 0.0
    %2180 = vmatpush1.msra.mxu0 0.0
    %2181 = vmatprep.subr.mxu0 0.0
    %2182 = vmatpush1.msra.mxu0 0.0
    %2183 = vmatprep.subr.mxu0 0.0
    %2184 = vmatpush1.msra.mxu0 0.0
    %2185 = vmatprep.subr.mxu0 0.0
    %2186 = vmatpush1.msra.mxu0 0.0
    %2187 = vmatprep.subr.mxu0 0.0
    %2188 = vmatpush1.msra.mxu0 0.0
    %2189 = vmatprep.subr.mxu0 0.0
    %2190 = vmatpush1.msra.mxu0 0.0
    %2191 = vmatprep.subr.mxu0 0.0
    %2192 = vmatpush1.msra.mxu0 0.0
    %2193 = vmatprep.subr.mxu0 0.0
    %2194 = vmatpush1.msra.mxu0 0.0
    %2195 = vmatprep.subr.mxu0 0.0
    %2196 = vmatpush1.msra.mxu0 0.0
    %2197 = vmatprep.subr.mxu0 0.0
    %2198 = vmatpush1.msra.mxu0 0.0
    %2199 = vmatprep.subr.mxu0 0.0
    %2200 = vmatpush1.msra.mxu0 0.0
    %2201 = vmatprep.subr.mxu0 0.0
    %2202 = vmatpush1.msra.mxu0 0.0
    %2203 = vmatprep.subr.mxu0 0.0
    %2204 = vmatpush1.msra.mxu0 0.0
    %2205 = vmatprep.subr.mxu0 0.0
    %2206 = vmatpush1.msra.mxu0 0.0
    %2207 = vmatprep.subr.mxu0 0.0
    %2208 = vmatpush1.msra.mxu0 0.0
    %2209 = vmatprep.subr.mxu0 0.0
    %2210 = vmatpush1.msra.mxu0 0.0
    %2211 = vmatprep.subr.mxu0 0.0
    %2212 = vmatpush1.msra.mxu0 0.0
    %2213 = vmatprep.subr.mxu0 0.0
    %2214 = vmatpush1.msra.mxu0 0.0
    %2215 = vmatprep.subr.mxu0 0.0
    %2216 = vmatpush1.msra.mxu0 0.0
    %2217 = vmatprep.subr.mxu0 0.0
    %2218 = vmatpush1.msra.mxu0 0.0
    %2219 = vmatprep.mubr.f32.mxu0 0.0
    %2220 = vmatmul.mubr.f32.gmra.mrb[0].mxu0 %v1999
    %v2221 = vpop.f32.mrb[0].mxu0
    %v2222 = vadd.f32 0.0, %v2221
    %v2223 = vpop.f32.mrb[0].mxu0
    %2224 = vdwg.mxu0
    %v2225 = vadd.f32 %v607, %v2222
    %v2226 = vtanh.pop %v2225
    %2227 = vmatprep.subr.mxu0 0.0
    %2228 = vmatpush1.msra.mxu0 %v185
    %2229 = vmatprep.subr.mxu0 0.0
    %2230 = vmatpush1.msra.mxu0 %v186
    %2231 = vmatprep.subr.mxu0 0.0
    %2232 = vmatpush1.msra.mxu0 %v187
    %2233 = vmatprep.subr.mxu0 0.0
    %2234 = vmatpush1.msra.mxu0 %v188
    %2235 = vmatprep.subr.mxu0 0.0
    %2236 = vmatpush1.msra.mxu0 0.0
    %2237 = vmatprep.subr.mxu0 0.0
    %2238 = vmatpush1.msra.mxu0 0.0
    %2239 = vmatprep.subr.mxu0 0.0
    %2240 = vmatpush1.msra.mxu0 0.0
    %2241 = vmatprep.subr.mxu0 0.0
    %2242 = vmatpush1.msra.mxu0 0.0
    %2243 = vmatprep.subr.mxu0 0.0
    %2244 = vmatpush1.msra.mxu0 0.0
    %2245 = vmatprep.subr.mxu0 0.0
    %2246 = vmatpush1.msra.mxu0 0.0
    %2247 = vmatprep.subr.mxu0 0.0
    %2248 = vmatpush1.msra.mxu0 0.0
    %2249 = vmatprep.subr.mxu0 0.0
    %2250 = vmatpush1.msra.mxu0 0.0
    %2251 = vmatprep.subr.mxu0 0.0
    %2252 = vmatpush1.msra.mxu0 0.0
    %2253 = vmatprep.subr.mxu0 0.0
    %2254 = vmatpush1.msra.mxu0 0.0
    %2255 = vmatprep.subr.mxu0 0.0
    %2256 = vmatpush1.msra.mxu0 0.0
    %2257 = vmatprep.subr.mxu0 0.0
    %2258 = vmatpush1.msra.mxu0 0.0
    %2259 = vmatprep.subr.mxu0 0.0
    %2260 = vmatpush1.msra.mxu0 0.0
    %2261 = vmatprep.subr.mxu0 0.0
    %2262 = vmatpush1.msra.mxu0 0.0
    %2263 = vmatprep.subr.mxu0 0.0
    %2264 = vmatpush1.msra.mxu0 0.0
    %2265 = vmatprep.subr.mxu0 0.0
    %2266 = vmatpush1.msra.mxu0 0.0
    %2267 = vmatprep.subr.mxu0 0.0
    %2268 = vmatpush1.msra.mxu0 0.0
    %2269 = vmatprep.subr.mxu0 0.0
    %2270 = vmatpush1.msra.mxu0 0.0
    %2271 = vmatprep.subr.mxu0 0.0
    %2272 = vmatpush1.msra.mxu0 0.0
    %2273 = vmatprep.subr.mxu0 0.0
    %2274 = vmatpush1.msra.mxu0 0.0
    %2275 = vmatprep.subr.mxu0 0.0
    %2276 = vmatpush1.msra.mxu0 0.0
    %2277 = vmatprep.subr.mxu0 0.0
    %2278 = vmatpush1.msra.mxu0 0.0
    %2279 = vmatprep.subr.mxu0 0.0
    %2280 = vmatpush1.msra.mxu0 0.0
    %2281 = vmatprep.subr.mxu0 0.0
    %2282 = vmatpush1.msra.mxu0 0.0
    %2283 = vmatprep.subr.mxu0 0.0
    %2284 = vmatpush1.msra.mxu0 0.0
    %2285 = vmatprep.subr.mxu0 0.0
    %2286 = vmatpush1.msra.mxu0 0.0
    %2287 = vmatprep.subr.mxu0 0.0
    %2288 = vmatpush1.msra.mxu0 0.0
    %2289 = vmatprep.subr.mxu0 0.0
    %2290 = vmatpush1.msra.mxu0 0.0
    %2291 = vmatprep.mubr.f32.mxu0 0.0
    %2292 = vmatmul.mubr.f32.gmra.mrb[0].mxu0 %v1999
    %v2293 = vpop.f32.mrb[0].mxu0
    %v2294 = vadd.f32 0.0, %v2293
    %v2295 = vpop.f32.mrb[0].mxu0
    %2296 = vdwg.mxu0
    %v2297 = vadd.f32 %v735, %v2294
    %v2298 = vxor.u32 %v2297, 2147483648
    %v2299 = vmul.f32 %v2298, 1.442695
    %v2300 = vpow.pop %v2299
    %v2301 = vadd.f32 %v2300, 1.0
    %v2302 = vrcp.pop %v2301
    %v2303 = vmul.f32 1.0, %v2302
    %v2304 = vmul.f32 %v2154, %v1995
    %v2305 = vmul.f32 %v2077, %v2226
    %v2306 = vadd.f32 %v2304, %v2305
    %v2307 = vtanh.pop %v2306
    %v2308 = vmul.f32 %v2303, %v2307
    %v2310 = vsel %vm753, %v2308, 0
    %2312 = vmatprep.subr.mxu0 0.0
    %2313 = vmatpush1.msra.mxu0 %v173
    %2314 = vmatprep.subr.mxu0 0.0
    %2315 = vmatpush1.msra.mxu0 %v174
    %2316 = vmatprep.subr.mxu0 0.0
    %2317 = vmatpush1.msra.mxu0 %v175
    %2318 = vmatprep.subr.mxu0 0.0
    %2319 = vmatpush1.msra.mxu0 %v176
    %2320 = vmatprep.subr.mxu0 0.0
    %2321 = vmatpush1.msra.mxu0 0.0
    %2322 = vmatprep.subr.mxu0 0.0
    %2323 = vmatpush1.msra.mxu0 0.0
    %2324 = vmatprep.subr.mxu0 0.0
    %2325 = vmatpush1.msra.mxu0 0.0
    %2326 = vmatprep.subr.mxu0 0.0
    %2327 = vmatpush1.msra.mxu0 0.0
    %2328 = vmatprep.subr.mxu0 0.0
    %2329 = vmatpush1.msra.mxu0 0.0
    %2330 = vmatprep.subr.mxu0 0.0
    %2331 = vmatpush1.msra.mxu0 0.0
    %2332 = vmatprep.subr.mxu0 0.0
    %2333 = vmatpush1.msra.mxu0 0.0
    %2334 = vmatprep.subr.mxu0 0.0
    %2335 = vmatpush1.msra.mxu0 0.0
    %2336 = vmatprep.subr.mxu0 0.0
    %2337 = vmatpush1.msra.mxu0 0.0
    %2338 = vmatprep.subr.mxu0 0.0
    %2339 = vmatpush1.msra.mxu0 0.0
    %2340 = vmatprep.subr.mxu0 0.0
    %2341 = vmatpush1.msra.mxu0 0.0
    %2342 = vmatprep.subr.mxu0 0.0
    %2343 = vmatpush1.msra.mxu0 0.0
    %2344 = vmatprep.subr.mxu0 0.0
    %2345 = vmatpush1.msra.mxu0 0.0
    %2346 = vmatprep.subr.mxu0 0.0
    %2347 = vmatpush1.msra.mxu0 0.0
    %2348 = vmatprep.subr.mxu0 0.0
    %2349 = vmatpush1.msra.mxu0 0.0
    %2350 = vmatprep.subr.mxu0 0.0
    %2351 = vmatpush1.msra.mxu0 0.0
    %2352 = vmatprep.subr.mxu0 0.0
    %2353 = vmatpush1.msra.mxu0 0.0
    %2354 = vmatprep.subr.mxu0 0.0
    %2355 = vmatpush1.msra.mxu0 0.0
    %2356 = vmatprep.subr.mxu0 0.0
    %2357 = vmatpush1.msra.mxu0 0.0
    %2358 = vmatprep.subr.mxu0 0.0
    %2359 = vmatpush1.msra.mxu0 0.0
    %2360 = vmatprep.subr.mxu0 0.0
    %2361 = vmatpush1.msra.mxu0 0.0
    %2362 = vmatprep.subr.mxu0 0.0
    %2363 = vmatpush1.msra.mxu0 0.0
    %2364 = vmatprep.subr.mxu0 0.0
    %2365 = vmatpush1.msra.mxu0 0.0
    %2366 = vmatprep.subr.mxu0 0.0
    %2367 = vmatpush1.msra.mxu0 0.0
    %2368 = vmatprep.subr.mxu0 0.0
    %2369 = vmatpush1.msra.mxu0 0.0
    %2370 = vmatprep.subr.mxu0 0.0
    %2371 = vmatpush1.msra.mxu0 0.0
    %2372 = vmatprep.subr.mxu0 0.0
    %2373 = vmatpush1.msra.mxu0 0.0
    %2374 = vmatprep.subr.mxu0 0.0
    %2375 = vmatpush1.msra.mxu0 0.0
    %2376 = vmatprep.mubr.f32.mxu0 0.0
    %2377 = vmatmul.mubr.f32.gmra.mrb[0].mxu0 %v2310
    %v2378 = vpop.f32.mrb[0].mxu0
    %v2379 = vadd.f32 0.0, %v2378
    %v2380 = vpop.f32.mrb[0].mxu0
    %2381 = vdwg.mxu0
    %v2382 = vadd.f32 %v359, %v2379
    %v2383 = vxor.u32 %v2382, 2147483648
    %v2384 = vmul.f32 %v2383, 1.442695
    %v2385 = vpow.pop %v2384
    %v2386 = vadd.f32 %v2385, 1.0
    %v2387 = vrcp.pop %v2386
    %v2388 = vmul.f32 1.0, %v2387
    %2389 = vmatprep.subr.mxu0 0.0
    %2390 = vmatpush1.msra.mxu0 %v177
    %2391 = vmatprep.subr.mxu0 0.0
    %2392 = vmatpush1.msra.mxu0 %v178
    %2393 = vmatprep.subr.mxu0 0.0
    %2394 = vmatpush1.msra.mxu0 %v179
    %2395 = vmatprep.subr.mxu0 0.0
    %2396 = vmatpush1.msra.mxu0 %v180
    %2397 = vmatprep.subr.mxu0 0.0
    %2398 = vmatpush1.msra.mxu0 0.0
    %2399 = vmatprep.subr.mxu0 0.0
    %2400 = vmatpush1.msra.mxu0 0.0
    %2401 = vmatprep.subr.mxu0 0.0
    %2402 = vmatpush1.msra.mxu0 0.0
    %2403 = vmatprep.subr.mxu0 0.0
    %2404 = vmatpush1.msra.mxu0 0.0
    %2405 = vmatprep.subr.mxu0 0.0
    %2406 = vmatpush1.msra.mxu0 0.0
    %2407 = vmatprep.subr.mxu0 0.0
    %2408 = vmatpush1.msra.mxu0 0.0
    %2409 = vmatprep.subr.mxu0 0.0
    %2410 = vmatpush1.msra.mxu0 0.0
    %2411 = vmatprep.subr.mxu0 0.0
    %2412 = vmatpush1.msra.mxu0 0.0
    %2413 = vmatprep.subr.mxu0 0.0
    %2414 = vmatpush1.msra.mxu0 0.0
    %2415 = vmatprep.subr.mxu0 0.0
    %2416 = vmatpush1.msra.mxu0 0.0
    %2417 = vmatprep.subr.mxu0 0.0
    %2418 = vmatpush1.msra.mxu0 0.0
    %2419 = vmatprep.subr.mxu0 0.0
    %2420 = vmatpush1.msra.mxu0 0.0
    %2421 = vmatprep.subr.mxu0 0.0
    %2422 = vmatpush1.msra.mxu0 0.0
    %2423 = vmatprep.subr.mxu0 0.0
    %2424 = vmatpush1.msra.mxu0 0.0
    %2425 = vmatprep.subr.mxu0 0.0
    %2426 = vmatpush1.msra.mxu0 0.0
    %2427 = vmatprep.subr.mxu0 0.0
    %2428 = vmatpush1.msra.mxu0 0.0
    %2429 = vmatprep.subr.mxu0 0.0
    %2430 = vmatpush1.msra.mxu0 0.0
    %2431 = vmatprep.subr.mxu0 0.0
    %2432 = vmatpush1.msra.mxu0 0.0
    %2433 = vmatprep.subr.mxu0 0.0
    %2434 = vmatpush1.msra.mxu0 0.0
    %2435 = vmatprep.subr.mxu0 0.0
    %2436 = vmatpush1.msra.mxu0 0.0
    %2437 = vmatprep.subr.mxu0 0.0
    %2438 = vmatpush1.msra.mxu0 0.0
    %2439 = vmatprep.subr.mxu0 0.0
    %2440 = vmatpush1.msra.mxu0 0.0
    %2441 = vmatprep.subr.mxu0 0.0
    %2442 = vmatpush1.msra.mxu0 0.0
    %2443 = vmatprep.subr.mxu0 0.0
    %2444 = vmatpush1.msra.mxu0 0.0
    %2445 = vmatprep.subr.mxu0 0.0
    %2446 = vmatpush1.msra.mxu0 0.0
    %2447 = vmatprep.subr.mxu0 0.0
    %2448 = vmatpush1.msra.mxu0 0.0
    %2449 = vmatprep.subr.mxu0 0.0
    %2450 = vmatpush1.msra.mxu0 0.0
    %2451 = vmatprep.subr.mxu0 0.0
    %2452 = vmatpush1.msra.mxu0 0.0
    %2453 = vmatprep.mubr.f32.mxu0 0.0
    %2454 = vmatmul.mubr.f32.gmra.mrb[0].mxu0 %v2310
    %v2455 = vpop.f32.mrb[0].mxu0
    %v2456 = vadd.f32 0.0, %v2455
    %v2457 = vpop.f32.mrb[0].mxu0
    %2458 = vdwg.mxu0
    %v2459 = vadd.f32 %v487, %v2456
    %v2460 = vxor.u32 %v2459, 2147483648
    %v2461 = vmul.f32 %v2460, 1.442695
    %v2462 = vpow.pop %v2461
    %v2463 = vadd.f32 %v2462, 1.0
    %v2464 = vrcp.pop %v2463
    %v2465 = vmul.f32 1.0, %v2464
    %2466 = vmatprep.subr.mxu0 0.0
    %2467 = vmatpush1.msra.mxu0 %v181
    %2468 = vmatprep.subr.mxu0 0.0
    %2469 = vmatpush1.msra.mxu0 %v182
    %2470 = vmatprep.subr.mxu0 0.0
    %2471 = vmatpush1.msra.mxu0 %v183
    %2472 = vmatprep.subr.mxu0 0.0
    %2473 = vmatpush1.msra.mxu0 %v184
    %2474 = vmatprep.subr.mxu0 0.0
    %2475 = vmatpush1.msra.mxu0 0.0
    %2476 = vmatprep.subr.mxu0 0.0
    %2477 = vmatpush1.msra.mxu0 0.0
    %2478 = vmatprep.subr.mxu0 0.0
    %2479 = vmatpush1.msra.mxu0 0.0
    %2480 = vmatprep.subr.mxu0 0.0
    %2481 = vmatpush1.msra.mxu0 0.0
    %2482 = vmatprep.subr.mxu0 0.0
    %2483 = vmatpush1.msra.mxu0 0.0
    %2484 = vmatprep.subr.mxu0 0.0
    %2485 = vmatpush1.msra.mxu0 0.0
    %2486 = vmatprep.subr.mxu0 0.0
    %2487 = vmatpush1.msra.mxu0 0.0
    %2488 = vmatprep.subr.mxu0 0.0
    %2489 = vmatpush1.msra.mxu0 0.0
    %2490 = vmatprep.subr.mxu0 0.0
    %2491 = vmatpush1.msra.mxu0 0.0
    %2492 = vmatprep.subr.mxu0 0.0
    %2493 = vmatpush1.msra.mxu0 0.0
    %2494 = vmatprep.subr.mxu0 0.0
    %2495 = vmatpush1.msra.mxu0 0.0
    %2496 = vmatprep.subr.mxu0 0.0
    %2497 = vmatpush1.msra.mxu0 0.0
    %2498 = vmatprep.subr.mxu0 0.0
    %2499 = vmatpush1.msra.mxu0 0.0
    %2500 = vmatprep.subr.mxu0 0.0
    %2501 = vmatpush1.msra.mxu0 0.0
    %2502 = vmatprep.subr.mxu0 0.0
    %2503 = vmatpush1.msra.mxu0 0.0
    %2504 = vmatprep.subr.mxu0 0.0
    %2505 = vmatpush1.msra.mxu0 0.0
    %2506 = vmatprep.subr.mxu0 0.0
    %2507 = vmatpush1.msra.mxu0 0.0
    %2508 = vmatprep.subr.mxu0 0.0
    %2509 = vmatpush1.msra.mxu0 0.0
    %2510 = vmatprep.subr.mxu0 0.0
    %2511 = vmatpush1.msra.mxu0 0.0
    %2512 = vmatprep.subr.mxu0 0.0
    %2513 = vmatpush1.msra.mxu0 0.0
    %2514 = vmatprep.subr.mxu0 0.0
    %2515 = vmatpush1.msra.mxu0 0.0
    %2516 = vmatprep.subr.mxu0 0.0
    %2517 = vmatpush1.msra.mxu0 0.0
    %2518 = vmatprep.subr.mxu0 0.0
    %2519 = vmatpush1.msra.mxu0 0.0
    %2520 = vmatprep.subr.mxu0 0.0
    %2521 = vmatpush1.msra.mxu0 0.0
    %2522 = vmatprep.subr.mxu0 0.0
    %2523 = vmatpush1.msra.mxu0 0.0
    %2524 = vmatprep.subr.mxu0 0.0
    %2525 = vmatpush1.msra.mxu0 0.0
    %2526 = vmatprep.subr.mxu0 0.0
    %2527 = vmatpush1.msra.mxu0 0.0
    %2528 = vmatprep.subr.mxu0 0.0
    %2529 = vmatpush1.msra.mxu0 0.0
    %2530 = vmatprep.mubr.f32.mxu0 0.0
    %2531 = vmatmul.mubr.f32.gmra.mrb[0].mxu0 %v2310
    %v2532 = vpop.f32.mrb[0].mxu0
    %v2533 = vadd.f32 0.0, %v2532
    %v2534 = vpop.f32.mrb[0].mxu0
    %2535 = vdwg.mxu0
    %v2536 = vadd.f32 %v615, %v2533
    %v2537 = vtanh.pop %v2536
    %2538 = vmatprep.subr.mxu0 0.0
    %2539 = vmatpush1.msra.mxu0 %v185
    %2540 = vmatprep.subr.mxu0 0.0
    %2541 = vmatpush1.msra.mxu0 %v186
    %2542 = vmatprep.subr.mxu0 0.0
    %2543 = vmatpush1.msra.mxu0 %v187
    %2544 = vmatprep.subr.mxu0 0.0
    %2545 = vmatpush1.msra.mxu0 %v188
    %2546 = vmatprep.subr.mxu0 0.0
    %2547 = vmatpush1.msra.mxu0 0.0
    %2548 = vmatprep.subr.mxu0 0.0
    %2549 = vmatpush1.msra.mxu0 0.0
    %2550 = vmatprep.subr.mxu0 0.0
    %2551 = vmatpush1.msra.mxu0 0.0
    %2552 = vmatprep.subr.mxu0 0.0
    %2553 = vmatpush1.msra.mxu0 0.0
    %2554 = vmatprep.subr.mxu0 0.0
    %2555 = vmatpush1.msra.mxu0 0.0
    %2556 = vmatprep.subr.mxu0 0.0
    %2557 = vmatpush1.msra.mxu0 0.0
    %2558 = vmatprep.subr.mxu0 0.0
    %2559 = vmatpush1.msra.mxu0 0.0
    %2560 = vmatprep.subr.mxu0 0.0
    %2561 = vmatpush1.msra.mxu0 0.0
    %2562 = vmatprep.subr.mxu0 0.0
    %2563 = vmatpush1.msra.mxu0 0.0
    %2564 = vmatprep.subr.mxu0 0.0
    %2565 = vmatpush1.msra.mxu0 0.0
    %2566 = vmatprep.subr.mxu0 0.0
    %2567 = vmatpush1.msra.mxu0 0.0
    %2568 = vmatprep.subr.mxu0 0.0
    %2569 = vmatpush1.msra.mxu0 0.0
    %2570 = vmatprep.subr.mxu0 0.0
    %2571 = vmatpush1.msra.mxu0 0.0
    %2572 = vmatprep.subr.mxu0 0.0
    %2573 = vmatpush1.msra.mxu0 0.0
    %2574 = vmatprep.subr.mxu0 0.0
    %2575 = vmatpush1.msra.mxu0 0.0
    %2576 = vmatprep.subr.mxu0 0.0
    %2577 = vmatpush1.msra.mxu0 0.0
    %2578 = vmatprep.subr.mxu0 0.0
    %2579 = vmatpush1.msra.mxu0 0.0
    %2580 = vmatprep.subr.mxu0 0.0
    %2581 = vmatpush1.msra.mxu0 0.0
    %2582 = vmatprep.subr.mxu0 0.0
    %2583 = vmatpush1.msra.mxu0 0.0
    %2584 = vmatprep.subr.mxu0 0.0
    %2585 = vmatpush1.msra.mxu0 0.0
    %2586 = vmatprep.subr.mxu0 0.0
    %2587 = vmatpush1.msra.mxu0 0.0
    %2588 = vmatprep.subr.mxu0 0.0
    %2589 = vmatpush1.msra.mxu0 0.0
    %2590 = vmatprep.subr.mxu0 0.0
    %2591 = vmatpush1.msra.mxu0 0.0
    %2592 = vmatprep.subr.mxu0 0.0
    %2593 = vmatpush1.msra.mxu0 0.0
    %2594 = vmatprep.subr.mxu0 0.0
    %2595 = vmatpush1.msra.mxu0 0.0
    %2596 = vmatprep.subr.mxu0 0.0
    %2597 = vmatpush1.msra.mxu0 0.0
    %2598 = vmatprep.subr.mxu0 0.0
    %2599 = vmatpush1.msra.mxu0 0.0
    %2600 = vmatprep.subr.mxu0 0.0
    %2601 = vmatpush1.msra.mxu0 0.0
    %2602 = vmatprep.mubr.f32.mxu0 0.0
    %2603 = vmatmul.mubr.f32.gmra.mrb[0].mxu0 %v2310
    %v2604 = vpop.f32.mrb[0].mxu0
    %v2605 = vadd.f32 0.0, %v2604
    %v2606 = vpop.f32.mrb[0].mxu0
    %2607 = vdwg.mxu0
    %v2608 = vadd.f32 %v743, %v2605
    %v2609 = vxor.u32 %v2608, 2147483648
    %v2610 = vmul.f32 %v2609, 1.442695
    %v2611 = vpow.pop %v2610
    %v2612 = vadd.f32 %v2611, 1.0
    %v2613 = vrcp.pop %v2612
    %v2614 = vmul.f32 1.0, %v2613
    %v2615 = vmul.f32 %v2465, %v2306
    %v2616 = vmul.f32 %v2388, %v2537
    %v2617 = vadd.f32 %v2615, %v2616
    %v2618 = vtanh.pop %v2617
    %v2619 = vmul.f32 %v2614, %v2618
    %v2621 = vsel %vm753, %v2619, 0
    %2623 = vmatprep.subr.mxu0 0.0
    %2624 = vmatpush1.msra.mxu0 %v173
    %2625 = vmatprep.subr.mxu0 0.0
    %2626 = vmatpush1.msra.mxu0 %v174
    %2627 = vmatprep.subr.mxu0 0.0
    %2628 = vmatpush1.msra.mxu0 %v175
    %2629 = vmatprep.subr.mxu0 0.0
    %2630 = vmatpush1.msra.mxu0 %v176
    %2631 = vmatprep.subr.mxu0 0.0
    %2632 = vmatpush1.msra.mxu0 0.0
    %2633 = vmatprep.subr.mxu0 0.0
    %2634 = vmatpush1.msra.mxu0 0.0
    %2635 = vmatprep.subr.mxu0 0.0
    %2636 = vmatpush1.msra.mxu0 0.0
    %2637 = vmatprep.subr.mxu0 0.0
    %2638 = vmatpush1.msra.mxu0 0.0
    %2639 = vmatprep.subr.mxu0 0.0
    %2640 = vmatpush1.msra.mxu0 0.0
    %2641 = vmatprep.subr.mxu0 0.0
    %2642 = vmatpush1.msra.mxu0 0.0
    %2643 = vmatprep.subr.mxu0 0.0
    %2644 = vmatpush1.msra.mxu0 0.0
    %2645 = vmatprep.subr.mxu0 0.0
    %2646 = vmatpush1.msra.mxu0 0.0
    %2647 = vmatprep.subr.mxu0 0.0
    %2648 = vmatpush1.msra.mxu0 0.0
    %2649 = vmatprep.subr.mxu0 0.0
    %2650 = vmatpush1.msra.mxu0 0.0
    %2651 = vmatprep.subr.mxu0 0.0
    %2652 = vmatpush1.msra.mxu0 0.0
    %2653 = vmatprep.subr.mxu0 0.0
    %2654 = vmatpush1.msra.mxu0 0.0
    %2655 = vmatprep.subr.mxu0 0.0
    %2656 = vmatpush1.msra.mxu0 0.0
    %2657 = vmatprep.subr.mxu0 0.0
    %2658 = vmatpush1.msra.mxu0 0.0
    %2659 = vmatprep.subr.mxu0 0.0
    %2660 = vmatpush1.msra.mxu0 0.0
    %2661 = vmatprep.subr.mxu0 0.0
    %2662 = vmatpush1.msra.mxu0 0.0
    %2663 = vmatprep.subr.mxu0 0.0
    %2664 = vmatpush1.msra.mxu0 0.0
    %2665 = vmatprep.subr.mxu0 0.0
    %2666 = vmatpush1.msra.mxu0 0.0
    %2667 = vmatprep.subr.mxu0 0.0
    %2668 = vmatpush1.msra.mxu0 0.0
    %2669 = vmatprep.subr.mxu0 0.0
    %2670 = vmatpush1.msra.mxu0 0.0
    %2671 = vmatprep.subr.mxu0 0.0
    %2672 = vmatpush1.msra.mxu0 0.0
    %2673 = vmatprep.subr.mxu0 0.0
    %2674 = vmatpush1.msra.mxu0 0.0
    %2675 = vmatprep.subr.mxu0 0.0
    %2676 = vmatpush1.msra.mxu0 0.0
    %2677 = vmatprep.subr.mxu0 0.0
    %2678 = vmatpush1.msra.mxu0 0.0
    %2679 = vmatprep.subr.mxu0 0.0
    %2680 = vmatpush1.msra.mxu0 0.0
    %2681 = vmatprep.subr.mxu0 0.0
    %2682 = vmatpush1.msra.mxu0 0.0
    %2683 = vmatprep.subr.mxu0 0.0
    %2684 = vmatpush1.msra.mxu0 0.0
    %2685 = vmatprep.subr.mxu0 0.0
    %2686 = vmatpush1.msra.mxu0 0.0
    %2687 = vmatprep.mubr.f32.mxu0 0.0
    %2688 = vmatmul.mubr.f32.gmra.mrb[0].mxu0 %v2621
    %v2689 = vpop.f32.mrb[0].mxu0
    %v2690 = vadd.f32 0.0, %v2689
    %v2691 = vpop.f32.mrb[0].mxu0
    %2692 = vdwg.mxu0
    %v2693 = vadd.f32 %v358, %v2690
    %v2694 = vxor.u32 %v2693, 2147483648
    %v2695 = vmul.f32 %v2694, 1.442695
    %v2696 = vpow.pop %v2695
    %v2697 = vadd.f32 %v2696, 1.0
    %v2698 = vrcp.pop %v2697
    %v2699 = vmul.f32 1.0, %v2698
    %2700 = vmatprep.subr.mxu0 0.0
    %2701 = vmatpush1.msra.mxu0 %v177
    %2702 = vmatprep.subr.mxu0 0.0
    %2703 = vmatpush1.msra.mxu0 %v178
    %2704 = vmatprep.subr.mxu0 0.0
    %2705 = vmatpush1.msra.mxu0 %v179
    %2706 = vmatprep.subr.mxu0 0.0
    %2707 = vmatpush1.msra.mxu0 %v180
    %2708 = vmatprep.subr.mxu0 0.0
    %2709 = vmatpush1.msra.mxu0 0.0
    %2710 = vmatprep.subr.mxu0 0.0
    %2711 = vmatpush1.msra.mxu0 0.0
    %2712 = vmatprep.subr.mxu0 0.0
    %2713 = vmatpush1.msra.mxu0 0.0
    %2714 = vmatprep.subr.mxu0 0.0
    %2715 = vmatpush1.msra.mxu0 0.0
    %2716 = vmatprep.subr.mxu0 0.0
    %2717 = vmatpush1.msra.mxu0 0.0
    %2718 = vmatprep.subr.mxu0 0.0
    %2719 = vmatpush1.msra.mxu0 0.0
    %2720 = vmatprep.subr.mxu0 0.0
    %2721 = vmatpush1.msra.mxu0 0.0
    %2722 = vmatprep.subr.mxu0 0.0
    %2723 = vmatpush1.msra.mxu0 0.0
    %2724 = vmatprep.subr.mxu0 0.0
    %2725 = vmatpush1.msra.mxu0 0.0
    %2726 = vmatprep.subr.mxu0 0.0
    %2727 = vmatpush1.msra.mxu0 0.0
    %2728 = vmatprep.subr.mxu0 0.0
    %2729 = vmatpush1.msra.mxu0 0.0
    %2730 = vmatprep.subr.mxu0 0.0
    %2731 = vmatpush1.msra.mxu0 0.0
    %2732 = vmatprep.subr.mxu0 0.0
    %2733 = vmatpush1.msra.mxu0 0.0
    %2734 = vmatprep.subr.mxu0 0.0
    %2735 = vmatpush1.msra.mxu0 0.0
    %2736 = vmatprep.subr.mxu0 0.0
    %2737 = vmatpush1.msra.mxu0 0.0
    %2738 = vmatprep.subr.mxu0 0.0
    %2739 = vmatpush1.msra.mxu0 0.0
    %2740 = vmatprep.subr.mxu0 0.0
    %2741 = vmatpush1.msra.mxu0 0.0
    %2742 = vmatprep.subr.mxu0 0.0
    %2743 = vmatpush1.msra.mxu0 0.0
    %2744 = vmatprep.subr.mxu0 0.0
    %2745 = vmatpush1.msra.mxu0 0.0
    %2746 = vmatprep.subr.mxu0 0.0
    %2747 = vmatpush1.msra.mxu0 0.0
    %2748 = vmatprep.subr.mxu0 0.0
    %2749 = vmatpush1.msra.mxu0 0.0
    %2750 = vmatprep.subr.mxu0 0.0
    %2751 = vmatpush1.msra.mxu0 0.0
    %2752 = vmatprep.subr.mxu0 0.0
    %2753 = vmatpush1.msra.mxu0 0.0
    %2754 = vmatprep.subr.mxu0 0.0
    %2755 = vmatpush1.msra.mxu0 0.0
    %2756 = vmatprep.subr.mxu0 0.0
    %2757 = vmatpush1.msra.mxu0 0.0
    %2758 = vmatprep.subr.mxu0 0.0
    %2759 = vmatpush1.msra.mxu0 0.0
    %2760 = vmatprep.subr.mxu0 0.0
    %2761 = vmatpush1.msra.mxu0 0.0
    %2762 = vmatprep.subr.mxu0 0.0
    %2763 = vmatpush1.msra.mxu0 0.0
    %2764 = vmatprep.mubr.f32.mxu0 0.0
    %2765 = vmatmul.mubr.f32.gmra.mrb[0].mxu0 %v2621
    %v2766 = vpop.f32.mrb[0].mxu0
    %v2767 = vadd.f32 0.0, %v2766
    %v2768 = vpop.f32.mrb[0].mxu0
    %2769 = vdwg.mxu0
    %v2770 = vadd.f32 %v486, %v2767
    %v2771 = vxor.u32 %v2770, 2147483648
    %v2772 = vmul.f32 %v2771, 1.442695
    %v2773 = vpow.pop %v2772
    %v2774 = vadd.f32 %v2773, 1.0
    %v2775 = vrcp.pop %v2774
    %v2776 = vmul.f32 1.0, %v2775
    %2777 = vmatprep.subr.mxu0 0.0
    %2778 = vmatpush1.msra.mxu0 %v181
    %2779 = vmatprep.subr.mxu0 0.0
    %2780 = vmatpush1.msra.mxu0 %v182
    %2781 = vmatprep.subr.mxu0 0.0
    %2782 = vmatpush1.msra.mxu0 %v183
    %2783 = vmatprep.subr.mxu0 0.0
    %2784 = vmatpush1.msra.mxu0 %v184
    %2785 = vmatprep.subr.mxu0 0.0
    %2786 = vmatpush1.msra.mxu0 0.0
    %2787 = vmatprep.subr.mxu0 0.0
    %2788 = vmatpush1.msra.mxu0 0.0
    %2789 = vmatprep.subr.mxu0 0.0
    %2790 = vmatpush1.msra.mxu0 0.0
    %2791 = vmatprep.subr.mxu0 0.0
    %2792 = vmatpush1.msra.mxu0 0.0
    %2793 = vmatprep.subr.mxu0 0.0
    %2794 = vmatpush1.msra.mxu0 0.0
    %2795 = vmatprep.subr.mxu0 0.0
    %2796 = vmatpush1.msra.mxu0 0.0
    %2797 = vmatprep.subr.mxu0 0.0
    %2798 = vmatpush1.msra.mxu0 0.0
    %2799 = vmatprep.subr.mxu0 0.0
    %2800 = vmatpush1.msra.mxu0 0.0
    %2801 = vmatprep.subr.mxu0 0.0
    %2802 = vmatpush1.msra.mxu0 0.0
    %2803 = vmatprep.subr.mxu0 0.0
    %2804 = vmatpush1.msra.mxu0 0.0
    %2805 = vmatprep.subr.mxu0 0.0
    %2806 = vmatpush1.msra.mxu0 0.0
    %2807 = vmatprep.subr.mxu0 0.0
    %2808 = vmatpush1.msra.mxu0 0.0
    %2809 = vmatprep.subr.mxu0 0.0
    %2810 = vmatpush1.msra.mxu0 0.0
    %2811 = vmatprep.subr.mxu0 0.0
    %2812 = vmatpush1.msra.mxu0 0.0
    %2813 = vmatprep.subr.mxu0 0.0
    %2814 = vmatpush1.msra.mxu0 0.0
    %2815 = vmatprep.subr.mxu0 0.0
    %2816 = vmatpush1.msra.mxu0 0.0
    %2817 = vmatprep.subr.mxu0 0.0
    %2818 = vmatpush1.msra.mxu0 0.0
    %2819 = vmatprep.subr.mxu0 0.0
    %2820 = vmatpush1.msra.mxu0 0.0
    %2821 = vmatprep.subr.mxu0 0.0
    %2822 = vmatpush1.msra.mxu0 0.0
    %2823 = vmatprep.subr.mxu0 0.0
    %2824 = vmatpush1.msra.mxu0 0.0
    %2825 = vmatprep.subr.mxu0 0.0
    %2826 = vmatpush1.msra.mxu0 0.0
    %2827 = vmatprep.subr.mxu0 0.0
    %2828 = vmatpush1.msra.mxu0 0.0
    %2829 = vmatprep.subr.mxu0 0.0
    %2830 = vmatpush1.msra.mxu0 0.0
    %2831 = vmatprep.subr.mxu0 0.0
    %2832 = vmatpush1.msra.mxu0 0.0
    %2833 = vmatprep.subr.mxu0 0.0
    %2834 = vmatpush1.msra.mxu0 0.0
    %2835 = vmatprep.subr.mxu0 0.0
    %2836 = vmatpush1.msra.mxu0 0.0
    %2837 = vmatprep.subr.mxu0 0.0
    %2838 = vmatpush1.msra.mxu0 0.0
    %2839 = vmatprep.subr.mxu0 0.0
    %2840 = vmatpush1.msra.mxu0 0.0
    %2841 = vmatprep.mubr.f32.mxu0 0.0
    %2842 = vmatmul.mubr.f32.gmra.mrb[0].mxu0 %v2621
    %v2843 = vpop.f32.mrb[0].mxu0
    %v2844 = vadd.f32 0.0, %v2843
    %v2845 = vpop.f32.mrb[0].mxu0
    %2846 = vdwg.mxu0
    %v2847 = vadd.f32 %v614, %v2844
    %v2848 = vtanh.pop %v2847
    %2849 = vmatprep.subr.mxu0 0.0
    %2850 = vmatpush1.msra.mxu0 %v185
    %2851 = vmatprep.subr.mxu0 0.0
    %2852 = vmatpush1.msra.mxu0 %v186
    %2853 = vmatprep.subr.mxu0 0.0
    %2854 = vmatpush1.msra.mxu0 %v187
    %2855 = vmatprep.subr.mxu0 0.0
    %2856 = vmatpush1.msra.mxu0 %v188
    %2857 = vmatprep.subr.mxu0 0.0
    %2858 = vmatpush1.msra.mxu0 0.0
    %2859 = vmatprep.subr.mxu0 0.0
    %2860 = vmatpush1.msra.mxu0 0.0
    %2861 = vmatprep.subr.mxu0 0.0
    %2862 = vmatpush1.msra.mxu0 0.0
    %2863 = vmatprep.subr.mxu0 0.0
    %2864 = vmatpush1.msra.mxu0 0.0
    %2865 = vmatprep.subr.mxu0 0.0
    %2866 = vmatpush1.msra.mxu0 0.0
    %2867 = vmatprep.subr.mxu0 0.0
    %2868 = vmatpush1.msra.mxu0 0.0
    %2869 = vmatprep.subr.mxu0 0.0
    %2870 = vmatpush1.msra.mxu0 0.0
    %2871 = vmatprep.subr.mxu0 0.0
    %2872 = vmatpush1.msra.mxu0 0.0
    %2873 = vmatprep.subr.mxu0 0.0
    %2874 = vmatpush1.msra.mxu0 0.0
    %2875 = vmatprep.subr.mxu0 0.0
    %2876 = vmatpush1.msra.mxu0 0.0
    %2877 = vmatprep.subr.mxu0 0.0
    %2878 = vmatpush1.msra.mxu0 0.0
    %2879 = vmatprep.subr.mxu0 0.0
    %2880 = vmatpush1.msra.mxu0 0.0
    %2881 = vmatprep.subr.mxu0 0.0
    %2882 = vmatpush1.msra.mxu0 0.0
    %2883 = vmatprep.subr.mxu0 0.0
    %2884 = vmatpush1.msra.mxu0 0.0
    %2885 = vmatprep.subr.mxu0 0.0
    %2886 = vmatpush1.msra.mxu0 0.0
    %2887 = vmatprep.subr.mxu0 0.0
    %2888 = vmatpush1.msra.mxu0 0.0
    %2889 = vmatprep.subr.mxu0 0.0
    %2890 = vmatpush1.msra.mxu0 0.0
    %2891 = vmatprep.subr.mxu0 0.0
    %2892 = vmatpush1.msra.mxu0 0.0
    %2893 = vmatprep.subr.mxu0 0.0
    %2894 = vmatpush1.msra.mxu0 0.0
    %2895 = vmatprep.subr.mxu0 0.0
    %2896 = vmatpush1.msra.mxu0 0.0
    %2897 = vmatprep.subr.mxu0 0.0
    %2898 = vmatpush1.msra.mxu0 0.0
    %2899 = vmatprep.subr.mxu0 0.0
    %2900 = vmatpush1.msra.mxu0 0.0
    %2901 = vmatprep.subr.mxu0 0.0
    %2902 = vmatpush1.msra.mxu0 0.0
    %2903 = vmatprep.subr.mxu0 0.0
    %2904 = vmatpush1.msra.mxu0 0.0
    %2905 = vmatprep.subr.mxu0 0.0
    %2906 = vmatpush1.msra.mxu0 0.0
    %2907 = vmatprep.subr.mxu0 0.0
    %2908 = vmatpush1.msra.mxu0 0.0
    %2909 = vmatprep.subr.mxu0 0.0
    %2910 = vmatpush1.msra.mxu0 0.0
    %2911 = vmatprep.subr.mxu0 0.0
    %2912 = vmatpush1.msra.mxu0 0.0
    %2913 = vmatprep.mubr.f32.mxu0 0.0
    %2914 = vmatmul.mubr.f32.gmra.mrb[0].mxu0 %v2621
    %v2915 = vpop.f32.mrb[0].mxu0
    %v2916 = vadd.f32 0.0, %v2915
    %v2917 = vpop.f32.mrb[0].mxu0
    %2918 = vdwg.mxu0
    %v2919 = vadd.f32 %v742, %v2916
    %v2920 = vxor.u32 %v2919, 2147483648
    %v2921 = vmul.f32 %v2920, 1.442695
    %v2922 = vpow.pop %v2921
    %v2923 = vadd.f32 %v2922, 1.0
    %v2924 = vrcp.pop %v2923
    %v2925 = vmul.f32 1.0, %v2924
    %v2926 = vmul.f32 %v2776, %v2617
    %v2927 = vmul.f32 %v2699, %v2848
    %v2928 = vadd.f32 %v2926, %v2927
    %v2929 = vtanh.pop %v2928
    %v2930 = vmul.f32 %v2925, %v2929
    %v2932 = vsel %vm753, %v2930, 0
    %2934 = vmatprep.subr.mxu0 0.0
    %2935 = vmatpush1.msra.mxu0 %v173
    %2936 = vmatprep.subr.mxu0 0.0
    %2937 = vmatpush1.msra.mxu0 %v174
    %2938 = vmatprep.subr.mxu0 0.0
    %2939 = vmatpush1.msra.mxu0 %v175
    %2940 = vmatprep.subr.mxu0 0.0
    %2941 = vmatpush1.msra.mxu0 %v176
    %2942 = vmatprep.subr.mxu0 0.0
    %2943 = vmatpush1.msra.mxu0 0.0
    %2944 = vmatprep.subr.mxu0 0.0
    %2945 = vmatpush1.msra.mxu0 0.0
    %2946 = vmatprep.subr.mxu0 0.0
    %2947 = vmatpush1.msra.mxu0 0.0
    %2948 = vmatprep.subr.mxu0 0.0
    %2949 = vmatpush1.msra.mxu0 0.0
    %2950 = vmatprep.subr.mxu0 0.0
    %2951 = vmatpush1.msra.mxu0 0.0
    %2952 = vmatprep.subr.mxu0 0.0
    %2953 = vmatpush1.msra.mxu0 0.0
    %2954 = vmatprep.subr.mxu0 0.0
    %2955 = vmatpush1.msra.mxu0 0.0
    %2956 = vmatprep.subr.mxu0 0.0
    %2957 = vmatpush1.msra.mxu0 0.0
    %2958 = vmatprep.subr.mxu0 0.0
    %2959 = vmatpush1.msra.mxu0 0.0
    %2960 = vmatprep.subr.mxu0 0.0
    %2961 = vmatpush1.msra.mxu0 0.0
    %2962 = vmatprep.subr.mxu0 0.0
    %2963 = vmatpush1.msra.mxu0 0.0
    %2964 = vmatprep.subr.mxu0 0.0
    %2965 = vmatpush1.msra.mxu0 0.0
    %2966 = vmatprep.subr.mxu0 0.0
    %2967 = vmatpush1.msra.mxu0 0.0
    %2968 = vmatprep.subr.mxu0 0.0
    %2969 = vmatpush1.msra.mxu0 0.0
    %2970 = vmatprep.subr.mxu0 0.0
    %2971 = vmatpush1.msra.mxu0 0.0
    %2972 = vmatprep.subr.mxu0 0.0
    %2973 = vmatpush1.msra.mxu0 0.0
    %2974 = vmatprep.subr.mxu0 0.0
    %2975 = vmatpush1.msra.mxu0 0.0
    %2976 = vmatprep.subr.mxu0 0.0
    %2977 = vmatpush1.msra.mxu0 0.0
    %2978 = vmatprep.subr.mxu0 0.0
    %2979 = vmatpush1.msra.mxu0 0.0
    %2980 = vmatprep.subr.mxu0 0.0
    %2981 = vmatpush1.msra.mxu0 0.0
    %2982 = vmatprep.subr.mxu0 0.0
    %2983 = vmatpush1.msra.mxu0 0.0
    %2984 = vmatprep.subr.mxu0 0.0
    %2985 = vmatpush1.msra.mxu0 0.0
    %2986 = vmatprep.subr.mxu0 0.0
    %2987 = vmatpush1.msra.mxu0 0.0
    %2988 = vmatprep.subr.mxu0 0.0
    %2989 = vmatpush1.msra.mxu0 0.0
    %2990 = vmatprep.subr.mxu0 0.0
    %2991 = vmatpush1.msra.mxu0 0.0
    %2992 = vmatprep.subr.mxu0 0.0
    %2993 = vmatpush1.msra.mxu0 0.0
    %2994 = vmatprep.subr.mxu0 0.0
    %2995 = vmatpush1.msra.mxu0 0.0
    %2996 = vmatprep.subr.mxu0 0.0
    %2997 = vmatpush1.msra.mxu0 0.0
    %2998 = vmatprep.mubr.f32.mxu0 0.0
    %2999 = vmatmul.mubr.f32.gmra.mrb[0].mxu0 %v2932
    %v3000 = vpop.f32.mrb[0].mxu0
    %v3001 = vadd.f32 0.0, %v3000
    %v3002 = vpop.f32.mrb[0].mxu0
    %3003 = vdwg.mxu0
    %v3004 = vadd.f32 %v360, %v3001
    %v3005 = vxor.u32 %v3004, 2147483648
    %v3006 = vmul.f32 %v3005, 1.442695
    %v3007 = vpow.pop %v3006
    %v3008 = vadd.f32 %v3007, 1.0
    %v3009 = vrcp.pop %v3008
    %v3010 = vmul.f32 1.0, %v3009
    %3011 = vmatprep.subr.mxu0 0.0
    %3012 = vmatpush1.msra.mxu0 %v177
    %3013 = vmatprep.subr.mxu0 0.0
    %3014 = vmatpush1.msra.mxu0 %v178
    %3015 = vmatprep.subr.mxu0 0.0
    %3016 = vmatpush1.msra.mxu0 %v179
    %3017 = vmatprep.subr.mxu0 0.0
    %3018 = vmatpush1.msra.mxu0 %v180
    %3019 = vmatprep.subr.mxu0 0.0
    %3020 = vmatpush1.msra.mxu0 0.0
    %3021 = vmatprep.subr.mxu0 0.0
    %3022 = vmatpush1.msra.mxu0 0.0
    %3023 = vmatprep.subr.mxu0 0.0
    %3024 = vmatpush1.msra.mxu0 0.0
    %3025 = vmatprep.subr.mxu0 0.0
    %3026 = vmatpush1.msra.mxu0 0.0
    %3027 = vmatprep.subr.mxu0 0.0
    %3028 = vmatpush1.msra.mxu0 0.0
    %3029 = vmatprep.subr.mxu0 0.0
    %3030 = vmatpush1.msra.mxu0 0.0
    %3031 = vmatprep.subr.mxu0 0.0
    %3032 = vmatpush1.msra.mxu0 0.0
    %3033 = vmatprep.subr.mxu0 0.0
    %3034 = vmatpush1.msra.mxu0 0.0
    %3035 = vmatprep.subr.mxu0 0.0
    %3036 = vmatpush1.msra.mxu0 0.0
    %3037 = vmatprep.subr.mxu0 0.0
    %3038 = vmatpush1.msra.mxu0 0.0
    %3039 = vmatprep.subr.mxu0 0.0
    %3040 = vmatpush1.msra.mxu0 0.0
    %3041 = vmatprep.subr.mxu0 0.0
    %3042 = vmatpush1.msra.mxu0 0.0
    %3043 = vmatprep.subr.mxu0 0.0
    %3044 = vmatpush1.msra.mxu0 0.0
    %3045 = vmatprep.subr.mxu0 0.0
    %3046 = vmatpush1.msra.mxu0 0.0
    %3047 = vmatprep.subr.mxu0 0.0
    %3048 = vmatpush1.msra.mxu0 0.0
    %3049 = vmatprep.subr.mxu0 0.0
    %3050 = vmatpush1.msra.mxu0 0.0
    %3051 = vmatprep.subr.mxu0 0.0
    %3052 = vmatpush1.msra.mxu0 0.0
    %3053 = vmatprep.subr.mxu0 0.0
    %3054 = vmatpush1.msra.mxu0 0.0
    %3055 = vmatprep.subr.mxu0 0.0
    %3056 = vmatpush1.msra.mxu0 0.0
    %3057 = vmatprep.subr.mxu0 0.0
    %3058 = vmatpush1.msra.mxu0 0.0
    %3059 = vmatprep.subr.mxu0 0.0
    %3060 = vmatpush1.msra.mxu0 0.0
    %3061 = vmatprep.subr.mxu0 0.0
    %3062 = vmatpush1.msra.mxu0 0.0
    %3063 = vmatprep.subr.mxu0 0.0
    %3064 = vmatpush1.msra.mxu0 0.0
    %3065 = vmatprep.subr.mxu0 0.0
    %3066 = vmatpush1.msra.mxu0 0.0
    %3067 = vmatprep.subr.mxu0 0.0
    %3068 = vmatpush1.msra.mxu0 0.0
    %3069 = vmatprep.subr.mxu0 0.0
    %3070 = vmatpush1.msra.mxu0 0.0
    %3071 = vmatprep.subr.mxu0 0.0
    %3072 = vmatpush1.msra.mxu0 0.0
    %3073 = vmatprep.subr.mxu0 0.0
    %3074 = vmatpush1.msra.mxu0 0.0
    %3075 = vmatprep.mubr.f32.mxu0 0.0
    %3076 = vmatmul.mubr.f32.gmra.mrb[0].mxu0 %v2932
    %v3077 = vpop.f32.mrb[0].mxu0
    %v3078 = vadd.f32 0.0, %v3077
    %v3079 = vpop.f32.mrb[0].mxu0
    %3080 = vdwg.mxu0
    %v3081 = vadd.f32 %v488, %v3078
    %v3082 = vxor.u32 %v3081, 2147483648
    %v3083 = vmul.f32 %v3082, 1.442695
    %v3084 = vpow.pop %v3083
    %v3085 = vadd.f32 %v3084, 1.0
    %v3086 = vrcp.pop %v3085
    %v3087 = vmul.f32 1.0, %v3086
    %3088 = vmatprep.subr.mxu0 0.0
    %3089 = vmatpush1.msra.mxu0 %v181
    %3090 = vmatprep.subr.mxu0 0.0
    %3091 = vmatpush1.msra.mxu0 %v182
    %3092 = vmatprep.subr.mxu0 0.0
    %3093 = vmatpush1.msra.mxu0 %v183
    %3094 = vmatprep.subr.mxu0 0.0
    %3095 = vmatpush1.msra.mxu0 %v184
    %3096 = vmatprep.subr.mxu0 0.0
    %3097 = vmatpush1.msra.mxu0 0.0
    %3098 = vmatprep.subr.mxu0 0.0
    %3099 = vmatpush1.msra.mxu0 0.0
    %3100 = vmatprep.subr.mxu0 0.0
    %3101 = vmatpush1.msra.mxu0 0.0
    %3102 = vmatprep.subr.mxu0 0.0
    %3103 = vmatpush1.msra.mxu0 0.0
    %3104 = vmatprep.subr.mxu0 0.0
    %3105 = vmatpush1.msra.mxu0 0.0
    %3106 = vmatprep.subr.mxu0 0.0
    %3107 = vmatpush1.msra.mxu0 0.0
    %3108 = vmatprep.subr.mxu0 0.0
    %3109 = vmatpush1.msra.mxu0 0.0
    %3110 = vmatprep.subr.mxu0 0.0
    %3111 = vmatpush1.msra.mxu0 0.0
    %3112 = vmatprep.subr.mxu0 0.0
    %3113 = vmatpush1.msra.mxu0 0.0
    %3114 = vmatprep.subr.mxu0 0.0
    %3115 = vmatpush1.msra.mxu0 0.0
    %3116 = vmatprep.subr.mxu0 0.0
    %3117 = vmatpush1.msra.mxu0 0.0
    %3118 = vmatprep.subr.mxu0 0.0
    %3119 = vmatpush1.msra.mxu0 0.0
    %3120 = vmatprep.subr.mxu0 0.0
    %3121 = vmatpush1.msra.mxu0 0.0
    %3122 = vmatprep.subr.mxu0 0.0
    %3123 = vmatpush1.msra.mxu0 0.0
    %3124 = vmatprep.subr.mxu0 0.0
    %3125 = vmatpush1.msra.mxu0 0.0
    %3126 = vmatprep.subr.mxu0 0.0
    %3127 = vmatpush1.msra.mxu0 0.0
    %3128 = vmatprep.subr.mxu0 0.0
    %3129 = vmatpush1.msra.mxu0 0.0
    %3130 = vmatprep.subr.mxu0 0.0
    %3131 = vmatpush1.msra.mxu0 0.0
    %3132 = vmatprep.subr.mxu0 0.0
    %3133 = vmatpush1.msra.mxu0 0.0
    %3134 = vmatprep.subr.mxu0 0.0
    %3135 = vmatpush1.msra.mxu0 0.0
    %3136 = vmatprep.subr.mxu0 0.0
    %3137 = vmatpush1.msra.mxu0 0.0
    %3138 = vmatprep.subr.mxu0 0.0
    %3139 = vmatpush1.msra.mxu0 0.0
    %3140 = vmatprep.subr.mxu0 0.0
    %3141 = vmatpush1.msra.mxu0 0.0
    %3142 = vmatprep.subr.mxu0 0.0
    %3143 = vmatpush1.msra.mxu0 0.0
    %3144 = vmatprep.subr.mxu0 0.0
    %3145 = vmatpush1.msra.mxu0 0.0
    %3146 = vmatprep.subr.mxu0 0.0
    %3147 = vmatpush1.msra.mxu0 0.0
    %3148 = vmatprep.subr.mxu0 0.0
    %3149 = vmatpush1.msra.mxu0 0.0
    %3150 = vmatprep.subr.mxu0 0.0
    %3151 = vmatpush1.msra.mxu0 0.0
    %3152 = vmatprep.mubr.f32.mxu0 0.0
    %3153 = vmatmul.mubr.f32.gmra.mrb[0].mxu0 %v2932
    %v3154 = vpop.f32.mrb[0].mxu0
    %v3155 = vadd.f32 0.0, %v3154
    %v3156 = vpop.f32.mrb[0].mxu0
    %3157 = vdwg.mxu0
    %v3158 = vadd.f32 %v616, %v3155
    %v3159 = vtanh.pop %v3158
    %3160 = vmatprep.subr.mxu0 0.0
    %3161 = vmatpush1.msra.mxu0 %v185
    %3162 = vmatprep.subr.mxu0 0.0
    %3163 = vmatpush1.msra.mxu0 %v186
    %3164 = vmatprep.subr.mxu0 0.0
    %3165 = vmatpush1.msra.mxu0 %v187
    %3166 = vmatprep.subr.mxu0 0.0
    %3167 = vmatpush1.msra.mxu0 %v188
    %3168 = vmatprep.subr.mxu0 0.0
    %3169 = vmatpush1.msra.mxu0 0.0
    %3170 = vmatprep.subr.mxu0 0.0
    %3171 = vmatpush1.msra.mxu0 0.0
    %3172 = vmatprep.subr.mxu0 0.0
    %3173 = vmatpush1.msra.mxu0 0.0
    %3174 = vmatprep.subr.mxu0 0.0
    %3175 = vmatpush1.msra.mxu0 0.0
    %3176 = vmatprep.subr.mxu0 0.0
    %3177 = vmatpush1.msra.mxu0 0.0
    %3178 = vmatprep.subr.mxu0 0.0
    %3179 = vmatpush1.msra.mxu0 0.0
    %3180 = vmatprep.subr.mxu0 0.0
    %3181 = vmatpush1.msra.mxu0 0.0
    %3182 = vmatprep.subr.mxu0 0.0
    %3183 = vmatpush1.msra.mxu0 0.0
    %3184 = vmatprep.subr.mxu0 0.0
    %3185 = vmatpush1.msra.mxu0 0.0
    %3186 = vmatprep.subr.mxu0 0.0
    %3187 = vmatpush1.msra.mxu0 0.0
    %3188 = vmatprep.subr.mxu0 0.0
    %3189 = vmatpush1.msra.mxu0 0.0
    %3190 = vmatprep.subr.mxu0 0.0
    %3191 = vmatpush1.msra.mxu0 0.0
    %3192 = vmatprep.subr.mxu0 0.0
    %3193 = vmatpush1.msra.mxu0 0.0
    %3194 = vmatprep.subr.mxu0 0.0
    %3195 = vmatpush1.msra.mxu0 0.0
    %3196 = vmatprep.subr.mxu0 0.0
    %3197 = vmatpush1.msra.mxu0 0.0
    %3198 = vmatprep.subr.mxu0 0.0
    %3199 = vmatpush1.msra.mxu0 0.0
    %3200 = vmatprep.subr.mxu0 0.0
    %3201 = vmatpush1.msra.mxu0 0.0
    %3202 = vmatprep.subr.mxu0 0.0
    %3203 = vmatpush1.msra.mxu0 0.0
    %3204 = vmatprep.subr.mxu0 0.0
    %3205 = vmatpush1.msra.mxu0 0.0
    %3206 = vmatprep.subr.mxu0 0.0
    %3207 = vmatpush1.msra.mxu0 0.0
    %3208 = vmatprep.subr.mxu0 0.0
    %3209 = vmatpush1.msra.mxu0 0.0
    %3210 = vmatprep.subr.mxu0 0.0
    %3211 = vmatpush1.msra.mxu0 0.0
    %3212 = vmatprep.subr.mxu0 0.0
    %3213 = vmatpush1.msra.mxu0 0.0
    %3214 = vmatprep.subr.mxu0 0.0
    %3215 = vmatpush1.msra.mxu0 0.0
    %3216 = vmatprep.subr.mxu0 0.0
    %3217 = vmatpush1.msra.mxu0 0.0
    %3218 = vmatprep.subr.mxu0 0.0
    %3219 = vmatpush1.msra.mxu0 0.0
    %3220 = vmatprep.subr.mxu0 0.0
    %3221 = vmatpush1.msra.mxu0 0.0
    %3222 = vmatprep.subr.mxu0 0.0
    %3223 = vmatpush1.msra.mxu0 0.0
    %3224 = vmatprep.mubr.f32.mxu0 0.0
    %3225 = vmatmul.mubr.f32.gmra.mrb[0].mxu0 %v2932
    %v3226 = vpop.f32.mrb[0].mxu0
    %v3227 = vadd.f32 0.0, %v3226
    %v3228 = vpop.f32.mrb[0].mxu0
    %3229 = vdwg.mxu0
    %v3230 = vadd.f32 %v744, %v3227
    %v3231 = vxor.u32 %v3230, 2147483648
    %v3232 = vmul.f32 %v3231, 1.442695
    %v3233 = vpow.pop %v3232
    %v3234 = vadd.f32 %v3233, 1.0
    %v3235 = vrcp.pop %v3234
    %v3236 = vmul.f32 1.0, %v3235
    %v3237 = vmul.f32 %v3087, %v2928
    %v3238 = vmul.f32 %v3010, %v3159
    %v3239 = vadd.f32 %v3237, %v3238
    %v3240 = vtanh.pop %v3239
    %v3241 = vmul.f32 %v3236, %v3240
    %v3242 = vcombine.low %v1375, %v1375
    %v3244 = vunpack.c.l.s4 1983009808
    %v3245 = vunpack.c.0.s8 %v3244
    %v3246 = vlaneseq
    %v3247 = vshrl.u32 %v3246, 7
    %v3248 = vsub.s32 %v3245, %v3247
    %v3249 = vrot.slane %v3242, %v3248
    %v3252 = vunpack.c.l.s4 1983009808
    %v3253 = vunpack.c.0.s8 %v3252
    %v3254 = vlaneseq
    %v3255 = vshrl.u32 %v3254, 7
    %v3256 = vsub.s32 %v3253, %v3255
    %v3257 = vrot.slane %v1686, %v3256
    %v3258 = vcombine.low %v3257, %v3257
    %v3260 = vcombine.low %v1997, %v1997
    %v3262 = vunpack.c.l.s4 1983009808
    %v3263 = vunpack.c.0.s8 %v3262
    %v3264 = vlaneseq
    %v3265 = vshrl.u32 %v3264, 7
    %v3266 = vsub.s32 %v3263, %v3265
    %v3267 = vrot.slane %v3260, %v3266
    %v3268 = vcombine.low %v3267, %v3267
    %v3270 = vcombine.low %v2619, %v2619
    %v3272 = vunpack.c.l.s4 1983009808
    %v3273 = vunpack.c.0.s8 %v3272
    %v3274 = vlaneseq
    %v3275 = vshrl.u32 %v3274, 7
    %v3276 = vsub.s32 %v3273, %v3275
    %v3277 = vrot.slane %v3270, %v3276
    %v3280 = vunpack.c.l.s4 1983009808
    %v3281 = vunpack.c.0.s8 %v3280
    %v3282 = vlaneseq
    %v3283 = vshrl.u32 %v3282, 7
    %v3284 = vsub.s32 %v3281, %v3283
    %v3285 = vrot.slane %v2930, %v3284
    %v3286 = vcombine.low %v3285, %v3285
    %v3289 = vcombine.low %v3241, %v3241
    %v3291 = vunpack.c.l.s4 1983009808
    %v3292 = vunpack.c.0.s8 %v3291
    %v3293 = vlaneseq
    %v3294 = vshrl.u32 %v3293, 7
    %v3295 = vsub.s32 %v3292, %v3294
    %v3296 = vrot.slane %v3289, %v3295
    %v3297 = vcombine.low %v3296, %v3296
    %vm3299 = vcmask 1041408
    %v3300 = vsel %vm3299, %v1064, %v3249
    %v3301 = vsel %vm246, %v3300, %v3258
    %vm3302 = vcmask 1045504
    %v3303 = vsel %vm3302, %v3301, %v3268
    %v3304 = vsel %vm3299, %v2308, %v3277
    %v3305 = vsel %vm246, %v3304, %v3286
    %v3306 = vsel %vm3302, %v3305, %v3297
    %v3307 = vld [vmem:[#allocation7] sm:$0xff]
    %v3308 = vld [vmem:[#allocation7 + $0x8] sm:$0xff]
    %v3309 = vld [vmem:[#allocation7 + $0x10] sm:$0xff]
    %v3310 = vld [vmem:[#allocation7 + $0x18] sm:$0xff]
    %v3311 = vld [vmem:[#allocation7 + $0x20] sm:$0xff]
    %v3312 = vld [vmem:[#allocation7 + $0x28] sm:$0xff]
    %v3313 = vld [vmem:[#allocation7 + $0x30] sm:$0xff]
    %v3314 = vld [vmem:[#allocation7 + $0x38] sm:$0xff]
    %v3315 = vld [vmem:[#allocation7 + $0x40] sm:$0xff]
    %v3316 = vld [vmem:[#allocation7 + $0x48] sm:$0xff]
    %v3317 = vld [vmem:[#allocation7 + $0x50] sm:$0xff]
    %v3318 = vld [vmem:[#allocation7 + $0x58] sm:$0xff]
    %v3319 = vld [vmem:[#allocation7 + $0x60] sm:$0xff]
    %v3320 = vld [vmem:[#allocation7 + $0x68] sm:$0xff]
    %v3321 = vld [vmem:[#allocation7 + $0x70] sm:$0xff]
    %v3322 = vld [vmem:[#allocation7 + $0x78] sm:$0xff]
    %v3323 = vld [vmem:[#allocation8] sm:$0xff]
    %v3324 = vld [vmem:[#allocation8 + $0x8] sm:$0xff]
    %v3325 = vld [vmem:[#allocation8 + $0x10] sm:$0xff]
    %v3326 = vld [vmem:[#allocation8 + $0x18] sm:$0xff]
    %v3327 = vld [vmem:[#allocation8 + $0x20] sm:$0xff]
    %v3328 = vld [vmem:[#allocation8 + $0x28] sm:$0xff]
    %v3329 = vld [vmem:[#allocation8 + $0x30] sm:$0xff]
    %v3330 = vld [vmem:[#allocation8 + $0x38] sm:$0xff]
    %v3331 = vld [vmem:[#allocation8 + $0x40] sm:$0xff]
    %v3332 = vld [vmem:[#allocation8 + $0x48] sm:$0xff]
    %v3333 = vld [vmem:[#allocation8 + $0x50] sm:$0xff]
    %v3334 = vld [vmem:[#allocation8 + $0x58] sm:$0xff]
    %v3335 = vld [vmem:[#allocation8 + $0x60] sm:$0xff]
    %v3336 = vld [vmem:[#allocation8 + $0x68] sm:$0xff]
    %v3337 = vld [vmem:[#allocation8 + $0x70] sm:$0xff]
    %v3338 = vld [vmem:[#allocation8 + $0x78] sm:$0xff]
    %v3339 = vld [vmem:[#allocation10] sm:$0x1]
    %v3340 = vld [vmem:[#allocation10 + $0x1] sm:$0x1]
    %v3341 = vld [vmem:[#allocation10 + $0x2] sm:$0x1]
    %v3342 = vld [vmem:[#allocation10 + $0x3] sm:$0x1]
    %v3344 = vlaneseq
    %v3345 = vshrl.u32 %v3344, 7
    %v3346 = vsub.s32 0, %v3345
    %v3347 = vrot.slane %v3339, %v3346
    %v3350 = vsel %vm753, %v3303, 0
    %v3353 = vsel %vm753, %v3306, 0
    %3355 = vmatprep.subr.mxu0 0.0
    %3356 = vmatpush1.msra.mxu0 %v3307
    %3357 = vmatprep.subr.mxu0 0.0
    %3358 = vmatpush1.msra.mxu0 %v3308
    %3359 = vmatprep.subr.mxu0 0.0
    %3360 = vmatpush1.msra.mxu0 %v3309
    %3361 = vmatprep.subr.mxu0 0.0
    %3362 = vmatpush1.msra.mxu0 %v3310
    %3363 = vmatprep.subr.mxu0 0.0
    %3364 = vmatpush1.msra.mxu0 0.0
    %3365 = vmatprep.subr.mxu0 0.0
    %3366 = vmatpush1.msra.mxu0 0.0
    %3367 = vmatprep.subr.mxu0 0.0
    %3368 = vmatpush1.msra.mxu0 0.0
    %3369 = vmatprep.subr.mxu0 0.0
    %3370 = vmatpush1.msra.mxu0 0.0
    %3371 = vmatprep.subr.mxu0 0.0
    %3372 = vmatpush1.msra.mxu0 0.0
    %3373 = vmatprep.subr.mxu0 0.0
    %3374 = vmatpush1.msra.mxu0 0.0
    %3375 = vmatprep.subr.mxu0 0.0
    %3376 = vmatpush1.msra.mxu0 0.0
    %3377 = vmatprep.subr.mxu0 0.0
    %3378 = vmatpush1.msra.mxu0 0.0
    %3379 = vmatprep.subr.mxu0 0.0
    %3380 = vmatpush1.msra.mxu0 0.0
    %3381 = vmatprep.subr.mxu0 0.0
    %3382 = vmatpush1.msra.mxu0 0.0
    %3383 = vmatprep.subr.mxu0 0.0
    %3384 = vmatpush1.msra.mxu0 0.0
    %3385 = vmatprep.subr.mxu0 0.0
    %3386 = vmatpush1.msra.mxu0 0.0
    %3387 = vmatprep.subr.mxu0 0.0
    %3388 = vmatpush1.msra.mxu0 0.0
    %3389 = vmatprep.subr.mxu0 0.0
    %3390 = vmatpush1.msra.mxu0 0.0
    %3391 = vmatprep.subr.mxu0 0.0
    %3392 = vmatpush1.msra.mxu0 0.0
    %3393 = vmatprep.subr.mxu0 0.0
    %3394 = vmatpush1.msra.mxu0 0.0
    %3395 = vmatprep.subr.mxu0 0.0
    %3396 = vmatpush1.msra.mxu0 0.0
    %3397 = vmatprep.subr.mxu0 0.0
    %3398 = vmatpush1.msra.mxu0 0.0
    %3399 = vmatprep.subr.mxu0 0.0
    %3400 = vmatpush1.msra.mxu0 0.0
    %3401 = vmatprep.subr.mxu0 0.0
    %3402 = vmatpush1.msra.mxu0 0.0
    %3403 = vmatprep.subr.mxu0 0.0
    %3404 = vmatpush1.msra.mxu0 0.0
    %3405 = vmatprep.subr.mxu0 0.0
    %3406 = vmatpush1.msra.mxu0 0.0
    %3407 = vmatprep.subr.mxu0 0.0
    %3408 = vmatpush1.msra.mxu0 0.0
    %3409 = vmatprep.subr.mxu0 0.0
    %3410 = vmatpush1.msra.mxu0 0.0
    %3411 = vmatprep.subr.mxu0 0.0
    %3412 = vmatpush1.msra.mxu0 0.0
    %3413 = vmatprep.subr.mxu0 0.0
    %3414 = vmatpush1.msra.mxu0 0.0
    %3415 = vmatprep.subr.mxu0 0.0
    %3416 = vmatpush1.msra.mxu0 0.0
    %3417 = vmatprep.subr.mxu0 0.0
    %3418 = vmatpush1.msra.mxu0 0.0
    %3419 = vmatprep.mubr.f32.mxu0 0.0
    %3420 = vmatmul.mubr.f32.gmra.mrb[0].mxu0 %v3350
    %v3421 = vpop.f32.mrb[0].mxu0
    %v3422 = vadd.f32 %v3347, %v3421
    %v3423 = vpop.f32.mrb[0].mxu0
    %3424 = vmatprep.mubr.f32.mxu0 0.0
    %3425 = vmatmul.mubr.f32.gmra.mrb[0].mxu0 %v3353
    %v3426 = vpop.f32.mrb[0].mxu0
    %v3427 = vadd.f32 %v3347, %v3426
    %v3428 = vpop.f32.mrb[0].mxu0
    %3429 = vdwg.mxu0
    %v3432 = vcombine.high %v3422, %v3422
    %v3434 = vunpack.c.l.s4 1983009808
    %v3435 = vunpack.c.0.s8 %v3434
    %v3436 = vlaneseq
    %v3437 = vshrl.u32 %v3436, 7
    %v3438 = vsub.s32 %v3435, %v3437
    %v3439 = vrot.slane %v3422, %v3438
    %v3441 = vunpack.c.l.s4 1983009808
    %v3442 = vunpack.c.0.s8 %v3441
    %v3443 = vlaneseq
    %v3444 = vshrl.u32 %v3443, 7
    %v3445 = vsub.s32 %v3442, %v3444
    %v3446 = vrot.slane %v3432, %v3445
    %v3447 = vcombine.high %v3439, %v3439
    %v3448 = vcombine.high %v3446, %v3446
    %v3449 = vcombine.high %v3427, %v3427
    %v3451 = vunpack.c.l.s4 1983009808
    %v3452 = vunpack.c.0.s8 %v3451
    %v3453 = vlaneseq
    %v3454 = vshrl.u32 %v3453, 7
    %v3455 = vsub.s32 %v3452, %v3454
    %v3456 = vrot.slane %v3427, %v3455
    %v3458 = vunpack.c.l.s4 1983009808
    %v3459 = vunpack.c.0.s8 %v3458
    %v3460 = vlaneseq
    %v3461 = vshrl.u32 %v3460, 7
    %v3462 = vsub.s32 %v3459, %v3461
    %v3463 = vrot.slane %v3449, %v3462
    %v3464 = vcombine.high %v3456, %v3456
    %v3465 = vcombine.high %v3463, %v3463
    %v3475 = vlaneseq
    %v3476 = vshrl.u32 %v3475, 7
    %v3477 = vsub.s32 0, %v3476
    %v3478 = vrot.slane %v3340, %v3477
    %3480 = vmatprep.subr.mxu0 0.0
    %3481 = vmatpush1.msra.mxu0 %v3311
    %3482 = vmatprep.subr.mxu0 0.0
    %3483 = vmatpush1.msra.mxu0 %v3312
    %3484 = vmatprep.subr.mxu0 0.0
    %3485 = vmatpush1.msra.mxu0 %v3313
    %3486 = vmatprep.subr.mxu0 0.0
    %3487 = vmatpush1.msra.mxu0 %v3314
    %3488 = vmatprep.subr.mxu0 0.0
    %3489 = vmatpush1.msra.mxu0 0.0
    %3490 = vmatprep.subr.mxu0 0.0
    %3491 = vmatpush1.msra.mxu0 0.0
    %3492 = vmatprep.subr.mxu0 0.0
    %3493 = vmatpush1.msra.mxu0 0.0
    %3494 = vmatprep.subr.mxu0 0.0
    %3495 = vmatpush1.msra.mxu0 0.0
    %3496 = vmatprep.subr.mxu0 0.0
    %3497 = vmatpush1.msra.mxu0 0.0
    %3498 = vmatprep.subr.mxu0 0.0
    %3499 = vmatpush1.msra.mxu0 0.0
    %3500 = vmatprep.subr.mxu0 0.0
    %3501 = vmatpush1.msra.mxu0 0.0
    %3502 = vmatprep.subr.mxu0 0.0
    %3503 = vmatpush1.msra.mxu0 0.0
    %3504 = vmatprep.subr.mxu0 0.0
    %3505 = vmatpush1.msra.mxu0 0.0
    %3506 = vmatprep.subr.mxu0 0.0
    %3507 = vmatpush1.msra.mxu0 0.0
    %3508 = vmatprep.subr.mxu0 0.0
    %3509 = vmatpush1.msra.mxu0 0.0
    %3510 = vmatprep.subr.mxu0 0.0
    %3511 = vmatpush1.msra.mxu0 0.0
    %3512 = vmatprep.subr.mxu0 0.0
    %3513 = vmatpush1.msra.mxu0 0.0
    %3514 = vmatprep.subr.mxu0 0.0
    %3515 = vmatpush1.msra.mxu0 0.0
    %3516 = vmatprep.subr.mxu0 0.0
    %3517 = vmatpush1.msra.mxu0 0.0
    %3518 = vmatprep.subr.mxu0 0.0
    %3519 = vmatpush1.msra.mxu0 0.0
    %3520 = vmatprep.subr.mxu0 0.0
    %3521 = vmatpush1.msra.mxu0 0.0
    %3522 = vmatprep.subr.mxu0 0.0
    %3523 = vmatpush1.msra.mxu0 0.0
    %3524 = vmatprep.subr.mxu0 0.0
    %3525 = vmatpush1.msra.mxu0 0.0
    %3526 = vmatprep.subr.mxu0 0.0
    %3527 = vmatpush1.msra.mxu0 0.0
    %3528 = vmatprep.subr.mxu0 0.0
    %3529 = vmatpush1.msra.mxu0 0.0
    %3530 = vmatprep.subr.mxu0 0.0
    %3531 = vmatpush1.msra.mxu0 0.0
    %3532 = vmatprep.subr.mxu0 0.0
    %3533 = vmatpush1.msra.mxu0 0.0
    %3534 = vmatprep.subr.mxu0 0.0
    %3535 = vmatpush1.msra.mxu0 0.0
    %3536 = vmatprep.subr.mxu0 0.0
    %3537 = vmatpush1.msra.mxu0 0.0
    %3538 = vmatprep.subr.mxu0 0.0
    %3539 = vmatpush1.msra.mxu0 0.0
    %3540 = vmatprep.subr.mxu0 0.0
    %3541 = vmatpush1.msra.mxu0 0.0
    %3542 = vmatprep.subr.mxu0 0.0
    %3543 = vmatpush1.msra.mxu0 0.0
    %3544 = vmatprep.mubr.f32.mxu0 0.0
    %3545 = vmatmul.mubr.f32.gmra.mrb[0].mxu0 %v3350
    %v3546 = vpop.f32.mrb[0].mxu0
    %v3547 = vadd.f32 %v3478, %v3546
    %v3548 = vpop.f32.mrb[0].mxu0
    %3549 = vmatprep.mubr.f32.mxu0 0.0
    %3550 = vmatmul.mubr.f32.gmra.mrb[0].mxu0 %v3353
    %v3551 = vpop.f32.mrb[0].mxu0
    %v3552 = vadd.f32 %v3478, %v3551
    %v3553 = vpop.f32.mrb[0].mxu0
    %3554 = vdwg.mxu0
    %v3557 = vcombine.high %v3547, %v3547
    %v3559 = vunpack.c.l.s4 1983009808
    %v3560 = vunpack.c.0.s8 %v3559
    %v3561 = vlaneseq
    %v3562 = vshrl.u32 %v3561, 7
    %v3563 = vsub.s32 %v3560, %v3562
    %v3564 = vrot.slane %v3547, %v3563
    %v3566 = vunpack.c.l.s4 1983009808
    %v3567 = vunpack.c.0.s8 %v3566
    %v3568 = vlaneseq
    %v3569 = vshrl.u32 %v3568, 7
    %v3570 = vsub.s32 %v3567, %v3569
    %v3571 = vrot.slane %v3557, %v3570
    %v3572 = vcombine.high %v3564, %v3564
    %v3573 = vcombine.high %v3571, %v3571
    %v3574 = vcombine.high %v3552, %v3552
    %v3576 = vunpack.c.l.s4 1983009808
    %v3577 = vunpack.c.0.s8 %v3576
    %v3578 = vlaneseq
    %v3579 = vshrl.u32 %v3578, 7
    %v3580 = vsub.s32 %v3577, %v3579
    %v3581 = vrot.slane %v3552, %v3580
    %v3583 = vunpack.c.l.s4 1983009808
    %v3584 = vunpack.c.0.s8 %v3583
    %v3585 = vlaneseq
    %v3586 = vshrl.u32 %v3585, 7
    %v3587 = vsub.s32 %v3584, %v3586
    %v3588 = vrot.slane %v3574, %v3587
    %v3589 = vcombine.high %v3581, %v3581
    %v3590 = vcombine.high %v3588, %v3588
    %v3600 = vlaneseq
    %v3601 = vshrl.u32 %v3600, 7
    %v3602 = vsub.s32 0, %v3601
    %v3603 = vrot.slane %v3341, %v3602
    %3605 = vmatprep.subr.mxu0 0.0
    %3606 = vmatpush1.msra.mxu0 %v3315
    %3607 = vmatprep.subr.mxu0 0.0
    %3608 = vmatpush1.msra.mxu0 %v3316
    %3609 = vmatprep.subr.mxu0 0.0
    %3610 = vmatpush1.msra.mxu0 %v3317
    %3611 = vmatprep.subr.mxu0 0.0
    %3612 = vmatpush1.msra.mxu0 %v3318
    %3613 = vmatprep.subr.mxu0 0.0
    %3614 = vmatpush1.msra.mxu0 0.0
    %3615 = vmatprep.subr.mxu0 0.0
    %3616 = vmatpush1.msra.mxu0 0.0
    %3617 = vmatprep.subr.mxu0 0.0
    %3618 = vmatpush1.msra.mxu0 0.0
    %3619 = vmatprep.subr.mxu0 0.0
    %3620 = vmatpush1.msra.mxu0 0.0
    %3621 = vmatprep.subr.mxu0 0.0
    %3622 = vmatpush1.msra.mxu0 0.0
    %3623 = vmatprep.subr.mxu0 0.0
    %3624 = vmatpush1.msra.mxu0 0.0
    %3625 = vmatprep.subr.mxu0 0.0
    %3626 = vmatpush1.msra.mxu0 0.0
    %3627 = vmatprep.subr.mxu0 0.0
    %3628 = vmatpush1.msra.mxu0 0.0
    %3629 = vmatprep.subr.mxu0 0.0
    %3630 = vmatpush1.msra.mxu0 0.0
    %3631 = vmatprep.subr.mxu0 0.0
    %3632 = vmatpush1.msra.mxu0 0.0
    %3633 = vmatprep.subr.mxu0 0.0
    %3634 = vmatpush1.msra.mxu0 0.0
    %3635 = vmatprep.subr.mxu0 0.0
    %3636 = vmatpush1.msra.mxu0 0.0
    %3637 = vmatprep.subr.mxu0 0.0
    %3638 = vmatpush1.msra.mxu0 0.0
    %3639 = vmatprep.subr.mxu0 0.0
    %3640 = vmatpush1.msra.mxu0 0.0
    %3641 = vmatprep.subr.mxu0 0.0
    %3642 = vmatpush1.msra.mxu0 0.0
    %3643 = vmatprep.subr.mxu0 0.0
    %3644 = vmatpush1.msra.mxu0 0.0
    %3645 = vmatprep.subr.mxu0 0.0
    %3646 = vmatpush1.msra.mxu0 0.0
    %3647 = vmatprep.subr.mxu0 0.0
    %3648 = vmatpush1.msra.mxu0 0.0
    %3649 = vmatprep.subr.mxu0 0.0
    %3650 = vmatpush1.msra.mxu0 0.0
    %3651 = vmatprep.subr.mxu0 0.0
    %3652 = vmatpush1.msra.mxu0 0.0
    %3653 = vmatprep.subr.mxu0 0.0
    %3654 = vmatpush1.msra.mxu0 0.0
    %3655 = vmatprep.subr.mxu0 0.0
    %3656 = vmatpush1.msra.mxu0 0.0
    %3657 = vmatprep.subr.mxu0 0.0
    %3658 = vmatpush1.msra.mxu0 0.0
    %3659 = vmatprep.subr.mxu0 0.0
    %3660 = vmatpush1.msra.mxu0 0.0
    %3661 = vmatprep.subr.mxu0 0.0
    %3662 = vmatpush1.msra.mxu0 0.0
    %3663 = vmatprep.subr.mxu0 0.0
    %3664 = vmatpush1.msra.mxu0 0.0
    %3665 = vmatprep.subr.mxu0 0.0
    %3666 = vmatpush1.msra.mxu0 0.0
    %3667 = vmatprep.subr.mxu0 0.0
    %3668 = vmatpush1.msra.mxu0 0.0
    %3669 = vmatprep.mubr.f32.mxu0 0.0
    %3670 = vmatmul.mubr.f32.gmra.mrb[0].mxu0 %v3350
    %v3671 = vpop.f32.mrb[0].mxu0
    %v3672 = vadd.f32 %v3603, %v3671
    %v3673 = vpop.f32.mrb[0].mxu0
    %3674 = vmatprep.mubr.f32.mxu0 0.0
    %3675 = vmatmul.mubr.f32.gmra.mrb[0].mxu0 %v3353
    %v3676 = vpop.f32.mrb[0].mxu0
    %v3677 = vadd.f32 %v3603, %v3676
    %v3678 = vpop.f32.mrb[0].mxu0
    %3679 = vdwg.mxu0
    %v3682 = vcombine.high %v3672, %v3672
    %v3684 = vunpack.c.l.s4 1983009808
    %v3685 = vunpack.c.0.s8 %v3684
    %v3686 = vlaneseq
    %v3687 = vshrl.u32 %v3686, 7
    %v3688 = vsub.s32 %v3685, %v3687
    %v3689 = vrot.slane %v3672, %v3688
    %v3691 = vunpack.c.l.s4 1983009808
    %v3692 = vunpack.c.0.s8 %v3691
    %v3693 = vlaneseq
    %v3694 = vshrl.u32 %v3693, 7
    %v3695 = vsub.s32 %v3692, %v3694
    %v3696 = vrot.slane %v3682, %v3695
    %v3697 = vcombine.high %v3689, %v3689
    %v3698 = vcombine.high %v3696, %v3696
    %v3699 = vcombine.high %v3677, %v3677
    %v3701 = vunpack.c.l.s4 1983009808
    %v3702 = vunpack.c.0.s8 %v3701
    %v3703 = vlaneseq
    %v3704 = vshrl.u32 %v3703, 7
    %v3705 = vsub.s32 %v3702, %v3704
    %v3706 = vrot.slane %v3677, %v3705
    %v3708 = vunpack.c.l.s4 1983009808
    %v3709 = vunpack.c.0.s8 %v3708
    %v3710 = vlaneseq
    %v3711 = vshrl.u32 %v3710, 7
    %v3712 = vsub.s32 %v3709, %v3711
    %v3713 = vrot.slane %v3699, %v3712
    %v3714 = vcombine.high %v3706, %v3706
    %v3715 = vcombine.high %v3713, %v3713
    %v3725 = vlaneseq
    %v3726 = vshrl.u32 %v3725, 7
    %v3727 = vsub.s32 0, %v3726
    %v3728 = vrot.slane %v3342, %v3727
    %3730 = vmatprep.subr.mxu0 0.0
    %3731 = vmatpush1.msra.mxu0 %v3319
    %3732 = vmatprep.subr.mxu0 0.0
    %3733 = vmatpush1.msra.mxu0 %v3320
    %3734 = vmatprep.subr.mxu0 0.0
    %3735 = vmatpush1.msra.mxu0 %v3321
    %3736 = vmatprep.subr.mxu0 0.0
    %3737 = vmatpush1.msra.mxu0 %v3322
    %3738 = vmatprep.subr.mxu0 0.0
    %3739 = vmatpush1.msra.mxu0 0.0
    %3740 = vmatprep.subr.mxu0 0.0
    %3741 = vmatpush1.msra.mxu0 0.0
    %3742 = vmatprep.subr.mxu0 0.0
    %3743 = vmatpush1.msra.mxu0 0.0
    %3744 = vmatprep.subr.mxu0 0.0
    %3745 = vmatpush1.msra.mxu0 0.0
    %3746 = vmatprep.subr.mxu0 0.0
    %3747 = vmatpush1.msra.mxu0 0.0
    %3748 = vmatprep.subr.mxu0 0.0
    %3749 = vmatpush1.msra.mxu0 0.0
    %3750 = vmatprep.subr.mxu0 0.0
    %3751 = vmatpush1.msra.mxu0 0.0
    %3752 = vmatprep.subr.mxu0 0.0
    %3753 = vmatpush1.msra.mxu0 0.0
    %3754 = vmatprep.subr.mxu0 0.0
    %3755 = vmatpush1.msra.mxu0 0.0
    %3756 = vmatprep.subr.mxu0 0.0
    %3757 = vmatpush1.msra.mxu0 0.0
    %3758 = vmatprep.subr.mxu0 0.0
    %3759 = vmatpush1.msra.mxu0 0.0
    %3760 = vmatprep.subr.mxu0 0.0
    %3761 = vmatpush1.msra.mxu0 0.0
    %3762 = vmatprep.subr.mxu0 0.0
    %3763 = vmatpush1.msra.mxu0 0.0
    %3764 = vmatprep.subr.mxu0 0.0
    %3765 = vmatpush1.msra.mxu0 0.0
    %3766 = vmatprep.subr.mxu0 0.0
    %3767 = vmatpush1.msra.mxu0 0.0
    %3768 = vmatprep.subr.mxu0 0.0
    %3769 = vmatpush1.msra.mxu0 0.0
    %3770 = vmatprep.subr.mxu0 0.0
    %3771 = vmatpush1.msra.mxu0 0.0
    %3772 = vmatprep.subr.mxu0 0.0
    %3773 = vmatpush1.msra.mxu0 0.0
    %3774 = vmatprep.subr.mxu0 0.0
    %3775 = vmatpush1.msra.mxu0 0.0
    %3776 = vmatprep.subr.mxu0 0.0
    %3777 = vmatpush1.msra.mxu0 0.0
    %3778 = vmatprep.subr.mxu0 0.0
    %3779 = vmatpush1.msra.mxu0 0.0
    %3780 = vmatprep.subr.mxu0 0.0
    %3781 = vmatpush1.msra.mxu0 0.0
    %3782 = vmatprep.subr.mxu0 0.0
    %3783 = vmatpush1.msra.mxu0 0.0
    %3784 = vmatprep.subr.mxu0 0.0
    %3785 = vmatpush1.msra.mxu0 0.0
    %3786 = vmatprep.subr.mxu0 0.0
    %3787 = vmatpush1.msra.mxu0 0.0
    %3788 = vmatprep.subr.mxu0 0.0
    %3789 = vmatpush1.msra.mxu0 0.0
    %3790 = vmatprep.subr.mxu0 0.0
    %3791 = vmatpush1.msra.mxu0 0.0
    %3792 = vmatprep.subr.mxu0 0.0
    %3793 = vmatpush1.msra.mxu0 0.0
    %3794 = vmatprep.mubr.f32.mxu0 0.0
    %3795 = vmatmul.mubr.f32.gmra.mrb[0].mxu0 %v3350
    %v3796 = vpop.f32.mrb[0].mxu0
    %v3797 = vadd.f32 %v3728, %v3796
    %v3798 = vpop.f32.mrb[0].mxu0
    %3799 = vmatprep.mubr.f32.mxu0 0.0
    %3800 = vmatmul.mubr.f32.gmra.mrb[0].mxu0 %v3353
    %v3801 = vpop.f32.mrb[0].mxu0
    %v3802 = vadd.f32 %v3728, %v3801
    %v3803 = vpop.f32.mrb[0].mxu0
    %3804 = vdwg.mxu0
    %v3807 = vcombine.high %v3797, %v3797
    %v3809 = vunpack.c.l.s4 1983009808
    %v3810 = vunpack.c.0.s8 %v3809
    %v3811 = vlaneseq
    %v3812 = vshrl.u32 %v3811, 7
    %v3813 = vsub.s32 %v3810, %v3812
    %v3814 = vrot.slane %v3797, %v3813
    %v3816 = vunpack.c.l.s4 1983009808
    %v3817 = vunpack.c.0.s8 %v3816
    %v3818 = vlaneseq
    %v3819 = vshrl.u32 %v3818, 7
    %v3820 = vsub.s32 %v3817, %v3819
    %v3821 = vrot.slane %v3807, %v3820
    %v3822 = vcombine.high %v3814, %v3814
    %v3823 = vcombine.high %v3821, %v3821
    %v3824 = vcombine.high %v3802, %v3802
    %v3826 = vunpack.c.l.s4 1983009808
    %v3827 = vunpack.c.0.s8 %v3826
    %v3828 = vlaneseq
    %v3829 = vshrl.u32 %v3828, 7
    %v3830 = vsub.s32 %v3827, %v3829
    %v3831 = vrot.slane %v3802, %v3830
    %v3833 = vunpack.c.l.s4 1983009808
    %v3834 = vunpack.c.0.s8 %v3833
    %v3835 = vlaneseq
    %v3836 = vshrl.u32 %v3835, 7
    %v3837 = vsub.s32 %v3834, %v3836
    %v3838 = vrot.slane %v3824, %v3837
    %v3839 = vcombine.high %v3831, %v3831
    %v3840 = vcombine.high %v3838, %v3838
    %3849 = vmatprep.subr.mxu0 0.0
    %3850 = vmatpush1.msra.mxu0 %v3323
    %3851 = vmatprep.subr.mxu0 0.0
    %3852 = vmatpush1.msra.mxu0 %v3324
    %3853 = vmatprep.subr.mxu0 0.0
    %3854 = vmatpush1.msra.mxu0 %v3325
    %3855 = vmatprep.subr.mxu0 0.0
    %3856 = vmatpush1.msra.mxu0 %v3326
    %3857 = vmatprep.subr.mxu0 0.0
    %3858 = vmatpush1.msra.mxu0 0.0
    %3859 = vmatprep.subr.mxu0 0.0
    %3860 = vmatpush1.msra.mxu0 0.0
    %3861 = vmatprep.subr.mxu0 0.0
    %3862 = vmatpush1.msra.mxu0 0.0
    %3863 = vmatprep.subr.mxu0 0.0
    %3864 = vmatpush1.msra.mxu0 0.0
    %3865 = vmatprep.subr.mxu0 0.0
    %3866 = vmatpush1.msra.mxu0 0.0
    %3867 = vmatprep.subr.mxu0 0.0
    %3868 = vmatpush1.msra.mxu0 0.0
    %3869 = vmatprep.subr.mxu0 0.0
    %3870 = vmatpush1.msra.mxu0 0.0
    %3871 = vmatprep.subr.mxu0 0.0
    %3872 = vmatpush1.msra.mxu0 0.0
    %3873 = vmatprep.subr.mxu0 0.0
    %3874 = vmatpush1.msra.mxu0 0.0
    %3875 = vmatprep.subr.mxu0 0.0
    %3876 = vmatpush1.msra.mxu0 0.0
    %3877 = vmatprep.subr.mxu0 0.0
    %3878 = vmatpush1.msra.mxu0 0.0
    %3879 = vmatprep.subr.mxu0 0.0
    %3880 = vmatpush1.msra.mxu0 0.0
    %3881 = vmatprep.subr.mxu0 0.0
    %3882 = vmatpush1.msra.mxu0 0.0
    %3883 = vmatprep.subr.mxu0 0.0
    %3884 = vmatpush1.msra.mxu0 0.0
    %3885 = vmatprep.subr.mxu0 0.0
    %3886 = vmatpush1.msra.mxu0 0.0
    %3887 = vmatprep.subr.mxu0 0.0
    %3888 = vmatpush1.msra.mxu0 0.0
    %3889 = vmatprep.subr.mxu0 0.0
    %3890 = vmatpush1.msra.mxu0 0.0
    %3891 = vmatprep.subr.mxu0 0.0
    %3892 = vmatpush1.msra.mxu0 0.0
    %3893 = vmatprep.subr.mxu0 0.0
    %3894 = vmatpush1.msra.mxu0 0.0
    %3895 = vmatprep.subr.mxu0 0.0
    %3896 = vmatpush1.msra.mxu0 0.0
    %3897 = vmatprep.subr.mxu0 0.0
    %3898 = vmatpush1.msra.mxu0 0.0
    %3899 = vmatprep.subr.mxu0 0.0
    %3900 = vmatpush1.msra.mxu0 0.0
    %3901 = vmatprep.subr.mxu0 0.0
    %3902 = vmatpush1.msra.mxu0 0.0
    %3903 = vmatprep.subr.mxu0 0.0
    %3904 = vmatpush1.msra.mxu0 0.0
    %3905 = vmatprep.subr.mxu0 0.0
    %3906 = vmatpush1.msra.mxu0 0.0
    %3907 = vmatprep.subr.mxu0 0.0
    %3908 = vmatpush1.msra.mxu0 0.0
    %3909 = vmatprep.subr.mxu0 0.0
    %3910 = vmatpush1.msra.mxu0 0.0
    %3911 = vmatprep.subr.mxu0 0.0
    %3912 = vmatpush1.msra.mxu0 0.0
    %3913 = vmatprep.mubr.f32.mxu0 0.0
    %3914 = vmatmul.mubr.f32.gmra.mrb[0].mxu0 %v755
    %v3915 = vpop.f32.mrb[0].mxu0
    %v3916 = vadd.f32 0.0, %v3915
    %v3917 = vpop.f32.mrb[0].mxu0
    %3918 = vdwg.mxu0
    %v3919 = vadd.f32 %v3439, %v3916
    %v3920 = vxor.u32 %v3919, 2147483648
    %v3921 = vmul.f32 %v3920, 1.442695
    %v3922 = vpow.pop %v3921
    %v3923 = vadd.f32 %v3922, 1.0
    %v3924 = vrcp.pop %v3923
    %v3925 = vmul.f32 1.0, %v3924
    %3926 = vmatprep.subr.mxu0 0.0
    %3927 = vmatpush1.msra.mxu0 %v3327
    %3928 = vmatprep.subr.mxu0 0.0
    %3929 = vmatpush1.msra.mxu0 %v3328
    %3930 = vmatprep.subr.mxu0 0.0
    %3931 = vmatpush1.msra.mxu0 %v3329
    %3932 = vmatprep.subr.mxu0 0.0
    %3933 = vmatpush1.msra.mxu0 %v3330
    %3934 = vmatprep.subr.mxu0 0.0
    %3935 = vmatpush1.msra.mxu0 0.0
    %3936 = vmatprep.subr.mxu0 0.0
    %3937 = vmatpush1.msra.mxu0 0.0
    %3938 = vmatprep.subr.mxu0 0.0
    %3939 = vmatpush1.msra.mxu0 0.0
    %3940 = vmatprep.subr.mxu0 0.0
    %3941 = vmatpush1.msra.mxu0 0.0
    %3942 = vmatprep.subr.mxu0 0.0
    %3943 = vmatpush1.msra.mxu0 0.0
    %3944 = vmatprep.subr.mxu0 0.0
    %3945 = vmatpush1.msra.mxu0 0.0
    %3946 = vmatprep.subr.mxu0 0.0
    %3947 = vmatpush1.msra.mxu0 0.0
    %3948 = vmatprep.subr.mxu0 0.0
    %3949 = vmatpush1.msra.mxu0 0.0
    %3950 = vmatprep.subr.mxu0 0.0
    %3951 = vmatpush1.msra.mxu0 0.0
    %3952 = vmatprep.subr.mxu0 0.0
    %3953 = vmatpush1.msra.mxu0 0.0
    %3954 = vmatprep.subr.mxu0 0.0
    %3955 = vmatpush1.msra.mxu0 0.0
    %3956 = vmatprep.subr.mxu0 0.0
    %3957 = vmatpush1.msra.mxu0 0.0
    %3958 = vmatprep.subr.mxu0 0.0
    %3959 = vmatpush1.msra.mxu0 0.0
    %3960 = vmatprep.subr.mxu0 0.0
    %3961 = vmatpush1.msra.mxu0 0.0
    %3962 = vmatprep.subr.mxu0 0.0
    %3963 = vmatpush1.msra.mxu0 0.0
    %3964 = vmatprep.subr.mxu0 0.0
    %3965 = vmatpush1.msra.mxu0 0.0
    %3966 = vmatprep.subr.mxu0 0.0
    %3967 = vmatpush1.msra.mxu0 0.0
    %3968 = vmatprep.subr.mxu0 0.0
    %3969 = vmatpush1.msra.mxu0 0.0
    %3970 = vmatprep.subr.mxu0 0.0
    %3971 = vmatpush1.msra.mxu0 0.0
    %3972 = vmatprep.subr.mxu0 0.0
    %3973 = vmatpush1.msra.mxu0 0.0
    %3974 = vmatprep.subr.mxu0 0.0
    %3975 = vmatpush1.msra.mxu0 0.0
    %3976 = vmatprep.subr.mxu0 0.0
    %3977 = vmatpush1.msra.mxu0 0.0
    %3978 = vmatprep.subr.mxu0 0.0
    %3979 = vmatpush1.msra.mxu0 0.0
    %3980 = vmatprep.subr.mxu0 0.0
    %3981 = vmatpush1.msra.mxu0 0.0
    %3982 = vmatprep.subr.mxu0 0.0
    %3983 = vmatpush1.msra.mxu0 0.0
    %3984 = vmatprep.subr.mxu0 0.0
    %3985 = vmatpush1.msra.mxu0 0.0
    %3986 = vmatprep.subr.mxu0 0.0
    %3987 = vmatpush1.msra.mxu0 0.0
    %3988 = vmatprep.subr.mxu0 0.0
    %3989 = vmatpush1.msra.mxu0 0.0
    %3990 = vmatprep.mubr.f32.mxu0 0.0
    %3991 = vmatmul.mubr.f32.gmra.mrb[0].mxu0 %v755
    %v3992 = vpop.f32.mrb[0].mxu0
    %v3993 = vadd.f32 0.0, %v3992
    %v3994 = vpop.f32.mrb[0].mxu0
    %3995 = vdwg.mxu0
    %v3996 = vadd.f32 %v3564, %v3993
    %v3997 = vxor.u32 %v3996, 2147483648
    %v3998 = vmul.f32 %v3997, 1.442695
    %v3999 = vpow.pop %v3998
    %v4000 = vadd.f32 %v3999, 1.0
    %v4001 = vrcp.pop %v4000
    %v4002 = vmul.f32 1.0, %v4001
    %4003 = vmatprep.subr.mxu0 0.0
    %4004 = vmatpush1.msra.mxu0 %v3331
    %4005 = vmatprep.subr.mxu0 0.0
    %4006 = vmatpush1.msra.mxu0 %v3332
    %4007 = vmatprep.subr.mxu0 0.0
    %4008 = vmatpush1.msra.mxu0 %v3333
    %4009 = vmatprep.subr.mxu0 0.0
    %4010 = vmatpush1.msra.mxu0 %v3334
    %4011 = vmatprep.subr.mxu0 0.0
    %4012 = vmatpush1.msra.mxu0 0.0
    %4013 = vmatprep.subr.mxu0 0.0
    %4014 = vmatpush1.msra.mxu0 0.0
    %4015 = vmatprep.subr.mxu0 0.0
    %4016 = vmatpush1.msra.mxu0 0.0
    %4017 = vmatprep.subr.mxu0 0.0
    %4018 = vmatpush1.msra.mxu0 0.0
    %4019 = vmatprep.subr.mxu0 0.0
    %4020 = vmatpush1.msra.mxu0 0.0
    %4021 = vmatprep.subr.mxu0 0.0
    %4022 = vmatpush1.msra.mxu0 0.0
    %4023 = vmatprep.subr.mxu0 0.0
    %4024 = vmatpush1.msra.mxu0 0.0
    %4025 = vmatprep.subr.mxu0 0.0
    %4026 = vmatpush1.msra.mxu0 0.0
    %4027 = vmatprep.subr.mxu0 0.0
    %4028 = vmatpush1.msra.mxu0 0.0
    %4029 = vmatprep.subr.mxu0 0.0
    %4030 = vmatpush1.msra.mxu0 0.0
    %4031 = vmatprep.subr.mxu0 0.0
    %4032 = vmatpush1.msra.mxu0 0.0
    %4033 = vmatprep.subr.mxu0 0.0
    %4034 = vmatpush1.msra.mxu0 0.0
    %4035 = vmatprep.subr.mxu0 0.0
    %4036 = vmatpush1.msra.mxu0 0.0
    %4037 = vmatprep.subr.mxu0 0.0
    %4038 = vmatpush1.msra.mxu0 0.0
    %4039 = vmatprep.subr.mxu0 0.0
    %4040 = vmatpush1.msra.mxu0 0.0
    %4041 = vmatprep.subr.mxu0 0.0
    %4042 = vmatpush1.msra.mxu0 0.0
    %4043 = vmatprep.subr.mxu0 0.0
    %4044 = vmatpush1.msra.mxu0 0.0
    %4045 = vmatprep.subr.mxu0 0.0
    %4046 = vmatpush1.msra.mxu0 0.0
    %4047 = vmatprep.subr.mxu0 0.0
    %4048 = vmatpush1.msra.mxu0 0.0
    %4049 = vmatprep.subr.mxu0 0.0
    %4050 = vmatpush1.msra.mxu0 0.0
    %4051 = vmatprep.subr.mxu0 0.0
    %4052 = vmatpush1.msra.mxu0 0.0
    %4053 = vmatprep.subr.mxu0 0.0
    %4054 = vmatpush1.msra.mxu0 0.0
    %4055 = vmatprep.subr.mxu0 0.0
    %4056 = vmatpush1.msra.mxu0 0.0
    %4057 = vmatprep.subr.mxu0 0.0
    %4058 = vmatpush1.msra.mxu0 0.0
    %4059 = vmatprep.subr.mxu0 0.0
    %4060 = vmatpush1.msra.mxu0 0.0
    %4061 = vmatprep.subr.mxu0 0.0
    %4062 = vmatpush1.msra.mxu0 0.0
    %4063 = vmatprep.subr.mxu0 0.0
    %4064 = vmatpush1.msra.mxu0 0.0
    %4065 = vmatprep.subr.mxu0 0.0
    %4066 = vmatpush1.msra.mxu0 0.0
    %4067 = vmatprep.mubr.f32.mxu0 0.0
    %4068 = vmatmul.mubr.f32.gmra.mrb[0].mxu0 %v755
    %v4069 = vpop.f32.mrb[0].mxu0
    %v4070 = vadd.f32 0.0, %v4069
    %v4071 = vpop.f32.mrb[0].mxu0
    %4072 = vdwg.mxu0
    %v4073 = vadd.f32 %v3689, %v4070
    %v4074 = vtanh.pop %v4073
    %4075 = vmatprep.subr.mxu0 0.0
    %4076 = vmatpush1.msra.mxu0 %v3335
    %4077 = vmatprep.subr.mxu0 0.0
    %4078 = vmatpush1.msra.mxu0 %v3336
    %4079 = vmatprep.subr.mxu0 0.0
    %4080 = vmatpush1.msra.mxu0 %v3337
    %4081 = vmatprep.subr.mxu0 0.0
    %4082 = vmatpush1.msra.mxu0 %v3338
    %4083 = vmatprep.subr.mxu0 0.0
    %4084 = vmatpush1.msra.mxu0 0.0
    %4085 = vmatprep.subr.mxu0 0.0
    %4086 = vmatpush1.msra.mxu0 0.0
    %4087 = vmatprep.subr.mxu0 0.0
    %4088 = vmatpush1.msra.mxu0 0.0
    %4089 = vmatprep.subr.mxu0 0.0
    %4090 = vmatpush1.msra.mxu0 0.0
    %4091 = vmatprep.subr.mxu0 0.0
    %4092 = vmatpush1.msra.mxu0 0.0
    %4093 = vmatprep.subr.mxu0 0.0
    %4094 = vmatpush1.msra.mxu0 0.0
    %4095 = vmatprep.subr.mxu0 0.0
    %4096 = vmatpush1.msra.mxu0 0.0
    %4097 = vmatprep.subr.mxu0 0.0
    %4098 = vmatpush1.msra.mxu0 0.0
    %4099 = vmatprep.subr.mxu0 0.0
    %4100 = vmatpush1.msra.mxu0 0.0
    %4101 = vmatprep.subr.mxu0 0.0
    %4102 = vmatpush1.msra.mxu0 0.0
    %4103 = vmatprep.subr.mxu0 0.0
    %4104 = vmatpush1.msra.mxu0 0.0
    %4105 = vmatprep.subr.mxu0 0.0
    %4106 = vmatpush1.msra.mxu0 0.0
    %4107 = vmatprep.subr.mxu0 0.0
    %4108 = vmatpush1.msra.mxu0 0.0
    %4109 = vmatprep.subr.mxu0 0.0
    %4110 = vmatpush1.msra.mxu0 0.0
    %4111 = vmatprep.subr.mxu0 0.0
    %4112 = vmatpush1.msra.mxu0 0.0
    %4113 = vmatprep.subr.mxu0 0.0
    %4114 = vmatpush1.msra.mxu0 0.0
    %4115 = vmatprep.subr.mxu0 0.0
    %4116 = vmatpush1.msra.mxu0 0.0
    %4117 = vmatprep.subr.mxu0 0.0
    %4118 = vmatpush1.msra.mxu0 0.0
    %4119 = vmatprep.subr.mxu0 0.0
    %4120 = vmatpush1.msra.mxu0 0.0
    %4121 = vmatprep.subr.mxu0 0.0
    %4122 = vmatpush1.msra.mxu0 0.0
    %4123 = vmatprep.subr.mxu0 0.0
    %4124 = vmatpush1.msra.mxu0 0.0
    %4125 = vmatprep.subr.mxu0 0.0
    %4126 = vmatpush1.msra.mxu0 0.0
    %4127 = vmatprep.subr.mxu0 0.0
    %4128 = vmatpush1.msra.mxu0 0.0
    %4129 = vmatprep.subr.mxu0 0.0
    %4130 = vmatpush1.msra.mxu0 0.0
    %4131 = vmatprep.subr.mxu0 0.0
    %4132 = vmatpush1.msra.mxu0 0.0
    %4133 = vmatprep.subr.mxu0 0.0
    %4134 = vmatpush1.msra.mxu0 0.0
    %4135 = vmatprep.subr.mxu0 0.0
    %4136 = vmatpush1.msra.mxu0 0.0
    %4137 = vmatprep.subr.mxu0 0.0
    %4138 = vmatpush1.msra.mxu0 0.0
    %4139 = vmatprep.mubr.f32.mxu0 0.0
    %4140 = vmatmul.mubr.f32.gmra.mrb[0].mxu0 %v755
    %v4141 = vpop.f32.mrb[0].mxu0
    %v4142 = vadd.f32 0.0, %v4141
    %v4143 = vpop.f32.mrb[0].mxu0
    %4144 = vdwg.mxu0
    %v4145 = vadd.f32 %v3814, %v4142
    %v4146 = vxor.u32 %v4145, 2147483648
    %v4147 = vmul.f32 %v4146, 1.442695
    %v4148 = vpow.pop %v4147
    %v4149 = vadd.f32 %v4148, 1.0
    %v4150 = vrcp.pop %v4149
    %v4151 = vmul.f32 1.0, %v4150
    %v4152 = vmul.f32 %v4002, 0.0
    %v4153 = vmul.f32 %v3925, %v4074
    %v4154 = vadd.f32 %v4152, %v4153
    %v4155 = vtanh.pop %v4154
    %v4156 = vmul.f32 %v4151, %v4155
    %v4158 = vsel %vm753, %v4156, 0
    %4160 = vmatprep.subr.mxu0 0.0
    %4161 = vmatpush1.msra.mxu0 %v3323
    %4162 = vmatprep.subr.mxu0 0.0
    %4163 = vmatpush1.msra.mxu0 %v3324
    %4164 = vmatprep.subr.mxu0 0.0
    %4165 = vmatpush1.msra.mxu0 %v3325
    %4166 = vmatprep.subr.mxu0 0.0
    %4167 = vmatpush1.msra.mxu0 %v3326
    %4168 = vmatprep.subr.mxu0 0.0
    %4169 = vmatpush1.msra.mxu0 0.0
    %4170 = vmatprep.subr.mxu0 0.0
    %4171 = vmatpush1.msra.mxu0 0.0
    %4172 = vmatprep.subr.mxu0 0.0
    %4173 = vmatpush1.msra.mxu0 0.0
    %4174 = vmatprep.subr.mxu0 0.0
    %4175 = vmatpush1.msra.mxu0 0.0
    %4176 = vmatprep.subr.mxu0 0.0
    %4177 = vmatpush1.msra.mxu0 0.0
    %4178 = vmatprep.subr.mxu0 0.0
    %4179 = vmatpush1.msra.mxu0 0.0
    %4180 = vmatprep.subr.mxu0 0.0
    %4181 = vmatpush1.msra.mxu0 0.0
    %4182 = vmatprep.subr.mxu0 0.0
    %4183 = vmatpush1.msra.mxu0 0.0
    %4184 = vmatprep.subr.mxu0 0.0
    %4185 = vmatpush1.msra.mxu0 0.0
    %4186 = vmatprep.subr.mxu0 0.0
    %4187 = vmatpush1.msra.mxu0 0.0
    %4188 = vmatprep.subr.mxu0 0.0
    %4189 = vmatpush1.msra.mxu0 0.0
    %4190 = vmatprep.subr.mxu0 0.0
    %4191 = vmatpush1.msra.mxu0 0.0
    %4192 = vmatprep.subr.mxu0 0.0
    %4193 = vmatpush1.msra.mxu0 0.0
    %4194 = vmatprep.subr.mxu0 0.0
    %4195 = vmatpush1.msra.mxu0 0.0
    %4196 = vmatprep.subr.mxu0 0.0
    %4197 = vmatpush1.msra.mxu0 0.0
    %4198 = vmatprep.subr.mxu0 0.0
    %4199 = vmatpush1.msra.mxu0 0.0
    %4200 = vmatprep.subr.mxu0 0.0
    %4201 = vmatpush1.msra.mxu0 0.0
    %4202 = vmatprep.subr.mxu0 0.0
    %4203 = vmatpush1.msra.mxu0 0.0
    %4204 = vmatprep.subr.mxu0 0.0
    %4205 = vmatpush1.msra.mxu0 0.0
    %4206 = vmatprep.subr.mxu0 0.0
    %4207 = vmatpush1.msra.mxu0 0.0
    %4208 = vmatprep.subr.mxu0 0.0
    %4209 = vmatpush1.msra.mxu0 0.0
    %4210 = vmatprep.subr.mxu0 0.0
    %4211 = vmatpush1.msra.mxu0 0.0
    %4212 = vmatprep.subr.mxu0 0.0
    %4213 = vmatpush1.msra.mxu0 0.0
    %4214 = vmatprep.subr.mxu0 0.0
    %4215 = vmatpush1.msra.mxu0 0.0
    %4216 = vmatprep.subr.mxu0 0.0
    %4217 = vmatpush1.msra.mxu0 0.0
    %4218 = vmatprep.subr.mxu0 0.0
    %4219 = vmatpush1.msra.mxu0 0.0
    %4220 = vmatprep.subr.mxu0 0.0
    %4221 = vmatpush1.msra.mxu0 0.0
    %4222 = vmatprep.subr.mxu0 0.0
    %4223 = vmatpush1.msra.mxu0 0.0
    %4224 = vmatprep.mubr.f32.mxu0 0.0
    %4225 = vmatmul.mubr.f32.gmra.mrb[0].mxu0 %v4158
    %v4226 = vpop.f32.mrb[0].mxu0
    %v4227 = vadd.f32 0.0, %v4226
    %v4228 = vpop.f32.mrb[0].mxu0
    %4229 = vdwg.mxu0
    %v4230 = vadd.f32 %v3447, %v4227
    %v4231 = vxor.u32 %v4230, 2147483648
    %v4232 = vmul.f32 %v4231, 1.442695
    %v4233 = vpow.pop %v4232
    %v4234 = vadd.f32 %v4233, 1.0
    %v4235 = vrcp.pop %v4234
    %v4236 = vmul.f32 1.0, %v4235
    %4237 = vmatprep.subr.mxu0 0.0
    %4238 = vmatpush1.msra.mxu0 %v3327
    %4239 = vmatprep.subr.mxu0 0.0
    %4240 = vmatpush1.msra.mxu0 %v3328
    %4241 = vmatprep.subr.mxu0 0.0
    %4242 = vmatpush1.msra.mxu0 %v3329
    %4243 = vmatprep.subr.mxu0 0.0
    %4244 = vmatpush1.msra.mxu0 %v3330
    %4245 = vmatprep.subr.mxu0 0.0
    %4246 = vmatpush1.msra.mxu0 0.0
    %4247 = vmatprep.subr.mxu0 0.0
    %4248 = vmatpush1.msra.mxu0 0.0
    %4249 = vmatprep.subr.mxu0 0.0
    %4250 = vmatpush1.msra.mxu0 0.0
    %4251 = vmatprep.subr.mxu0 0.0
    %4252 = vmatpush1.msra.mxu0 0.0
    %4253 = vmatprep.subr.mxu0 0.0
    %4254 = vmatpush1.msra.mxu0 0.0
    %4255 = vmatprep.subr.mxu0 0.0
    %4256 = vmatpush1.msra.mxu0 0.0
    %4257 = vmatprep.subr.mxu0 0.0
    %4258 = vmatpush1.msra.mxu0 0.0
    %4259 = vmatprep.subr.mxu0 0.0
    %4260 = vmatpush1.msra.mxu0 0.0
    %4261 = vmatprep.subr.mxu0 0.0
    %4262 = vmatpush1.msra.mxu0 0.0
    %4263 = vmatprep.subr.mxu0 0.0
    %4264 = vmatpush1.msra.mxu0 0.0
    %4265 = vmatprep.subr.mxu0 0.0
    %4266 = vmatpush1.msra.mxu0 0.0
    %4267 = vmatprep.subr.mxu0 0.0
    %4268 = vmatpush1.msra.mxu0 0.0
    %4269 = vmatprep.subr.mxu0 0.0
    %4270 = vmatpush1.msra.mxu0 0.0
    %4271 = vmatprep.subr.mxu0 0.0
    %4272 = vmatpush1.msra.mxu0 0.0
    %4273 = vmatprep.subr.mxu0 0.0
    %4274 = vmatpush1.msra.mxu0 0.0
    %4275 = vmatprep.subr.mxu0 0.0
    %4276 = vmatpush1.msra.mxu0 0.0
    %4277 = vmatprep.subr.mxu0 0.0
    %4278 = vmatpush1.msra.mxu0 0.0
    %4279 = vmatprep.subr.mxu0 0.0
    %4280 = vmatpush1.msra.mxu0 0.0
    %4281 = vmatprep.subr.mxu0 0.0
    %4282 = vmatpush1.msra.mxu0 0.0
    %4283 = vmatprep.subr.mxu0 0.0
    %4284 = vmatpush1.msra.mxu0 0.0
    %4285 = vmatprep.subr.mxu0 0.0
    %4286 = vmatpush1.msra.mxu0 0.0
    %4287 = vmatprep.subr.mxu0 0.0
    %4288 = vmatpush1.msra.mxu0 0.0
    %4289 = vmatprep.subr.mxu0 0.0
    %4290 = vmatpush1.msra.mxu0 0.0
    %4291 = vmatprep.subr.mxu0 0.0
    %4292 = vmatpush1.msra.mxu0 0.0
    %4293 = vmatprep.subr.mxu0 0.0
    %4294 = vmatpush1.msra.mxu0 0.0
    %4295 = vmatprep.subr.mxu0 0.0
    %4296 = vmatpush1.msra.mxu0 0.0
    %4297 = vmatprep.subr.mxu0 0.0
    %4298 = vmatpush1.msra.mxu0 0.0
    %4299 = vmatprep.subr.mxu0 0.0
    %4300 = vmatpush1.msra.mxu0 0.0
    %4301 = vmatprep.mubr.f32.mxu0 0.0
    %4302 = vmatmul.mubr.f32.gmra.mrb[0].mxu0 %v4158
    %v4303 = vpop.f32.mrb[0].mxu0
    %v4304 = vadd.f32 0.0, %v4303
    %v4305 = vpop.f32.mrb[0].mxu0
    %4306 = vdwg.mxu0
    %v4307 = vadd.f32 %v3572, %v4304
    %v4308 = vxor.u32 %v4307, 2147483648
    %v4309 = vmul.f32 %v4308, 1.442695
    %v4310 = vpow.pop %v4309
    %v4311 = vadd.f32 %v4310, 1.0
    %v4312 = vrcp.pop %v4311
    %v4313 = vmul.f32 1.0, %v4312
    %4314 = vmatprep.subr.mxu0 0.0
    %4315 = vmatpush1.msra.mxu0 %v3331
    %4316 = vmatprep.subr.mxu0 0.0
    %4317 = vmatpush1.msra.mxu0 %v3332
    %4318 = vmatprep.subr.mxu0 0.0
    %4319 = vmatpush1.msra.mxu0 %v3333
    %4320 = vmatprep.subr.mxu0 0.0
    %4321 = vmatpush1.msra.mxu0 %v3334
    %4322 = vmatprep.subr.mxu0 0.0
    %4323 = vmatpush1.msra.mxu0 0.0
    %4324 = vmatprep.subr.mxu0 0.0
    %4325 = vmatpush1.msra.mxu0 0.0
    %4326 = vmatprep.subr.mxu0 0.0
    %4327 = vmatpush1.msra.mxu0 0.0
    %4328 = vmatprep.subr.mxu0 0.0
    %4329 = vmatpush1.msra.mxu0 0.0
    %4330 = vmatprep.subr.mxu0 0.0
    %4331 = vmatpush1.msra.mxu0 0.0
    %4332 = vmatprep.subr.mxu0 0.0
    %4333 = vmatpush1.msra.mxu0 0.0
    %4334 = vmatprep.subr.mxu0 0.0
    %4335 = vmatpush1.msra.mxu0 0.0
    %4336 = vmatprep.subr.mxu0 0.0
    %4337 = vmatpush1.msra.mxu0 0.0
    %4338 = vmatprep.subr.mxu0 0.0
    %4339 = vmatpush1.msra.mxu0 0.0
    %4340 = vmatprep.subr.mxu0 0.0
    %4341 = vmatpush1.msra.mxu0 0.0
    %4342 = vmatprep.subr.mxu0 0.0
    %4343 = vmatpush1.msra.mxu0 0.0
    %4344 = vmatprep.subr.mxu0 0.0
    %4345 = vmatpush1.msra.mxu0 0.0
    %4346 = vmatprep.subr.mxu0 0.0
    %4347 = vmatpush1.msra.mxu0 0.0
    %4348 = vmatprep.subr.mxu0 0.0
    %4349 = vmatpush1.msra.mxu0 0.0
    %4350 = vmatprep.subr.mxu0 0.0
    %4351 = vmatpush1.msra.mxu0 0.0
    %4352 = vmatprep.subr.mxu0 0.0
    %4353 = vmatpush1.msra.mxu0 0.0
    %4354 = vmatprep.subr.mxu0 0.0
    %4355 = vmatpush1.msra.mxu0 0.0
    %4356 = vmatprep.subr.mxu0 0.0
    %4357 = vmatpush1.msra.mxu0 0.0
    %4358 = vmatprep.subr.mxu0 0.0
    %4359 = vmatpush1.msra.mxu0 0.0
    %4360 = vmatprep.subr.mxu0 0.0
    %4361 = vmatpush1.msra.mxu0 0.0
    %4362 = vmatprep.subr.mxu0 0.0
    %4363 = vmatpush1.msra.mxu0 0.0
    %4364 = vmatprep.subr.mxu0 0.0
    %4365 = vmatpush1.msra.mxu0 0.0
    %4366 = vmatprep.subr.mxu0 0.0
    %4367 = vmatpush1.msra.mxu0 0.0
    %4368 = vmatprep.subr.mxu0 0.0
    %4369 = vmatpush1.msra.mxu0 0.0
    %4370 = vmatprep.subr.mxu0 0.0
    %4371 = vmatpush1.msra.mxu0 0.0
    %4372 = vmatprep.subr.mxu0 0.0
    %4373 = vmatpush1.msra.mxu0 0.0
    %4374 = vmatprep.subr.mxu0 0.0
    %4375 = vmatpush1.msra.mxu0 0.0
    %4376 = vmatprep.subr.mxu0 0.0
    %4377 = vmatpush1.msra.mxu0 0.0
    %4378 = vmatprep.mubr.f32.mxu0 0.0
    %4379 = vmatmul.mubr.f32.gmra.mrb[0].mxu0 %v4158
    %v4380 = vpop.f32.mrb[0].mxu0
    %v4381 = vadd.f32 0.0, %v4380
    %v4382 = vpop.f32.mrb[0].mxu0
    %4383 = vdwg.mxu0
    %v4384 = vadd.f32 %v3697, %v4381
    %v4385 = vtanh.pop %v4384
    %4386 = vmatprep.subr.mxu0 0.0
    %4387 = vmatpush1.msra.mxu0 %v3335
    %4388 = vmatprep.subr.mxu0 0.0
    %4389 = vmatpush1.msra.mxu0 %v3336
    %4390 = vmatprep.subr.mxu0 0.0
    %4391 = vmatpush1.msra.mxu0 %v3337
    %4392 = vmatprep.subr.mxu0 0.0
    %4393 = vmatpush1.msra.mxu0 %v3338
    %4394 = vmatprep.subr.mxu0 0.0
    %4395 = vmatpush1.msra.mxu0 0.0
    %4396 = vmatprep.subr.mxu0 0.0
    %4397 = vmatpush1.msra.mxu0 0.0
    %4398 = vmatprep.subr.mxu0 0.0
    %4399 = vmatpush1.msra.mxu0 0.0
    %4400 = vmatprep.subr.mxu0 0.0
    %4401 = vmatpush1.msra.mxu0 0.0
    %4402 = vmatprep.subr.mxu0 0.0
    %4403 = vmatpush1.msra.mxu0 0.0
    %4404 = vmatprep.subr.mxu0 0.0
    %4405 = vmatpush1.msra.mxu0 0.0
    %4406 = vmatprep.subr.mxu0 0.0
    %4407 = vmatpush1.msra.mxu0 0.0
    %4408 = vmatprep.subr.mxu0 0.0
    %4409 = vmatpush1.msra.mxu0 0.0
    %4410 = vmatprep.subr.mxu0 0.0
    %4411 = vmatpush1.msra.mxu0 0.0
    %4412 = vmatprep.subr.mxu0 0.0
    %4413 = vmatpush1.msra.mxu0 0.0
    %4414 = vmatprep.subr.mxu0 0.0
    %4415 = vmatpush1.msra.mxu0 0.0
    %4416 = vmatprep.subr.mxu0 0.0
    %4417 = vmatpush1.msra.mxu0 0.0
    %4418 = vmatprep.subr.mxu0 0.0
    %4419 = vmatpush1.msra.mxu0 0.0
    %4420 = vmatprep.subr.mxu0 0.0
    %4421 = vmatpush1.msra.mxu0 0.0
    %4422 = vmatprep.subr.mxu0 0.0
    %4423 = vmatpush1.msra.mxu0 0.0
    %4424 = vmatprep.subr.mxu0 0.0
    %4425 = vmatpush1.msra.mxu0 0.0
    %4426 = vmatprep.subr.mxu0 0.0
    %4427 = vmatpush1.msra.mxu0 0.0
    %4428 = vmatprep.subr.mxu0 0.0
    %4429 = vmatpush1.msra.mxu0 0.0
    %4430 = vmatprep.subr.mxu0 0.0
    %4431 = vmatpush1.msra.mxu0 0.0
    %4432 = vmatprep.subr.mxu0 0.0
    %4433 = vmatpush1.msra.mxu0 0.0
    %4434 = vmatprep.subr.mxu0 0.0
    %4435 = vmatpush1.msra.mxu0 0.0
    %4436 = vmatprep.subr.mxu0 0.0
    %4437 = vmatpush1.msra.mxu0 0.0
    %4438 = vmatprep.subr.mxu0 0.0
    %4439 = vmatpush1.msra.mxu0 0.0
    %4440 = vmatprep.subr.mxu0 0.0
    %4441 = vmatpush1.msra.mxu0 0.0
    %4442 = vmatprep.subr.mxu0 0.0
    %4443 = vmatpush1.msra.mxu0 0.0
    %4444 = vmatprep.subr.mxu0 0.0
    %4445 = vmatpush1.msra.mxu0 0.0
    %4446 = vmatprep.subr.mxu0 0.0
    %4447 = vmatpush1.msra.mxu0 0.0
    %4448 = vmatprep.subr.mxu0 0.0
    %4449 = vmatpush1.msra.mxu0 0.0
    %4450 = vmatprep.mubr.f32.mxu0 0.0
    %4451 = vmatmul.mubr.f32.gmra.mrb[0].mxu0 %v4158
    %v4452 = vpop.f32.mrb[0].mxu0
    %v4453 = vadd.f32 0.0, %v4452
    %v4454 = vpop.f32.mrb[0].mxu0
    %4455 = vdwg.mxu0
    %v4456 = vadd.f32 %v3822, %v4453
    %v4457 = vxor.u32 %v4456, 2147483648
    %v4458 = vmul.f32 %v4457, 1.442695
    %v4459 = vpow.pop %v4458
    %v4460 = vadd.f32 %v4459, 1.0
    %v4461 = vrcp.pop %v4460
    %v4462 = vmul.f32 1.0, %v4461
    %v4463 = vmul.f32 %v4313, %v4154
    %v4464 = vmul.f32 %v4236, %v4385
    %v4465 = vadd.f32 %v4463, %v4464
    %v4466 = vtanh.pop %v4465
    %v4467 = vmul.f32 %v4462, %v4466
    %v4469 = vsel %vm753, %v4467, 0
    %4471 = vmatprep.subr.mxu0 0.0
    %4472 = vmatpush1.msra.mxu0 %v3323
    %4473 = vmatprep.subr.mxu0 0.0
    %4474 = vmatpush1.msra.mxu0 %v3324
    %4475 = vmatprep.subr.mxu0 0.0
    %4476 = vmatpush1.msra.mxu0 %v3325
    %4477 = vmatprep.subr.mxu0 0.0
    %4478 = vmatpush1.msra.mxu0 %v3326
    %4479 = vmatprep.subr.mxu0 0.0
    %4480 = vmatpush1.msra.mxu0 0.0
    %4481 = vmatprep.subr.mxu0 0.0
    %4482 = vmatpush1.msra.mxu0 0.0
    %4483 = vmatprep.subr.mxu0 0.0
    %4484 = vmatpush1.msra.mxu0 0.0
    %4485 = vmatprep.subr.mxu0 0.0
    %4486 = vmatpush1.msra.mxu0 0.0
    %4487 = vmatprep.subr.mxu0 0.0
    %4488 = vmatpush1.msra.mxu0 0.0
    %4489 = vmatprep.subr.mxu0 0.0
    %4490 = vmatpush1.msra.mxu0 0.0
    %4491 = vmatprep.subr.mxu0 0.0
    %4492 = vmatpush1.msra.mxu0 0.0
    %4493 = vmatprep.subr.mxu0 0.0
    %4494 = vmatpush1.msra.mxu0 0.0
    %4495 = vmatprep.subr.mxu0 0.0
    %4496 = vmatpush1.msra.mxu0 0.0
    %4497 = vmatprep.subr.mxu0 0.0
    %4498 = vmatpush1.msra.mxu0 0.0
    %4499 = vmatprep.subr.mxu0 0.0
    %4500 = vmatpush1.msra.mxu0 0.0
    %4501 = vmatprep.subr.mxu0 0.0
    %4502 = vmatpush1.msra.mxu0 0.0
    %4503 = vmatprep.subr.mxu0 0.0
    %4504 = vmatpush1.msra.mxu0 0.0
    %4505 = vmatprep.subr.mxu0 0.0
    %4506 = vmatpush1.msra.mxu0 0.0
    %4507 = vmatprep.subr.mxu0 0.0
    %4508 = vmatpush1.msra.mxu0 0.0
    %4509 = vmatprep.subr.mxu0 0.0
    %4510 = vmatpush1.msra.mxu0 0.0
    %4511 = vmatprep.subr.mxu0 0.0
    %4512 = vmatpush1.msra.mxu0 0.0
    %4513 = vmatprep.subr.mxu0 0.0
    %4514 = vmatpush1.msra.mxu0 0.0
    %4515 = vmatprep.subr.mxu0 0.0
    %4516 = vmatpush1.msra.mxu0 0.0
    %4517 = vmatprep.subr.mxu0 0.0
    %4518 = vmatpush1.msra.mxu0 0.0
    %4519 = vmatprep.subr.mxu0 0.0
    %4520 = vmatpush1.msra.mxu0 0.0
    %4521 = vmatprep.subr.mxu0 0.0
    %4522 = vmatpush1.msra.mxu0 0.0
    %4523 = vmatprep.subr.mxu0 0.0
    %4524 = vmatpush1.msra.mxu0 0.0
    %4525 = vmatprep.subr.mxu0 0.0
    %4526 = vmatpush1.msra.mxu0 0.0
    %4527 = vmatprep.subr.mxu0 0.0
    %4528 = vmatpush1.msra.mxu0 0.0
    %4529 = vmatprep.subr.mxu0 0.0
    %4530 = vmatpush1.msra.mxu0 0.0
    %4531 = vmatprep.subr.mxu0 0.0
    %4532 = vmatpush1.msra.mxu0 0.0
    %4533 = vmatprep.subr.mxu0 0.0
    %4534 = vmatpush1.msra.mxu0 0.0
    %4535 = vmatprep.mubr.f32.mxu0 0.0
    %4536 = vmatmul.mubr.f32.gmra.mrb[0].mxu0 %v4469
    %v4537 = vpop.f32.mrb[0].mxu0
    %v4538 = vadd.f32 0.0, %v4537
    %v4539 = vpop.f32.mrb[0].mxu0
    %4540 = vdwg.mxu0
    %v4541 = vadd.f32 %v3446, %v4538
    %v4542 = vxor.u32 %v4541, 2147483648
    %v4543 = vmul.f32 %v4542, 1.442695
    %v4544 = vpow.pop %v4543
    %v4545 = vadd.f32 %v4544, 1.0
    %v4546 = vrcp.pop %v4545
    %v4547 = vmul.f32 1.0, %v4546
    %4548 = vmatprep.subr.mxu0 0.0
    %4549 = vmatpush1.msra.mxu0 %v3327
    %4550 = vmatprep.subr.mxu0 0.0
    %4551 = vmatpush1.msra.mxu0 %v3328
    %4552 = vmatprep.subr.mxu0 0.0
    %4553 = vmatpush1.msra.mxu0 %v3329
    %4554 = vmatprep.subr.mxu0 0.0
    %4555 = vmatpush1.msra.mxu0 %v3330
    %4556 = vmatprep.subr.mxu0 0.0
    %4557 = vmatpush1.msra.mxu0 0.0
    %4558 = vmatprep.subr.mxu0 0.0
    %4559 = vmatpush1.msra.mxu0 0.0
    %4560 = vmatprep.subr.mxu0 0.0
    %4561 = vmatpush1.msra.mxu0 0.0
    %4562 = vmatprep.subr.mxu0 0.0
    %4563 = vmatpush1.msra.mxu0 0.0
    %4564 = vmatprep.subr.mxu0 0.0
    %4565 = vmatpush1.msra.mxu0 0.0
    %4566 = vmatprep.subr.mxu0 0.0
    %4567 = vmatpush1.msra.mxu0 0.0
    %4568 = vmatprep.subr.mxu0 0.0
    %4569 = vmatpush1.msra.mxu0 0.0
    %4570 = vmatprep.subr.mxu0 0.0
    %4571 = vmatpush1.msra.mxu0 0.0
    %4572 = vmatprep.subr.mxu0 0.0
    %4573 = vmatpush1.msra.mxu0 0.0
    %4574 = vmatprep.subr.mxu0 0.0
    %4575 = vmatpush1.msra.mxu0 0.0
    %4576 = vmatprep.subr.mxu0 0.0
    %4577 = vmatpush1.msra.mxu0 0.0
    %4578 = vmatprep.subr.mxu0 0.0
    %4579 = vmatpush1.msra.mxu0 0.0
    %4580 = vmatprep.subr.mxu0 0.0
    %4581 = vmatpush1.msra.mxu0 0.0
    %4582 = vmatprep.subr.mxu0 0.0
    %4583 = vmatpush1.msra.mxu0 0.0
    %4584 = vmatprep.subr.mxu0 0.0
    %4585 = vmatpush1.msra.mxu0 0.0
    %4586 = vmatprep.subr.mxu0 0.0
    %4587 = vmatpush1.msra.mxu0 0.0
    %4588 = vmatprep.subr.mxu0 0.0
    %4589 = vmatpush1.msra.mxu0 0.0
    %4590 = vmatprep.subr.mxu0 0.0
    %4591 = vmatpush1.msra.mxu0 0.0
    %4592 = vmatprep.subr.mxu0 0.0
    %4593 = vmatpush1.msra.mxu0 0.0
    %4594 = vmatprep.subr.mxu0 0.0
    %4595 = vmatpush1.msra.mxu0 0.0
    %4596 = vmatprep.subr.mxu0 0.0
    %4597 = vmatpush1.msra.mxu0 0.0
    %4598 = vmatprep.subr.mxu0 0.0
    %4599 = vmatpush1.msra.mxu0 0.0
    %4600 = vmatprep.subr.mxu0 0.0
    %4601 = vmatpush1.msra.mxu0 0.0
    %4602 = vmatprep.subr.mxu0 0.0
    %4603 = vmatpush1.msra.mxu0 0.0
    %4604 = vmatprep.subr.mxu0 0.0
    %4605 = vmatpush1.msra.mxu0 0.0
    %4606 = vmatprep.subr.mxu0 0.0
    %4607 = vmatpush1.msra.mxu0 0.0
    %4608 = vmatprep.subr.mxu0 0.0
    %4609 = vmatpush1.msra.mxu0 0.0
    %4610 = vmatprep.subr.mxu0 0.0
    %4611 = vmatpush1.msra.mxu0 0.0
    %4612 = vmatprep.mubr.f32.mxu0 0.0
    %4613 = vmatmul.mubr.f32.gmra.mrb[0].mxu0 %v4469
    %v4614 = vpop.f32.mrb[0].mxu0
    %v4615 = vadd.f32 0.0, %v4614
    %v4616 = vpop.f32.mrb[0].mxu0
    %4617 = vdwg.mxu0
    %v4618 = vadd.f32 %v3571, %v4615
    %v4619 = vxor.u32 %v4618, 2147483648
    %v4620 = vmul.f32 %v4619, 1.442695
    %v4621 = vpow.pop %v4620
    %v4622 = vadd.f32 %v4621, 1.0
    %v4623 = vrcp.pop %v4622
    %v4624 = vmul.f32 1.0, %v4623
    %4625 = vmatprep.subr.mxu0 0.0
    %4626 = vmatpush1.msra.mxu0 %v3331
    %4627 = vmatprep.subr.mxu0 0.0
    %4628 = vmatpush1.msra.mxu0 %v3332
    %4629 = vmatprep.subr.mxu0 0.0
    %4630 = vmatpush1.msra.mxu0 %v3333
    %4631 = vmatprep.subr.mxu0 0.0
    %4632 = vmatpush1.msra.mxu0 %v3334
    %4633 = vmatprep.subr.mxu0 0.0
    %4634 = vmatpush1.msra.mxu0 0.0
    %4635 = vmatprep.subr.mxu0 0.0
    %4636 = vmatpush1.msra.mxu0 0.0
    %4637 = vmatprep.subr.mxu0 0.0
    %4638 = vmatpush1.msra.mxu0 0.0
    %4639 = vmatprep.subr.mxu0 0.0
    %4640 = vmatpush1.msra.mxu0 0.0
    %4641 = vmatprep.subr.mxu0 0.0
    %4642 = vmatpush1.msra.mxu0 0.0
    %4643 = vmatprep.subr.mxu0 0.0
    %4644 = vmatpush1.msra.mxu0 0.0
    %4645 = vmatprep.subr.mxu0 0.0
    %4646 = vmatpush1.msra.mxu0 0.0
    %4647 = vmatprep.subr.mxu0 0.0
    %4648 = vmatpush1.msra.mxu0 0.0
    %4649 = vmatprep.subr.mxu0 0.0
    %4650 = vmatpush1.msra.mxu0 0.0
    %4651 = vmatprep.subr.mxu0 0.0
    %4652 = vmatpush1.msra.mxu0 0.0
    %4653 = vmatprep.subr.mxu0 0.0
    %4654 = vmatpush1.msra.mxu0 0.0
    %4655 = vmatprep.subr.mxu0 0.0
    %4656 = vmatpush1.msra.mxu0 0.0
    %4657 = vmatprep.subr.mxu0 0.0
    %4658 = vmatpush1.msra.mxu0 0.0
    %4659 = vmatprep.subr.mxu0 0.0
    %4660 = vmatpush1.msra.mxu0 0.0
    %4661 = vmatprep.subr.mxu0 0.0
    %4662 = vmatpush1.msra.mxu0 0.0
    %4663 = vmatprep.subr.mxu0 0.0
    %4664 = vmatpush1.msra.mxu0 0.0
    %4665 = vmatprep.subr.mxu0 0.0
    %4666 = vmatpush1.msra.mxu0 0.0
    %4667 = vmatprep.subr.mxu0 0.0
    %4668 = vmatpush1.msra.mxu0 0.0
    %4669 = vmatprep.subr.mxu0 0.0
    %4670 = vmatpush1.msra.mxu0 0.0
    %4671 = vmatprep.subr.mxu0 0.0
    %4672 = vmatpush1.msra.mxu0 0.0
    %4673 = vmatprep.subr.mxu0 0.0
    %4674 = vmatpush1.msra.mxu0 0.0
    %4675 = vmatprep.subr.mxu0 0.0
    %4676 = vmatpush1.msra.mxu0 0.0
    %4677 = vmatprep.subr.mxu0 0.0
    %4678 = vmatpush1.msra.mxu0 0.0
    %4679 = vmatprep.subr.mxu0 0.0
    %4680 = vmatpush1.msra.mxu0 0.0
    %4681 = vmatprep.subr.mxu0 0.0
    %4682 = vmatpush1.msra.mxu0 0.0
    %4683 = vmatprep.subr.mxu0 0.0
    %4684 = vmatpush1.msra.mxu0 0.0
    %4685 = vmatprep.subr.mxu0 0.0
    %4686 = vmatpush1.msra.mxu0 0.0
    %4687 = vmatprep.subr.mxu0 0.0
    %4688 = vmatpush1.msra.mxu0 0.0
    %4689 = vmatprep.mubr.f32.mxu0 0.0
    %4690 = vmatmul.mubr.f32.gmra.mrb[0].mxu0 %v4469
    %v4691 = vpop.f32.mrb[0].mxu0
    %v4692 = vadd.f32 0.0, %v4691
    %v4693 = vpop.f32.mrb[0].mxu0
    %4694 = vdwg.mxu0
    %v4695 = vadd.f32 %v3696, %v4692
    %v4696 = vtanh.pop %v4695
    %4697 = vmatprep.subr.mxu0 0.0
    %4698 = vmatpush1.msra.mxu0 %v3335
    %4699 = vmatprep.subr.mxu0 0.0
    %4700 = vmatpush1.msra.mxu0 %v3336
    %4701 = vmatprep.subr.mxu0 0.0
    %4702 = vmatpush1.msra.mxu0 %v3337
    %4703 = vmatprep.subr.mxu0 0.0
    %4704 = vmatpush1.msra.mxu0 %v3338
    %4705 = vmatprep.subr.mxu0 0.0
    %4706 = vmatpush1.msra.mxu0 0.0
    %4707 = vmatprep.subr.mxu0 0.0
    %4708 = vmatpush1.msra.mxu0 0.0
    %4709 = vmatprep.subr.mxu0 0.0
    %4710 = vmatpush1.msra.mxu0 0.0
    %4711 = vmatprep.subr.mxu0 0.0
    %4712 = vmatpush1.msra.mxu0 0.0
    %4713 = vmatprep.subr.mxu0 0.0
    %4714 = vmatpush1.msra.mxu0 0.0
    %4715 = vmatprep.subr.mxu0 0.0
    %4716 = vmatpush1.msra.mxu0 0.0
    %4717 = vmatprep.subr.mxu0 0.0
    %4718 = vmatpush1.msra.mxu0 0.0
    %4719 = vmatprep.subr.mxu0 0.0
    %4720 = vmatpush1.msra.mxu0 0.0
    %4721 = vmatprep.subr.mxu0 0.0
    %4722 = vmatpush1.msra.mxu0 0.0
    %4723 = vmatprep.subr.mxu0 0.0
    %4724 = vmatpush1.msra.mxu0 0.0
    %4725 = vmatprep.subr.mxu0 0.0
    %4726 = vmatpush1.msra.mxu0 0.0
    %4727 = vmatprep.subr.mxu0 0.0
    %4728 = vmatpush1.msra.mxu0 0.0
    %4729 = vmatprep.subr.mxu0 0.0
    %4730 = vmatpush1.msra.mxu0 0.0
    %4731 = vmatprep.subr.mxu0 0.0
    %4732 = vmatpush1.msra.mxu0 0.0
    %4733 = vmatprep.subr.mxu0 0.0
    %4734 = vmatpush1.msra.mxu0 0.0
    %4735 = vmatprep.subr.mxu0 0.0
    %4736 = vmatpush1.msra.mxu0 0.0
    %4737 = vmatprep.subr.mxu0 0.0
    %4738 = vmatpush1.msra.mxu0 0.0
    %4739 = vmatprep.subr.mxu0 0.0
    %4740 = vmatpush1.msra.mxu0 0.0
    %4741 = vmatprep.subr.mxu0 0.0
    %4742 = vmatpush1.msra.mxu0 0.0
    %4743 = vmatprep.subr.mxu0 0.0
    %4744 = vmatpush1.msra.mxu0 0.0
    %4745 = vmatprep.subr.mxu0 0.0
    %4746 = vmatpush1.msra.mxu0 0.0
    %4747 = vmatprep.subr.mxu0 0.0
    %4748 = vmatpush1.msra.mxu0 0.0
    %4749 = vmatprep.subr.mxu0 0.0
    %4750 = vmatpush1.msra.mxu0 0.0
    %4751 = vmatprep.subr.mxu0 0.0
    %4752 = vmatpush1.msra.mxu0 0.0
    %4753 = vmatprep.subr.mxu0 0.0
    %4754 = vmatpush1.msra.mxu0 0.0
    %4755 = vmatprep.subr.mxu0 0.0
    %4756 = vmatpush1.msra.mxu0 0.0
    %4757 = vmatprep.subr.mxu0 0.0
    %4758 = vmatpush1.msra.mxu0 0.0
    %4759 = vmatprep.subr.mxu0 0.0
    %4760 = vmatpush1.msra.mxu0 0.0
    %4761 = vmatprep.mubr.f32.mxu0 0.0
    %4762 = vmatmul.mubr.f32.gmra.mrb[0].mxu0 %v4469
    %v4763 = vpop.f32.mrb[0].mxu0
    %v4764 = vadd.f32 0.0, %v4763
    %v4765 = vpop.f32.mrb[0].mxu0
    %4766 = vdwg.mxu0
    %v4767 = vadd.f32 %v3821, %v4764
    %v4768 = vxor.u32 %v4767, 2147483648
    %v4769 = vmul.f32 %v4768, 1.442695
    %v4770 = vpow.pop %v4769
    %v4771 = vadd.f32 %v4770, 1.0
    %v4772 = vrcp.pop %v4771
    %v4773 = vmul.f32 1.0, %v4772
    %v4774 = vmul.f32 %v4624, %v4465
    %v4775 = vmul.f32 %v4547, %v4696
    %v4776 = vadd.f32 %v4774, %v4775
    %v4777 = vtanh.pop %v4776
    %v4778 = vmul.f32 %v4773, %v4777
    %v4780 = vsel %vm753, %v4778, 0
    %4782 = vmatprep.subr.mxu0 0.0
    %4783 = vmatpush1.msra.mxu0 %v3323
    %4784 = vmatprep.subr.mxu0 0.0
    %4785 = vmatpush1.msra.mxu0 %v3324
    %4786 = vmatprep.subr.mxu0 0.0
    %4787 = vmatpush1.msra.mxu0 %v3325
    %4788 = vmatprep.subr.mxu0 0.0
    %4789 = vmatpush1.msra.mxu0 %v3326
    %4790 = vmatprep.subr.mxu0 0.0
    %4791 = vmatpush1.msra.mxu0 0.0
    %4792 = vmatprep.subr.mxu0 0.0
    %4793 = vmatpush1.msra.mxu0 0.0
    %4794 = vmatprep.subr.mxu0 0.0
    %4795 = vmatpush1.msra.mxu0 0.0
    %4796 = vmatprep.subr.mxu0 0.0
    %4797 = vmatpush1.msra.mxu0 0.0
    %4798 = vmatprep.subr.mxu0 0.0
    %4799 = vmatpush1.msra.mxu0 0.0
    %4800 = vmatprep.subr.mxu0 0.0
    %4801 = vmatpush1.msra.mxu0 0.0
    %4802 = vmatprep.subr.mxu0 0.0
    %4803 = vmatpush1.msra.mxu0 0.0
    %4804 = vmatprep.subr.mxu0 0.0
    %4805 = vmatpush1.msra.mxu0 0.0
    %4806 = vmatprep.subr.mxu0 0.0
    %4807 = vmatpush1.msra.mxu0 0.0
    %4808 = vmatprep.subr.mxu0 0.0
    %4809 = vmatpush1.msra.mxu0 0.0
    %4810 = vmatprep.subr.mxu0 0.0
    %4811 = vmatpush1.msra.mxu0 0.0
    %4812 = vmatprep.subr.mxu0 0.0
    %4813 = vmatpush1.msra.mxu0 0.0
    %4814 = vmatprep.subr.mxu0 0.0
    %4815 = vmatpush1.msra.mxu0 0.0
    %4816 = vmatprep.subr.mxu0 0.0
    %4817 = vmatpush1.msra.mxu0 0.0
    %4818 = vmatprep.subr.mxu0 0.0
    %4819 = vmatpush1.msra.mxu0 0.0
    %4820 = vmatprep.subr.mxu0 0.0
    %4821 = vmatpush1.msra.mxu0 0.0
    %4822 = vmatprep.subr.mxu0 0.0
    %4823 = vmatpush1.msra.mxu0 0.0
    %4824 = vmatprep.subr.mxu0 0.0
    %4825 = vmatpush1.msra.mxu0 0.0
    %4826 = vmatprep.subr.mxu0 0.0
    %4827 = vmatpush1.msra.mxu0 0.0
    %4828 = vmatprep.subr.mxu0 0.0
    %4829 = vmatpush1.msra.mxu0 0.0
    %4830 = vmatprep.subr.mxu0 0.0
    %4831 = vmatpush1.msra.mxu0 0.0
    %4832 = vmatprep.subr.mxu0 0.0
    %4833 = vmatpush1.msra.mxu0 0.0
    %4834 = vmatprep.subr.mxu0 0.0
    %4835 = vmatpush1.msra.mxu0 0.0
    %4836 = vmatprep.subr.mxu0 0.0
    %4837 = vmatpush1.msra.mxu0 0.0
    %4838 = vmatprep.subr.mxu0 0.0
    %4839 = vmatpush1.msra.mxu0 0.0
    %4840 = vmatprep.subr.mxu0 0.0
    %4841 = vmatpush1.msra.mxu0 0.0
    %4842 = vmatprep.subr.mxu0 0.0
    %4843 = vmatpush1.msra.mxu0 0.0
    %4844 = vmatprep.subr.mxu0 0.0
    %4845 = vmatpush1.msra.mxu0 0.0
    %4846 = vmatprep.mubr.f32.mxu0 0.0
    %4847 = vmatmul.mubr.f32.gmra.mrb[0].mxu0 %v4780
    %v4848 = vpop.f32.mrb[0].mxu0
    %v4849 = vadd.f32 0.0, %v4848
    %v4850 = vpop.f32.mrb[0].mxu0
    %4851 = vdwg.mxu0
    %v4852 = vadd.f32 %v3448, %v4849
    %v4853 = vxor.u32 %v4852, 2147483648
    %v4854 = vmul.f32 %v4853, 1.442695
    %v4855 = vpow.pop %v4854
    %v4856 = vadd.f32 %v4855, 1.0
    %v4857 = vrcp.pop %v4856
    %v4858 = vmul.f32 1.0, %v4857
    %4859 = vmatprep.subr.mxu0 0.0
    %4860 = vmatpush1.msra.mxu0 %v3327
    %4861 = vmatprep.subr.mxu0 0.0
    %4862 = vmatpush1.msra.mxu0 %v3328
    %4863 = vmatprep.subr.mxu0 0.0
    %4864 = vmatpush1.msra.mxu0 %v3329
    %4865 = vmatprep.subr.mxu0 0.0
    %4866 = vmatpush1.msra.mxu0 %v3330
    %4867 = vmatprep.subr.mxu0 0.0
    %4868 = vmatpush1.msra.mxu0 0.0
    %4869 = vmatprep.subr.mxu0 0.0
    %4870 = vmatpush1.msra.mxu0 0.0
    %4871 = vmatprep.subr.mxu0 0.0
    %4872 = vmatpush1.msra.mxu0 0.0
    %4873 = vmatprep.subr.mxu0 0.0
    %4874 = vmatpush1.msra.mxu0 0.0
    %4875 = vmatprep.subr.mxu0 0.0
    %4876 = vmatpush1.msra.mxu0 0.0
    %4877 = vmatprep.subr.mxu0 0.0
    %4878 = vmatpush1.msra.mxu0 0.0
    %4879 = vmatprep.subr.mxu0 0.0
    %4880 = vmatpush1.msra.mxu0 0.0
    %4881 = vmatprep.subr.mxu0 0.0
    %4882 = vmatpush1.msra.mxu0 0.0
    %4883 = vmatprep.subr.mxu0 0.0
    %4884 = vmatpush1.msra.mxu0 0.0
    %4885 = vmatprep.subr.mxu0 0.0
    %4886 = vmatpush1.msra.mxu0 0.0
    %4887 = vmatprep.subr.mxu0 0.0
    %4888 = vmatpush1.msra.mxu0 0.0
    %4889 = vmatprep.subr.mxu0 0.0
    %4890 = vmatpush1.msra.mxu0 0.0
    %4891 = vmatprep.subr.mxu0 0.0
    %4892 = vmatpush1.msra.mxu0 0.0
    %4893 = vmatprep.subr.mxu0 0.0
    %4894 = vmatpush1.msra.mxu0 0.0
    %4895 = vmatprep.subr.mxu0 0.0
    %4896 = vmatpush1.msra.mxu0 0.0
    %4897 = vmatprep.subr.mxu0 0.0
    %4898 = vmatpush1.msra.mxu0 0.0
    %4899 = vmatprep.subr.mxu0 0.0
    %4900 = vmatpush1.msra.mxu0 0.0
    %4901 = vmatprep.subr.mxu0 0.0
    %4902 = vmatpush1.msra.mxu0 0.0
    %4903 = vmatprep.subr.mxu0 0.0
    %4904 = vmatpush1.msra.mxu0 0.0
    %4905 = vmatprep.subr.mxu0 0.0
    %4906 = vmatpush1.msra.mxu0 0.0
    %4907 = vmatprep.subr.mxu0 0.0
    %4908 = vmatpush1.msra.mxu0 0.0
    %4909 = vmatprep.subr.mxu0 0.0
    %4910 = vmatpush1.msra.mxu0 0.0
    %4911 = vmatprep.subr.mxu0 0.0
    %4912 = vmatpush1.msra.mxu0 0.0
    %4913 = vmatprep.subr.mxu0 0.0
    %4914 = vmatpush1.msra.mxu0 0.0
    %4915 = vmatprep.subr.mxu0 0.0
    %4916 = vmatpush1.msra.mxu0 0.0
    %4917 = vmatprep.subr.mxu0 0.0
    %4918 = vmatpush1.msra.mxu0 0.0
    %4919 = vmatprep.subr.mxu0 0.0
    %4920 = vmatpush1.msra.mxu0 0.0
    %4921 = vmatprep.subr.mxu0 0.0
    %4922 = vmatpush1.msra.mxu0 0.0
    %4923 = vmatprep.mubr.f32.mxu0 0.0
    %4924 = vmatmul.mubr.f32.gmra.mrb[0].mxu0 %v4780
    %v4925 = vpop.f32.mrb[0].mxu0
    %v4926 = vadd.f32 0.0, %v4925
    %v4927 = vpop.f32.mrb[0].mxu0
    %4928 = vdwg.mxu0
    %v4929 = vadd.f32 %v3573, %v4926
    %v4930 = vxor.u32 %v4929, 2147483648
    %v4931 = vmul.f32 %v4930, 1.442695
    %v4932 = vpow.pop %v4931
    %v4933 = vadd.f32 %v4932, 1.0
    %v4934 = vrcp.pop %v4933
    %v4935 = vmul.f32 1.0, %v4934
    %4936 = vmatprep.subr.mxu0 0.0
    %4937 = vmatpush1.msra.mxu0 %v3331
    %4938 = vmatprep.subr.mxu0 0.0
    %4939 = vmatpush1.msra.mxu0 %v3332
    %4940 = vmatprep.subr.mxu0 0.0
    %4941 = vmatpush1.msra.mxu0 %v3333
    %4942 = vmatprep.subr.mxu0 0.0
    %4943 = vmatpush1.msra.mxu0 %v3334
    %4944 = vmatprep.subr.mxu0 0.0
    %4945 = vmatpush1.msra.mxu0 0.0
    %4946 = vmatprep.subr.mxu0 0.0
    %4947 = vmatpush1.msra.mxu0 0.0
    %4948 = vmatprep.subr.mxu0 0.0
    %4949 = vmatpush1.msra.mxu0 0.0
    %4950 = vmatprep.subr.mxu0 0.0
    %4951 = vmatpush1.msra.mxu0 0.0
    %4952 = vmatprep.subr.mxu0 0.0
    %4953 = vmatpush1.msra.mxu0 0.0
    %4954 = vmatprep.subr.mxu0 0.0
    %4955 = vmatpush1.msra.mxu0 0.0
    %4956 = vmatprep.subr.mxu0 0.0
    %4957 = vmatpush1.msra.mxu0 0.0
    %4958 = vmatprep.subr.mxu0 0.0
    %4959 = vmatpush1.msra.mxu0 0.0
    %4960 = vmatprep.subr.mxu0 0.0
    %4961 = vmatpush1.msra.mxu0 0.0
    %4962 = vmatprep.subr.mxu0 0.0
    %4963 = vmatpush1.msra.mxu0 0.0
    %4964 = vmatprep.subr.mxu0 0.0
    %4965 = vmatpush1.msra.mxu0 0.0
    %4966 = vmatprep.subr.mxu0 0.0
    %4967 = vmatpush1.msra.mxu0 0.0
    %4968 = vmatprep.subr.mxu0 0.0
    %4969 = vmatpush1.msra.mxu0 0.0
    %4970 = vmatprep.subr.mxu0 0.0
    %4971 = vmatpush1.msra.mxu0 0.0
    %4972 = vmatprep.subr.mxu0 0.0
    %4973 = vmatpush1.msra.mxu0 0.0
    %4974 = vmatprep.subr.mxu0 0.0
    %4975 = vmatpush1.msra.mxu0 0.0
    %4976 = vmatprep.subr.mxu0 0.0
    %4977 = vmatpush1.msra.mxu0 0.0
    %4978 = vmatprep.subr.mxu0 0.0
    %4979 = vmatpush1.msra.mxu0 0.0
    %4980 = vmatprep.subr.mxu0 0.0
    %4981 = vmatpush1.msra.mxu0 0.0
    %4982 = vmatprep.subr.mxu0 0.0
    %4983 = vmatpush1.msra.mxu0 0.0
    %4984 = vmatprep.subr.mxu0 0.0
    %4985 = vmatpush1.msra.mxu0 0.0
    %4986 = vmatprep.subr.mxu0 0.0
    %4987 = vmatpush1.msra.mxu0 0.0
    %4988 = vmatprep.subr.mxu0 0.0
    %4989 = vmatpush1.msra.mxu0 0.0
    %4990 = vmatprep.subr.mxu0 0.0
    %4991 = vmatpush1.msra.mxu0 0.0
    %4992 = vmatprep.subr.mxu0 0.0
    %4993 = vmatpush1.msra.mxu0 0.0
    %4994 = vmatprep.subr.mxu0 0.0
    %4995 = vmatpush1.msra.mxu0 0.0
    %4996 = vmatprep.subr.mxu0 0.0
    %4997 = vmatpush1.msra.mxu0 0.0
    %4998 = vmatprep.subr.mxu0 0.0
    %4999 = vmatpush1.msra.mxu0 0.0
    %5000 = vmatprep.mubr.f32.mxu0 0.0
    %5001 = vmatmul.mubr.f32.gmra.mrb[0].mxu0 %v4780
    %v5002 = vpop.f32.mrb[0].mxu0
    %v5003 = vadd.f32 0.0, %v5002
    %v5004 = vpop.f32.mrb[0].mxu0
    %5005 = vdwg.mxu0
    %v5006 = vadd.f32 %v3698, %v5003
    %v5007 = vtanh.pop %v5006
    %5008 = vmatprep.subr.mxu0 0.0
    %5009 = vmatpush1.msra.mxu0 %v3335
    %5010 = vmatprep.subr.mxu0 0.0
    %5011 = vmatpush1.msra.mxu0 %v3336
    %5012 = vmatprep.subr.mxu0 0.0
    %5013 = vmatpush1.msra.mxu0 %v3337
    %5014 = vmatprep.subr.mxu0 0.0
    %5015 = vmatpush1.msra.mxu0 %v3338
    %5016 = vmatprep.subr.mxu0 0.0
    %5017 = vmatpush1.msra.mxu0 0.0
    %5018 = vmatprep.subr.mxu0 0.0
    %5019 = vmatpush1.msra.mxu0 0.0
    %5020 = vmatprep.subr.mxu0 0.0
    %5021 = vmatpush1.msra.mxu0 0.0
    %5022 = vmatprep.subr.mxu0 0.0
    %5023 = vmatpush1.msra.mxu0 0.0
    %5024 = vmatprep.subr.mxu0 0.0
    %5025 = vmatpush1.msra.mxu0 0.0
    %5026 = vmatprep.subr.mxu0 0.0
    %5027 = vmatpush1.msra.mxu0 0.0
    %5028 = vmatprep.subr.mxu0 0.0
    %5029 = vmatpush1.msra.mxu0 0.0
    %5030 = vmatprep.subr.mxu0 0.0
    %5031 = vmatpush1.msra.mxu0 0.0
    %5032 = vmatprep.subr.mxu0 0.0
    %5033 = vmatpush1.msra.mxu0 0.0
    %5034 = vmatprep.subr.mxu0 0.0
    %5035 = vmatpush1.msra.mxu0 0.0
    %5036 = vmatprep.subr.mxu0 0.0
    %5037 = vmatpush1.msra.mxu0 0.0
    %5038 = vmatprep.subr.mxu0 0.0
    %5039 = vmatpush1.msra.mxu0 0.0
    %5040 = vmatprep.subr.mxu0 0.0
    %5041 = vmatpush1.msra.mxu0 0.0
    %5042 = vmatprep.subr.mxu0 0.0
    %5043 = vmatpush1.msra.mxu0 0.0
    %5044 = vmatprep.subr.mxu0 0.0
    %5045 = vmatpush1.msra.mxu0 0.0
    %5046 = vmatprep.subr.mxu0 0.0
    %5047 = vmatpush1.msra.mxu0 0.0
    %5048 = vmatprep.subr.mxu0 0.0
    %5049 = vmatpush1.msra.mxu0 0.0
    %5050 = vmatprep.subr.mxu0 0.0
    %5051 = vmatpush1.msra.mxu0 0.0
    %5052 = vmatprep.subr.mxu0 0.0
    %5053 = vmatpush1.msra.mxu0 0.0
    %5054 = vmatprep.subr.mxu0 0.0
    %5055 = vmatpush1.msra.mxu0 0.0
    %5056 = vmatprep.subr.mxu0 0.0
    %5057 = vmatpush1.msra.mxu0 0.0
    %5058 = vmatprep.subr.mxu0 0.0
    %5059 = vmatpush1.msra.mxu0 0.0
    %5060 = vmatprep.subr.mxu0 0.0
    %5061 = vmatpush1.msra.mxu0 0.0
    %5062 = vmatprep.subr.mxu0 0.0
    %5063 = vmatpush1.msra.mxu0 0.0
    %5064 = vmatprep.subr.mxu0 0.0
    %5065 = vmatpush1.msra.mxu0 0.0
    %5066 = vmatprep.subr.mxu0 0.0
    %5067 = vmatpush1.msra.mxu0 0.0
    %5068 = vmatprep.subr.mxu0 0.0
    %5069 = vmatpush1.msra.mxu0 0.0
    %5070 = vmatprep.subr.mxu0 0.0
    %5071 = vmatpush1.msra.mxu0 0.0
    %5072 = vmatprep.mubr.f32.mxu0 0.0
    %5073 = vmatmul.mubr.f32.gmra.mrb[0].mxu0 %v4780
    %v5074 = vpop.f32.mrb[0].mxu0
    %v5075 = vadd.f32 0.0, %v5074
    %v5076 = vpop.f32.mrb[0].mxu0
    %5077 = vdwg.mxu0
    %v5078 = vadd.f32 %v3823, %v5075
    %v5079 = vxor.u32 %v5078, 2147483648
    %v5080 = vmul.f32 %v5079, 1.442695
    %v5081 = vpow.pop %v5080
    %v5082 = vadd.f32 %v5081, 1.0
    %v5083 = vrcp.pop %v5082
    %v5084 = vmul.f32 1.0, %v5083
    %v5085 = vmul.f32 %v4935, %v4776
    %v5086 = vmul.f32 %v4858, %v5007
    %v5087 = vadd.f32 %v5085, %v5086
    %v5088 = vtanh.pop %v5087
    %v5089 = vmul.f32 %v5084, %v5088
    %v5091 = vsel %vm753, %v5089, 0
    %5093 = vmatprep.subr.mxu0 0.0
    %5094 = vmatpush1.msra.mxu0 %v3323
    %5095 = vmatprep.subr.mxu0 0.0
    %5096 = vmatpush1.msra.mxu0 %v3324
    %5097 = vmatprep.subr.mxu0 0.0
    %5098 = vmatpush1.msra.mxu0 %v3325
    %5099 = vmatprep.subr.mxu0 0.0
    %5100 = vmatpush1.msra.mxu0 %v3326
    %5101 = vmatprep.subr.mxu0 0.0
    %5102 = vmatpush1.msra.mxu0 0.0
    %5103 = vmatprep.subr.mxu0 0.0
    %5104 = vmatpush1.msra.mxu0 0.0
    %5105 = vmatprep.subr.mxu0 0.0
    %5106 = vmatpush1.msra.mxu0 0.0
    %5107 = vmatprep.subr.mxu0 0.0
    %5108 = vmatpush1.msra.mxu0 0.0
    %5109 = vmatprep.subr.mxu0 0.0
    %5110 = vmatpush1.msra.mxu0 0.0
    %5111 = vmatprep.subr.mxu0 0.0
    %5112 = vmatpush1.msra.mxu0 0.0
    %5113 = vmatprep.subr.mxu0 0.0
    %5114 = vmatpush1.msra.mxu0 0.0
    %5115 = vmatprep.subr.mxu0 0.0
    %5116 = vmatpush1.msra.mxu0 0.0
    %5117 = vmatprep.subr.mxu0 0.0
    %5118 = vmatpush1.msra.mxu0 0.0
    %5119 = vmatprep.subr.mxu0 0.0
    %5120 = vmatpush1.msra.mxu0 0.0
    %5121 = vmatprep.subr.mxu0 0.0
    %5122 = vmatpush1.msra.mxu0 0.0
    %5123 = vmatprep.subr.mxu0 0.0
    %5124 = vmatpush1.msra.mxu0 0.0
    %5125 = vmatprep.subr.mxu0 0.0
    %5126 = vmatpush1.msra.mxu0 0.0
    %5127 = vmatprep.subr.mxu0 0.0
    %5128 = vmatpush1.msra.mxu0 0.0
    %5129 = vmatprep.subr.mxu0 0.0
    %5130 = vmatpush1.msra.mxu0 0.0
    %5131 = vmatprep.subr.mxu0 0.0
    %5132 = vmatpush1.msra.mxu0 0.0
    %5133 = vmatprep.subr.mxu0 0.0
    %5134 = vmatpush1.msra.mxu0 0.0
    %5135 = vmatprep.subr.mxu0 0.0
    %5136 = vmatpush1.msra.mxu0 0.0
    %5137 = vmatprep.subr.mxu0 0.0
    %5138 = vmatpush1.msra.mxu0 0.0
    %5139 = vmatprep.subr.mxu0 0.0
    %5140 = vmatpush1.msra.mxu0 0.0
    %5141 = vmatprep.subr.mxu0 0.0
    %5142 = vmatpush1.msra.mxu0 0.0
    %5143 = vmatprep.subr.mxu0 0.0
    %5144 = vmatpush1.msra.mxu0 0.0
    %5145 = vmatprep.subr.mxu0 0.0
    %5146 = vmatpush1.msra.mxu0 0.0
    %5147 = vmatprep.subr.mxu0 0.0
    %5148 = vmatpush1.msra.mxu0 0.0
    %5149 = vmatprep.subr.mxu0 0.0
    %5150 = vmatpush1.msra.mxu0 0.0
    %5151 = vmatprep.subr.mxu0 0.0
    %5152 = vmatpush1.msra.mxu0 0.0
    %5153 = vmatprep.subr.mxu0 0.0
    %5154 = vmatpush1.msra.mxu0 0.0
    %5155 = vmatprep.subr.mxu0 0.0
    %5156 = vmatpush1.msra.mxu0 0.0
    %5157 = vmatprep.mubr.f32.mxu0 0.0
    %5158 = vmatmul.mubr.f32.gmra.mrb[0].mxu0 %v5091
    %v5159 = vpop.f32.mrb[0].mxu0
    %v5160 = vadd.f32 0.0, %v5159
    %v5161 = vpop.f32.mrb[0].mxu0
    %5162 = vdwg.mxu0
    %v5163 = vadd.f32 %v3456, %v5160
    %v5164 = vxor.u32 %v5163, 2147483648
    %v5165 = vmul.f32 %v5164, 1.442695
    %v5166 = vpow.pop %v5165
    %v5167 = vadd.f32 %v5166, 1.0
    %v5168 = vrcp.pop %v5167
    %v5169 = vmul.f32 1.0, %v5168
    %5170 = vmatprep.subr.mxu0 0.0
    %5171 = vmatpush1.msra.mxu0 %v3327
    %5172 = vmatprep.subr.mxu0 0.0
    %5173 = vmatpush1.msra.mxu0 %v3328
    %5174 = vmatprep.subr.mxu0 0.0
    %5175 = vmatpush1.msra.mxu0 %v3329
    %5176 = vmatprep.subr.mxu0 0.0
    %5177 = vmatpush1.msra.mxu0 %v3330
    %5178 = vmatprep.subr.mxu0 0.0
    %5179 = vmatpush1.msra.mxu0 0.0
    %5180 = vmatprep.subr.mxu0 0.0
    %5181 = vmatpush1.msra.mxu0 0.0
    %5182 = vmatprep.subr.mxu0 0.0
    %5183 = vmatpush1.msra.mxu0 0.0
    %5184 = vmatprep.subr.mxu0 0.0
    %5185 = vmatpush1.msra.mxu0 0.0
    %5186 = vmatprep.subr.mxu0 0.0
    %5187 = vmatpush1.msra.mxu0 0.0
    %5188 = vmatprep.subr.mxu0 0.0
    %5189 = vmatpush1.msra.mxu0 0.0
    %5190 = vmatprep.subr.mxu0 0.0
    %5191 = vmatpush1.msra.mxu0 0.0
    %5192 = vmatprep.subr.mxu0 0.0
    %5193 = vmatpush1.msra.mxu0 0.0
    %5194 = vmatprep.subr.mxu0 0.0
    %5195 = vmatpush1.msra.mxu0 0.0
    %5196 = vmatprep.subr.mxu0 0.0
    %5197 = vmatpush1.msra.mxu0 0.0
    %5198 = vmatprep.subr.mxu0 0.0
    %5199 = vmatpush1.msra.mxu0 0.0
    %5200 = vmatprep.subr.mxu0 0.0
    %5201 = vmatpush1.msra.mxu0 0.0
    %5202 = vmatprep.subr.mxu0 0.0
    %5203 = vmatpush1.msra.mxu0 0.0
    %5204 = vmatprep.subr.mxu0 0.0
    %5205 = vmatpush1.msra.mxu0 0.0
    %5206 = vmatprep.subr.mxu0 0.0
    %5207 = vmatpush1.msra.mxu0 0.0
    %5208 = vmatprep.subr.mxu0 0.0
    %5209 = vmatpush1.msra.mxu0 0.0
    %5210 = vmatprep.subr.mxu0 0.0
    %5211 = vmatpush1.msra.mxu0 0.0
    %5212 = vmatprep.subr.mxu0 0.0
    %5213 = vmatpush1.msra.mxu0 0.0
    %5214 = vmatprep.subr.mxu0 0.0
    %5215 = vmatpush1.msra.mxu0 0.0
    %5216 = vmatprep.subr.mxu0 0.0
    %5217 = vmatpush1.msra.mxu0 0.0
    %5218 = vmatprep.subr.mxu0 0.0
    %5219 = vmatpush1.msra.mxu0 0.0
    %5220 = vmatprep.subr.mxu0 0.0
    %5221 = vmatpush1.msra.mxu0 0.0
    %5222 = vmatprep.subr.mxu0 0.0
    %5223 = vmatpush1.msra.mxu0 0.0
    %5224 = vmatprep.subr.mxu0 0.0
    %5225 = vmatpush1.msra.mxu0 0.0
    %5226 = vmatprep.subr.mxu0 0.0
    %5227 = vmatpush1.msra.mxu0 0.0
    %5228 = vmatprep.subr.mxu0 0.0
    %5229 = vmatpush1.msra.mxu0 0.0
    %5230 = vmatprep.subr.mxu0 0.0
    %5231 = vmatpush1.msra.mxu0 0.0
    %5232 = vmatprep.subr.mxu0 0.0
    %5233 = vmatpush1.msra.mxu0 0.0
    %5234 = vmatprep.mubr.f32.mxu0 0.0
    %5235 = vmatmul.mubr.f32.gmra.mrb[0].mxu0 %v5091
    %v5236 = vpop.f32.mrb[0].mxu0
    %v5237 = vadd.f32 0.0, %v5236
    %v5238 = vpop.f32.mrb[0].mxu0
    %5239 = vdwg.mxu0
    %v5240 = vadd.f32 %v3581, %v5237
    %v5241 = vxor.u32 %v5240, 2147483648
    %v5242 = vmul.f32 %v5241, 1.442695
    %v5243 = vpow.pop %v5242
    %v5244 = vadd.f32 %v5243, 1.0
    %v5245 = vrcp.pop %v5244
    %v5246 = vmul.f32 1.0, %v5245
    %5247 = vmatprep.subr.mxu0 0.0
    %5248 = vmatpush1.msra.mxu0 %v3331
    %5249 = vmatprep.subr.mxu0 0.0
    %5250 = vmatpush1.msra.mxu0 %v3332
    %5251 = vmatprep.subr.mxu0 0.0
    %5252 = vmatpush1.msra.mxu0 %v3333
    %5253 = vmatprep.subr.mxu0 0.0
    %5254 = vmatpush1.msra.mxu0 %v3334
    %5255 = vmatprep.subr.mxu0 0.0
    %5256 = vmatpush1.msra.mxu0 0.0
    %5257 = vmatprep.subr.mxu0 0.0
    %5258 = vmatpush1.msra.mxu0 0.0
    %5259 = vmatprep.subr.mxu0 0.0
    %5260 = vmatpush1.msra.mxu0 0.0
    %5261 = vmatprep.subr.mxu0 0.0
    %5262 = vmatpush1.msra.mxu0 0.0
    %5263 = vmatprep.subr.mxu0 0.0
    %5264 = vmatpush1.msra.mxu0 0.0
    %5265 = vmatprep.subr.mxu0 0.0
    %5266 = vmatpush1.msra.mxu0 0.0
    %5267 = vmatprep.subr.mxu0 0.0
    %5268 = vmatpush1.msra.mxu0 0.0
    %5269 = vmatprep.subr.mxu0 0.0
    %5270 = vmatpush1.msra.mxu0 0.0
    %5271 = vmatprep.subr.mxu0 0.0
    %5272 = vmatpush1.msra.mxu0 0.0
    %5273 = vmatprep.subr.mxu0 0.0
    %5274 = vmatpush1.msra.mxu0 0.0
    %5275 = vmatprep.subr.mxu0 0.0
    %5276 = vmatpush1.msra.mxu0 0.0
    %5277 = vmatprep.subr.mxu0 0.0
    %5278 = vmatpush1.msra.mxu0 0.0
    %5279 = vmatprep.subr.mxu0 0.0
    %5280 = vmatpush1.msra.mxu0 0.0
    %5281 = vmatprep.subr.mxu0 0.0
    %5282 = vmatpush1.msra.mxu0 0.0
    %5283 = vmatprep.subr.mxu0 0.0
    %5284 = vmatpush1.msra.mxu0 0.0
    %5285 = vmatprep.subr.mxu0 0.0
    %5286 = vmatpush1.msra.mxu0 0.0
    %5287 = vmatprep.subr.mxu0 0.0
    %5288 = vmatpush1.msra.mxu0 0.0
    %5289 = vmatprep.subr.mxu0 0.0
    %5290 = vmatpush1.msra.mxu0 0.0
    %5291 = vmatprep.subr.mxu0 0.0
    %5292 = vmatpush1.msra.mxu0 0.0
    %5293 = vmatprep.subr.mxu0 0.0
    %5294 = vmatpush1.msra.mxu0 0.0
    %5295 = vmatprep.subr.mxu0 0.0
    %5296 = vmatpush1.msra.mxu0 0.0
    %5297 = vmatprep.subr.mxu0 0.0
    %5298 = vmatpush1.msra.mxu0 0.0
    %5299 = vmatprep.subr.mxu0 0.0
    %5300 = vmatpush1.msra.mxu0 0.0
    %5301 = vmatprep.subr.mxu0 0.0
    %5302 = vmatpush1.msra.mxu0 0.0
    %5303 = vmatprep.subr.mxu0 0.0
    %5304 = vmatpush1.msra.mxu0 0.0
    %5305 = vmatprep.subr.mxu0 0.0
    %5306 = vmatpush1.msra.mxu0 0.0
    %5307 = vmatprep.subr.mxu0 0.0
    %5308 = vmatpush1.msra.mxu0 0.0
    %5309 = vmatprep.subr.mxu0 0.0
    %5310 = vmatpush1.msra.mxu0 0.0
    %5311 = vmatprep.mubr.f32.mxu0 0.0
    %5312 = vmatmul.mubr.f32.gmra.mrb[0].mxu0 %v5091
    %v5313 = vpop.f32.mrb[0].mxu0
    %v5314 = vadd.f32 0.0, %v5313
    %v5315 = vpop.f32.mrb[0].mxu0
    %5316 = vdwg.mxu0
    %v5317 = vadd.f32 %v3706, %v5314
    %v5318 = vtanh.pop %v5317
    %5319 = vmatprep.subr.mxu0 0.0
    %5320 = vmatpush1.msra.mxu0 %v3335
    %5321 = vmatprep.subr.mxu0 0.0
    %5322 = vmatpush1.msra.mxu0 %v3336
    %5323 = vmatprep.subr.mxu0 0.0
    %5324 = vmatpush1.msra.mxu0 %v3337
    %5325 = vmatprep.subr.mxu0 0.0
    %5326 = vmatpush1.msra.mxu0 %v3338
    %5327 = vmatprep.subr.mxu0 0.0
    %5328 = vmatpush1.msra.mxu0 0.0
    %5329 = vmatprep.subr.mxu0 0.0
    %5330 = vmatpush1.msra.mxu0 0.0
    %5331 = vmatprep.subr.mxu0 0.0
    %5332 = vmatpush1.msra.mxu0 0.0
    %5333 = vmatprep.subr.mxu0 0.0
    %5334 = vmatpush1.msra.mxu0 0.0
    %5335 = vmatprep.subr.mxu0 0.0
    %5336 = vmatpush1.msra.mxu0 0.0
    %5337 = vmatprep.subr.mxu0 0.0
    %5338 = vmatpush1.msra.mxu0 0.0
    %5339 = vmatprep.subr.mxu0 0.0
    %5340 = vmatpush1.msra.mxu0 0.0
    %5341 = vmatprep.subr.mxu0 0.0
    %5342 = vmatpush1.msra.mxu0 0.0
    %5343 = vmatprep.subr.mxu0 0.0
    %5344 = vmatpush1.msra.mxu0 0.0
    %5345 = vmatprep.subr.mxu0 0.0
    %5346 = vmatpush1.msra.mxu0 0.0
    %5347 = vmatprep.subr.mxu0 0.0
    %5348 = vmatpush1.msra.mxu0 0.0
    %5349 = vmatprep.subr.mxu0 0.0
    %5350 = vmatpush1.msra.mxu0 0.0
    %5351 = vmatprep.subr.mxu0 0.0
    %5352 = vmatpush1.msra.mxu0 0.0
    %5353 = vmatprep.subr.mxu0 0.0
    %5354 = vmatpush1.msra.mxu0 0.0
    %5355 = vmatprep.subr.mxu0 0.0
    %5356 = vmatpush1.msra.mxu0 0.0
    %5357 = vmatprep.subr.mxu0 0.0
    %5358 = vmatpush1.msra.mxu0 0.0
    %5359 = vmatprep.subr.mxu0 0.0
    %5360 = vmatpush1.msra.mxu0 0.0
    %5361 = vmatprep.subr.mxu0 0.0
    %5362 = vmatpush1.msra.mxu0 0.0
    %5363 = vmatprep.subr.mxu0 0.0
    %5364 = vmatpush1.msra.mxu0 0.0
    %5365 = vmatprep.subr.mxu0 0.0
    %5366 = vmatpush1.msra.mxu0 0.0
    %5367 = vmatprep.subr.mxu0 0.0
    %5368 = vmatpush1.msra.mxu0 0.0
    %5369 = vmatprep.subr.mxu0 0.0
    %5370 = vmatpush1.msra.mxu0 0.0
    %5371 = vmatprep.subr.mxu0 0.0
    %5372 = vmatpush1.msra.mxu0 0.0
    %5373 = vmatprep.subr.mxu0 0.0
    %5374 = vmatpush1.msra.mxu0 0.0
    %5375 = vmatprep.subr.mxu0 0.0
    %5376 = vmatpush1.msra.mxu0 0.0
    %5377 = vmatprep.subr.mxu0 0.0
    %5378 = vmatpush1.msra.mxu0 0.0
    %5379 = vmatprep.subr.mxu0 0.0
    %5380 = vmatpush1.msra.mxu0 0.0
    %5381 = vmatprep.subr.mxu0 0.0
    %5382 = vmatpush1.msra.mxu0 0.0
    %5383 = vmatprep.mubr.f32.mxu0 0.0
    %5384 = vmatmul.mubr.f32.gmra.mrb[0].mxu0 %v5091
    %v5385 = vpop.f32.mrb[0].mxu0
    %v5386 = vadd.f32 0.0, %v5385
    %v5387 = vpop.f32.mrb[0].mxu0
    %5388 = vdwg.mxu0
    %v5389 = vadd.f32 %v3831, %v5386
    %v5390 = vxor.u32 %v5389, 2147483648
    %v5391 = vmul.f32 %v5390, 1.442695
    %v5392 = vpow.pop %v5391
    %v5393 = vadd.f32 %v5392, 1.0
    %v5394 = vrcp.pop %v5393
    %v5395 = vmul.f32 1.0, %v5394
    %v5396 = vmul.f32 %v5246, %v5087
    %v5397 = vmul.f32 %v5169, %v5318
    %v5398 = vadd.f32 %v5396, %v5397
    %v5399 = vtanh.pop %v5398
    %v5400 = vmul.f32 %v5395, %v5399
    %v5402 = vsel %vm753, %v5400, 0
    %5404 = vmatprep.subr.mxu0 0.0
    %5405 = vmatpush1.msra.mxu0 %v3323
    %5406 = vmatprep.subr.mxu0 0.0
    %5407 = vmatpush1.msra.mxu0 %v3324
    %5408 = vmatprep.subr.mxu0 0.0
    %5409 = vmatpush1.msra.mxu0 %v3325
    %5410 = vmatprep.subr.mxu0 0.0
    %5411 = vmatpush1.msra.mxu0 %v3326
    %5412 = vmatprep.subr.mxu0 0.0
    %5413 = vmatpush1.msra.mxu0 0.0
    %5414 = vmatprep.subr.mxu0 0.0
    %5415 = vmatpush1.msra.mxu0 0.0
    %5416 = vmatprep.subr.mxu0 0.0
    %5417 = vmatpush1.msra.mxu0 0.0
    %5418 = vmatprep.subr.mxu0 0.0
    %5419 = vmatpush1.msra.mxu0 0.0
    %5420 = vmatprep.subr.mxu0 0.0
    %5421 = vmatpush1.msra.mxu0 0.0
    %5422 = vmatprep.subr.mxu0 0.0
    %5423 = vmatpush1.msra.mxu0 0.0
    %5424 = vmatprep.subr.mxu0 0.0
    %5425 = vmatpush1.msra.mxu0 0.0
    %5426 = vmatprep.subr.mxu0 0.0
    %5427 = vmatpush1.msra.mxu0 0.0
    %5428 = vmatprep.subr.mxu0 0.0
    %5429 = vmatpush1.msra.mxu0 0.0
    %5430 = vmatprep.subr.mxu0 0.0
    %5431 = vmatpush1.msra.mxu0 0.0
    %5432 = vmatprep.subr.mxu0 0.0
    %5433 = vmatpush1.msra.mxu0 0.0
    %5434 = vmatprep.subr.mxu0 0.0
    %5435 = vmatpush1.msra.mxu0 0.0
    %5436 = vmatprep.subr.mxu0 0.0
    %5437 = vmatpush1.msra.mxu0 0.0
    %5438 = vmatprep.subr.mxu0 0.0
    %5439 = vmatpush1.msra.mxu0 0.0
    %5440 = vmatprep.subr.mxu0 0.0
    %5441 = vmatpush1.msra.mxu0 0.0
    %5442 = vmatprep.subr.mxu0 0.0
    %5443 = vmatpush1.msra.mxu0 0.0
    %5444 = vmatprep.subr.mxu0 0.0
    %5445 = vmatpush1.msra.mxu0 0.0
    %5446 = vmatprep.subr.mxu0 0.0
    %5447 = vmatpush1.msra.mxu0 0.0
    %5448 = vmatprep.subr.mxu0 0.0
    %5449 = vmatpush1.msra.mxu0 0.0
    %5450 = vmatprep.subr.mxu0 0.0
    %5451 = vmatpush1.msra.mxu0 0.0
    %5452 = vmatprep.subr.mxu0 0.0
    %5453 = vmatpush1.msra.mxu0 0.0
    %5454 = vmatprep.subr.mxu0 0.0
    %5455 = vmatpush1.msra.mxu0 0.0
    %5456 = vmatprep.subr.mxu0 0.0
    %5457 = vmatpush1.msra.mxu0 0.0
    %5458 = vmatprep.subr.mxu0 0.0
    %5459 = vmatpush1.msra.mxu0 0.0
    %5460 = vmatprep.subr.mxu0 0.0
    %5461 = vmatpush1.msra.mxu0 0.0
    %5462 = vmatprep.subr.mxu0 0.0
    %5463 = vmatpush1.msra.mxu0 0.0
    %5464 = vmatprep.subr.mxu0 0.0
    %5465 = vmatpush1.msra.mxu0 0.0
    %5466 = vmatprep.subr.mxu0 0.0
    %5467 = vmatpush1.msra.mxu0 0.0
    %5468 = vmatprep.mubr.f32.mxu0 0.0
    %5469 = vmatmul.mubr.f32.gmra.mrb[0].mxu0 %v5402
    %v5470 = vpop.f32.mrb[0].mxu0
    %v5471 = vadd.f32 0.0, %v5470
    %v5472 = vpop.f32.mrb[0].mxu0
    %5473 = vdwg.mxu0
    %v5474 = vadd.f32 %v3464, %v5471
    %v5475 = vxor.u32 %v5474, 2147483648
    %v5476 = vmul.f32 %v5475, 1.442695
    %v5477 = vpow.pop %v5476
    %v5478 = vadd.f32 %v5477, 1.0
    %v5479 = vrcp.pop %v5478
    %v5480 = vmul.f32 1.0, %v5479
    %5481 = vmatprep.subr.mxu0 0.0
    %5482 = vmatpush1.msra.mxu0 %v3327
    %5483 = vmatprep.subr.mxu0 0.0
    %5484 = vmatpush1.msra.mxu0 %v3328
    %5485 = vmatprep.subr.mxu0 0.0
    %5486 = vmatpush1.msra.mxu0 %v3329
    %5487 = vmatprep.subr.mxu0 0.0
    %5488 = vmatpush1.msra.mxu0 %v3330
    %5489 = vmatprep.subr.mxu0 0.0
    %5490 = vmatpush1.msra.mxu0 0.0
    %5491 = vmatprep.subr.mxu0 0.0
    %5492 = vmatpush1.msra.mxu0 0.0
    %5493 = vmatprep.subr.mxu0 0.0
    %5494 = vmatpush1.msra.mxu0 0.0
    %5495 = vmatprep.subr.mxu0 0.0
    %5496 = vmatpush1.msra.mxu0 0.0
    %5497 = vmatprep.subr.mxu0 0.0
    %5498 = vmatpush1.msra.mxu0 0.0
    %5499 = vmatprep.subr.mxu0 0.0
    %5500 = vmatpush1.msra.mxu0 0.0
    %5501 = vmatprep.subr.mxu0 0.0
    %5502 = vmatpush1.msra.mxu0 0.0
    %5503 = vmatprep.subr.mxu0 0.0
    %5504 = vmatpush1.msra.mxu0 0.0
    %5505 = vmatprep.subr.mxu0 0.0
    %5506 = vmatpush1.msra.mxu0 0.0
    %5507 = vmatprep.subr.mxu0 0.0
    %5508 = vmatpush1.msra.mxu0 0.0
    %5509 = vmatprep.subr.mxu0 0.0
    %5510 = vmatpush1.msra.mxu0 0.0
    %5511 = vmatprep.subr.mxu0 0.0
    %5512 = vmatpush1.msra.mxu0 0.0
    %5513 = vmatprep.subr.mxu0 0.0
    %5514 = vmatpush1.msra.mxu0 0.0
    %5515 = vmatprep.subr.mxu0 0.0
    %5516 = vmatpush1.msra.mxu0 0.0
    %5517 = vmatprep.subr.mxu0 0.0
    %5518 = vmatpush1.msra.mxu0 0.0
    %5519 = vmatprep.subr.mxu0 0.0
    %5520 = vmatpush1.msra.mxu0 0.0
    %5521 = vmatprep.subr.mxu0 0.0
    %5522 = vmatpush1.msra.mxu0 0.0
    %5523 = vmatprep.subr.mxu0 0.0
    %5524 = vmatpush1.msra.mxu0 0.0
    %5525 = vmatprep.subr.mxu0 0.0
    %5526 = vmatpush1.msra.mxu0 0.0
    %5527 = vmatprep.subr.mxu0 0.0
    %5528 = vmatpush1.msra.mxu0 0.0
    %5529 = vmatprep.subr.mxu0 0.0
    %5530 = vmatpush1.msra.mxu0 0.0
    %5531 = vmatprep.subr.mxu0 0.0
    %5532 = vmatpush1.msra.mxu0 0.0
    %5533 = vmatprep.subr.mxu0 0.0
    %5534 = vmatpush1.msra.mxu0 0.0
    %5535 = vmatprep.subr.mxu0 0.0
    %5536 = vmatpush1.msra.mxu0 0.0
    %5537 = vmatprep.subr.mxu0 0.0
    %5538 = vmatpush1.msra.mxu0 0.0
    %5539 = vmatprep.subr.mxu0 0.0
    %5540 = vmatpush1.msra.mxu0 0.0
    %5541 = vmatprep.subr.mxu0 0.0
    %5542 = vmatpush1.msra.mxu0 0.0
    %5543 = vmatprep.subr.mxu0 0.0
    %5544 = vmatpush1.msra.mxu0 0.0
    %5545 = vmatprep.mubr.f32.mxu0 0.0
    %5546 = vmatmul.mubr.f32.gmra.mrb[0].mxu0 %v5402
    %v5547 = vpop.f32.mrb[0].mxu0
    %v5548 = vadd.f32 0.0, %v5547
    %v5549 = vpop.f32.mrb[0].mxu0
    %5550 = vdwg.mxu0
    %v5551 = vadd.f32 %v3589, %v5548
    %v5552 = vxor.u32 %v5551, 2147483648
    %v5553 = vmul.f32 %v5552, 1.442695
    %v5554 = vpow.pop %v5553
    %v5555 = vadd.f32 %v5554, 1.0
    %v5556 = vrcp.pop %v5555
    %v5557 = vmul.f32 1.0, %v5556
    %5558 = vmatprep.subr.mxu0 0.0
    %5559 = vmatpush1.msra.mxu0 %v3331
    %5560 = vmatprep.subr.mxu0 0.0
    %5561 = vmatpush1.msra.mxu0 %v3332
    %5562 = vmatprep.subr.mxu0 0.0
    %5563 = vmatpush1.msra.mxu0 %v3333
    %5564 = vmatprep.subr.mxu0 0.0
    %5565 = vmatpush1.msra.mxu0 %v3334
    %5566 = vmatprep.subr.mxu0 0.0
    %5567 = vmatpush1.msra.mxu0 0.0
    %5568 = vmatprep.subr.mxu0 0.0
    %5569 = vmatpush1.msra.mxu0 0.0
    %5570 = vmatprep.subr.mxu0 0.0
    %5571 = vmatpush1.msra.mxu0 0.0
    %5572 = vmatprep.subr.mxu0 0.0
    %5573 = vmatpush1.msra.mxu0 0.0
    %5574 = vmatprep.subr.mxu0 0.0
    %5575 = vmatpush1.msra.mxu0 0.0
    %5576 = vmatprep.subr.mxu0 0.0
    %5577 = vmatpush1.msra.mxu0 0.0
    %5578 = vmatprep.subr.mxu0 0.0
    %5579 = vmatpush1.msra.mxu0 0.0
    %5580 = vmatprep.subr.mxu0 0.0
    %5581 = vmatpush1.msra.mxu0 0.0
    %5582 = vmatprep.subr.mxu0 0.0
    %5583 = vmatpush1.msra.mxu0 0.0
    %5584 = vmatprep.subr.mxu0 0.0
    %5585 = vmatpush1.msra.mxu0 0.0
    %5586 = vmatprep.subr.mxu0 0.0
    %5587 = vmatpush1.msra.mxu0 0.0
    %5588 = vmatprep.subr.mxu0 0.0
    %5589 = vmatpush1.msra.mxu0 0.0
    %5590 = vmatprep.subr.mxu0 0.0
    %5591 = vmatpush1.msra.mxu0 0.0
    %5592 = vmatprep.subr.mxu0 0.0
    %5593 = vmatpush1.msra.mxu0 0.0
    %5594 = vmatprep.subr.mxu0 0.0
    %5595 = vmatpush1.msra.mxu0 0.0
    %5596 = vmatprep.subr.mxu0 0.0
    %5597 = vmatpush1.msra.mxu0 0.0
    %5598 = vmatprep.subr.mxu0 0.0
    %5599 = vmatpush1.msra.mxu0 0.0
    %5600 = vmatprep.subr.mxu0 0.0
    %5601 = vmatpush1.msra.mxu0 0.0
    %5602 = vmatprep.subr.mxu0 0.0
    %5603 = vmatpush1.msra.mxu0 0.0
    %5604 = vmatprep.subr.mxu0 0.0
    %5605 = vmatpush1.msra.mxu0 0.0
    %5606 = vmatprep.subr.mxu0 0.0
    %5607 = vmatpush1.msra.mxu0 0.0
    %5608 = vmatprep.subr.mxu0 0.0
    %5609 = vmatpush1.msra.mxu0 0.0
    %5610 = vmatprep.subr.mxu0 0.0
    %5611 = vmatpush1.msra.mxu0 0.0
    %5612 = vmatprep.subr.mxu0 0.0
    %5613 = vmatpush1.msra.mxu0 0.0
    %5614 = vmatprep.subr.mxu0 0.0
    %5615 = vmatpush1.msra.mxu0 0.0
    %5616 = vmatprep.subr.mxu0 0.0
    %5617 = vmatpush1.msra.mxu0 0.0
    %5618 = vmatprep.subr.mxu0 0.0
    %5619 = vmatpush1.msra.mxu0 0.0
    %5620 = vmatprep.subr.mxu0 0.0
    %5621 = vmatpush1.msra.mxu0 0.0
    %5622 = vmatprep.mubr.f32.mxu0 0.0
    %5623 = vmatmul.mubr.f32.gmra.mrb[0].mxu0 %v5402
    %v5624 = vpop.f32.mrb[0].mxu0
    %v5625 = vadd.f32 0.0, %v5624
    %v5626 = vpop.f32.mrb[0].mxu0
    %5627 = vdwg.mxu0
    %v5628 = vadd.f32 %v3714, %v5625
    %v5629 = vtanh.pop %v5628
    %5630 = vmatprep.subr.mxu0 0.0
    %5631 = vmatpush1.msra.mxu0 %v3335
    %5632 = vmatprep.subr.mxu0 0.0
    %5633 = vmatpush1.msra.mxu0 %v3336
    %5634 = vmatprep.subr.mxu0 0.0
    %5635 = vmatpush1.msra.mxu0 %v3337
    %5636 = vmatprep.subr.mxu0 0.0
    %5637 = vmatpush1.msra.mxu0 %v3338
    %5638 = vmatprep.subr.mxu0 0.0
    %5639 = vmatpush1.msra.mxu0 0.0
    %5640 = vmatprep.subr.mxu0 0.0
    %5641 = vmatpush1.msra.mxu0 0.0
    %5642 = vmatprep.subr.mxu0 0.0
    %5643 = vmatpush1.msra.mxu0 0.0
    %5644 = vmatprep.subr.mxu0 0.0
    %5645 = vmatpush1.msra.mxu0 0.0
    %5646 = vmatprep.subr.mxu0 0.0
    %5647 = vmatpush1.msra.mxu0 0.0
    %5648 = vmatprep.subr.mxu0 0.0
    %5649 = vmatpush1.msra.mxu0 0.0
    %5650 = vmatprep.subr.mxu0 0.0
    %5651 = vmatpush1.msra.mxu0 0.0
    %5652 = vmatprep.subr.mxu0 0.0
    %5653 = vmatpush1.msra.mxu0 0.0
    %5654 = vmatprep.subr.mxu0 0.0
    %5655 = vmatpush1.msra.mxu0 0.0
    %5656 = vmatprep.subr.mxu0 0.0
    %5657 = vmatpush1.msra.mxu0 0.0
    %5658 = vmatprep.subr.mxu0 0.0
    %5659 = vmatpush1.msra.mxu0 0.0
    %5660 = vmatprep.subr.mxu0 0.0
    %5661 = vmatpush1.msra.mxu0 0.0
    %5662 = vmatprep.subr.mxu0 0.0
    %5663 = vmatpush1.msra.mxu0 0.0
    %5664 = vmatprep.subr.mxu0 0.0
    %5665 = vmatpush1.msra.mxu0 0.0
    %5666 = vmatprep.subr.mxu0 0.0
    %5667 = vmatpush1.msra.mxu0 0.0
    %5668 = vmatprep.subr.mxu0 0.0
    %5669 = vmatpush1.msra.mxu0 0.0
    %5670 = vmatprep.subr.mxu0 0.0
    %5671 = vmatpush1.msra.mxu0 0.0
    %5672 = vmatprep.subr.mxu0 0.0
    %5673 = vmatpush1.msra.mxu0 0.0
    %5674 = vmatprep.subr.mxu0 0.0
    %5675 = vmatpush1.msra.mxu0 0.0
    %5676 = vmatprep.subr.mxu0 0.0
    %5677 = vmatpush1.msra.mxu0 0.0
    %5678 = vmatprep.subr.mxu0 0.0
    %5679 = vmatpush1.msra.mxu0 0.0
    %5680 = vmatprep.subr.mxu0 0.0
    %5681 = vmatpush1.msra.mxu0 0.0
    %5682 = vmatprep.subr.mxu0 0.0
    %5683 = vmatpush1.msra.mxu0 0.0
    %5684 = vmatprep.subr.mxu0 0.0
    %5685 = vmatpush1.msra.mxu0 0.0
    %5686 = vmatprep.subr.mxu0 0.0
    %5687 = vmatpush1.msra.mxu0 0.0
    %5688 = vmatprep.subr.mxu0 0.0
    %5689 = vmatpush1.msra.mxu0 0.0
    %5690 = vmatprep.subr.mxu0 0.0
    %5691 = vmatpush1.msra.mxu0 0.0
    %5692 = vmatprep.subr.mxu0 0.0
    %5693 = vmatpush1.msra.mxu0 0.0
    %5694 = vmatprep.mubr.f32.mxu0 0.0
    %5695 = vmatmul.mubr.f32.gmra.mrb[0].mxu0 %v5402
    %v5696 = vpop.f32.mrb[0].mxu0
    %v5697 = vadd.f32 0.0, %v5696
    %v5698 = vpop.f32.mrb[0].mxu0
    %5699 = vdwg.mxu0
    %v5700 = vadd.f32 %v3839, %v5697
    %v5701 = vxor.u32 %v5700, 2147483648
    %v5702 = vmul.f32 %v5701, 1.442695
    %v5703 = vpow.pop %v5702
    %v5704 = vadd.f32 %v5703, 1.0
    %v5705 = vrcp.pop %v5704
    %v5706 = vmul.f32 1.0, %v5705
    %v5707 = vmul.f32 %v5557, %v5398
    %v5708 = vmul.f32 %v5480, %v5629
    %v5709 = vadd.f32 %v5707, %v5708
    %v5710 = vtanh.pop %v5709
    %v5711 = vmul.f32 %v5706, %v5710
    %v5713 = vsel %vm753, %v5711, 0
    %5715 = vmatprep.subr.mxu0 0.0
    %5716 = vmatpush1.msra.mxu0 %v3323
    %5717 = vmatprep.subr.mxu0 0.0
    %5718 = vmatpush1.msra.mxu0 %v3324
    %5719 = vmatprep.subr.mxu0 0.0
    %5720 = vmatpush1.msra.mxu0 %v3325
    %5721 = vmatprep.subr.mxu0 0.0
    %5722 = vmatpush1.msra.mxu0 %v3326
    %5723 = vmatprep.subr.mxu0 0.0
    %5724 = vmatpush1.msra.mxu0 0.0
    %5725 = vmatprep.subr.mxu0 0.0
    %5726 = vmatpush1.msra.mxu0 0.0
    %5727 = vmatprep.subr.mxu0 0.0
    %5728 = vmatpush1.msra.mxu0 0.0
    %5729 = vmatprep.subr.mxu0 0.0
    %5730 = vmatpush1.msra.mxu0 0.0
    %5731 = vmatprep.subr.mxu0 0.0
    %5732 = vmatpush1.msra.mxu0 0.0
    %5733 = vmatprep.subr.mxu0 0.0
    %5734 = vmatpush1.msra.mxu0 0.0
    %5735 = vmatprep.subr.mxu0 0.0
    %5736 = vmatpush1.msra.mxu0 0.0
    %5737 = vmatprep.subr.mxu0 0.0
    %5738 = vmatpush1.msra.mxu0 0.0
    %5739 = vmatprep.subr.mxu0 0.0
    %5740 = vmatpush1.msra.mxu0 0.0
    %5741 = vmatprep.subr.mxu0 0.0
    %5742 = vmatpush1.msra.mxu0 0.0
    %5743 = vmatprep.subr.mxu0 0.0
    %5744 = vmatpush1.msra.mxu0 0.0
    %5745 = vmatprep.subr.mxu0 0.0
    %5746 = vmatpush1.msra.mxu0 0.0
    %5747 = vmatprep.subr.mxu0 0.0
    %5748 = vmatpush1.msra.mxu0 0.0
    %5749 = vmatprep.subr.mxu0 0.0
    %5750 = vmatpush1.msra.mxu0 0.0
    %5751 = vmatprep.subr.mxu0 0.0
    %5752 = vmatpush1.msra.mxu0 0.0
    %5753 = vmatprep.subr.mxu0 0.0
    %5754 = vmatpush1.msra.mxu0 0.0
    %5755 = vmatprep.subr.mxu0 0.0
    %5756 = vmatpush1.msra.mxu0 0.0
    %5757 = vmatprep.subr.mxu0 0.0
    %5758 = vmatpush1.msra.mxu0 0.0
    %5759 = vmatprep.subr.mxu0 0.0
    %5760 = vmatpush1.msra.mxu0 0.0
    %5761 = vmatprep.subr.mxu0 0.0
    %5762 = vmatpush1.msra.mxu0 0.0
    %5763 = vmatprep.subr.mxu0 0.0
    %5764 = vmatpush1.msra.mxu0 0.0
    %5765 = vmatprep.subr.mxu0 0.0
    %5766 = vmatpush1.msra.mxu0 0.0
    %5767 = vmatprep.subr.mxu0 0.0
    %5768 = vmatpush1.msra.mxu0 0.0
    %5769 = vmatprep.subr.mxu0 0.0
    %5770 = vmatpush1.msra.mxu0 0.0
    %5771 = vmatprep.subr.mxu0 0.0
    %5772 = vmatpush1.msra.mxu0 0.0
    %5773 = vmatprep.subr.mxu0 0.0
    %5774 = vmatpush1.msra.mxu0 0.0
    %5775 = vmatprep.subr.mxu0 0.0
    %5776 = vmatpush1.msra.mxu0 0.0
    %5777 = vmatprep.subr.mxu0 0.0
    %5778 = vmatpush1.msra.mxu0 0.0
    %5779 = vmatprep.mubr.f32.mxu0 0.0
    %5780 = vmatmul.mubr.f32.gmra.mrb[0].mxu0 %v5713
    %v5781 = vpop.f32.mrb[0].mxu0
    %v5782 = vadd.f32 0.0, %v5781
    %v5783 = vpop.f32.mrb[0].mxu0
    %5784 = vdwg.mxu0
    %v5785 = vadd.f32 %v3463, %v5782
    %v5786 = vxor.u32 %v5785, 2147483648
    %v5787 = vmul.f32 %v5786, 1.442695
    %v5788 = vpow.pop %v5787
    %v5789 = vadd.f32 %v5788, 1.0
    %v5790 = vrcp.pop %v5789
    %v5791 = vmul.f32 1.0, %v5790
    %5792 = vmatprep.subr.mxu0 0.0
    %5793 = vmatpush1.msra.mxu0 %v3327
    %5794 = vmatprep.subr.mxu0 0.0
    %5795 = vmatpush1.msra.mxu0 %v3328
    %5796 = vmatprep.subr.mxu0 0.0
    %5797 = vmatpush1.msra.mxu0 %v3329
    %5798 = vmatprep.subr.mxu0 0.0
    %5799 = vmatpush1.msra.mxu0 %v3330
    %5800 = vmatprep.subr.mxu0 0.0
    %5801 = vmatpush1.msra.mxu0 0.0
    %5802 = vmatprep.subr.mxu0 0.0
    %5803 = vmatpush1.msra.mxu0 0.0
    %5804 = vmatprep.subr.mxu0 0.0
    %5805 = vmatpush1.msra.mxu0 0.0
    %5806 = vmatprep.subr.mxu0 0.0
    %5807 = vmatpush1.msra.mxu0 0.0
    %5808 = vmatprep.subr.mxu0 0.0
    %5809 = vmatpush1.msra.mxu0 0.0
    %5810 = vmatprep.subr.mxu0 0.0
    %5811 = vmatpush1.msra.mxu0 0.0
    %5812 = vmatprep.subr.mxu0 0.0
    %5813 = vmatpush1.msra.mxu0 0.0
    %5814 = vmatprep.subr.mxu0 0.0
    %5815 = vmatpush1.msra.mxu0 0.0
    %5816 = vmatprep.subr.mxu0 0.0
    %5817 = vmatpush1.msra.mxu0 0.0
    %5818 = vmatprep.subr.mxu0 0.0
    %5819 = vmatpush1.msra.mxu0 0.0
    %5820 = vmatprep.subr.mxu0 0.0
    %5821 = vmatpush1.msra.mxu0 0.0
    %5822 = vmatprep.subr.mxu0 0.0
    %5823 = vmatpush1.msra.mxu0 0.0
    %5824 = vmatprep.subr.mxu0 0.0
    %5825 = vmatpush1.msra.mxu0 0.0
    %5826 = vmatprep.subr.mxu0 0.0
    %5827 = vmatpush1.msra.mxu0 0.0
    %5828 = vmatprep.subr.mxu0 0.0
    %5829 = vmatpush1.msra.mxu0 0.0
    %5830 = vmatprep.subr.mxu0 0.0
    %5831 = vmatpush1.msra.mxu0 0.0
    %5832 = vmatprep.subr.mxu0 0.0
    %5833 = vmatpush1.msra.mxu0 0.0
    %5834 = vmatprep.subr.mxu0 0.0
    %5835 = vmatpush1.msra.mxu0 0.0
    %5836 = vmatprep.subr.mxu0 0.0
    %5837 = vmatpush1.msra.mxu0 0.0
    %5838 = vmatprep.subr.mxu0 0.0
    %5839 = vmatpush1.msra.mxu0 0.0
    %5840 = vmatprep.subr.mxu0 0.0
    %5841 = vmatpush1.msra.mxu0 0.0
    %5842 = vmatprep.subr.mxu0 0.0
    %5843 = vmatpush1.msra.mxu0 0.0
    %5844 = vmatprep.subr.mxu0 0.0
    %5845 = vmatpush1.msra.mxu0 0.0
    %5846 = vmatprep.subr.mxu0 0.0
    %5847 = vmatpush1.msra.mxu0 0.0
    %5848 = vmatprep.subr.mxu0 0.0
    %5849 = vmatpush1.msra.mxu0 0.0
    %5850 = vmatprep.subr.mxu0 0.0
    %5851 = vmatpush1.msra.mxu0 0.0
    %5852 = vmatprep.subr.mxu0 0.0
    %5853 = vmatpush1.msra.mxu0 0.0
    %5854 = vmatprep.subr.mxu0 0.0
    %5855 = vmatpush1.msra.mxu0 0.0
    %5856 = vmatprep.mubr.f32.mxu0 0.0
    %5857 = vmatmul.mubr.f32.gmra.mrb[0].mxu0 %v5713
    %v5858 = vpop.f32.mrb[0].mxu0
    %v5859 = vadd.f32 0.0, %v5858
    %v5860 = vpop.f32.mrb[0].mxu0
    %5861 = vdwg.mxu0
    %v5862 = vadd.f32 %v3588, %v5859
    %v5863 = vxor.u32 %v5862, 2147483648
    %v5864 = vmul.f32 %v5863, 1.442695
    %v5865 = vpow.pop %v5864
    %v5866 = vadd.f32 %v5865, 1.0
    %v5867 = vrcp.pop %v5866
    %v5868 = vmul.f32 1.0, %v5867
    %5869 = vmatprep.subr.mxu0 0.0
    %5870 = vmatpush1.msra.mxu0 %v3331
    %5871 = vmatprep.subr.mxu0 0.0
    %5872 = vmatpush1.msra.mxu0 %v3332
    %5873 = vmatprep.subr.mxu0 0.0
    %5874 = vmatpush1.msra.mxu0 %v3333
    %5875 = vmatprep.subr.mxu0 0.0
    %5876 = vmatpush1.msra.mxu0 %v3334
    %5877 = vmatprep.subr.mxu0 0.0
    %5878 = vmatpush1.msra.mxu0 0.0
    %5879 = vmatprep.subr.mxu0 0.0
    %5880 = vmatpush1.msra.mxu0 0.0
    %5881 = vmatprep.subr.mxu0 0.0
    %5882 = vmatpush1.msra.mxu0 0.0
    %5883 = vmatprep.subr.mxu0 0.0
    %5884 = vmatpush1.msra.mxu0 0.0
    %5885 = vmatprep.subr.mxu0 0.0
    %5886 = vmatpush1.msra.mxu0 0.0
    %5887 = vmatprep.subr.mxu0 0.0
    %5888 = vmatpush1.msra.mxu0 0.0
    %5889 = vmatprep.subr.mxu0 0.0
    %5890 = vmatpush1.msra.mxu0 0.0
    %5891 = vmatprep.subr.mxu0 0.0
    %5892 = vmatpush1.msra.mxu0 0.0
    %5893 = vmatprep.subr.mxu0 0.0
    %5894 = vmatpush1.msra.mxu0 0.0
    %5895 = vmatprep.subr.mxu0 0.0
    %5896 = vmatpush1.msra.mxu0 0.0
    %5897 = vmatprep.subr.mxu0 0.0
    %5898 = vmatpush1.msra.mxu0 0.0
    %5899 = vmatprep.subr.mxu0 0.0
    %5900 = vmatpush1.msra.mxu0 0.0
    %5901 = vmatprep.subr.mxu0 0.0
    %5902 = vmatpush1.msra.mxu0 0.0
    %5903 = vmatprep.subr.mxu0 0.0
    %5904 = vmatpush1.msra.mxu0 0.0
    %5905 = vmatprep.subr.mxu0 0.0
    %5906 = vmatpush1.msra.mxu0 0.0
    %5907 = vmatprep.subr.mxu0 0.0
    %5908 = vmatpush1.msra.mxu0 0.0
    %5909 = vmatprep.subr.mxu0 0.0
    %5910 = vmatpush1.msra.mxu0 0.0
    %5911 = vmatprep.subr.mxu0 0.0
    %5912 = vmatpush1.msra.mxu0 0.0
    %5913 = vmatprep.subr.mxu0 0.0
    %5914 = vmatpush1.msra.mxu0 0.0
    %5915 = vmatprep.subr.mxu0 0.0
    %5916 = vmatpush1.msra.mxu0 0.0
    %5917 = vmatprep.subr.mxu0 0.0
    %5918 = vmatpush1.msra.mxu0 0.0
    %5919 = vmatprep.subr.mxu0 0.0
    %5920 = vmatpush1.msra.mxu0 0.0
    %5921 = vmatprep.subr.mxu0 0.0
    %5922 = vmatpush1.msra.mxu0 0.0
    %5923 = vmatprep.subr.mxu0 0.0
    %5924 = vmatpush1.msra.mxu0 0.0
    %5925 = vmatprep.subr.mxu0 0.0
    %5926 = vmatpush1.msra.mxu0 0.0
    %5927 = vmatprep.subr.mxu0 0.0
    %5928 = vmatpush1.msra.mxu0 0.0
    %5929 = vmatprep.subr.mxu0 0.0
    %5930 = vmatpush1.msra.mxu0 0.0
    %5931 = vmatprep.subr.mxu0 0.0
    %5932 = vmatpush1.msra.mxu0 0.0
    %5933 = vmatprep.mubr.f32.mxu0 0.0
    %5934 = vmatmul.mubr.f32.gmra.mrb[0].mxu0 %v5713
    %v5935 = vpop.f32.mrb[0].mxu0
    %v5936 = vadd.f32 0.0, %v5935
    %v5937 = vpop.f32.mrb[0].mxu0
    %5938 = vdwg.mxu0
    %v5939 = vadd.f32 %v3713, %v5936
    %v5940 = vtanh.pop %v5939
    %5941 = vmatprep.subr.mxu0 0.0
    %5942 = vmatpush1.msra.mxu0 %v3335
    %5943 = vmatprep.subr.mxu0 0.0
    %5944 = vmatpush1.msra.mxu0 %v3336
    %5945 = vmatprep.subr.mxu0 0.0
    %5946 = vmatpush1.msra.mxu0 %v3337
    %5947 = vmatprep.subr.mxu0 0.0
    %5948 = vmatpush1.msra.mxu0 %v3338
    %5949 = vmatprep.subr.mxu0 0.0
    %5950 = vmatpush1.msra.mxu0 0.0
    %5951 = vmatprep.subr.mxu0 0.0
    %5952 = vmatpush1.msra.mxu0 0.0
    %5953 = vmatprep.subr.mxu0 0.0
    %5954 = vmatpush1.msra.mxu0 0.0
    %5955 = vmatprep.subr.mxu0 0.0
    %5956 = vmatpush1.msra.mxu0 0.0
    %5957 = vmatprep.subr.mxu0 0.0
    %5958 = vmatpush1.msra.mxu0 0.0
    %5959 = vmatprep.subr.mxu0 0.0
    %5960 = vmatpush1.msra.mxu0 0.0
    %5961 = vmatprep.subr.mxu0 0.0
    %5962 = vmatpush1.msra.mxu0 0.0
    %5963 = vmatprep.subr.mxu0 0.0
    %5964 = vmatpush1.msra.mxu0 0.0
    %5965 = vmatprep.subr.mxu0 0.0
    %5966 = vmatpush1.msra.mxu0 0.0
    %5967 = vmatprep.subr.mxu0 0.0
    %5968 = vmatpush1.msra.mxu0 0.0
    %5969 = vmatprep.subr.mxu0 0.0
    %5970 = vmatpush1.msra.mxu0 0.0
    %5971 = vmatprep.subr.mxu0 0.0
    %5972 = vmatpush1.msra.mxu0 0.0
    %5973 = vmatprep.subr.mxu0 0.0
    %5974 = vmatpush1.msra.mxu0 0.0
    %5975 = vmatprep.subr.mxu0 0.0
    %5976 = vmatpush1.msra.mxu0 0.0
    %5977 = vmatprep.subr.mxu0 0.0
    %5978 = vmatpush1.msra.mxu0 0.0
    %5979 = vmatprep.subr.mxu0 0.0
    %5980 = vmatpush1.msra.mxu0 0.0
    %5981 = vmatprep.subr.mxu0 0.0
    %5982 = vmatpush1.msra.mxu0 0.0
    %5983 = vmatprep.subr.mxu0 0.0
    %5984 = vmatpush1.msra.mxu0 0.0
    %5985 = vmatprep.subr.mxu0 0.0
    %5986 = vmatpush1.msra.mxu0 0.0
    %5987 = vmatprep.subr.mxu0 0.0
    %5988 = vmatpush1.msra.mxu0 0.0
    %5989 = vmatprep.subr.mxu0 0.0
    %5990 = vmatpush1.msra.mxu0 0.0
    %5991 = vmatprep.subr.mxu0 0.0
    %5992 = vmatpush1.msra.mxu0 0.0
    %5993 = vmatprep.subr.mxu0 0.0
    %5994 = vmatpush1.msra.mxu0 0.0
    %5995 = vmatprep.subr.mxu0 0.0
    %5996 = vmatpush1.msra.mxu0 0.0
    %5997 = vmatprep.subr.mxu0 0.0
    %5998 = vmatpush1.msra.mxu0 0.0
    %5999 = vmatprep.subr.mxu0 0.0
    %6000 = vmatpush1.msra.mxu0 0.0
    %6001 = vmatprep.subr.mxu0 0.0
    %6002 = vmatpush1.msra.mxu0 0.0
    %6003 = vmatprep.subr.mxu0 0.0
    %6004 = vmatpush1.msra.mxu0 0.0
    %6005 = vmatprep.mubr.f32.mxu0 0.0
    %6006 = vmatmul.mubr.f32.gmra.mrb[0].mxu0 %v5713
    %v6007 = vpop.f32.mrb[0].mxu0
    %v6008 = vadd.f32 0.0, %v6007
    %v6009 = vpop.f32.mrb[0].mxu0
    %6010 = vdwg.mxu0
    %v6011 = vadd.f32 %v3838, %v6008
    %v6012 = vxor.u32 %v6011, 2147483648
    %v6013 = vmul.f32 %v6012, 1.442695
    %v6014 = vpow.pop %v6013
    %v6015 = vadd.f32 %v6014, 1.0
    %v6016 = vrcp.pop %v6015
    %v6017 = vmul.f32 1.0, %v6016
    %v6018 = vmul.f32 %v5868, %v5709
    %v6019 = vmul.f32 %v5791, %v5940
    %v6020 = vadd.f32 %v6018, %v6019
    %v6021 = vtanh.pop %v6020
    %v6022 = vmul.f32 %v6017, %v6021
    %v6024 = vsel %vm753, %v6022, 0
    %6026 = vmatprep.subr.mxu0 0.0
    %6027 = vmatpush1.msra.mxu0 %v3323
    %6028 = vmatprep.subr.mxu0 0.0
    %6029 = vmatpush1.msra.mxu0 %v3324
    %6030 = vmatprep.subr.mxu0 0.0
    %6031 = vmatpush1.msra.mxu0 %v3325
    %6032 = vmatprep.subr.mxu0 0.0
    %6033 = vmatpush1.msra.mxu0 %v3326
    %6034 = vmatprep.subr.mxu0 0.0
    %6035 = vmatpush1.msra.mxu0 0.0
    %6036 = vmatprep.subr.mxu0 0.0
    %6037 = vmatpush1.msra.mxu0 0.0
    %6038 = vmatprep.subr.mxu0 0.0
    %6039 = vmatpush1.msra.mxu0 0.0
    %6040 = vmatprep.subr.mxu0 0.0
    %6041 = vmatpush1.msra.mxu0 0.0
    %6042 = vmatprep.subr.mxu0 0.0
    %6043 = vmatpush1.msra.mxu0 0.0
    %6044 = vmatprep.subr.mxu0 0.0
    %6045 = vmatpush1.msra.mxu0 0.0
    %6046 = vmatprep.subr.mxu0 0.0
    %6047 = vmatpush1.msra.mxu0 0.0
    %6048 = vmatprep.subr.mxu0 0.0
    %6049 = vmatpush1.msra.mxu0 0.0
    %6050 = vmatprep.subr.mxu0 0.0
    %6051 = vmatpush1.msra.mxu0 0.0
    %6052 = vmatprep.subr.mxu0 0.0
    %6053 = vmatpush1.msra.mxu0 0.0
    %6054 = vmatprep.subr.mxu0 0.0
    %6055 = vmatpush1.msra.mxu0 0.0
    %6056 = vmatprep.subr.mxu0 0.0
    %6057 = vmatpush1.msra.mxu0 0.0
    %6058 = vmatprep.subr.mxu0 0.0
    %6059 = vmatpush1.msra.mxu0 0.0
    %6060 = vmatprep.subr.mxu0 0.0
    %6061 = vmatpush1.msra.mxu0 0.0
    %6062 = vmatprep.subr.mxu0 0.0
    %6063 = vmatpush1.msra.mxu0 0.0
    %6064 = vmatprep.subr.mxu0 0.0
    %6065 = vmatpush1.msra.mxu0 0.0
    %6066 = vmatprep.subr.mxu0 0.0
    %6067 = vmatpush1.msra.mxu0 0.0
    %6068 = vmatprep.subr.mxu0 0.0
    %6069 = vmatpush1.msra.mxu0 0.0
    %6070 = vmatprep.subr.mxu0 0.0
    %6071 = vmatpush1.msra.mxu0 0.0
    %6072 = vmatprep.subr.mxu0 0.0
    %6073 = vmatpush1.msra.mxu0 0.0
    %6074 = vmatprep.subr.mxu0 0.0
    %6075 = vmatpush1.msra.mxu0 0.0
    %6076 = vmatprep.subr.mxu0 0.0
    %6077 = vmatpush1.msra.mxu0 0.0
    %6078 = vmatprep.subr.mxu0 0.0
    %6079 = vmatpush1.msra.mxu0 0.0
    %6080 = vmatprep.subr.mxu0 0.0
    %6081 = vmatpush1.msra.mxu0 0.0
    %6082 = vmatprep.subr.mxu0 0.0
    %6083 = vmatpush1.msra.mxu0 0.0
    %6084 = vmatprep.subr.mxu0 0.0
    %6085 = vmatpush1.msra.mxu0 0.0
    %6086 = vmatprep.subr.mxu0 0.0
    %6087 = vmatpush1.msra.mxu0 0.0
    %6088 = vmatprep.subr.mxu0 0.0
    %6089 = vmatpush1.msra.mxu0 0.0
    %6090 = vmatprep.mubr.f32.mxu0 0.0
    %6091 = vmatmul.mubr.f32.gmra.mrb[0].mxu0 %v6024
    %v6092 = vpop.f32.mrb[0].mxu0
    %v6093 = vadd.f32 0.0, %v6092
    %v6094 = vpop.f32.mrb[0].mxu0
    %6095 = vdwg.mxu0
    %v6096 = vadd.f32 %v3465, %v6093
    %v6097 = vxor.u32 %v6096, 2147483648
    %v6098 = vmul.f32 %v6097, 1.442695
    %v6099 = vpow.pop %v6098
    %v6100 = vadd.f32 %v6099, 1.0
    %v6101 = vrcp.pop %v6100
    %v6102 = vmul.f32 1.0, %v6101
    %6103 = vmatprep.subr.mxu0 0.0
    %6104 = vmatpush1.msra.mxu0 %v3327
    %6105 = vmatprep.subr.mxu0 0.0
    %6106 = vmatpush1.msra.mxu0 %v3328
    %6107 = vmatprep.subr.mxu0 0.0
    %6108 = vmatpush1.msra.mxu0 %v3329
    %6109 = vmatprep.subr.mxu0 0.0
    %6110 = vmatpush1.msra.mxu0 %v3330
    %6111 = vmatprep.subr.mxu0 0.0
    %6112 = vmatpush1.msra.mxu0 0.0
    %6113 = vmatprep.subr.mxu0 0.0
    %6114 = vmatpush1.msra.mxu0 0.0
    %6115 = vmatprep.subr.mxu0 0.0
    %6116 = vmatpush1.msra.mxu0 0.0
    %6117 = vmatprep.subr.mxu0 0.0
    %6118 = vmatpush1.msra.mxu0 0.0
    %6119 = vmatprep.subr.mxu0 0.0
    %6120 = vmatpush1.msra.mxu0 0.0
    %6121 = vmatprep.subr.mxu0 0.0
    %6122 = vmatpush1.msra.mxu0 0.0
    %6123 = vmatprep.subr.mxu0 0.0
    %6124 = vmatpush1.msra.mxu0 0.0
    %6125 = vmatprep.subr.mxu0 0.0
    %6126 = vmatpush1.msra.mxu0 0.0
    %6127 = vmatprep.subr.mxu0 0.0
    %6128 = vmatpush1.msra.mxu0 0.0
    %6129 = vmatprep.subr.mxu0 0.0
    %6130 = vmatpush1.msra.mxu0 0.0
    %6131 = vmatprep.subr.mxu0 0.0
    %6132 = vmatpush1.msra.mxu0 0.0
    %6133 = vmatprep.subr.mxu0 0.0
    %6134 = vmatpush1.msra.mxu0 0.0
    %6135 = vmatprep.subr.mxu0 0.0
    %6136 = vmatpush1.msra.mxu0 0.0
    %6137 = vmatprep.subr.mxu0 0.0
    %6138 = vmatpush1.msra.mxu0 0.0
    %6139 = vmatprep.subr.mxu0 0.0
    %6140 = vmatpush1.msra.mxu0 0.0
    %6141 = vmatprep.subr.mxu0 0.0
    %6142 = vmatpush1.msra.mxu0 0.0
    %6143 = vmatprep.subr.mxu0 0.0
    %6144 = vmatpush1.msra.mxu0 0.0
    %6145 = vmatprep.subr.mxu0 0.0
    %6146 = vmatpush1.msra.mxu0 0.0
    %6147 = vmatprep.subr.mxu0 0.0
    %6148 = vmatpush1.msra.mxu0 0.0
    %6149 = vmatprep.subr.mxu0 0.0
    %6150 = vmatpush1.msra.mxu0 0.0
    %6151 = vmatprep.subr.mxu0 0.0
    %6152 = vmatpush1.msra.mxu0 0.0
    %6153 = vmatprep.subr.mxu0 0.0
    %6154 = vmatpush1.msra.mxu0 0.0
    %6155 = vmatprep.subr.mxu0 0.0
    %6156 = vmatpush1.msra.mxu0 0.0
    %6157 = vmatprep.subr.mxu0 0.0
    %6158 = vmatpush1.msra.mxu0 0.0
    %6159 = vmatprep.subr.mxu0 0.0
    %6160 = vmatpush1.msra.mxu0 0.0
    %6161 = vmatprep.subr.mxu0 0.0
    %6162 = vmatpush1.msra.mxu0 0.0
    %6163 = vmatprep.subr.mxu0 0.0
    %6164 = vmatpush1.msra.mxu0 0.0
    %6165 = vmatprep.subr.mxu0 0.0
    %6166 = vmatpush1.msra.mxu0 0.0
    %6167 = vmatprep.mubr.f32.mxu0 0.0
    %6168 = vmatmul.mubr.f32.gmra.mrb[0].mxu0 %v6024
    %v6169 = vpop.f32.mrb[0].mxu0
    %v6170 = vadd.f32 0.0, %v6169
    %v6171 = vpop.f32.mrb[0].mxu0
    %6172 = vdwg.mxu0
    %v6173 = vadd.f32 %v3590, %v6170
    %v6174 = vxor.u32 %v6173, 2147483648
    %v6175 = vmul.f32 %v6174, 1.442695
    %v6176 = vpow.pop %v6175
    %v6177 = vadd.f32 %v6176, 1.0
    %v6178 = vrcp.pop %v6177
    %v6179 = vmul.f32 1.0, %v6178
    %6180 = vmatprep.subr.mxu0 0.0
    %6181 = vmatpush1.msra.mxu0 %v3331
    %6182 = vmatprep.subr.mxu0 0.0
    %6183 = vmatpush1.msra.mxu0 %v3332
    %6184 = vmatprep.subr.mxu0 0.0
    %6185 = vmatpush1.msra.mxu0 %v3333
    %6186 = vmatprep.subr.mxu0 0.0
    %6187 = vmatpush1.msra.mxu0 %v3334
    %6188 = vmatprep.subr.mxu0 0.0
    %6189 = vmatpush1.msra.mxu0 0.0
    %6190 = vmatprep.subr.mxu0 0.0
    %6191 = vmatpush1.msra.mxu0 0.0
    %6192 = vmatprep.subr.mxu0 0.0
    %6193 = vmatpush1.msra.mxu0 0.0
    %6194 = vmatprep.subr.mxu0 0.0
    %6195 = vmatpush1.msra.mxu0 0.0
    %6196 = vmatprep.subr.mxu0 0.0
    %6197 = vmatpush1.msra.mxu0 0.0
    %6198 = vmatprep.subr.mxu0 0.0
    %6199 = vmatpush1.msra.mxu0 0.0
    %6200 = vmatprep.subr.mxu0 0.0
    %6201 = vmatpush1.msra.mxu0 0.0
    %6202 = vmatprep.subr.mxu0 0.0
    %6203 = vmatpush1.msra.mxu0 0.0
    %6204 = vmatprep.subr.mxu0 0.0
    %6205 = vmatpush1.msra.mxu0 0.0
    %6206 = vmatprep.subr.mxu0 0.0
    %6207 = vmatpush1.msra.mxu0 0.0
    %6208 = vmatprep.subr.mxu0 0.0
    %6209 = vmatpush1.msra.mxu0 0.0
    %6210 = vmatprep.subr.mxu0 0.0
    %6211 = vmatpush1.msra.mxu0 0.0
    %6212 = vmatprep.subr.mxu0 0.0
    %6213 = vmatpush1.msra.mxu0 0.0
    %6214 = vmatprep.subr.mxu0 0.0
    %6215 = vmatpush1.msra.mxu0 0.0
    %6216 = vmatprep.subr.mxu0 0.0
    %6217 = vmatpush1.msra.mxu0 0.0
    %6218 = vmatprep.subr.mxu0 0.0
    %6219 = vmatpush1.msra.mxu0 0.0
    %6220 = vmatprep.subr.mxu0 0.0
    %6221 = vmatpush1.msra.mxu0 0.0
    %6222 = vmatprep.subr.mxu0 0.0
    %6223 = vmatpush1.msra.mxu0 0.0
    %6224 = vmatprep.subr.mxu0 0.0
    %6225 = vmatpush1.msra.mxu0 0.0
    %6226 = vmatprep.subr.mxu0 0.0
    %6227 = vmatpush1.msra.mxu0 0.0
    %6228 = vmatprep.subr.mxu0 0.0
    %6229 = vmatpush1.msra.mxu0 0.0
    %6230 = vmatprep.subr.mxu0 0.0
    %6231 = vmatpush1.msra.mxu0 0.0
    %6232 = vmatprep.subr.mxu0 0.0
    %6233 = vmatpush1.msra.mxu0 0.0
    %6234 = vmatprep.subr.mxu0 0.0
    %6235 = vmatpush1.msra.mxu0 0.0
    %6236 = vmatprep.subr.mxu0 0.0
    %6237 = vmatpush1.msra.mxu0 0.0
    %6238 = vmatprep.subr.mxu0 0.0
    %6239 = vmatpush1.msra.mxu0 0.0
    %6240 = vmatprep.subr.mxu0 0.0
    %6241 = vmatpush1.msra.mxu0 0.0
    %6242 = vmatprep.subr.mxu0 0.0
    %6243 = vmatpush1.msra.mxu0 0.0
    %6244 = vmatprep.mubr.f32.mxu0 0.0
    %6245 = vmatmul.mubr.f32.gmra.mrb[0].mxu0 %v6024
    %v6246 = vpop.f32.mrb[0].mxu0
    %v6247 = vadd.f32 0.0, %v6246
    %v6248 = vpop.f32.mrb[0].mxu0
    %6249 = vdwg.mxu0
    %v6250 = vadd.f32 %v3715, %v6247
    %v6251 = vtanh.pop %v6250
    %6252 = vmatprep.subr.mxu0 0.0
    %6253 = vmatpush1.msra.mxu0 %v3335
    %6254 = vmatprep.subr.mxu0 0.0
    %6255 = vmatpush1.msra.mxu0 %v3336
    %6256 = vmatprep.subr.mxu0 0.0
    %6257 = vmatpush1.msra.mxu0 %v3337
    %6258 = vmatprep.subr.mxu0 0.0
    %6259 = vmatpush1.msra.mxu0 %v3338
    %6260 = vmatprep.subr.mxu0 0.0
    %6261 = vmatpush1.msra.mxu0 0.0
    %6262 = vmatprep.subr.mxu0 0.0
    %6263 = vmatpush1.msra.mxu0 0.0
    %6264 = vmatprep.subr.mxu0 0.0
    %6265 = vmatpush1.msra.mxu0 0.0
    %6266 = vmatprep.subr.mxu0 0.0
    %6267 = vmatpush1.msra.mxu0 0.0
    %6268 = vmatprep.subr.mxu0 0.0
    %6269 = vmatpush1.msra.mxu0 0.0
    %6270 = vmatprep.subr.mxu0 0.0
    %6271 = vmatpush1.msra.mxu0 0.0
    %6272 = vmatprep.subr.mxu0 0.0
    %6273 = vmatpush1.msra.mxu0 0.0
    %6274 = vmatprep.subr.mxu0 0.0
    %6275 = vmatpush1.msra.mxu0 0.0
    %6276 = vmatprep.subr.mxu0 0.0
    %6277 = vmatpush1.msra.mxu0 0.0
    %6278 = vmatprep.subr.mxu0 0.0
    %6279 = vmatpush1.msra.mxu0 0.0
    %6280 = vmatprep.subr.mxu0 0.0
    %6281 = vmatpush1.msra.mxu0 0.0
    %6282 = vmatprep.subr.mxu0 0.0
    %6283 = vmatpush1.msra.mxu0 0.0
    %6284 = vmatprep.subr.mxu0 0.0
    %6285 = vmatpush1.msra.mxu0 0.0
    %6286 = vmatprep.subr.mxu0 0.0
    %6287 = vmatpush1.msra.mxu0 0.0
    %6288 = vmatprep.subr.mxu0 0.0
    %6289 = vmatpush1.msra.mxu0 0.0
    %6290 = vmatprep.subr.mxu0 0.0
    %6291 = vmatpush1.msra.mxu0 0.0
    %6292 = vmatprep.subr.mxu0 0.0
    %6293 = vmatpush1.msra.mxu0 0.0
    %6294 = vmatprep.subr.mxu0 0.0
    %6295 = vmatpush1.msra.mxu0 0.0
    %6296 = vmatprep.subr.mxu0 0.0
    %6297 = vmatpush1.msra.mxu0 0.0
    %6298 = vmatprep.subr.mxu0 0.0
    %6299 = vmatpush1.msra.mxu0 0.0
    %6300 = vmatprep.subr.mxu0 0.0
    %6301 = vmatpush1.msra.mxu0 0.0
    %6302 = vmatprep.subr.mxu0 0.0
    %6303 = vmatpush1.msra.mxu0 0.0
    %6304 = vmatprep.subr.mxu0 0.0
    %6305 = vmatpush1.msra.mxu0 0.0
    %6306 = vmatprep.subr.mxu0 0.0
    %6307 = vmatpush1.msra.mxu0 0.0
    %6308 = vmatprep.subr.mxu0 0.0
    %6309 = vmatpush1.msra.mxu0 0.0
    %6310 = vmatprep.subr.mxu0 0.0
    %6311 = vmatpush1.msra.mxu0 0.0
    %6312 = vmatprep.subr.mxu0 0.0
    %6313 = vmatpush1.msra.mxu0 0.0
    %6314 = vmatprep.subr.mxu0 0.0
    %6315 = vmatpush1.msra.mxu0 0.0
    %6316 = vmatprep.mubr.f32.mxu0 0.0
    %6317 = vmatmul.mubr.f32.gmra.mrb[0].mxu0 %v6024
    %v6318 = vpop.f32.mrb[0].mxu0
    %v6319 = vadd.f32 0.0, %v6318
    %v6320 = vpop.f32.mrb[0].mxu0
    %6321 = vdwg.mxu0
    %v6322 = vadd.f32 %v3840, %v6319
    %v6323 = vxor.u32 %v6322, 2147483648
    %v6324 = vmul.f32 %v6323, 1.442695
    %v6325 = vpow.pop %v6324
    %v6326 = vadd.f32 %v6325, 1.0
    %v6327 = vrcp.pop %v6326
    %v6328 = vmul.f32 1.0, %v6327
    %v6329 = vmul.f32 %v6179, %v6020
    %v6330 = vmul.f32 %v6102, %v6251
    %v6331 = vadd.f32 %v6329, %v6330
    %v6332 = vtanh.pop %v6331
    %v6333 = vmul.f32 %v6328, %v6332
    %v6334 = vcombine.low %v4467, %v4467
    %v6336 = vunpack.c.l.s4 1983009808
    %v6337 = vunpack.c.0.s8 %v6336
    %v6338 = vlaneseq
    %v6339 = vshrl.u32 %v6338, 7
    %v6340 = vsub.s32 %v6337, %v6339
    %v6341 = vrot.slane %v6334, %v6340
    %v6344 = vunpack.c.l.s4 1983009808
    %v6345 = vunpack.c.0.s8 %v6344
    %v6346 = vlaneseq
    %v6347 = vshrl.u32 %v6346, 7
    %v6348 = vsub.s32 %v6345, %v6347
    %v6349 = vrot.slane %v4778, %v6348
    %v6350 = vcombine.low %v6349, %v6349
    %v6352 = vcombine.low %v5089, %v5089
    %v6354 = vunpack.c.l.s4 1983009808
    %v6355 = vunpack.c.0.s8 %v6354
    %v6356 = vlaneseq
    %v6357 = vshrl.u32 %v6356, 7
    %v6358 = vsub.s32 %v6355, %v6357
    %v6359 = vrot.slane %v6352, %v6358
    %v6360 = vcombine.low %v6359, %v6359
    %v6362 = vcombine.low %v5711, %v5711
    %v6364 = vunpack.c.l.s4 1983009808
    %v6365 = vunpack.c.0.s8 %v6364
    %v6366 = vlaneseq
    %v6367 = vshrl.u32 %v6366, 7
    %v6368 = vsub.s32 %v6365, %v6367
    %v6369 = vrot.slane %v6362, %v6368
    %v6372 = vunpack.c.l.s4 1983009808
    %v6373 = vunpack.c.0.s8 %v6372
    %v6374 = vlaneseq
    %v6375 = vshrl.u32 %v6374, 7
    %v6376 = vsub.s32 %v6373, %v6375
    %v6377 = vrot.slane %v6022, %v6376
    %v6378 = vcombine.low %v6377, %v6377
    %v6381 = vcombine.low %v6333, %v6333
    %v6383 = vunpack.c.l.s4 1983009808
    %v6384 = vunpack.c.0.s8 %v6383
    %v6385 = vlaneseq
    %v6386 = vshrl.u32 %v6385, 7
    %v6387 = vsub.s32 %v6384, %v6386
    %v6388 = vrot.slane %v6381, %v6387
    %v6389 = vcombine.low %v6388, %v6388
    %v6391 = vsel %vm3299, %v4156, %v6341
    %v6392 = vsel %vm246, %v6391, %v6350
    %v6393 = vsel %vm3302, %v6392, %v6360
    %v6394 = vsel %vm3299, %v5400, %v6369
    %v6395 = vsel %vm246, %v6394, %v6378
    %v6396 = vsel %vm3302, %v6395, %v6389
    %v6397 = vld [vmem:[%s7] sm:$0xff]
    %v6398 = vld [vmem:[%s7 + $0x8] sm:$0xff]
    %v6399 = vld [vmem:[%s7 + $0x10] sm:$0xff]
    %v6400 = vld [vmem:[%s7 + $0x18] sm:$0xff]
    %v6401 = vld [vmem:[%s8] sm:$0x1]
    %v6403 = vlaneseq
    %v6404 = vshrl.u32 %v6403, 7
    %v6405 = vsub.s32 0, %v6404
    %v6406 = vrot.slane %v6401, %v6405
    %v6409 = vsel %vm753, %v6393, 0
    %v6412 = vsel %vm753, %v6396, 0
    %6414 = vmatprep.subr.mxu0 0.0
    %6415 = vmatpush1.msra.mxu0 %v6397
    %6416 = vmatprep.subr.mxu0 0.0
    %6417 = vmatpush1.msra.mxu0 %v6398
    %6418 = vmatprep.subr.mxu0 0.0
    %6419 = vmatpush1.msra.mxu0 %v6399
    %6420 = vmatprep.subr.mxu0 0.0
    %6421 = vmatpush1.msra.mxu0 %v6400
    %6422 = vmatprep.subr.mxu0 0.0
    %6423 = vmatpush1.msra.mxu0 0.0
    %6424 = vmatprep.subr.mxu0 0.0
    %6425 = vmatpush1.msra.mxu0 0.0
    %6426 = vmatprep.subr.mxu0 0.0
    %6427 = vmatpush1.msra.mxu0 0.0
    %6428 = vmatprep.subr.mxu0 0.0
    %6429 = vmatpush1.msra.mxu0 0.0
    %6430 = vmatprep.subr.mxu0 0.0
    %6431 = vmatpush1.msra.mxu0 0.0
    %6432 = vmatprep.subr.mxu0 0.0
    %6433 = vmatpush1.msra.mxu0 0.0
    %6434 = vmatprep.subr.mxu0 0.0
    %6435 = vmatpush1.msra.mxu0 0.0
    %6436 = vmatprep.subr.mxu0 0.0
    %6437 = vmatpush1.msra.mxu0 0.0
    %6438 = vmatprep.subr.mxu0 0.0
    %6439 = vmatpush1.msra.mxu0 0.0
    %6440 = vmatprep.subr.mxu0 0.0
    %6441 = vmatpush1.msra.mxu0 0.0
    %6442 = vmatprep.subr.mxu0 0.0
    %6443 = vmatpush1.msra.mxu0 0.0
    %6444 = vmatprep.subr.mxu0 0.0
    %6445 = vmatpush1.msra.mxu0 0.0
    %6446 = vmatprep.subr.mxu0 0.0
    %6447 = vmatpush1.msra.mxu0 0.0
    %6448 = vmatprep.subr.mxu0 0.0
    %6449 = vmatpush1.msra.mxu0 0.0
    %6450 = vmatprep.subr.mxu0 0.0
    %6451 = vmatpush1.msra.mxu0 0.0
    %6452 = vmatprep.subr.mxu0 0.0
    %6453 = vmatpush1.msra.mxu0 0.0
    %6454 = vmatprep.subr.mxu0 0.0
    %6455 = vmatpush1.msra.mxu0 0.0
    %6456 = vmatprep.subr.mxu0 0.0
    %6457 = vmatpush1.msra.mxu0 0.0
    %6458 = vmatprep.subr.mxu0 0.0
    %6459 = vmatpush1.msra.mxu0 0.0
    %6460 = vmatprep.subr.mxu0 0.0
    %6461 = vmatpush1.msra.mxu0 0.0
    %6462 = vmatprep.subr.mxu0 0.0
    %6463 = vmatpush1.msra.mxu0 0.0
    %6464 = vmatprep.subr.mxu0 0.0
    %6465 = vmatpush1.msra.mxu0 0.0
    %6466 = vmatprep.subr.mxu0 0.0
    %6467 = vmatpush1.msra.mxu0 0.0
    %6468 = vmatprep.subr.mxu0 0.0
    %6469 = vmatpush1.msra.mxu0 0.0
    %6470 = vmatprep.subr.mxu0 0.0
    %6471 = vmatpush1.msra.mxu0 0.0
    %6472 = vmatprep.subr.mxu0 0.0
    %6473 = vmatpush1.msra.mxu0 0.0
    %6474 = vmatprep.subr.mxu0 0.0
    %6475 = vmatpush1.msra.mxu0 0.0
    %6476 = vmatprep.subr.mxu0 0.0
    %6477 = vmatpush1.msra.mxu0 0.0
    %6478 = vmatprep.mubr.f32.mxu0 0.0
    %6479 = vmatmul.mubr.f32.gmra.mrb[0].mxu0 %v6409
    %v6480 = vpop.f32.mrb[0].mxu0
    %v6481 = vadd.f32 %v6406, %v6480
    %v6482 = vpop.f32.mrb[0].mxu0
    %6483 = vmatprep.mubr.f32.mxu0 0.0
    %6484 = vmatmul.mubr.f32.gmra.mrb[0].mxu0 %v6412
    %v6485 = vpop.f32.mrb[0].mxu0
    %v6486 = vadd.f32 %v6406, %v6485
    %v6487 = vpop.f32.mrb[0].mxu0
    %6488 = vdwg.mxu0
    %v6491 = vcombine.high %v6481, %v6481
    %v6493 = vunpack.c.l.s4 1983009808
    %v6494 = vunpack.c.0.s8 %v6493
    %v6495 = vlaneseq
    %v6496 = vshrl.u32 %v6495, 7
    %v6497 = vsub.s32 %v6494, %v6496
    %v6498 = vrot.slane %v6481, %v6497
    %v6500 = vunpack.c.l.s4 1983009808
    %v6501 = vunpack.c.0.s8 %v6500
    %v6502 = vlaneseq
    %v6503 = vshrl.u32 %v6502, 7
    %v6504 = vsub.s32 %v6501, %v6503
    %v6505 = vrot.slane %v6491, %v6504
    %v6506 = vcombine.high %v6498, %v6498
    %v6507 = vcombine.high %v6505, %v6505
    %v6508 = vcombine.high %v6486, %v6486
    %v6510 = vunpack.c.l.s4 1983009808
    %v6511 = vunpack.c.0.s8 %v6510
    %v6512 = vlaneseq
    %v6513 = vshrl.u32 %v6512, 7
    %v6514 = vsub.s32 %v6511, %v6513
    %v6515 = vrot.slane %v6486, %v6514
    %v6517 = vunpack.c.l.s4 1983009808
    %v6518 = vunpack.c.0.s8 %v6517
    %v6519 = vlaneseq
    %v6520 = vshrl.u32 %v6519, 7
    %v6521 = vsub.s32 %v6518, %v6520
    %v6522 = vrot.slane %v6508, %v6521
    %v6523 = vcombine.high %v6515, %v6515
    %v6524 = vcombine.high %v6522, %v6522
    %v6533 = vcombine.low %v6498, %v6506
    %v6535 = vunpack.c.l.s4 1934713408
    %v6536 = vunpack.c.0.s8 %v6535
    %v6537 = vlaneseq
    %v6538 = vshrl.u32 %v6537, 7
    %v6539 = vsub.s32 %v6536, %v6538
    %v6540 = vrot.slane %v6533, %v6539
    %v6541 = vcombine.high %v6540, 0.0
    %v6542 = vcombine.low %v6505, %v6507
    %v6544 = vunpack.c.l.s4 1934713408
    %v6545 = vunpack.c.0.s8 %v6544
    %v6546 = vlaneseq
    %v6547 = vshrl.u32 %v6546, 7
    %v6548 = vsub.s32 %v6545, %v6547
    %v6549 = vrot.slane %v6542, %v6548
    %v6550 = vcombine.high %v6549, 0.0
    %v6551 = vcombine.low %v6515, %v6523
    %v6553 = vunpack.c.l.s4 1934713408
    %v6554 = vunpack.c.0.s8 %v6553
    %v6555 = vlaneseq
    %v6556 = vshrl.u32 %v6555, 7
    %v6557 = vsub.s32 %v6554, %v6556
    %v6558 = vrot.slane %v6551, %v6557
    %v6559 = vcombine.high %v6558, 0.0
    %v6560 = vcombine.low %v6522, %v6524
    %v6562 = vunpack.c.l.s4 1934713408
    %v6563 = vunpack.c.0.s8 %v6562
    %v6564 = vlaneseq
    %v6565 = vshrl.u32 %v6564, 7
    %v6566 = vsub.s32 %v6563, %v6565
    %v6567 = vrot.slane %v6560, %v6566
    %v6568 = vcombine.high %v6567, 0.0
    %v6577 = vcombine.low %v6540, %v6549
    %v6578 = vcombine.low %v6558, %v6567
    %v6580 = vunpack.c.l.s4 1983009808
    %v6581 = vunpack.c.0.s8 %v6580
    %v6582 = vlaneseq
    %v6583 = vshrl.u32 %v6582, 7
    %v6584 = vsub.s32 %v6581, %v6583
    %v6585 = vrot.slane %v6577, %v6584
    %v6587 = vunpack.c.l.s4 1983009808
    %v6588 = vunpack.c.0.s8 %v6587
    %v6589 = vlaneseq
    %v6590 = vshrl.u32 %v6589, 7
    %v6591 = vsub.s32 %v6588, %v6590
    %v6592 = vrot.slane %v6578, %v6591
    %v6593 = vcombine.low %v6585, %v6592
    %v6594 = vcombine.low %v6541, %v6550
    %v6595 = vcombine.low %v6559, %v6568
    %v6597 = vunpack.c.l.s4 1983009808
    %v6598 = vunpack.c.0.s8 %v6597
    %v6599 = vlaneseq
    %v6600 = vshrl.u32 %v6599, 7
    %v6601 = vsub.s32 %v6598, %v6600
    %v6602 = vrot.slane %v6594, %v6601
    %v6604 = vunpack.c.l.s4 1983009808
    %v6605 = vunpack.c.0.s8 %v6604
    %v6606 = vlaneseq
    %v6607 = vshrl.u32 %v6606, 7
    %v6608 = vsub.s32 %v6605, %v6607
    %v6609 = vrot.slane %v6595, %v6608
    %v6610 = vcombine.low %v6602, %v6609
    %6613 = vst [vmem:[#allocation11] sm:$0xff] %v6593
    %6614 = vst [vmem:[#allocation11 + $0x8] sm:$0xff] %v6610
    // Predicated region
    $region58: #{tpu_custom_call.1} parent=1 // pred_check
      _
    $region59: #{tpu_custom_call.1} parent=1 // pred_check_branch
      %6616 = sbr.rel (0) target = $region61
    $region60: #{tpu_custom_call.1} parent=1 // pred_region
      %s6618 = ssub.s32 256, 256
      %6619 = vsyncadd [#allocation4], %s6618
      %s6620 = sshll.u32 [#allocation11], 4
      %s6621 = int_to_ptr.vmem [resolvable:$true] %s6620
      %6626 = dma.vmem_to_hbm [thread:$0]  %s6621, 256, %s9, [#allocation4], 128, 128, 8
    $region61: #{tpu_custom_call.1} parent=1 // pred_fallthru
      _
    // Predicated region
    $region62: #{tpu_custom_call.1} parent=1 // pred_check
      _
    $region63: #{tpu_custom_call.1} parent=1 // pred_check_branch
      %6628 = sbr.rel (0) target = $region65
    $region64: #{tpu_custom_call.1} parent=1 // pred_region
      %6629 = dma.done [#allocation4], 256
    $region65: #{tpu_custom_call.1} parent=1 // pred_fallthru
      _
    %6630 = vsyncpa [#allocation3], 1
    %6631 = vsyncpa [#allocation6], 1
    %6632 = vsyncpa [#allocation9], 1
    %6633 = vsyncpa [#allocation4], 1

</llo_original>
